<compile_context>
chip_gen: v7x
topology: tpu7x:2x2x1
jax: 0.10.0
libtpu: 0.0.40
codegen_flags: <defaults>
</compile_context>

<pallas_src>
import functools

import jax
import jax.numpy as jnp
from jax.experimental import pallas as pl
from jax.experimental.pallas import tpu as pltpu


# --------------------------------------------------------------------------
# In-kernel helpers (traced inside the Pallas kernel body).
# --------------------------------------------------------------------------
def _layernorm(x, gamma, beta, eps=1e-5):
    mean = jnp.mean(x, axis=-1, keepdims=True)
    var = jnp.mean((x - mean) ** 2, axis=-1, keepdims=True)
    return (x - mean) * jax.lax.rsqrt(var + eps) * gamma + beta


def _attention(x, k_h, v_h, bias, wq, bq, wo_h, bo, n_heads, head_size):
    """Batched MHA for one query tile; K/V already projected & head-split.

    x: [TQ, D] query-tile activations, k_h / v_h: [H, Lk, hs],
    bias: [1, Lk] additive mask (0 keep, -1e18 drop),
    wq: [D, D], bq: [1, D], wo_h: [H, hs, D], bo: [1, D].
    Returns (context [TQ, D], attention weights [H, TQ, Lk]).
    """
    H, hs = n_heads, head_size
    scale = 1.0 / jnp.sqrt(jnp.float32(hs))

    # One wide (N = D) query projection; fold 1/sqrt(hs) into Q so the scale
    # touches [TQ, D] instead of [H, TQ, Lk].
    q = (jnp.dot(x, wq, preferred_element_type=jnp.float32) + bq) * scale     # [TQ, D]
    q_h = jnp.stack([q[:, h * hs:(h + 1) * hs] for h in range(H)], axis=0)    # [H,TQ,hs]

    # Batched scores over all heads; K contracted on its feature axis
    # (no explicit transpose of K).
    s = jnp.einsum("hqd,hkd->hqk", q_h, k_h,
                   preferred_element_type=jnp.float32)                        # [H,TQ,Lk]
    s = s + bias[None, :, :]
    s = s - jnp.max(s, axis=-1, keepdims=True)
    e = jnp.exp(s)
    denom = jnp.sum(e, axis=-1, keepdims=True)
    # EUP reciprocal + one Newton step: ~f32 accuracy, divide off the VALU slot.
    r = pl.reciprocal(denom, approx=True)
    r = r * (2.0 - denom * r)
    aw = e * r                                                                # [H,TQ,Lk]

    ctx_h = jnp.einsum("hqk,hkd->hqd", aw, v_h,
                       preferred_element_type=jnp.float32)                    # [H,TQ,hs]
    # Output projection folded per head: H lane-dense (N = D) matmuls
    # accumulated in f32 -- no H-way lane concat / relayout.
    ctx = jnp.dot(ctx_h[0], wo_h[0], preferred_element_type=jnp.float32)
    for h in range(1, H):
        ctx = ctx + jnp.dot(ctx_h[h], wo_h[h], preferred_element_type=jnp.float32)
    ctx = ctx + bo
    return ctx, aw


# --------------------------------------------------------------------------
# Pallas kernel: grid = (batch, query_tile); K/V pre-projected, resident per b.
# --------------------------------------------------------------------------
def decoder_block_kernel(xq_ref, k1_ref, v1_ref, k2_ref, v2_ref, dbias_ref, sbias_ref,
                         wq1, bq1, wo1, bo1, g1, be1,
                         wq2, bq2, wo2, bo2, g2, be2,
                         wi, bi, wu, bu, g3, be3,
                         out_ref, attn_ref, *, n_heads, head_size):
    xq = xq_ref[0]          # [TQ, D]  query tile (also the residual input)
    dbias = dbias_ref[0]    # [1, Ld]  additive mask bias
    sbias = sbias_ref[0]    # [1, Ls]

    # --- masked multi-head self-attention + residual + LayerNorm ---
    sa, _ = _attention(xq, k1_ref[0], v1_ref[0], dbias,
                       wq1[...], bq1[...], wo1[...], bo1[...],
                       n_heads, head_size)
    x1 = _layernorm(sa + xq, g1[...], be1[...])

    # --- cross multi-head attention + residual + LayerNorm ---
    ca, aw = _attention(x1, k2_ref[0], v2_ref[0], sbias,
                        wq2[...], bq2[...], wo2[...], bo2[...],
                        n_heads, head_size)
    x2 = _layernorm(ca + x1, g2[...], be2[...])

    # --- position-wise feed-forward + residual + LayerNorm ---
    hmid = jnp.maximum(
        jnp.dot(x2, wi[...], preferred_element_type=jnp.float32) + bi[...], 0.0)
    ff = jnp.dot(hmid, wu[...], preferred_element_type=jnp.float32) + bu[...]
    x3 = _layernorm(ff + x2, g3[...], be3[...])

    out_ref[0] = x3.astype(out_ref.dtype)
    attn_ref[0] = aw.astype(attn_ref.dtype)   # single lane-dense [H, TQ, Ls] store


# --------------------------------------------------------------------------
# VMEM budgeting helpers (generation-aware).
# --------------------------------------------------------------------------
def _vmem_capacity_bytes():
    try:
        cap = int(pltpu.get_tpu_info().vmem_capacity_bytes)
        if cap > 0:
            return cap
    except Exception:
        pass
    return 64 * 2 ** 20   # conservative fallback (v7x per-core VMEM)


def _padded_bytes(shape, itemsize=4):
    """f32 VMEM footprint with (8, 128) tiling on the trailing two dims."""
    dims = [int(d) for d in shape] or [1]
    dims[-1] = -(-dims[-1] // 128) * 128
    if len(dims) >= 2:
        dims[-2] = -(-dims[-2] // 8) * 8
    n = 1
    for d in dims:
        n *= d
    return n * itemsize


def _estimate_vmem(tq, ld, ls, d, h, hs, hidden, param_bytes):
    """Rough per-step VMEM: params + double-buffered I/O blocks + intermediates."""
    data = (_padded_bytes((tq, d)) + 2 * _padded_bytes((h, ld, hs))
            + 2 * _padded_bytes((h, ls, hs))
            + _padded_bytes((1, ld)) + _padded_bytes((1, ls)))
    outs = _padded_bytes((tq, d)) + _padded_bytes((h, tq, ls))
    inter = (3 * h * _padded_bytes((tq, max(ld, ls)))      # scores / exp / aw
             + 4 * h * _padded_bytes((tq, hs))             # q_h / ctx_h (both attns)
             + _padded_bytes((tq, hidden)) + 5 * _padded_bytes((tq, d)))
    return param_bytes + 2 * (data + outs) + inter


# --------------------------------------------------------------------------
# Wrapper
# --------------------------------------------------------------------------
def decoder_block(dest, src, dest_mask, src_mask, params, n_heads, *,
                  q_block=None, attn_dtype=jnp.float32):
    B, Ld, D = dest.shape
    _, Ls, _ = src.shape
    H = n_heads
    hs = D // H

    (wq1, bq1, wk1, bk1, wv1, bv1, wo1, bo1, g1, be1,
     wq2, bq2, wk2, bk2, wv2, bv2, wo2, bo2, g2, be2,
     wi, bi, wu, bu, g3, be3) = params
    hidden = wi.shape[1]

    # Params resident every grid step (output projections pre-split per head
    # so the kernel can fold them into the context accumulate).
    packed = [wq1, bq1, wo1.reshape(H, hs, D), bo1, g1, be1,
              wq2, bq2, wo2.reshape(H, hs, D), bo2, g2, be2,
              wi, bi, wu, bu, g3, be3]
    param_bytes = sum(_padded_bytes(p.shape) for p in packed)

    # ---- generation-aware VMEM budget & query-tile size --------------------
    cap = _vmem_capacity_bytes()
    usable = max(32 << 20, cap - (8 << 20))       # headroom below physical VMEM

    if q_block is not None:
        TQ = int(q_block)
    else:
        TQ = 256 if cap >= (100 << 20) else 128   # bigger tiles on v5e/v6e (128 MiB)
    TQ = min(TQ, Ld)
    if TQ < Ld:
        TQ = max(8, (TQ // 8) * 8)
        while TQ > 8:
            ld_pad = -(-Ld // TQ) * TQ
            if _estimate_vmem(TQ, ld_pad, Ls, D, H, hs, hidden, param_bytes) <= usable:
                break
            TQ = max(8, (TQ // 2 // 8) * 8)
    else:
        TQ = Ld
    Ld_p = Ld if TQ == Ld else -(-Ld // TQ) * TQ
    nq = Ld_p // TQ
    # TODO(synk): flash-style K/V tiling (online softmax) for very long Ld/Ls
    # (>= ~2-4K) so the [H, TQ, Lk] scores stay bounded on v7x's 64 MiB VMEM.

    # ---- hoisted K/V projections (plain XLA GEMMs, head-split layout) ------
    def kv_heads(x, w, b):                    # [B, L, D] -> [B, H, L, hs]
        y = jnp.einsum("bld,de->ble", x, w) + b
        return y.reshape(x.shape[0], x.shape[1], H, hs).transpose(0, 2, 1, 3)

    # Additive mask bias: 0.0 kept, -1e18 masked (== masked_fill(mask == 0)).
    dbias = (dest_mask.astype(jnp.float32) - 1.0) * 1e18          # [B, Ld]
    sbias = (src_mask.astype(jnp.float32) - 1.0) * 1e18           # [B, Ls]

    dest_p = dest
    if Ld_p != Ld:
        dest_p = jnp.pad(dest, ((0, 0), (0, Ld_p - Ld), (0, 0)))
        dbias = jnp.pad(dbias, ((0, 0), (0, Ld_p - Ld)), constant_values=-1e18)

    k1 = kv_heads(dest_p, wk1, bk1)            # [B, H, Ld_p, hs]
    v1 = kv_heads(dest_p, wv1, bv1)
    k2 = kv_heads(src, wk2, bk2)               # [B, H, Ls, hs]
    v2 = kv_heads(src, wv2, bv2)
    dbias = dbias.reshape(B, 1, Ld_p)
    sbias = sbias.reshape(B, 1, Ls)

    # ---- specs --------------------------------------------------------------
    data_specs = [
        pl.BlockSpec((1, TQ, D), lambda b, q: (b, q, 0)),           # dest query tile
        pl.BlockSpec((1, H, Ld_p, hs), lambda b, q: (b, 0, 0, 0)),  # K (self)
        pl.BlockSpec((1, H, Ld_p, hs), lambda b, q: (b, 0, 0, 0)),  # V (self)
        pl.BlockSpec((1, H, Ls, hs), lambda b, q: (b, 0, 0, 0)),    # K (cross)
        pl.BlockSpec((1, H, Ls, hs), lambda b, q: (b, 0, 0, 0)),    # V (cross)
        pl.BlockSpec((1, 1, Ld_p), lambda b, q: (b, 0, 0)),         # dest mask bias
        pl.BlockSpec((1, 1, Ls), lambda b, q: (b, 0, 0)),           # src mask bias
    ]

    def param_specs(single_buffer):
        # Constant index maps -> no re-fetch; Buffered(1) halves their VMEM.
        kwargs = {"pipeline_mode": pl.Buffered(1)} if single_buffer else {}
        return [pl.BlockSpec(p.shape, lambda b, q, n=p.ndim: (0,) * n, **kwargs)
                for p in packed]

    out_shapes = (
        jax.ShapeDtypeStruct((B, Ld_p, D), jnp.float32),
        jax.ShapeDtypeStruct((B, H, Ld_p, Ls), attn_dtype),
    )
    out_specs = (
        pl.BlockSpec((1, TQ, D), lambda b, q: (b, q, 0)),
        pl.BlockSpec((1, H, TQ, Ls), lambda b, q: (b, 0, q, 0)),
    )

    kernel = functools.partial(decoder_block_kernel, n_heads=H, head_size=hs)

    def call(single_buffer_params):
        return pl.pallas_call(
            kernel,
            out_shape=out_shapes,
            grid=(B, nq),
            in_specs=data_specs + param_specs(single_buffer_params),
            out_specs=out_specs,
            compiler_params=pltpu.CompilerParams(
                dimension_semantics=("parallel", "parallel"),
                vmem_limit_bytes=int(usable)),
        )(dest_p, k1, v1, k2, v2, dbias, sbias, *packed)

    try:
        out, attn = call(True)
        out = jax.block_until_ready(out)
        attn = jax.block_until_ready(attn)
    except Exception:
        # Fallback if single-buffered params (pl.Buffered(1)) are unsupported.
        out, attn = call(False)

    if Ld_p != Ld:
        out = out[:, :Ld]
        attn = attn[:, :, :Ld]
    return out, attn


# --------------------------------------------------------------------------
# Pure-JAX reference (mirrors the PyTorch forward) for verification.
# --------------------------------------------------------------------------
def _ref_forward(dest, src, dest_mask, src_mask, params, n_heads):
    (wq1, bq1, wk1, bk1, wv1, bv1, wo1, bo1, g1, be1,
     wq2, bq2, wk2, bk2, wv2, bv2, wo2, bo2, g2, be2,
     wi, bi, wu, bu, g3, be3) = params
    D = dest.shape[-1]
    hs = D // n_heads

    def ln(x, g, b, eps=1e-5):
        m = jnp.mean(x, -1, keepdims=True)
        v = jnp.mean((x - m) ** 2, -1, keepdims=True)
        return (x - m) / jnp.sqrt(v + eps) * g + b

    def mha(q, k, v, mask, wq, bq, wk, bk, wv, bv, wo, bo):
        B, Lq, _ = q.shape
        Lk = k.shape[1]
        Q = (q @ wq + bq).reshape(B, Lq, n_heads, hs).transpose(0, 2, 1, 3)
        K = (k @ wk + bk).reshape(B, Lk, n_heads, hs).transpose(0, 2, 1, 3)
        V = (v @ wv + bv).reshape(B, Lk, n_heads, hs).transpose(0, 2, 1, 3)
        scores = jnp.einsum("bhqd,bhkd->bhqk", Q, K) / jnp.sqrt(jnp.float32(hs))
        scores = jnp.where(mask[:, None, None, :] == 0, -1e18, scores)
        aw = jax.nn.softmax(scores, axis=-1)
        ctx = jnp.einsum("bhqk,bhkd->bhqd", aw, V)
        ctx = ctx.transpose(0, 2, 1, 3).reshape(B, Lq, D) @ wo + bo
        return ctx, aw

    sa, _ = mha(dest, dest, dest, dest_mask, wq1, bq1, wk1, bk1, wv1, bv1, wo1, bo1)
    x1 = ln(sa + dest, g1, be1)
    ca, aw = mha(x1, src, src, src_mask, wq2, bq2, wk2, bk2, wv2, bv2, wo2, bo2)
    x2 = ln(ca + x1, g2, be2)
    ff = jnp.maximum(x2 @ wi + bi, 0.0) @ wu + bu
    x3 = ln(ff + x2, g3, be3)
    return x3, aw


# --------------------------------------------------------------------------
# Deterministic parameter / input construction and test.
# --------------------------------------------------------------------------
def _make_params(key, d_model, hidden_size):
    ks = iter(jax.random.split(key, 40))

    def w(shape, scale=0.1):
        return (scale * jax.random.normal(next(ks), shape)).astype(jnp.float32)

    def lin(din, dout):
        return w((din, dout)), w((1, dout))

    params = []
    # masked self-attention: Wq, bq, Wk, bk, Wv, bv, Wo, bo
    for _ in range(4):
        params.extend(lin(d_model, d_model))
    # LayerNorm 1
    params.append((1.0 + w((1, d_model))).astype(jnp.float32))
    params.append(w((1, d_model)))
    # cross attention
    for _ in range(4):
        params.extend(lin(d_model, d_model))
    # LayerNorm 2
    params.append((1.0 + w((1, d_model))).astype(jnp.float32))
    params.append(w((1, d_model)))
    # FFN
    params.extend(lin(d_model, hidden_size))
    params.extend(lin(hidden_size, d_model))
    # LayerNorm 3
    params.append((1.0 + w((1, d_model))).astype(jnp.float32))
    params.append(w((1, d_model)))
    return params


if __name__ == "__main__":
    B, Ld, Ls = 2, 8, 16
    d_model, n_heads, hidden_size = 32, 4, 64

    key = jax.random.PRNGKey(0)
    kd, ksrc, kp = jax.random.split(key, 3)

    dest = jax.random.normal(kd, (B, Ld, d_model), dtype=jnp.float32)
    src = jax.random.normal(ksrc, (B, Ls, d_model), dtype=jnp.float32)
    # masks: 1 = keep, 0 = masked (mask out the tail positions of batch 1)
    dest_mask = jnp.ones((B, Ld), jnp.float32).at[1, Ld - 2:].set(0.0)
    src_mask = jnp.ones((B, Ls), jnp.float32).at[1, Ls - 4:].set(0.0)

    params = _make_params(kp, d_model, hidden_size)

    out, attn = decoder_block(dest, src, dest_mask, src_mask, params, n_heads)
    out = jax.block_until_ready(out)
    attn = jax.block_until_ready(attn)

    ref_out, ref_attn = _ref_forward(dest, src, dest_mask, src_mask, params, n_heads)

    assert out.shape == (B, Ld, d_model)
    assert attn.shape == (B, n_heads, Ld, Ls)
    assert jnp.allclose(out, ref_out, atol=2e-4, rtol=2e-4), "output mismatch"
    assert jnp.allclose(attn, ref_attn, atol=2e-4, rtol=2e-4), "attn mismatch"

    # Second check: exercises the query-tiling + ragged-Ld padding path.
    Ld2 = 20
    dest2 = jax.random.normal(jax.random.PRNGKey(1), (B, Ld2, d_model),
                              dtype=jnp.float32)
    dmask2 = jnp.ones((B, Ld2), jnp.float32).at[0, Ld2 - 3:].set(0.0)
    out2, attn2 = decoder_block(dest2, src, dmask2, src_mask, params, n_heads,
                                q_block=8)
    out2 = jax.block_until_ready(out2)
    attn2 = jax.block_until_ready(attn2)
    ref_out2, ref_attn2 = _ref_forward(dest2, src, dmask2, src_mask, params, n_heads)
    assert out2.shape == (B, Ld2, d_model)
    assert attn2.shape == (B, n_heads, Ld2, Ls)
    assert jnp.allclose(out2, ref_out2, atol=2e-4, rtol=2e-4), "tiled output mismatch"
    assert jnp.allclose(attn2, ref_attn2, atol=2e-4, rtol=2e-4), "tiled attn mismatch"

    print("KERNEL_OK")
</pallas_src>

<mosaic_0001>
module attributes {stable_mosaic.version = 11 : i64} {
  func.func @decoder_block_kernel(%arg0: i32, %arg1: i32, %arg2: memref<1x8x32xf32, #tpu.memory_space<vmem>>, %arg3: memref<1x4x8x8xf32, #tpu.memory_space<vmem>>, %arg4: memref<1x4x8x8xf32, #tpu.memory_space<vmem>>, %arg5: memref<1x4x16x8xf32, #tpu.memory_space<vmem>>, %arg6: memref<1x4x16x8xf32, #tpu.memory_space<vmem>>, %arg7: memref<1x1x8xf32, #tpu.memory_space<vmem>>, %arg8: memref<1x1x16xf32, #tpu.memory_space<vmem>>, %arg9: memref<32x32xf32, #tpu.memory_space<vmem>>, %arg10: memref<1x32xf32, #tpu.memory_space<vmem>>, %arg11: memref<4x8x32xf32, #tpu.memory_space<vmem>>, %arg12: memref<1x32xf32, #tpu.memory_space<vmem>>, %arg13: memref<1x32xf32, #tpu.memory_space<vmem>>, %arg14: memref<1x32xf32, #tpu.memory_space<vmem>>, %arg15: memref<32x32xf32, #tpu.memory_space<vmem>>, %arg16: memref<1x32xf32, #tpu.memory_space<vmem>>, %arg17: memref<4x8x32xf32, #tpu.memory_space<vmem>>, %arg18: memref<1x32xf32, #tpu.memory_space<vmem>>, %arg19: memref<1x32xf32, #tpu.memory_space<vmem>>, %arg20: memref<1x32xf32, #tpu.memory_space<vmem>>, %arg21: memref<32x64xf32, #tpu.memory_space<vmem>>, %arg22: memref<1x64xf32, #tpu.memory_space<vmem>>, %arg23: memref<64x32xf32, #tpu.memory_space<vmem>>, %arg24: memref<1x32xf32, #tpu.memory_space<vmem>>, %arg25: memref<1x32xf32, #tpu.memory_space<vmem>>, %arg26: memref<1x32xf32, #tpu.memory_space<vmem>>, %arg27: memref<1x8x32xf32, #tpu.memory_space<vmem>>, %arg28: memref<1x4x8x16xf32, #tpu.memory_space<vmem>>) attributes {dimension_semantics = [#tpu.dimension_semantics<parallel>, #tpu.dimension_semantics<parallel>], iteration_bounds = array<i64: 2, 1>, scalar_prefetch = 0 : i64, scratch_operands = 0 : i64, tpu.core_type = #tpu.core_type<tc>, window_params = [{transform_indices = @transform_0, window_bounds = array<i64: 1, 8, 32>}, {transform_indices = @transform_1, window_bounds = array<i64: 1, 4, 8, 8>}, {transform_indices = @transform_2, window_bounds = array<i64: 1, 4, 8, 8>}, {transform_indices = @transform_3, window_bounds = array<i64: 1, 4, 16, 8>}, {transform_indices = @transform_4, window_bounds = array<i64: 1, 4, 16, 8>}, {transform_indices = @transform_5, window_bounds = array<i64: 1, 1, 8>}, {transform_indices = @transform_6, window_bounds = array<i64: 1, 1, 16>}, {pipeline_mode = #tpu.pipeline_mode<synchronous>, transform_indices = @transform_7, window_bounds = array<i64: 32, 32>}, {pipeline_mode = #tpu.pipeline_mode<synchronous>, transform_indices = @transform_8, window_bounds = array<i64: 1, 32>}, {pipeline_mode = #tpu.pipeline_mode<synchronous>, transform_indices = @transform_9, window_bounds = array<i64: 4, 8, 32>}, {pipeline_mode = #tpu.pipeline_mode<synchronous>, transform_indices = @transform_10, window_bounds = array<i64: 1, 32>}, {pipeline_mode = #tpu.pipeline_mode<synchronous>, transform_indices = @transform_11, window_bounds = array<i64: 1, 32>}, {pipeline_mode = #tpu.pipeline_mode<synchronous>, transform_indices = @transform_12, window_bounds = array<i64: 1, 32>}, {pipeline_mode = #tpu.pipeline_mode<synchronous>, transform_indices = @transform_13, window_bounds = array<i64: 32, 32>}, {pipeline_mode = #tpu.pipeline_mode<synchronous>, transform_indices = @transform_14, window_bounds = array<i64: 1, 32>}, {pipeline_mode = #tpu.pipeline_mode<synchronous>, transform_indices = @transform_15, window_bounds = array<i64: 4, 8, 32>}, {pipeline_mode = #tpu.pipeline_mode<synchronous>, transform_indices = @transform_16, window_bounds = array<i64: 1, 32>}, {pipeline_mode = #tpu.pipeline_mode<synchronous>, transform_indices = @transform_17, window_bounds = array<i64: 1, 32>}, {pipeline_mode = #tpu.pipeline_mode<synchronous>, transform_indices = @transform_18, window_bounds = array<i64: 1, 32>}, {pipeline_mode = #tpu.pipeline_mode<synchronous>, transform_indices = @transform_19, window_bounds = array<i64: 32, 64>}, {pipeline_mode = #tpu.pipeline_mode<synchronous>, transform_indices = @transform_20, window_bounds = array<i64: 1, 64>}, {pipeline_mode = #tpu.pipeline_mode<synchronous>, transform_indices = @transform_21, window_bounds = array<i64: 64, 32>}, {pipeline_mode = #tpu.pipeline_mode<synchronous>, transform_indices = @transform_22, window_bounds = array<i64: 1, 32>}, {pipeline_mode = #tpu.pipeline_mode<synchronous>, transform_indices = @transform_23, window_bounds = array<i64: 1, 32>}, {pipeline_mode = #tpu.pipeline_mode<synchronous>, transform_indices = @transform_24, window_bounds = array<i64: 1, 32>}, {transform_indices = @transform_25, window_bounds = array<i64: 1, 8, 32>}, {transform_indices = @transform_26, window_bounds = array<i64: 1, 4, 8, 16>}]} {
    %c0 = arith.constant 0 : index
    %c0_0 = arith.constant 0 : index
    %c0_1 = arith.constant 0 : index
    %0 = vector.load %arg2[%c0, %c0_0, %c0_1] : memref<1x8x32xf32, #tpu.memory_space<vmem>>, vector<1x8x32xf32>
    %1 = vector.shape_cast %0 : vector<1x8x32xf32> to vector<8x32xf32>
    %c0_2 = arith.constant 0 : index
    %c0_3 = arith.constant 0 : index
    %c0_4 = arith.constant 0 : index
    %2 = vector.load %arg7[%c0_2, %c0_3, %c0_4] : memref<1x1x8xf32, #tpu.memory_space<vmem>>, vector<1x1x8xf32>
    %3 = vector.shape_cast %2 : vector<1x1x8xf32> to vector<1x8xf32>
    %c0_5 = arith.constant 0 : index
    %c0_6 = arith.constant 0 : index
    %c0_7 = arith.constant 0 : index
    %4 = vector.load %arg8[%c0_5, %c0_6, %c0_7] : memref<1x1x16xf32, #tpu.memory_space<vmem>>, vector<1x1x16xf32>
    %5 = vector.shape_cast %4 : vector<1x1x16xf32> to vector<1x16xf32>
    %c0_8 = arith.constant 0 : index
    %c0_9 = arith.constant 0 : index
    %c0_10 = arith.constant 0 : index
    %c0_11 = arith.constant 0 : index
    %6 = vector.load %arg3[%c0_8, %c0_9, %c0_10, %c0_11] : memref<1x4x8x8xf32, #tpu.memory_space<vmem>>, vector<1x4x8x8xf32>
    %7 = vector.shape_cast %6 : vector<1x4x8x8xf32> to vector<4x8x8xf32>
    %c0_12 = arith.constant 0 : index
    %c0_13 = arith.constant 0 : index
    %c0_14 = arith.constant 0 : index
    %c0_15 = arith.constant 0 : index
    %8 = vector.load %arg4[%c0_12, %c0_13, %c0_14, %c0_15] : memref<1x4x8x8xf32, #tpu.memory_space<vmem>>, vector<1x4x8x8xf32>
    %9 = vector.shape_cast %8 : vector<1x4x8x8xf32> to vector<4x8x8xf32>
    %c0_16 = arith.constant 0 : index
    %c0_17 = arith.constant 0 : index
    %10 = vector.load %arg9[%c0_16, %c0_17] : memref<32x32xf32, #tpu.memory_space<vmem>>, vector<32x32xf32>
    %c0_18 = arith.constant 0 : index
    %c0_19 = arith.constant 0 : index
    %11 = vector.load %arg10[%c0_18, %c0_19] : memref<1x32xf32, #tpu.memory_space<vmem>>, vector<1x32xf32>
    %c0_20 = arith.constant 0 : index
    %c0_21 = arith.constant 0 : index
    %c0_22 = arith.constant 0 : index
    %12 = vector.load %arg11[%c0_20, %c0_21, %c0_22] : memref<4x8x32xf32, #tpu.memory_space<vmem>>, vector<4x8x32xf32>
    %c0_23 = arith.constant 0 : index
    %c0_24 = arith.constant 0 : index
    %13 = vector.load %arg12[%c0_23, %c0_24] : memref<1x32xf32, #tpu.memory_space<vmem>>, vector<1x32xf32>
    %cst = arith.constant 8.000000e+00 : f32
    %14 = math.sqrt %cst : f32
    %cst_25 = arith.constant 1.000000e+00 : f32
    %15 = arith.divf %cst_25, %14 : f32
    %cst_26 = arith.constant dense<0.000000e+00> : vector<8x32xf32>
    %16 = tpu.matmul %1, %10, %cst_26 {dimension_numbers = #tpu.dot_dimension_numbers<[1], [0], [0], [1], [0, 0, 1, 1], [], []>} : vector<8x32xf32>, vector<32x32xf32>, vector<8x32xf32> -> vector<8x32xf32>
    %17 = vector.broadcast %11 : vector<1x32xf32> to vector<8x32xf32>
    %18 = arith.addf %16, %17 : vector<8x32xf32>
    %19 = vector.broadcast %15 : f32 to vector<8x32xf32>
    %20 = arith.mulf %18, %19 : vector<8x32xf32>
    %21 = vector.extract_strided_slice %20 {offsets = [0, 0], sizes = [8, 8], strides = [1, 1]} : vector<8x32xf32> to vector<8x8xf32>
    %22 = vector.extract_strided_slice %20 {offsets = [0, 8], sizes = [8, 8], strides = [1, 1]} : vector<8x32xf32> to vector<8x8xf32>
    %23 = vector.extract_strided_slice %20 {offsets = [0, 16], sizes = [8, 8], strides = [1, 1]} : vector<8x32xf32> to vector<8x8xf32>
    %24 = vector.extract_strided_slice %20 {offsets = [0, 24], sizes = [8, 8], strides = [1, 1]} : vector<8x32xf32> to vector<8x8xf32>
    %25 = vector.shape_cast %21 : vector<8x8xf32> to vector<1x8x8xf32>
    %26 = vector.shape_cast %22 : vector<8x8xf32> to vector<1x8x8xf32>
    %27 = vector.shape_cast %23 : vector<8x8xf32> to vector<1x8x8xf32>
    %28 = vector.shape_cast %24 : vector<8x8xf32> to vector<1x8x8xf32>
    %29 = tpu.concatenate %25, %26, %27, %28 in 0 : vector<1x8x8xf32>, vector<1x8x8xf32>, vector<1x8x8xf32>, vector<1x8x8xf32> -> vector<4x8x8xf32>
    "tpu.trace_start"() <{level = 10 : i32, message = "hqd,hkd->hqk"}> : () -> ()
    %cst_27 = arith.constant dense<0.000000e+00> : vector<4x8x8xf32>
    %30 = tpu.matmul %29, %7, %cst_27 {dimension_numbers = #tpu.dot_dimension_numbers<[2], [2], [1], [1], [0, 0, 0, 1, 1, 1], [0], [0]>} : vector<4x8x8xf32>, vector<4x8x8xf32>, vector<4x8x8xf32> -> vector<4x8x8xf32>
    "tpu.trace_stop"() : () -> ()
    %31 = vector.shape_cast %3 : vector<1x8xf32> to vector<1x1x8xf32>
    %32 = vector.broadcast %31 : vector<1x1x8xf32> to vector<4x8x8xf32>
    %33 = arith.addf %30, %32 : vector<4x8x8xf32>
    %cst_28 = arith.constant dense<0xFF800000> : vector<4x8xf32>
    %34 = vector.multi_reduction <maximumf>, %33, %cst_28 [2] : vector<4x8x8xf32> to vector<4x8xf32>
    %35 = vector.shape_cast %34 : vector<4x8xf32> to vector<4x8x1xf32>
    %36 = vector.broadcast %35 : vector<4x8x1xf32> to vector<4x8x8xf32>
    %37 = arith.subf %33, %36 : vector<4x8x8xf32>
    %38 = math.exp %37 : vector<4x8x8xf32>
    %cst_29 = arith.constant dense<0.000000e+00> : vector<4x8xf32>
    %39 = vector.multi_reduction <add>, %38, %cst_29 [2] : vector<4x8x8xf32> to vector<4x8xf32>
    %40 = vector.shape_cast %39 : vector<4x8xf32> to vector<4x8x1xf32>
    %41 = tpu.reciprocal %40 {approx = true} : vector<4x8x1xf32> -> vector<4x8x1xf32>
    %42 = arith.mulf %40, %41 : vector<4x8x1xf32>
    %cst_30 = arith.constant 2.000000e+00 : f32
    %43 = vector.broadcast %cst_30 : f32 to vector<4x8x1xf32>
    %44 = arith.subf %43, %42 : vector<4x8x1xf32>
    %45 = arith.mulf %41, %44 : vector<4x8x1xf32>
    %46 = vector.broadcast %45 : vector<4x8x1xf32> to vector<4x8x8xf32>
    %47 = arith.mulf %38, %46 : vector<4x8x8xf32>
    "tpu.trace_start"() <{level = 10 : i32, message = "hqk,hkd->hqd"}> : () -> ()
    %cst_31 = arith.constant dense<0.000000e+00> : vector<4x8x8xf32>
    %48 = tpu.matmul %47, %9, %cst_31 {dimension_numbers = #tpu.dot_dimension_numbers<[2], [1], [1], [2], [0, 0, 0, 1, 1, 2], [0], [0]>} : vector<4x8x8xf32>, vector<4x8x8xf32>, vector<4x8x8xf32> -> vector<4x8x8xf32>
    "tpu.trace_stop"() : () -> ()
    %49 = vector.extract_strided_slice %48 {offsets = [0, 0, 0], sizes = [1, 8, 8], strides = [1, 1, 1]} : vector<4x8x8xf32> to vector<1x8x8xf32>
    %50 = vector.shape_cast %49 : vector<1x8x8xf32> to vector<8x8xf32>
    %51 = vector.extract_strided_slice %12 {offsets = [0, 0, 0], sizes = [1, 8, 32], strides = [1, 1, 1]} : vector<4x8x32xf32> to vector<1x8x32xf32>
    %52 = vector.shape_cast %51 : vector<1x8x32xf32> to vector<8x32xf32>
    %cst_32 = arith.constant dense<0.000000e+00> : vector<8x32xf32>
    %53 = tpu.matmul %50, %52, %cst_32 {dimension_numbers = #tpu.dot_dimension_numbers<[1], [0], [0], [1], [0, 0, 1, 1], [], []>} : vector<8x8xf32>, vector<8x32xf32>, vector<8x32xf32> -> vector<8x32xf32>
    %54 = vector.extract_strided_slice %48 {offsets = [1, 0, 0], sizes = [1, 8, 8], strides = [1, 1, 1]} : vector<4x8x8xf32> to vector<1x8x8xf32>
    %55 = vector.shape_cast %54 : vector<1x8x8xf32> to vector<8x8xf32>
    %56 = vector.extract_strided_slice %12 {offsets = [1, 0, 0], sizes = [1, 8, 32], strides = [1, 1, 1]} : vector<4x8x32xf32> to vector<1x8x32xf32>
    %57 = vector.shape_cast %56 : vector<1x8x32xf32> to vector<8x32xf32>
    %cst_33 = arith.constant dense<0.000000e+00> : vector<8x32xf32>
    %58 = tpu.matmul %55, %57, %cst_33 {dimension_numbers = #tpu.dot_dimension_numbers<[1], [0], [0], [1], [0, 0, 1, 1], [], []>} : vector<8x8xf32>, vector<8x32xf32>, vector<8x32xf32> -> vector<8x32xf32>
    %59 = arith.addf %53, %58 : vector<8x32xf32>
    %60 = vector.extract_strided_slice %48 {offsets = [2, 0, 0], sizes = [1, 8, 8], strides = [1, 1, 1]} : vector<4x8x8xf32> to vector<1x8x8xf32>
    %61 = vector.shape_cast %60 : vector<1x8x8xf32> to vector<8x8xf32>
    %62 = vector.extract_strided_slice %12 {offsets = [2, 0, 0], sizes = [1, 8, 32], strides = [1, 1, 1]} : vector<4x8x32xf32> to vector<1x8x32xf32>
    %63 = vector.shape_cast %62 : vector<1x8x32xf32> to vector<8x32xf32>
    %cst_34 = arith.constant dense<0.000000e+00> : vector<8x32xf32>
    %64 = tpu.matmul %61, %63, %cst_34 {dimension_numbers = #tpu.dot_dimension_numbers<[1], [0], [0], [1], [0, 0, 1, 1], [], []>} : vector<8x8xf32>, vector<8x32xf32>, vector<8x32xf32> -> vector<8x32xf32>
    %65 = arith.addf %59, %64 : vector<8x32xf32>
    %66 = vector.extract_strided_slice %48 {offsets = [3, 0, 0], sizes = [1, 8, 8], strides = [1, 1, 1]} : vector<4x8x8xf32> to vector<1x8x8xf32>
    %67 = vector.shape_cast %66 : vector<1x8x8xf32> to vector<8x8xf32>
    %68 = vector.extract_strided_slice %12 {offsets = [3, 0, 0], sizes = [1, 8, 32], strides = [1, 1, 1]} : vector<4x8x32xf32> to vector<1x8x32xf32>
    %69 = vector.shape_cast %68 : vector<1x8x32xf32> to vector<8x32xf32>
    %cst_35 = arith.constant dense<0.000000e+00> : vector<8x32xf32>
    %70 = tpu.matmul %67, %69, %cst_35 {dimension_numbers = #tpu.dot_dimension_numbers<[1], [0], [0], [1], [0, 0, 1, 1], [], []>} : vector<8x8xf32>, vector<8x32xf32>, vector<8x32xf32> -> vector<8x32xf32>
    %71 = arith.addf %65, %70 : vector<8x32xf32>
    %72 = vector.broadcast %13 : vector<1x32xf32> to vector<8x32xf32>
    %73 = arith.addf %71, %72 : vector<8x32xf32>
    %74 = arith.addf %73, %1 : vector<8x32xf32>
    %c0_36 = arith.constant 0 : index
    %c0_37 = arith.constant 0 : index
    %75 = vector.load %arg13[%c0_36, %c0_37] : memref<1x32xf32, #tpu.memory_space<vmem>>, vector<1x32xf32>
    %c0_38 = arith.constant 0 : index
    %c0_39 = arith.constant 0 : index
    %76 = vector.load %arg14[%c0_38, %c0_39] : memref<1x32xf32, #tpu.memory_space<vmem>>, vector<1x32xf32>
    %cst_40 = arith.constant dense<0.000000e+00> : vector<8xf32>
    %77 = vector.multi_reduction <add>, %74, %cst_40 [1] : vector<8x32xf32> to vector<8xf32>
    %78 = vector.shape_cast %77 : vector<8xf32> to vector<8x1xf32>
    %cst_41 = arith.constant 3.200000e+01 : f32
    %79 = vector.broadcast %cst_41 : f32 to vector<8x1xf32>
    %80 = arith.divf %78, %79 : vector<8x1xf32>
    %81 = vector.broadcast %80 : vector<8x1xf32> to vector<8x32xf32>
    %82 = arith.subf %74, %81 : vector<8x32xf32>
    %83 = arith.mulf %82, %82 : vector<8x32xf32>
    %cst_42 = arith.constant dense<0.000000e+00> : vector<8xf32>
    %84 = vector.multi_reduction <add>, %83, %cst_42 [1] : vector<8x32xf32> to vector<8xf32>
    %85 = vector.shape_cast %84 : vector<8xf32> to vector<8x1xf32>
    %cst_43 = arith.constant 3.200000e+01 : f32
    %86 = vector.broadcast %cst_43 : f32 to vector<8x1xf32>
    %87 = arith.divf %85, %86 : vector<8x1xf32>
    %88 = vector.broadcast %80 : vector<8x1xf32> to vector<8x32xf32>
    %89 = arith.subf %74, %88 : vector<8x32xf32>
    %cst_44 = arith.constant 9.99999974E-6 : f32
    %90 = vector.broadcast %cst_44 : f32 to vector<8x1xf32>
    %91 = arith.addf %87, %90 : vector<8x1xf32>
    %92 = math.rsqrt %91 : vector<8x1xf32>
    %93 = vector.broadcast %92 : vector<8x1xf32> to vector<8x32xf32>
    %94 = arith.mulf %89, %93 : vector<8x32xf32>
    %95 = vector.broadcast %75 : vector<1x32xf32> to vector<8x32xf32>
    %96 = arith.mulf %94, %95 : vector<8x32xf32>
    %97 = vector.broadcast %76 : vector<1x32xf32> to vector<8x32xf32>
    %98 = arith.addf %96, %97 : vector<8x32xf32>
    %c0_45 = arith.constant 0 : index
    %c0_46 = arith.constant 0 : index
    %c0_47 = arith.constant 0 : index
    %c0_48 = arith.constant 0 : index
    %99 = vector.load %arg5[%c0_45, %c0_46, %c0_47, %c0_48] : memref<1x4x16x8xf32, #tpu.memory_space<vmem>>, vector<1x4x16x8xf32>
    %100 = vector.shape_cast %99 : vector<1x4x16x8xf32> to vector<4x16x8xf32>
    %c0_49 = arith.constant 0 : index
    %c0_50 = arith.constant 0 : index
    %c0_51 = arith.constant 0 : index
    %c0_52 = arith.constant 0 : index
    %101 = vector.load %arg6[%c0_49, %c0_50, %c0_51, %c0_52] : memref<1x4x16x8xf32, #tpu.memory_space<vmem>>, vector<1x4x16x8xf32>
    %102 = vector.shape_cast %101 : vector<1x4x16x8xf32> to vector<4x16x8xf32>
    %c0_53 = arith.constant 0 : index
    %c0_54 = arith.constant 0 : index
    %103 = vector.load %arg15[%c0_53, %c0_54] : memref<32x32xf32, #tpu.memory_space<vmem>>, vector<32x32xf32>
    %c0_55 = arith.constant 0 : index
    %c0_56 = arith.constant 0 : index
    %104 = vector.load %arg16[%c0_55, %c0_56] : memref<1x32xf32, #tpu.memory_space<vmem>>, vector<1x32xf32>
    %c0_57 = arith.constant 0 : index
    %c0_58 = arith.constant 0 : index
    %c0_59 = arith.constant 0 : index
    %105 = vector.load %arg17[%c0_57, %c0_58, %c0_59] : memref<4x8x32xf32, #tpu.memory_space<vmem>>, vector<4x8x32xf32>
    %c0_60 = arith.constant 0 : index
    %c0_61 = arith.constant 0 : index
    %106 = vector.load %arg18[%c0_60, %c0_61] : memref<1x32xf32, #tpu.memory_space<vmem>>, vector<1x32xf32>
    %cst_62 = arith.constant 8.000000e+00 : f32
    %107 = math.sqrt %cst_62 : f32
    %cst_63 = arith.constant 1.000000e+00 : f32
    %108 = arith.divf %cst_63, %107 : f32
    %cst_64 = arith.constant dense<0.000000e+00> : vector<8x32xf32>
    %109 = tpu.matmul %98, %103, %cst_64 {dimension_numbers = #tpu.dot_dimension_numbers<[1], [0], [0], [1], [0, 0, 1, 1], [], []>} : vector<8x32xf32>, vector<32x32xf32>, vector<8x32xf32> -> vector<8x32xf32>
    %110 = vector.broadcast %104 : vector<1x32xf32> to vector<8x32xf32>
    %111 = arith.addf %109, %110 : vector<8x32xf32>
    %112 = vector.broadcast %108 : f32 to vector<8x32xf32>
    %113 = arith.mulf %111, %112 : vector<8x32xf32>
    %114 = vector.extract_strided_slice %113 {offsets = [0, 0], sizes = [8, 8], strides = [1, 1]} : vector<8x32xf32> to vector<8x8xf32>
    %115 = vector.extract_strided_slice %113 {offsets = [0, 8], sizes = [8, 8], strides = [1, 1]} : vector<8x32xf32> to vector<8x8xf32>
    %116 = vector.extract_strided_slice %113 {offsets = [0, 16], sizes = [8, 8], strides = [1, 1]} : vector<8x32xf32> to vector<8x8xf32>
    %117 = vector.extract_strided_slice %113 {offsets = [0, 24], sizes = [8, 8], strides = [1, 1]} : vector<8x32xf32> to vector<8x8xf32>
    %118 = vector.shape_cast %114 : vector<8x8xf32> to vector<1x8x8xf32>
    %119 = vector.shape_cast %115 : vector<8x8xf32> to vector<1x8x8xf32>
    %120 = vector.shape_cast %116 : vector<8x8xf32> to vector<1x8x8xf32>
    %121 = vector.shape_cast %117 : vector<8x8xf32> to vector<1x8x8xf32>
    %122 = tpu.concatenate %118, %119, %120, %121 in 0 : vector<1x8x8xf32>, vector<1x8x8xf32>, vector<1x8x8xf32>, vector<1x8x8xf32> -> vector<4x8x8xf32>
    "tpu.trace_start"() <{level = 10 : i32, message = "hqd,hkd->hqk"}> : () -> ()
    %cst_65 = arith.constant dense<0.000000e+00> : vector<4x8x16xf32>
    %123 = tpu.matmul %122, %100, %cst_65 {dimension_numbers = #tpu.dot_dimension_numbers<[2], [2], [1], [1], [0, 0, 0, 1, 1, 1], [0], [0]>} : vector<4x8x8xf32>, vector<4x16x8xf32>, vector<4x8x16xf32> -> vector<4x8x16xf32>
    "tpu.trace_stop"() : () -> ()
    %124 = vector.shape_cast %5 : vector<1x16xf32> to vector<1x1x16xf32>
    %125 = vector.broadcast %124 : vector<1x1x16xf32> to vector<4x8x16xf32>
    %126 = arith.addf %123, %125 : vector<4x8x16xf32>
    %cst_66 = arith.constant dense<0xFF800000> : vector<4x8xf32>
    %127 = vector.multi_reduction <maximumf>, %126, %cst_66 [2] : vector<4x8x16xf32> to vector<4x8xf32>
    %128 = vector.shape_cast %127 : vector<4x8xf32> to vector<4x8x1xf32>
    %129 = vector.broadcast %128 : vector<4x8x1xf32> to vector<4x8x16xf32>
    %130 = arith.subf %126, %129 : vector<4x8x16xf32>
    %131 = math.exp %130 : vector<4x8x16xf32>
    %cst_67 = arith.constant dense<0.000000e+00> : vector<4x8xf32>
    %132 = vector.multi_reduction <add>, %131, %cst_67 [2] : vector<4x8x16xf32> to vector<4x8xf32>
    %133 = vector.shape_cast %132 : vector<4x8xf32> to vector<4x8x1xf32>
    %134 = tpu.reciprocal %133 {approx = true} : vector<4x8x1xf32> -> vector<4x8x1xf32>
    %135 = arith.mulf %133, %134 : vector<4x8x1xf32>
    %cst_68 = arith.constant 2.000000e+00 : f32
    %136 = vector.broadcast %cst_68 : f32 to vector<4x8x1xf32>
    %137 = arith.subf %136, %135 : vector<4x8x1xf32>
    %138 = arith.mulf %134, %137 : vector<4x8x1xf32>
    %139 = vector.broadcast %138 : vector<4x8x1xf32> to vector<4x8x16xf32>
    %140 = arith.mulf %131, %139 : vector<4x8x16xf32>
    "tpu.trace_start"() <{level = 10 : i32, message = "hqk,hkd->hqd"}> : () -> ()
    %cst_69 = arith.constant dense<0.000000e+00> : vector<4x8x8xf32>
    %141 = tpu.matmul %140, %102, %cst_69 {dimension_numbers = #tpu.dot_dimension_numbers<[2], [1], [1], [2], [0, 0, 0, 1, 1, 2], [0], [0]>} : vector<4x8x16xf32>, vector<4x16x8xf32>, vector<4x8x8xf32> -> vector<4x8x8xf32>
    "tpu.trace_stop"() : () -> ()
    %142 = vector.extract_strided_slice %141 {offsets = [0, 0, 0], sizes = [1, 8, 8], strides = [1, 1, 1]} : vector<4x8x8xf32> to vector<1x8x8xf32>
    %143 = vector.shape_cast %142 : vector<1x8x8xf32> to vector<8x8xf32>
    %144 = vector.extract_strided_slice %105 {offsets = [0, 0, 0], sizes = [1, 8, 32], strides = [1, 1, 1]} : vector<4x8x32xf32> to vector<1x8x32xf32>
    %145 = vector.shape_cast %144 : vector<1x8x32xf32> to vector<8x32xf32>
    %cst_70 = arith.constant dense<0.000000e+00> : vector<8x32xf32>
    %146 = tpu.matmul %143, %145, %cst_70 {dimension_numbers = #tpu.dot_dimension_numbers<[1], [0], [0], [1], [0, 0, 1, 1], [], []>} : vector<8x8xf32>, vector<8x32xf32>, vector<8x32xf32> -> vector<8x32xf32>
    %147 = vector.extract_strided_slice %141 {offsets = [1, 0, 0], sizes = [1, 8, 8], strides = [1, 1, 1]} : vector<4x8x8xf32> to vector<1x8x8xf32>
    %148 = vector.shape_cast %147 : vector<1x8x8xf32> to vector<8x8xf32>
    %149 = vector.extract_strided_slice %105 {offsets = [1, 0, 0], sizes = [1, 8, 32], strides = [1, 1, 1]} : vector<4x8x32xf32> to vector<1x8x32xf32>
    %150 = vector.shape_cast %149 : vector<1x8x32xf32> to vector<8x32xf32>
    %cst_71 = arith.constant dense<0.000000e+00> : vector<8x32xf32>
    %151 = tpu.matmul %148, %150, %cst_71 {dimension_numbers = #tpu.dot_dimension_numbers<[1], [0], [0], [1], [0, 0, 1, 1], [], []>} : vector<8x8xf32>, vector<8x32xf32>, vector<8x32xf32> -> vector<8x32xf32>
    %152 = arith.addf %146, %151 : vector<8x32xf32>
    %153 = vector.extract_strided_slice %141 {offsets = [2, 0, 0], sizes = [1, 8, 8], strides = [1, 1, 1]} : vector<4x8x8xf32> to vector<1x8x8xf32>
    %154 = vector.shape_cast %153 : vector<1x8x8xf32> to vector<8x8xf32>
    %155 = vector.extract_strided_slice %105 {offsets = [2, 0, 0], sizes = [1, 8, 32], strides = [1, 1, 1]} : vector<4x8x32xf32> to vector<1x8x32xf32>
    %156 = vector.shape_cast %155 : vector<1x8x32xf32> to vector<8x32xf32>
    %cst_72 = arith.constant dense<0.000000e+00> : vector<8x32xf32>
    %157 = tpu.matmul %154, %156, %cst_72 {dimension_numbers = #tpu.dot_dimension_numbers<[1], [0], [0], [1], [0, 0, 1, 1], [], []>} : vector<8x8xf32>, vector<8x32xf32>, vector<8x32xf32> -> vector<8x32xf32>
    %158 = arith.addf %152, %157 : vector<8x32xf32>
    %159 = vector.extract_strided_slice %141 {offsets = [3, 0, 0], sizes = [1, 8, 8], strides = [1, 1, 1]} : vector<4x8x8xf32> to vector<1x8x8xf32>
    %160 = vector.shape_cast %159 : vector<1x8x8xf32> to vector<8x8xf32>
    %161 = vector.extract_strided_slice %105 {offsets = [3, 0, 0], sizes = [1, 8, 32], strides = [1, 1, 1]} : vector<4x8x32xf32> to vector<1x8x32xf32>
    %162 = vector.shape_cast %161 : vector<1x8x32xf32> to vector<8x32xf32>
    %cst_73 = arith.constant dense<0.000000e+00> : vector<8x32xf32>
    %163 = tpu.matmul %160, %162, %cst_73 {dimension_numbers = #tpu.dot_dimension_numbers<[1], [0], [0], [1], [0, 0, 1, 1], [], []>} : vector<8x8xf32>, vector<8x32xf32>, vector<8x32xf32> -> vector<8x32xf32>
    %164 = arith.addf %158, %163 : vector<8x32xf32>
    %165 = vector.broadcast %106 : vector<1x32xf32> to vector<8x32xf32>
    %166 = arith.addf %164, %165 : vector<8x32xf32>
    %167 = arith.addf %166, %98 : vector<8x32xf32>
    %c0_74 = arith.constant 0 : index
    %c0_75 = arith.constant 0 : index
    %168 = vector.load %arg19[%c0_74, %c0_75] : memref<1x32xf32, #tpu.memory_space<vmem>>, vector<1x32xf32>
    %c0_76 = arith.constant 0 : index
    %c0_77 = arith.constant 0 : index
    %169 = vector.load %arg20[%c0_76, %c0_77] : memref<1x32xf32, #tpu.memory_space<vmem>>, vector<1x32xf32>
    %cst_78 = arith.constant dense<0.000000e+00> : vector<8xf32>
    %170 = vector.multi_reduction <add>, %167, %cst_78 [1] : vector<8x32xf32> to vector<8xf32>
    %171 = vector.shape_cast %170 : vector<8xf32> to vector<8x1xf32>
    %cst_79 = arith.constant 3.200000e+01 : f32
    %172 = vector.broadcast %cst_79 : f32 to vector<8x1xf32>
    %173 = arith.divf %171, %172 : vector<8x1xf32>
    %174 = vector.broadcast %173 : vector<8x1xf32> to vector<8x32xf32>
    %175 = arith.subf %167, %174 : vector<8x32xf32>
    %176 = arith.mulf %175, %175 : vector<8x32xf32>
    %cst_80 = arith.constant dense<0.000000e+00> : vector<8xf32>
    %177 = vector.multi_reduction <add>, %176, %cst_80 [1] : vector<8x32xf32> to vector<8xf32>
    %178 = vector.shape_cast %177 : vector<8xf32> to vector<8x1xf32>
    %cst_81 = arith.constant 3.200000e+01 : f32
    %179 = vector.broadcast %cst_81 : f32 to vector<8x1xf32>
    %180 = arith.divf %178, %179 : vector<8x1xf32>
    %181 = vector.broadcast %173 : vector<8x1xf32> to vector<8x32xf32>
    %182 = arith.subf %167, %181 : vector<8x32xf32>
    %cst_82 = arith.constant 9.99999974E-6 : f32
    %183 = vector.broadcast %cst_82 : f32 to vector<8x1xf32>
    %184 = arith.addf %180, %183 : vector<8x1xf32>
    %185 = math.rsqrt %184 : vector<8x1xf32>
    %186 = vector.broadcast %185 : vector<8x1xf32> to vector<8x32xf32>
    %187 = arith.mulf %182, %186 : vector<8x32xf32>
    %188 = vector.broadcast %168 : vector<1x32xf32> to vector<8x32xf32>
    %189 = arith.mulf %187, %188 : vector<8x32xf32>
    %190 = vector.broadcast %169 : vector<1x32xf32> to vector<8x32xf32>
    %191 = arith.addf %189, %190 : vector<8x32xf32>
    %c0_83 = arith.constant 0 : index
    %c0_84 = arith.constant 0 : index
    %192 = vector.load %arg21[%c0_83, %c0_84] : memref<32x64xf32, #tpu.memory_space<vmem>>, vector<32x64xf32>
    %cst_85 = arith.constant dense<0.000000e+00> : vector<8x64xf32>
    %193 = tpu.matmul %191, %192, %cst_85 {dimension_numbers = #tpu.dot_dimension_numbers<[1], [0], [0], [1], [0, 0, 1, 1], [], []>} : vector<8x32xf32>, vector<32x64xf32>, vector<8x64xf32> -> vector<8x64xf32>
    %c0_86 = arith.constant 0 : index
    %c0_87 = arith.constant 0 : index
    %194 = vector.load %arg22[%c0_86, %c0_87] : memref<1x64xf32, #tpu.memory_space<vmem>>, vector<1x64xf32>
    %195 = vector.broadcast %194 : vector<1x64xf32> to vector<8x64xf32>
    %196 = arith.addf %193, %195 : vector<8x64xf32>
    %cst_88 = arith.constant 0.000000e+00 : f32
    %197 = vector.broadcast %cst_88 : f32 to vector<8x64xf32>
    %198 = arith.maximumf %196, %197 : vector<8x64xf32>
    %c0_89 = arith.constant 0 : index
    %c0_90 = arith.constant 0 : index
    %199 = vector.load %arg23[%c0_89, %c0_90] : memref<64x32xf32, #tpu.memory_space<vmem>>, vector<64x32xf32>
    %cst_91 = arith.constant dense<0.000000e+00> : vector<8x32xf32>
    %200 = tpu.matmul %198, %199, %cst_91 {dimension_numbers = #tpu.dot_dimension_numbers<[1], [0], [0], [1], [0, 0, 1, 1], [], []>} : vector<8x64xf32>, vector<64x32xf32>, vector<8x32xf32> -> vector<8x32xf32>
    %c0_92 = arith.constant 0 : index
    %c0_93 = arith.constant 0 : index
    %201 = vector.load %arg24[%c0_92, %c0_93] : memref<1x32xf32, #tpu.memory_space<vmem>>, vector<1x32xf32>
    %202 = vector.broadcast %201 : vector<1x32xf32> to vector<8x32xf32>
    %203 = arith.addf %200, %202 : vector<8x32xf32>
    %204 = arith.addf %203, %191 : vector<8x32xf32>
    %c0_94 = arith.constant 0 : index
    %c0_95 = arith.constant 0 : index
    %205 = vector.load %arg25[%c0_94, %c0_95] : memref<1x32xf32, #tpu.memory_space<vmem>>, vector<1x32xf32>
    %c0_96 = arith.constant 0 : index
    %c0_97 = arith.constant 0 : index
    %206 = vector.load %arg26[%c0_96, %c0_97] : memref<1x32xf32, #tpu.memory_space<vmem>>, vector<1x32xf32>
    %cst_98 = arith.constant dense<0.000000e+00> : vector<8xf32>
    %207 = vector.multi_reduction <add>, %204, %cst_98 [1] : vector<8x32xf32> to vector<8xf32>
    %208 = vector.shape_cast %207 : vector<8xf32> to vector<8x1xf32>
    %cst_99 = arith.constant 3.200000e+01 : f32
    %209 = vector.broadcast %cst_99 : f32 to vector<8x1xf32>
    %210 = arith.divf %208, %209 : vector<8x1xf32>
    %211 = vector.broadcast %210 : vector<8x1xf32> to vector<8x32xf32>
    %212 = arith.subf %204, %211 : vector<8x32xf32>
    %213 = arith.mulf %212, %212 : vector<8x32xf32>
    %cst_100 = arith.constant dense<0.000000e+00> : vector<8xf32>
    %214 = vector.multi_reduction <add>, %213, %cst_100 [1] : vector<8x32xf32> to vector<8xf32>
    %215 = vector.shape_cast %214 : vector<8xf32> to vector<8x1xf32>
    %cst_101 = arith.constant 3.200000e+01 : f32
    %216 = vector.broadcast %cst_101 : f32 to vector<8x1xf32>
    %217 = arith.divf %215, %216 : vector<8x1xf32>
    %218 = vector.broadcast %210 : vector<8x1xf32> to vector<8x32xf32>
    %219 = arith.subf %204, %218 : vector<8x32xf32>
    %cst_102 = arith.constant 9.99999974E-6 : f32
    %220 = vector.broadcast %cst_102 : f32 to vector<8x1xf32>
    %221 = arith.addf %217, %220 : vector<8x1xf32>
    %222 = math.rsqrt %221 : vector<8x1xf32>
    %223 = vector.broadcast %222 : vector<8x1xf32> to vector<8x32xf32>
    %224 = arith.mulf %219, %223 : vector<8x32xf32>
    %225 = vector.broadcast %205 : vector<1x32xf32> to vector<8x32xf32>
    %226 = arith.mulf %224, %225 : vector<8x32xf32>
    %227 = vector.broadcast %206 : vector<1x32xf32> to vector<8x32xf32>
    %228 = arith.addf %226, %227 : vector<8x32xf32>
    %c0_103 = arith.constant 0 : index
    %c0_104 = arith.constant 0 : index
    %c0_105 = arith.constant 0 : index
    %229 = vector.load %arg27[%c0_103, %c0_104, %c0_105] : memref<1x8x32xf32, #tpu.memory_space<vmem>>, vector<1x8x32xf32>
    %230 = vector.shape_cast %229 : vector<1x8x32xf32> to vector<8x32xf32>
    %231 = vector.shape_cast %228 : vector<8x32xf32> to vector<1x8x32xf32>
    tpu.vector_store %arg27[%c0_103, %c0_104, %c0_105], %231 {strides = array<i32>} : memref<1x8x32xf32, #tpu.memory_space<vmem>>, vector<1x8x32xf32>,
    %c0_106 = arith.constant 0 : index
    %c0_107 = arith.constant 0 : index
    %c0_108 = arith.constant 0 : index
    %c0_109 = arith.constant 0 : index
    %232 = vector.load %arg28[%c0_106, %c0_107, %c0_108, %c0_109] : memref<1x4x8x16xf32, #tpu.memory_space<vmem>>, vector<1x4x8x16xf32>
    %233 = vector.shape_cast %232 : vector<1x4x8x16xf32> to vector<4x8x16xf32>
    %234 = vector.shape_cast %140 : vector<4x8x16xf32> to vector<1x4x8x16xf32>
    tpu.vector_store %arg28[%c0_106, %c0_107, %c0_108, %c0_109], %234 {strides = array<i32>} : memref<1x4x8x16xf32, #tpu.memory_space<vmem>>, vector<1x4x8x16xf32>,
    return
  }
  func.func @transform_0(%arg0: i32, %arg1: i32) -> (i32, i32, i32) {
    %c0_i32 = arith.constant 0 : i32
    %c0_i32_0 = arith.constant 0 : i32
    return %arg0, %arg1, %c0_i32 : i32, i32, i32
  }
  func.func @transform_1(%arg0: i32, %arg1: i32) -> (i32, i32, i32, i32) {
    %c0_i32 = arith.constant 0 : i32
    %c0_i32_0 = arith.constant 0 : i32
    %c0_i32_1 = arith.constant 0 : i32
    %c0_i32_2 = arith.constant 0 : i32
    return %arg0, %c0_i32, %c0_i32_0, %c0_i32_1 : i32, i32, i32, i32
  }
  func.func @transform_2(%arg0: i32, %arg1: i32) -> (i32, i32, i32, i32) {
    %c0_i32 = arith.constant 0 : i32
    %c0_i32_0 = arith.constant 0 : i32
    %c0_i32_1 = arith.constant 0 : i32
    %c0_i32_2 = arith.constant 0 : i32
    return %arg0, %c0_i32, %c0_i32_0, %c0_i32_1 : i32, i32, i32, i32
  }
  func.func @transform_3(%arg0: i32, %arg1: i32) -> (i32, i32, i32, i32) {
    %c0_i32 = arith.constant 0 : i32
    %c0_i32_0 = arith.constant 0 : i32
    %c0_i32_1 = arith.constant 0 : i32
    %c0_i32_2 = arith.constant 0 : i32
    return %arg0, %c0_i32, %c0_i32_0, %c0_i32_1 : i32, i32, i32, i32
  }
  func.func @transform_4(%arg0: i32, %arg1: i32) -> (i32, i32, i32, i32) {
    %c0_i32 = arith.constant 0 : i32
    %c0_i32_0 = arith.constant 0 : i32
    %c0_i32_1 = arith.constant 0 : i32
    %c0_i32_2 = arith.constant 0 : i32
    return %arg0, %c0_i32, %c0_i32_0, %c0_i32_1 : i32, i32, i32, i32
  }
  func.func @transform_5(%arg0: i32, %arg1: i32) -> (i32, i32, i32) {
    %c0_i32 = arith.constant 0 : i32
    %c0_i32_0 = arith.constant 0 : i32
    %c0_i32_1 = arith.constant 0 : i32
    return %arg0, %c0_i32, %c0_i32_0 : i32, i32, i32
  }
  func.func @transform_6(%arg0: i32, %arg1: i32) -> (i32, i32, i32) {
    %c0_i32 = arith.constant 0 : i32
    %c0_i32_0 = arith.constant 0 : i32
    %c0_i32_1 = arith.constant 0 : i32
    return %arg0, %c0_i32, %c0_i32_0 : i32, i32, i32
  }
  func.func @transform_7(%arg0: i32, %arg1: i32) -> (i32, i32) {
    %c0_i32 = arith.constant 0 : i32
    %c0_i32_0 = arith.constant 0 : i32
    %c0_i32_1 = arith.constant 0 : i32
    return %c0_i32, %c0_i32_0 : i32, i32
  }
  func.func @transform_8(%arg0: i32, %arg1: i32) -> (i32, i32) {
    %c0_i32 = arith.constant 0 : i32
    %c0_i32_0 = arith.constant 0 : i32
    %c0_i32_1 = arith.constant 0 : i32
    return %c0_i32, %c0_i32_0 : i32, i32
  }
  func.func @transform_9(%arg0: i32, %arg1: i32) -> (i32, i32, i32) {
    %c0_i32 = arith.constant 0 : i32
    %c0_i32_0 = arith.constant 0 : i32
    %c0_i32_1 = arith.constant 0 : i32
    %c0_i32_2 = arith.constant 0 : i32
    return %c0_i32, %c0_i32_0, %c0_i32_1 : i32, i32, i32
  }
  func.func @transform_10(%arg0: i32, %arg1: i32) -> (i32, i32) {
    %c0_i32 = arith.constant 0 : i32
    %c0_i32_0 = arith.constant 0 : i32
    %c0_i32_1 = arith.constant 0 : i32
    return %c0_i32, %c0_i32_0 : i32, i32
  }
  func.func @transform_11(%arg0: i32, %arg1: i32) -> (i32, i32) {
    %c0_i32 = arith.constant 0 : i32
    %c0_i32_0 = arith.constant 0 : i32
    %c0_i32_1 = arith.constant 0 : i32
    return %c0_i32, %c0_i32_0 : i32, i32
  }
  func.func @transform_12(%arg0: i32, %arg1: i32) -> (i32, i32) {
    %c0_i32 = arith.constant 0 : i32
    %c0_i32_0 = arith.constant 0 : i32
    %c0_i32_1 = arith.constant 0 : i32
    return %c0_i32, %c0_i32_0 : i32, i32
  }
  func.func @transform_13(%arg0: i32, %arg1: i32) -> (i32, i32) {
    %c0_i32 = arith.constant 0 : i32
    %c0_i32_0 = arith.constant 0 : i32
    %c0_i32_1 = arith.constant 0 : i32
    return %c0_i32, %c0_i32_0 : i32, i32
  }
  func.func @transform_14(%arg0: i32, %arg1: i32) -> (i32, i32) {
    %c0_i32 = arith.constant 0 : i32
    %c0_i32_0 = arith.constant 0 : i32
    %c0_i32_1 = arith.constant 0 : i32
    return %c0_i32, %c0_i32_0 : i32, i32
  }
  func.func @transform_15(%arg0: i32, %arg1: i32) -> (i32, i32, i32) {
    %c0_i32 = arith.constant 0 : i32
    %c0_i32_0 = arith.constant 0 : i32
    %c0_i32_1 = arith.constant 0 : i32
    %c0_i32_2 = arith.constant 0 : i32
    return %c0_i32, %c0_i32_0, %c0_i32_1 : i32, i32, i32
  }
  func.func @transform_16(%arg0: i32, %arg1: i32) -> (i32, i32) {
    %c0_i32 = arith.constant 0 : i32
    %c0_i32_0 = arith.constant 0 : i32
    %c0_i32_1 = arith.constant 0 : i32
    return %c0_i32, %c0_i32_0 : i32, i32
  }
  func.func @transform_17(%arg0: i32, %arg1: i32) -> (i32, i32) {
    %c0_i32 = arith.constant 0 : i32
    %c0_i32_0 = arith.constant 0 : i32
    %c0_i32_1 = arith.constant 0 : i32
    return %c0_i32, %c0_i32_0 : i32, i32
  }
  func.func @transform_18(%arg0: i32, %arg1: i32) -> (i32, i32) {
    %c0_i32 = arith.constant 0 : i32
    %c0_i32_0 = arith.constant 0 : i32
    %c0_i32_1 = arith.constant 0 : i32
    return %c0_i32, %c0_i32_0 : i32, i32
  }
  func.func @transform_19(%arg0: i32, %arg1: i32) -> (i32, i32) {
    %c0_i32 = arith.constant 0 : i32
    %c0_i32_0 = arith.constant 0 : i32
    %c0_i32_1 = arith.constant 0 : i32
    return %c0_i32, %c0_i32_0 : i32, i32
  }
  func.func @transform_20(%arg0: i32, %arg1: i32) -> (i32, i32) {
    %c0_i32 = arith.constant 0 : i32
    %c0_i32_0 = arith.constant 0 : i32
    %c0_i32_1 = arith.constant 0 : i32
    return %c0_i32, %c0_i32_0 : i32, i32
  }
  func.func @transform_21(%arg0: i32, %arg1: i32) -> (i32, i32) {
    %c0_i32 = arith.constant 0 : i32
    %c0_i32_0 = arith.constant 0 : i32
    %c0_i32_1 = arith.constant 0 : i32
    return %c0_i32, %c0_i32_0 : i32, i32
  }
  func.func @transform_22(%arg0: i32, %arg1: i32) -> (i32, i32) {
    %c0_i32 = arith.constant 0 : i32
    %c0_i32_0 = arith.constant 0 : i32
    %c0_i32_1 = arith.constant 0 : i32
    return %c0_i32, %c0_i32_0 : i32, i32
  }
  func.func @transform_23(%arg0: i32, %arg1: i32) -> (i32, i32) {
    %c0_i32 = arith.constant 0 : i32
    %c0_i32_0 = arith.constant 0 : i32
    %c0_i32_1 = arith.constant 0 : i32
    return %c0_i32, %c0_i32_0 : i32, i32
  }
  func.func @transform_24(%arg0: i32, %arg1: i32) -> (i32, i32) {
    %c0_i32 = arith.constant 0 : i32
    %c0_i32_0 = arith.constant 0 : i32
    %c0_i32_1 = arith.constant 0 : i32
    return %c0_i32, %c0_i32_0 : i32, i32
  }
  func.func @transform_25(%arg0: i32, %arg1: i32) -> (i32, i32, i32) {
    %c0_i32 = arith.constant 0 : i32
    %c0_i32_0 = arith.constant 0 : i32
    return %arg0, %arg1, %c0_i32 : i32, i32, i32
  }
  func.func @transform_26(%arg0: i32, %arg1: i32) -> (i32, i32, i32, i32) {
    %c0_i32 = arith.constant 0 : i32
    %c0_i32_0 = arith.constant 0 : i32
    %c0_i32_1 = arith.constant 0 : i32
    return %arg0, %c0_i32, %arg1, %c0_i32_0 : i32, i32, i32, i32
  }
}

module attributes {stable_mosaic.version = 11 : i64} {
  func.func @decoder_block_kernel(%arg0: i32, %arg1: i32, %arg2: memref<1x8x32xf32, #tpu.memory_space<vmem>>, %arg3: memref<1x4x8x8xf32, #tpu.memory_space<vmem>>, %arg4: memref<1x4x8x8xf32, #tpu.memory_space<vmem>>, %arg5: memref<1x4x16x8xf32, #tpu.memory_space<vmem>>, %arg6: memref<1x4x16x8xf32, #tpu.memory_space<vmem>>, %arg7: memref<1x1x8xf32, #tpu.memory_space<vmem>>, %arg8: memref<1x1x16xf32, #tpu.memory_space<vmem>>, %arg9: memref<32x32xf32, #tpu.memory_space<vmem>>, %arg10: memref<1x32xf32, #tpu.memory_space<vmem>>, %arg11: memref<4x8x32xf32, #tpu.memory_space<vmem>>, %arg12: memref<1x32xf32, #tpu.memory_space<vmem>>, %arg13: memref<1x32xf32, #tpu.memory_space<vmem>>, %arg14: memref<1x32xf32, #tpu.memory_space<vmem>>, %arg15: memref<32x32xf32, #tpu.memory_space<vmem>>, %arg16: memref<1x32xf32, #tpu.memory_space<vmem>>, %arg17: memref<4x8x32xf32, #tpu.memory_space<vmem>>, %arg18: memref<1x32xf32, #tpu.memory_space<vmem>>, %arg19: memref<1x32xf32, #tpu.memory_space<vmem>>, %arg20: memref<1x32xf32, #tpu.memory_space<vmem>>, %arg21: memref<32x64xf32, #tpu.memory_space<vmem>>, %arg22: memref<1x64xf32, #tpu.memory_space<vmem>>, %arg23: memref<64x32xf32, #tpu.memory_space<vmem>>, %arg24: memref<1x32xf32, #tpu.memory_space<vmem>>, %arg25: memref<1x32xf32, #tpu.memory_space<vmem>>, %arg26: memref<1x32xf32, #tpu.memory_space<vmem>>, %arg27: memref<1x8x32xf32, #tpu.memory_space<vmem>>, %arg28: memref<1x4x8x16xf32, #tpu.memory_space<vmem>>) attributes {dimension_semantics = [#tpu.dimension_semantics<parallel>, #tpu.dimension_semantics<parallel>], iteration_bounds = array<i64: 2, 1>, scalar_prefetch = 0 : i64, scratch_operands = 0 : i64, tpu.core_type = #tpu.core_type<tc>, window_params = [{transform_indices = @transform_0, window_bounds = array<i64: 1, 8, 32>}, {transform_indices = @transform_1, window_bounds = array<i64: 1, 4, 8, 8>}, {transform_indices = @transform_2, window_bounds = array<i64: 1, 4, 8, 8>}, {transform_indices = @transform_3, window_bounds = array<i64: 1, 4, 16, 8>}, {transform_indices = @transform_4, window_bounds = array<i64: 1, 4, 16, 8>}, {transform_indices = @transform_5, window_bounds = array<i64: 1, 1, 8>}, {transform_indices = @transform_6, window_bounds = array<i64: 1, 1, 16>}, {pipeline_mode = #tpu.pipeline_mode<synchronous>, transform_indices = @transform_7, window_bounds = array<i64: 32, 32>}, {pipeline_mode = #tpu.pipeline_mode<synchronous>, transform_indices = @transform_8, window_bounds = array<i64: 1, 32>}, {pipeline_mode = #tpu.pipeline_mode<synchronous>, transform_indices = @transform_9, window_bounds = array<i64: 4, 8, 32>}, {pipeline_mode = #tpu.pipeline_mode<synchronous>, transform_indices = @transform_10, window_bounds = array<i64: 1, 32>}, {pipeline_mode = #tpu.pipeline_mode<synchronous>, transform_indices = @transform_11, window_bounds = array<i64: 1, 32>}, {pipeline_mode = #tpu.pipeline_mode<synchronous>, transform_indices = @transform_12, window_bounds = array<i64: 1, 32>}, {pipeline_mode = #tpu.pipeline_mode<synchronous>, transform_indices = @transform_13, window_bounds = array<i64: 32, 32>}, {pipeline_mode = #tpu.pipeline_mode<synchronous>, transform_indices = @transform_14, window_bounds = array<i64: 1, 32>}, {pipeline_mode = #tpu.pipeline_mode<synchronous>, transform_indices = @transform_15, window_bounds = array<i64: 4, 8, 32>}, {pipeline_mode = #tpu.pipeline_mode<synchronous>, transform_indices = @transform_16, window_bounds = array<i64: 1, 32>}, {pipeline_mode = #tpu.pipeline_mode<synchronous>, transform_indices = @transform_17, window_bounds = array<i64: 1, 32>}, {pipeline_mode = #tpu.pipeline_mode<synchronous>, transform_indices = @transform_18, window_bounds = array<i64: 1, 32>}, {pipeline_mode = #tpu.pipeline_mode<synchronous>, transform_indices = @transform_19, window_bounds = array<i64: 32, 64>}, {pipeline_mode = #tpu.pipeline_mode<synchronous>, transform_indices = @transform_20, window_bounds = array<i64: 1, 64>}, {pipeline_mode = #tpu.pipeline_mode<synchronous>, transform_indices = @transform_21, window_bounds = array<i64: 64, 32>}, {pipeline_mode = #tpu.pipeline_mode<synchronous>, transform_indices = @transform_22, window_bounds = array<i64: 1, 32>}, {pipeline_mode = #tpu.pipeline_mode<synchronous>, transform_indices = @transform_23, window_bounds = array<i64: 1, 32>}, {pipeline_mode = #tpu.pipeline_mode<synchronous>, transform_indices = @transform_24, window_bounds = array<i64: 1, 32>}, {transform_indices = @transform_25, window_bounds = array<i64: 1, 8, 32>}, {transform_indices = @transform_26, window_bounds = array<i64: 1, 4, 8, 16>}]} {
    %c0 = arith.constant 0 : index
    %c0_0 = arith.constant 0 : index
    %c0_1 = arith.constant 0 : index
    %0 = vector.load %arg2[%c0, %c0_0, %c0_1] : memref<1x8x32xf32, #tpu.memory_space<vmem>>, vector<1x8x32xf32>
    %1 = vector.shape_cast %0 : vector<1x8x32xf32> to vector<8x32xf32>
    %c0_2 = arith.constant 0 : index
    %c0_3 = arith.constant 0 : index
    %c0_4 = arith.constant 0 : index
    %2 = vector.load %arg7[%c0_2, %c0_3, %c0_4] : memref<1x1x8xf32, #tpu.memory_space<vmem>>, vector<1x1x8xf32>
    %3 = vector.shape_cast %2 : vector<1x1x8xf32> to vector<1x8xf32>
    %c0_5 = arith.constant 0 : index
    %c0_6 = arith.constant 0 : index
    %c0_7 = arith.constant 0 : index
    %4 = vector.load %arg8[%c0_5, %c0_6, %c0_7] : memref<1x1x16xf32, #tpu.memory_space<vmem>>, vector<1x1x16xf32>
    %5 = vector.shape_cast %4 : vector<1x1x16xf32> to vector<1x16xf32>
    %c0_8 = arith.constant 0 : index
    %c0_9 = arith.constant 0 : index
    %c0_10 = arith.constant 0 : index
    %c0_11 = arith.constant 0 : index
    %6 = vector.load %arg3[%c0_8, %c0_9, %c0_10, %c0_11] : memref<1x4x8x8xf32, #tpu.memory_space<vmem>>, vector<1x4x8x8xf32>
    %7 = vector.shape_cast %6 : vector<1x4x8x8xf32> to vector<4x8x8xf32>
    %c0_12 = arith.constant 0 : index
    %c0_13 = arith.constant 0 : index
    %c0_14 = arith.constant 0 : index
    %c0_15 = arith.constant 0 : index
    %8 = vector.load %arg4[%c0_12, %c0_13, %c0_14, %c0_15] : memref<1x4x8x8xf32, #tpu.memory_space<vmem>>, vector<1x4x8x8xf32>
    %9 = vector.shape_cast %8 : vector<1x4x8x8xf32> to vector<4x8x8xf32>
    %c0_16 = arith.constant 0 : index
    %c0_17 = arith.constant 0 : index
    %10 = vector.load %arg9[%c0_16, %c0_17] : memref<32x32xf32, #tpu.memory_space<vmem>>, vector<32x32xf32>
    %c0_18 = arith.constant 0 : index
    %c0_19 = arith.constant 0 : index
    %11 = vector.load %arg10[%c0_18, %c0_19] : memref<1x32xf32, #tpu.memory_space<vmem>>, vector<1x32xf32>
    %c0_20 = arith.constant 0 : index
    %c0_21 = arith.constant 0 : index
    %c0_22 = arith.constant 0 : index
    %12 = vector.load %arg11[%c0_20, %c0_21, %c0_22] : memref<4x8x32xf32, #tpu.memory_space<vmem>>, vector<4x8x32xf32>
    %c0_23 = arith.constant 0 : index
    %c0_24 = arith.constant 0 : index
    %13 = vector.load %arg12[%c0_23, %c0_24] : memref<1x32xf32, #tpu.memory_space<vmem>>, vector<1x32xf32>
    %cst = arith.constant 8.000000e+00 : f32
    %14 = math.sqrt %cst : f32
    %cst_25 = arith.constant 1.000000e+00 : f32
    %15 = arith.divf %cst_25, %14 : f32
    %cst_26 = arith.constant dense<0.000000e+00> : vector<8x32xf32>
    %16 = tpu.matmul %1, %10, %cst_26 {dimension_numbers = #tpu.dot_dimension_numbers<[1], [0], [0], [1], [0, 0, 1, 1], [], []>} : vector<8x32xf32>, vector<32x32xf32>, vector<8x32xf32> -> vector<8x32xf32>
    %17 = vector.broadcast %11 : vector<1x32xf32> to vector<8x32xf32>
    %18 = arith.addf %16, %17 : vector<8x32xf32>
    %19 = vector.broadcast %15 : f32 to vector<8x32xf32>
    %20 = arith.mulf %18, %19 : vector<8x32xf32>
    %21 = vector.extract_strided_slice %20 {offsets = [0, 0], sizes = [8, 8], strides = [1, 1]} : vector<8x32xf32> to vector<8x8xf32>
    %22 = vector.extract_strided_slice %20 {offsets = [0, 8], sizes = [8, 8], strides = [1, 1]} : vector<8x32xf32> to vector<8x8xf32>
    %23 = vector.extract_strided_slice %20 {offsets = [0, 16], sizes = [8, 8], strides = [1, 1]} : vector<8x32xf32> to vector<8x8xf32>
    %24 = vector.extract_strided_slice %20 {offsets = [0, 24], sizes = [8, 8], strides = [1, 1]} : vector<8x32xf32> to vector<8x8xf32>
    %25 = vector.shape_cast %21 : vector<8x8xf32> to vector<1x8x8xf32>
    %26 = vector.shape_cast %22 : vector<8x8xf32> to vector<1x8x8xf32>
    %27 = vector.shape_cast %23 : vector<8x8xf32> to vector<1x8x8xf32>
    %28 = vector.shape_cast %24 : vector<8x8xf32> to vector<1x8x8xf32>
    %29 = tpu.concatenate %25, %26, %27, %28 in 0 : vector<1x8x8xf32>, vector<1x8x8xf32>, vector<1x8x8xf32>, vector<1x8x8xf32> -> vector<4x8x8xf32>
    "tpu.trace_start"() <{level = 10 : i32, message = "hqd,hkd->hqk"}> : () -> ()
    %cst_27 = arith.constant dense<0.000000e+00> : vector<4x8x8xf32>
    %30 = tpu.matmul %29, %7, %cst_27 {dimension_numbers = #tpu.dot_dimension_numbers<[2], [2], [1], [1], [0, 0, 0, 1, 1, 1], [0], [0]>} : vector<4x8x8xf32>, vector<4x8x8xf32>, vector<4x8x8xf32> -> vector<4x8x8xf32>
    "tpu.trace_stop"() : () -> ()
    %31 = vector.shape_cast %3 : vector<1x8xf32> to vector<1x1x8xf32>
    %32 = vector.broadcast %31 : vector<1x1x8xf32> to vector<4x8x8xf32>
    %33 = arith.addf %30, %32 : vector<4x8x8xf32>
    %cst_28 = arith.constant dense<0xFF800000> : vector<4x8xf32>
    %34 = vector.multi_reduction <maximumf>, %33, %cst_28 [2] : vector<4x8x8xf32> to vector<4x8xf32>
    %35 = vector.shape_cast %34 : vector<4x8xf32> to vector<4x8x1xf32>
    %36 = vector.broadcast %35 : vector<4x8x1xf32> to vector<4x8x8xf32>
    %37 = arith.subf %33, %36 : vector<4x8x8xf32>
    %38 = math.exp %37 : vector<4x8x8xf32>
    %cst_29 = arith.constant dense<0.000000e+00> : vector<4x8xf32>
    %39 = vector.multi_reduction <add>, %38, %cst_29 [2] : vector<4x8x8xf32> to vector<4x8xf32>
    %40 = vector.shape_cast %39 : vector<4x8xf32> to vector<4x8x1xf32>
    %41 = tpu.reciprocal %40 {approx = true} : vector<4x8x1xf32> -> vector<4x8x1xf32>
    %42 = arith.mulf %40, %41 : vector<4x8x1xf32>
    %cst_30 = arith.constant 2.000000e+00 : f32
    %43 = vector.broadcast %cst_30 : f32 to vector<4x8x1xf32>
    %44 = arith.subf %43, %42 : vector<4x8x1xf32>
    %45 = arith.mulf %41, %44 : vector<4x8x1xf32>
    %46 = vector.broadcast %45 : vector<4x8x1xf32> to vector<4x8x8xf32>
    %47 = arith.mulf %38, %46 : vector<4x8x8xf32>
    "tpu.trace_start"() <{level = 10 : i32, message = "hqk,hkd->hqd"}> : () -> ()
    %cst_31 = arith.constant dense<0.000000e+00> : vector<4x8x8xf32>
    %48 = tpu.matmul %47, %9, %cst_31 {dimension_numbers = #tpu.dot_dimension_numbers<[2], [1], [1], [2], [0, 0, 0, 1, 1, 2], [0], [0]>} : vector<4x8x8xf32>, vector<4x8x8xf32>, vector<4x8x8xf32> -> vector<4x8x8xf32>
    "tpu.trace_stop"() : () -> ()
    %49 = vector.extract_strided_slice %48 {offsets = [0, 0, 0], sizes = [1, 8, 8], strides = [1, 1, 1]} : vector<4x8x8xf32> to vector<1x8x8xf32>
    %50 = vector.shape_cast %49 : vector<1x8x8xf32> to vector<8x8xf32>
    %51 = vector.extract_strided_slice %12 {offsets = [0, 0, 0], sizes = [1, 8, 32], strides = [1, 1, 1]} : vector<4x8x32xf32> to vector<1x8x32xf32>
    %52 = vector.shape_cast %51 : vector<1x8x32xf32> to vector<8x32xf32>
    %cst_32 = arith.constant dense<0.000000e+00> : vector<8x32xf32>
    %53 = tpu.matmul %50, %52, %cst_32 {dimension_numbers = #tpu.dot_dimension_numbers<[1], [0], [0], [1], [0, 0, 1, 1], [], []>} : vector<8x8xf32>, vector<8x32xf32>, vector<8x32xf32> -> vector<8x32xf32>
    %54 = vector.extract_strided_slice %48 {offsets = [1, 0, 0], sizes = [1, 8, 8], strides = [1, 1, 1]} : vector<4x8x8xf32> to vector<1x8x8xf32>
    %55 = vector.shape_cast %54 : vector<1x8x8xf32> to vector<8x8xf32>
    %56 = vector.extract_strided_slice %12 {offsets = [1, 0, 0], sizes = [1, 8, 32], strides = [1, 1, 1]} : vector<4x8x32xf32> to vector<1x8x32xf32>
    %57 = vector.shape_cast %56 : vector<1x8x32xf32> to vector<8x32xf32>
    %cst_33 = arith.constant dense<0.000000e+00> : vector<8x32xf32>
    %58 = tpu.matmul %55, %57, %cst_33 {dimension_numbers = #tpu.dot_dimension_numbers<[1], [0], [0], [1], [0, 0, 1, 1], [], []>} : vector<8x8xf32>, vector<8x32xf32>, vector<8x32xf32> -> vector<8x32xf32>
    %59 = arith.addf %53, %58 : vector<8x32xf32>
    %60 = vector.extract_strided_slice %48 {offsets = [2, 0, 0], sizes = [1, 8, 8], strides = [1, 1, 1]} : vector<4x8x8xf32> to vector<1x8x8xf32>
    %61 = vector.shape_cast %60 : vector<1x8x8xf32> to vector<8x8xf32>
    %62 = vector.extract_strided_slice %12 {offsets = [2, 0, 0], sizes = [1, 8, 32], strides = [1, 1, 1]} : vector<4x8x32xf32> to vector<1x8x32xf32>
    %63 = vector.shape_cast %62 : vector<1x8x32xf32> to vector<8x32xf32>
    %cst_34 = arith.constant dense<0.000000e+00> : vector<8x32xf32>
    %64 = tpu.matmul %61, %63, %cst_34 {dimension_numbers = #tpu.dot_dimension_numbers<[1], [0], [0], [1], [0, 0, 1, 1], [], []>} : vector<8x8xf32>, vector<8x32xf32>, vector<8x32xf32> -> vector<8x32xf32>
    %65 = arith.addf %59, %64 : vector<8x32xf32>
    %66 = vector.extract_strided_slice %48 {offsets = [3, 0, 0], sizes = [1, 8, 8], strides = [1, 1, 1]} : vector<4x8x8xf32> to vector<1x8x8xf32>
    %67 = vector.shape_cast %66 : vector<1x8x8xf32> to vector<8x8xf32>
    %68 = vector.extract_strided_slice %12 {offsets = [3, 0, 0], sizes = [1, 8, 32], strides = [1, 1, 1]} : vector<4x8x32xf32> to vector<1x8x32xf32>
    %69 = vector.shape_cast %68 : vector<1x8x32xf32> to vector<8x32xf32>
    %cst_35 = arith.constant dense<0.000000e+00> : vector<8x32xf32>
    %70 = tpu.matmul %67, %69, %cst_35 {dimension_numbers = #tpu.dot_dimension_numbers<[1], [0], [0], [1], [0, 0, 1, 1], [], []>} : vector<8x8xf32>, vector<8x32xf32>, vector<8x32xf32> -> vector<8x32xf32>
    %71 = arith.addf %65, %70 : vector<8x32xf32>
    %72 = vector.broadcast %13 : vector<1x32xf32> to vector<8x32xf32>
    %73 = arith.addf %71, %72 : vector<8x32xf32>
    %74 = arith.addf %73, %1 : vector<8x32xf32>
    %c0_36 = arith.constant 0 : index
    %c0_37 = arith.constant 0 : index
    %75 = vector.load %arg13[%c0_36, %c0_37] : memref<1x32xf32, #tpu.memory_space<vmem>>, vector<1x32xf32>
    %c0_38 = arith.constant 0 : index
    %c0_39 = arith.constant 0 : index
    %76 = vector.load %arg14[%c0_38, %c0_39] : memref<1x32xf32, #tpu.memory_space<vmem>>, vector<1x32xf32>
    %cst_40 = arith.constant dense<0.000000e+00> : vector<8xf32>
    %77 = vector.multi_reduction <add>, %74, %cst_40 [1] : vector<8x32xf32> to vector<8xf32>
    %78 = vector.shape_cast %77 : vector<8xf32> to vector<8x1xf32>
    %cst_41 = arith.constant 3.200000e+01 : f32
    %79 = vector.broadcast %cst_41 : f32 to vector<8x1xf32>
    %80 = arith.divf %78, %79 : vector<8x1xf32>
    %81 = vector.broadcast %80 : vector<8x1xf32> to vector<8x32xf32>
    %82 = arith.subf %74, %81 : vector<8x32xf32>
    %83 = arith.mulf %82, %82 : vector<8x32xf32>
    %cst_42 = arith.constant dense<0.000000e+00> : vector<8xf32>
    %84 = vector.multi_reduction <add>, %83, %cst_42 [1] : vector<8x32xf32> to vector<8xf32>
    %85 = vector.shape_cast %84 : vector<8xf32> to vector<8x1xf32>
    %cst_43 = arith.constant 3.200000e+01 : f32
    %86 = vector.broadcast %cst_43 : f32 to vector<8x1xf32>
    %87 = arith.divf %85, %86 : vector<8x1xf32>
    %88 = vector.broadcast %80 : vector<8x1xf32> to vector<8x32xf32>
    %89 = arith.subf %74, %88 : vector<8x32xf32>
    %cst_44 = arith.constant 9.99999974E-6 : f32
    %90 = vector.broadcast %cst_44 : f32 to vector<8x1xf32>
    %91 = arith.addf %87, %90 : vector<8x1xf32>
    %92 = math.rsqrt %91 : vector<8x1xf32>
    %93 = vector.broadcast %92 : vector<8x1xf32> to vector<8x32xf32>
    %94 = arith.mulf %89, %93 : vector<8x32xf32>
    %95 = vector.broadcast %75 : vector<1x32xf32> to vector<8x32xf32>
    %96 = arith.mulf %94, %95 : vector<8x32xf32>
    %97 = vector.broadcast %76 : vector<1x32xf32> to vector<8x32xf32>
    %98 = arith.addf %96, %97 : vector<8x32xf32>
    %c0_45 = arith.constant 0 : index
    %c0_46 = arith.constant 0 : index
    %c0_47 = arith.constant 0 : index
    %c0_48 = arith.constant 0 : index
    %99 = vector.load %arg5[%c0_45, %c0_46, %c0_47, %c0_48] : memref<1x4x16x8xf32, #tpu.memory_space<vmem>>, vector<1x4x16x8xf32>
    %100 = vector.shape_cast %99 : vector<1x4x16x8xf32> to vector<4x16x8xf32>
    %c0_49 = arith.constant 0 : index
    %c0_50 = arith.constant 0 : index
    %c0_51 = arith.constant 0 : index
    %c0_52 = arith.constant 0 : index
    %101 = vector.load %arg6[%c0_49, %c0_50, %c0_51, %c0_52] : memref<1x4x16x8xf32, #tpu.memory_space<vmem>>, vector<1x4x16x8xf32>
    %102 = vector.shape_cast %101 : vector<1x4x16x8xf32> to vector<4x16x8xf32>
    %c0_53 = arith.constant 0 : index
    %c0_54 = arith.constant 0 : index
    %103 = vector.load %arg15[%c0_53, %c0_54] : memref<32x32xf32, #tpu.memory_space<vmem>>, vector<32x32xf32>
    %c0_55 = arith.constant 0 : index
    %c0_56 = arith.constant 0 : index
    %104 = vector.load %arg16[%c0_55, %c0_56] : memref<1x32xf32, #tpu.memory_space<vmem>>, vector<1x32xf32>
    %c0_57 = arith.constant 0 : index
    %c0_58 = arith.constant 0 : index
    %c0_59 = arith.constant 0 : index
    %105 = vector.load %arg17[%c0_57, %c0_58, %c0_59] : memref<4x8x32xf32, #tpu.memory_space<vmem>>, vector<4x8x32xf32>
    %c0_60 = arith.constant 0 : index
    %c0_61 = arith.constant 0 : index
    %106 = vector.load %arg18[%c0_60, %c0_61] : memref<1x32xf32, #tpu.memory_space<vmem>>, vector<1x32xf32>
    %cst_62 = arith.constant 8.000000e+00 : f32
    %107 = math.sqrt %cst_62 : f32
    %cst_63 = arith.constant 1.000000e+00 : f32
    %108 = arith.divf %cst_63, %107 : f32
    %cst_64 = arith.constant dense<0.000000e+00> : vector<8x32xf32>
    %109 = tpu.matmul %98, %103, %cst_64 {dimension_numbers = #tpu.dot_dimension_numbers<[1], [0], [0], [1], [0, 0, 1, 1], [], []>} : vector<8x32xf32>, vector<32x32xf32>, vector<8x32xf32> -> vector<8x32xf32>
    %110 = vector.broadcast %104 : vector<1x32xf32> to vector<8x32xf32>
    %111 = arith.addf %109, %110 : vector<8x32xf32>
    %112 = vector.broadcast %108 : f32 to vector<8x32xf32>
    %113 = arith.mulf %111, %112 : vector<8x32xf32>
    %114 = vector.extract_strided_slice %113 {offsets = [0, 0], sizes = [8, 8], strides = [1, 1]} : vector<8x32xf32> to vector<8x8xf32>
    %115 = vector.extract_strided_slice %113 {offsets = [0, 8], sizes = [8, 8], strides = [1, 1]} : vector<8x32xf32> to vector<8x8xf32>
    %116 = vector.extract_strided_slice %113 {offsets = [0, 16], sizes = [8, 8], strides = [1, 1]} : vector<8x32xf32> to vector<8x8xf32>
    %117 = vector.extract_strided_slice %113 {offsets = [0, 24], sizes = [8, 8], strides = [1, 1]} : vector<8x32xf32> to vector<8x8xf32>
    %118 = vector.shape_cast %114 : vector<8x8xf32> to vector<1x8x8xf32>
    %119 = vector.shape_cast %115 : vector<8x8xf32> to vector<1x8x8xf32>
    %120 = vector.shape_cast %116 : vector<8x8xf32> to vector<1x8x8xf32>
    %121 = vector.shape_cast %117 : vector<8x8xf32> to vector<1x8x8xf32>
    %122 = tpu.concatenate %118, %119, %120, %121 in 0 : vector<1x8x8xf32>, vector<1x8x8xf32>, vector<1x8x8xf32>, vector<1x8x8xf32> -> vector<4x8x8xf32>
    "tpu.trace_start"() <{level = 10 : i32, message = "hqd,hkd->hqk"}> : () -> ()
    %cst_65 = arith.constant dense<0.000000e+00> : vector<4x8x16xf32>
    %123 = tpu.matmul %122, %100, %cst_65 {dimension_numbers = #tpu.dot_dimension_numbers<[2], [2], [1], [1], [0, 0, 0, 1, 1, 1], [0], [0]>} : vector<4x8x8xf32>, vector<4x16x8xf32>, vector<4x8x16xf32> -> vector<4x8x16xf32>
    "tpu.trace_stop"() : () -> ()
    %124 = vector.shape_cast %5 : vector<1x16xf32> to vector<1x1x16xf32>
    %125 = vector.broadcast %124 : vector<1x1x16xf32> to vector<4x8x16xf32>
    %126 = arith.addf %123, %125 : vector<4x8x16xf32>
    %cst_66 = arith.constant dense<0xFF800000> : vector<4x8xf32>
    %127 = vector.multi_reduction <maximumf>, %126, %cst_66 [2] : vector<4x8x16xf32> to vector<4x8xf32>
    %128 = vector.shape_cast %127 : vector<4x8xf32> to vector<4x8x1xf32>
    %129 = vector.broadcast %128 : vector<4x8x1xf32> to vector<4x8x16xf32>
    %130 = arith.subf %126, %129 : vector<4x8x16xf32>
    %131 = math.exp %130 : vector<4x8x16xf32>
    %cst_67 = arith.constant dense<0.000000e+00> : vector<4x8xf32>
    %132 = vector.multi_reduction <add>, %131, %cst_67 [2] : vector<4x8x16xf32> to vector<4x8xf32>
    %133 = vector.shape_cast %132 : vector<4x8xf32> to vector<4x8x1xf32>
    %134 = tpu.reciprocal %133 {approx = true} : vector<4x8x1xf32> -> vector<4x8x1xf32>
    %135 = arith.mulf %133, %134 : vector<4x8x1xf32>
    %cst_68 = arith.constant 2.000000e+00 : f32
    %136 = vector.broadcast %cst_68 : f32 to vector<4x8x1xf32>
    %137 = arith.subf %136, %135 : vector<4x8x1xf32>
    %138 = arith.mulf %134, %137 : vector<4x8x1xf32>
    %139 = vector.broadcast %138 : vector<4x8x1xf32> to vector<4x8x16xf32>
    %140 = arith.mulf %131, %139 : vector<4x8x16xf32>
    "tpu.trace_start"() <{level = 10 : i32, message = "hqk,hkd->hqd"}> : () -> ()
    %cst_69 = arith.constant dense<0.000000e+00> : vector<4x8x8xf32>
    %141 = tpu.matmul %140, %102, %cst_69 {dimension_numbers = #tpu.dot_dimension_numbers<[2], [1], [1], [2], [0, 0, 0, 1, 1, 2], [0], [0]>} : vector<4x8x16xf32>, vector<4x16x8xf32>, vector<4x8x8xf32> -> vector<4x8x8xf32>
    "tpu.trace_stop"() : () -> ()
    %142 = vector.extract_strided_slice %141 {offsets = [0, 0, 0], sizes = [1, 8, 8], strides = [1, 1, 1]} : vector<4x8x8xf32> to vector<1x8x8xf32>
    %143 = vector.shape_cast %142 : vector<1x8x8xf32> to vector<8x8xf32>
    %144 = vector.extract_strided_slice %105 {offsets = [0, 0, 0], sizes = [1, 8, 32], strides = [1, 1, 1]} : vector<4x8x32xf32> to vector<1x8x32xf32>
    %145 = vector.shape_cast %144 : vector<1x8x32xf32> to vector<8x32xf32>
    %cst_70 = arith.constant dense<0.000000e+00> : vector<8x32xf32>
    %146 = tpu.matmul %143, %145, %cst_70 {dimension_numbers = #tpu.dot_dimension_numbers<[1], [0], [0], [1], [0, 0, 1, 1], [], []>} : vector<8x8xf32>, vector<8x32xf32>, vector<8x32xf32> -> vector<8x32xf32>
    %147 = vector.extract_strided_slice %141 {offsets = [1, 0, 0], sizes = [1, 8, 8], strides = [1, 1, 1]} : vector<4x8x8xf32> to vector<1x8x8xf32>
    %148 = vector.shape_cast %147 : vector<1x8x8xf32> to vector<8x8xf32>
    %149 = vector.extract_strided_slice %105 {offsets = [1, 0, 0], sizes = [1, 8, 32], strides = [1, 1, 1]} : vector<4x8x32xf32> to vector<1x8x32xf32>
    %150 = vector.shape_cast %149 : vector<1x8x32xf32> to vector<8x32xf32>
    %cst_71 = arith.constant dense<0.000000e+00> : vector<8x32xf32>
    %151 = tpu.matmul %148, %150, %cst_71 {dimension_numbers = #tpu.dot_dimension_numbers<[1], [0], [0], [1], [0, 0, 1, 1], [], []>} : vector<8x8xf32>, vector<8x32xf32>, vector<8x32xf32> -> vector<8x32xf32>
    %152 = arith.addf %146, %151 : vector<8x32xf32>
    %153 = vector.extract_strided_slice %141 {offsets = [2, 0, 0], sizes = [1, 8, 8], strides = [1, 1, 1]} : vector<4x8x8xf32> to vector<1x8x8xf32>
    %154 = vector.shape_cast %153 : vector<1x8x8xf32> to vector<8x8xf32>
    %155 = vector.extract_strided_slice %105 {offsets = [2, 0, 0], sizes = [1, 8, 32], strides = [1, 1, 1]} : vector<4x8x32xf32> to vector<1x8x32xf32>
    %156 = vector.shape_cast %155 : vector<1x8x32xf32> to vector<8x32xf32>
    %cst_72 = arith.constant dense<0.000000e+00> : vector<8x32xf32>
    %157 = tpu.matmul %154, %156, %cst_72 {dimension_numbers = #tpu.dot_dimension_numbers<[1], [0], [0], [1], [0, 0, 1, 1], [], []>} : vector<8x8xf32>, vector<8x32xf32>, vector<8x32xf32> -> vector<8x32xf32>
    %158 = arith.addf %152, %157 : vector<8x32xf32>
    %159 = vector.extract_strided_slice %141 {offsets = [3, 0, 0], sizes = [1, 8, 8], strides = [1, 1, 1]} : vector<4x8x8xf32> to vector<1x8x8xf32>
    %160 = vector.shape_cast %159 : vector<1x8x8xf32> to vector<8x8xf32>
    %161 = vector.extract_strided_slice %105 {offsets = [3, 0, 0], sizes = [1, 8, 32], strides = [1, 1, 1]} : vector<4x8x32xf32> to vector<1x8x32xf32>
    %162 = vector.shape_cast %161 : vector<1x8x32xf32> to vector<8x32xf32>
    %cst_73 = arith.constant dense<0.000000e+00> : vector<8x32xf32>
    %163 = tpu.matmul %160, %162, %cst_73 {dimension_numbers = #tpu.dot_dimension_numbers<[1], [0], [0], [1], [0, 0, 1, 1], [], []>} : vector<8x8xf32>, vector<8x32xf32>, vector<8x32xf32> -> vector<8x32xf32>
    %164 = arith.addf %158, %163 : vector<8x32xf32>
    %165 = vector.broadcast %106 : vector<1x32xf32> to vector<8x32xf32>
    %166 = arith.addf %164, %165 : vector<8x32xf32>
    %167 = arith.addf %166, %98 : vector<8x32xf32>
    %c0_74 = arith.constant 0 : index
    %c0_75 = arith.constant 0 : index
    %168 = vector.load %arg19[%c0_74, %c0_75] : memref<1x32xf32, #tpu.memory_space<vmem>>, vector<1x32xf32>
    %c0_76 = arith.constant 0 : index
    %c0_77 = arith.constant 0 : index
    %169 = vector.load %arg20[%c0_76, %c0_77] : memref<1x32xf32, #tpu.memory_space<vmem>>, vector<1x32xf32>
    %cst_78 = arith.constant dense<0.000000e+00> : vector<8xf32>
    %170 = vector.multi_reduction <add>, %167, %cst_78 [1] : vector<8x32xf32> to vector<8xf32>
    %171 = vector.shape_cast %170 : vector<8xf32> to vector<8x1xf32>
    %cst_79 = arith.constant 3.200000e+01 : f32
    %172 = vector.broadcast %cst_79 : f32 to vector<8x1xf32>
    %173 = arith.divf %171, %172 : vector<8x1xf32>
    %174 = vector.broadcast %173 : vector<8x1xf32> to vector<8x32xf32>
    %175 = arith.subf %167, %174 : vector<8x32xf32>
    %176 = arith.mulf %175, %175 : vector<8x32xf32>
    %cst_80 = arith.constant dense<0.000000e+00> : vector<8xf32>
    %177 = vector.multi_reduction <add>, %176, %cst_80 [1] : vector<8x32xf32> to vector<8xf32>
    %178 = vector.shape_cast %177 : vector<8xf32> to vector<8x1xf32>
    %cst_81 = arith.constant 3.200000e+01 : f32
    %179 = vector.broadcast %cst_81 : f32 to vector<8x1xf32>
    %180 = arith.divf %178, %179 : vector<8x1xf32>
    %181 = vector.broadcast %173 : vector<8x1xf32> to vector<8x32xf32>
    %182 = arith.subf %167, %181 : vector<8x32xf32>
    %cst_82 = arith.constant 9.99999974E-6 : f32
    %183 = vector.broadcast %cst_82 : f32 to vector<8x1xf32>
    %184 = arith.addf %180, %183 : vector<8x1xf32>
    %185 = math.rsqrt %184 : vector<8x1xf32>
    %186 = vector.broadcast %185 : vector<8x1xf32> to vector<8x32xf32>
    %187 = arith.mulf %182, %186 : vector<8x32xf32>
    %188 = vector.broadcast %168 : vector<1x32xf32> to vector<8x32xf32>
    %189 = arith.mulf %187, %188 : vector<8x32xf32>
    %190 = vector.broadcast %169 : vector<1x32xf32> to vector<8x32xf32>
    %191 = arith.addf %189, %190 : vector<8x32xf32>
    %c0_83 = arith.constant 0 : index
    %c0_84 = arith.constant 0 : index
    %192 = vector.load %arg21[%c0_83, %c0_84] : memref<32x64xf32, #tpu.memory_space<vmem>>, vector<32x64xf32>
    %cst_85 = arith.constant dense<0.000000e+00> : vector<8x64xf32>
    %193 = tpu.matmul %191, %192, %cst_85 {dimension_numbers = #tpu.dot_dimension_numbers<[1], [0], [0], [1], [0, 0, 1, 1], [], []>} : vector<8x32xf32>, vector<32x64xf32>, vector<8x64xf32> -> vector<8x64xf32>
    %c0_86 = arith.constant 0 : index
    %c0_87 = arith.constant 0 : index
    %194 = vector.load %arg22[%c0_86, %c0_87] : memref<1x64xf32, #tpu.memory_space<vmem>>, vector<1x64xf32>
    %195 = vector.broadcast %194 : vector<1x64xf32> to vector<8x64xf32>
    %196 = arith.addf %193, %195 : vector<8x64xf32>
    %cst_88 = arith.constant 0.000000e+00 : f32
    %197 = vector.broadcast %cst_88 : f32 to vector<8x64xf32>
    %198 = arith.maximumf %196, %197 : vector<8x64xf32>
    %c0_89 = arith.constant 0 : index
    %c0_90 = arith.constant 0 : index
    %199 = vector.load %arg23[%c0_89, %c0_90] : memref<64x32xf32, #tpu.memory_space<vmem>>, vector<64x32xf32>
    %cst_91 = arith.constant dense<0.000000e+00> : vector<8x32xf32>
    %200 = tpu.matmul %198, %199, %cst_91 {dimension_numbers = #tpu.dot_dimension_numbers<[1], [0], [0], [1], [0, 0, 1, 1], [], []>} : vector<8x64xf32>, vector<64x32xf32>, vector<8x32xf32> -> vector<8x32xf32>
    %c0_92 = arith.constant 0 : index
    %c0_93 = arith.constant 0 : index
    %201 = vector.load %arg24[%c0_92, %c0_93] : memref<1x32xf32, #tpu.memory_space<vmem>>, vector<1x32xf32>
    %202 = vector.broadcast %201 : vector<1x32xf32> to vector<8x32xf32>
    %203 = arith.addf %200, %202 : vector<8x32xf32>
    %204 = arith.addf %203, %191 : vector<8x32xf32>
    %c0_94 = arith.constant 0 : index
    %c0_95 = arith.constant 0 : index
    %205 = vector.load %arg25[%c0_94, %c0_95] : memref<1x32xf32, #tpu.memory_space<vmem>>, vector<1x32xf32>
    %c0_96 = arith.constant 0 : index
    %c0_97 = arith.constant 0 : index
    %206 = vector.load %arg26[%c0_96, %c0_97] : memref<1x32xf32, #tpu.memory_space<vmem>>, vector<1x32xf32>
    %cst_98 = arith.constant dense<0.000000e+00> : vector<8xf32>
    %207 = vector.multi_reduction <add>, %204, %cst_98 [1] : vector<8x32xf32> to vector<8xf32>
    %208 = vector.shape_cast %207 : vector<8xf32> to vector<8x1xf32>
    %cst_99 = arith.constant 3.200000e+01 : f32
    %209 = vector.broadcast %cst_99 : f32 to vector<8x1xf32>
    %210 = arith.divf %208, %209 : vector<8x1xf32>
    %211 = vector.broadcast %210 : vector<8x1xf32> to vector<8x32xf32>
    %212 = arith.subf %204, %211 : vector<8x32xf32>
    %213 = arith.mulf %212, %212 : vector<8x32xf32>
    %cst_100 = arith.constant dense<0.000000e+00> : vector<8xf32>
    %214 = vector.multi_reduction <add>, %213, %cst_100 [1] : vector<8x32xf32> to vector<8xf32>
    %215 = vector.shape_cast %214 : vector<8xf32> to vector<8x1xf32>
    %cst_101 = arith.constant 3.200000e+01 : f32
    %216 = vector.broadcast %cst_101 : f32 to vector<8x1xf32>
    %217 = arith.divf %215, %216 : vector<8x1xf32>
    %218 = vector.broadcast %210 : vector<8x1xf32> to vector<8x32xf32>
    %219 = arith.subf %204, %218 : vector<8x32xf32>
    %cst_102 = arith.constant 9.99999974E-6 : f32
    %220 = vector.broadcast %cst_102 : f32 to vector<8x1xf32>
    %221 = arith.addf %217, %220 : vector<8x1xf32>
    %222 = math.rsqrt %221 : vector<8x1xf32>
    %223 = vector.broadcast %222 : vector<8x1xf32> to vector<8x32xf32>
    %224 = arith.mulf %219, %223 : vector<8x32xf32>
    %225 = vector.broadcast %205 : vector<1x32xf32> to vector<8x32xf32>
    %226 = arith.mulf %224, %225 : vector<8x32xf32>
    %227 = vector.broadcast %206 : vector<1x32xf32> to vector<8x32xf32>
    %228 = arith.addf %226, %227 : vector<8x32xf32>
    %c0_103 = arith.constant 0 : index
    %c0_104 = arith.constant 0 : index
    %c0_105 = arith.constant 0 : index
    %229 = vector.load %arg27[%c0_103, %c0_104, %c0_105] : memref<1x8x32xf32, #tpu.memory_space<vmem>>, vector<1x8x32xf32>
    %230 = vector.shape_cast %229 : vector<1x8x32xf32> to vector<8x32xf32>
    %231 = vector.shape_cast %228 : vector<8x32xf32> to vector<1x8x32xf32>
    tpu.vector_store %arg27[%c0_103, %c0_104, %c0_105], %231 {strides = array<i32>} : memref<1x8x32xf32, #tpu.memory_space<vmem>>, vector<1x8x32xf32>,
    %c0_106 = arith.constant 0 : index
    %c0_107 = arith.constant 0 : index
    %c0_108 = arith.constant 0 : index
    %c0_109 = arith.constant 0 : index
    %232 = vector.load %arg28[%c0_106, %c0_107, %c0_108, %c0_109] : memref<1x4x8x16xf32, #tpu.memory_space<vmem>>, vector<1x4x8x16xf32>
    %233 = vector.shape_cast %232 : vector<1x4x8x16xf32> to vector<4x8x16xf32>
    %234 = vector.shape_cast %140 : vector<4x8x16xf32> to vector<1x4x8x16xf32>
    tpu.vector_store %arg28[%c0_106, %c0_107, %c0_108, %c0_109], %234 {strides = array<i32>} : memref<1x4x8x16xf32, #tpu.memory_space<vmem>>, vector<1x4x8x16xf32>,
    return
  }
  func.func @transform_0(%arg0: i32, %arg1: i32) -> (i32, i32, i32) {
    %c0_i32 = arith.constant 0 : i32
    %c0_i32_0 = arith.constant 0 : i32
    return %arg0, %arg1, %c0_i32 : i32, i32, i32
  }
  func.func @transform_1(%arg0: i32, %arg1: i32) -> (i32, i32, i32, i32) {
    %c0_i32 = arith.constant 0 : i32
    %c0_i32_0 = arith.constant 0 : i32
    %c0_i32_1 = arith.constant 0 : i32
    %c0_i32_2 = arith.constant 0 : i32
    return %arg0, %c0_i32, %c0_i32_0, %c0_i32_1 : i32, i32, i32, i32
  }
  func.func @transform_2(%arg0: i32, %arg1: i32) -> (i32, i32, i32, i32) {
    %c0_i32 = arith.constant 0 : i32
    %c0_i32_0 = arith.constant 0 : i32
    %c0_i32_1 = arith.constant 0 : i32
    %c0_i32_2 = arith.constant 0 : i32
    return %arg0, %c0_i32, %c0_i32_0, %c0_i32_1 : i32, i32, i32, i32
  }
  func.func @transform_3(%arg0: i32, %arg1: i32) -> (i32, i32, i32, i32) {
    %c0_i32 = arith.constant 0 : i32
    %c0_i32_0 = arith.constant 0 : i32
    %c0_i32_1 = arith.constant 0 : i32
    %c0_i32_2 = arith.constant 0 : i32
    return %arg0, %c0_i32, %c0_i32_0, %c0_i32_1 : i32, i32, i32, i32
  }
  func.func @transform_4(%arg0: i32, %arg1: i32) -> (i32, i32, i32, i32) {
    %c0_i32 = arith.constant 0 : i32
    %c0_i32_0 = arith.constant 0 : i32
    %c0_i32_1 = arith.constant 0 : i32
    %c0_i32_2 = arith.constant 0 : i32
    return %arg0, %c0_i32, %c0_i32_0, %c0_i32_1 : i32, i32, i32, i32
  }
  func.func @transform_5(%arg0: i32, %arg1: i32) -> (i32, i32, i32) {
    %c0_i32 = arith.constant 0 : i32
    %c0_i32_0 = arith.constant 0 : i32
    %c0_i32_1 = arith.constant 0 : i32
    return %arg0, %c0_i32, %c0_i32_0 : i32, i32, i32
  }
  func.func @transform_6(%arg0: i32, %arg1: i32) -> (i32, i32, i32) {
    %c0_i32 = arith.constant 0 : i32
    %c0_i32_0 = arith.constant 0 : i32
    %c0_i32_1 = arith.constant 0 : i32
    return %arg0, %c0_i32, %c0_i32_0 : i32, i32, i32
  }
  func.func @transform_7(%arg0: i32, %arg1: i32) -> (i32, i32) {
    %c0_i32 = arith.constant 0 : i32
    %c0_i32_0 = arith.constant 0 : i32
    %c0_i32_1 = arith.constant 0 : i32
    return %c0_i32, %c0_i32_0 : i32, i32
  }
  func.func @transform_8(%arg0: i32, %arg1: i32) -> (i32, i32) {
    %c0_i32 = arith.constant 0 : i32
    %c0_i32_0 = arith.constant 0 : i32
    %c0_i32_1 = arith.constant 0 : i32
    return %c0_i32, %c0_i32_0 : i32, i32
  }
  func.func @transform_9(%arg0: i32, %arg1: i32) -> (i32, i32, i32) {
    %c0_i32 = arith.constant 0 : i32
    %c0_i32_0 = arith.constant 0 : i32
    %c0_i32_1 = arith.constant 0 : i32
    %c0_i32_2 = arith.constant 0 : i32
    return %c0_i32, %c0_i32_0, %c0_i32_1 : i32, i32, i32
  }
  func.func @transform_10(%arg0: i32, %arg1: i32) -> (i32, i32) {
    %c0_i32 = arith.constant 0 : i32
    %c0_i32_0 = arith.constant 0 : i32
    %c0_i32_1 = arith.constant 0 : i32
    return %c0_i32, %c0_i32_0 : i32, i32
  }
  func.func @transform_11(%arg0: i32, %arg1: i32) -> (i32, i32) {
    %c0_i32 = arith.constant 0 : i32
    %c0_i32_0 = arith.constant 0 : i32
    %c0_i32_1 = arith.constant 0 : i32
    return %c0_i32, %c0_i32_0 : i32, i32
  }
  func.func @transform_12(%arg0: i32, %arg1: i32) -> (i32, i32) {
    %c0_i32 = arith.constant 0 : i32
    %c0_i32_0 = arith.constant 0 : i32
    %c0_i32_1 = arith.constant 0 : i32
    return %c0_i32, %c0_i32_0 : i32, i32
  }
  func.func @transform_13(%arg0: i32, %arg1: i32) -> (i32, i32) {
    %c0_i32 = arith.constant 0 : i32
    %c0_i32_0 = arith.constant 0 : i32
    %c0_i32_1 = arith.constant 0 : i32
    return %c0_i32, %c0_i32_0 : i32, i32
  }
  func.func @transform_14(%arg0: i32, %arg1: i32) -> (i32, i32) {
    %c0_i32 = arith.constant 0 : i32
    %c0_i32_0 = arith.constant 0 : i32
    %c0_i32_1 = arith.constant 0 : i32
    return %c0_i32, %c0_i32_0 : i32, i32
  }
  func.func @transform_15(%arg0: i32, %arg1: i32) -> (i32, i32, i32) {
    %c0_i32 = arith.constant 0 : i32
    %c0_i32_0 = arith.constant 0 : i32
    %c0_i32_1 = arith.constant 0 : i32
    %c0_i32_2 = arith.constant 0 : i32
    return %c0_i32, %c0_i32_0, %c0_i32_1 : i32, i32, i32
  }
  func.func @transform_16(%arg0: i32, %arg1: i32) -> (i32, i32) {
    %c0_i32 = arith.constant 0 : i32
    %c0_i32_0 = arith.constant 0 : i32
    %c0_i32_1 = arith.constant 0 : i32
    return %c0_i32, %c0_i32_0 : i32, i32
  }
  func.func @transform_17(%arg0: i32, %arg1: i32) -> (i32, i32) {
    %c0_i32 = arith.constant 0 : i32
    %c0_i32_0 = arith.constant 0 : i32
    %c0_i32_1 = arith.constant 0 : i32
    return %c0_i32, %c0_i32_0 : i32, i32
  }
  func.func @transform_18(%arg0: i32, %arg1: i32) -> (i32, i32) {
    %c0_i32 = arith.constant 0 : i32
    %c0_i32_0 = arith.constant 0 : i32
    %c0_i32_1 = arith.constant 0 : i32
    return %c0_i32, %c0_i32_0 : i32, i32
  }
  func.func @transform_19(%arg0: i32, %arg1: i32) -> (i32, i32) {
    %c0_i32 = arith.constant 0 : i32
    %c0_i32_0 = arith.constant 0 : i32
    %c0_i32_1 = arith.constant 0 : i32
    return %c0_i32, %c0_i32_0 : i32, i32
  }
  func.func @transform_20(%arg0: i32, %arg1: i32) -> (i32, i32) {
    %c0_i32 = arith.constant 0 : i32
    %c0_i32_0 = arith.constant 0 : i32
    %c0_i32_1 = arith.constant 0 : i32
    return %c0_i32, %c0_i32_0 : i32, i32
  }
  func.func @transform_21(%arg0: i32, %arg1: i32) -> (i32, i32) {
    %c0_i32 = arith.constant 0 : i32
    %c0_i32_0 = arith.constant 0 : i32
    %c0_i32_1 = arith.constant 0 : i32
    return %c0_i32, %c0_i32_0 : i32, i32
  }
  func.func @transform_22(%arg0: i32, %arg1: i32) -> (i32, i32) {
    %c0_i32 = arith.constant 0 : i32
    %c0_i32_0 = arith.constant 0 : i32
    %c0_i32_1 = arith.constant 0 : i32
    return %c0_i32, %c0_i32_0 : i32, i32
  }
  func.func @transform_23(%arg0: i32, %arg1: i32) -> (i32, i32) {
    %c0_i32 = arith.constant 0 : i32
    %c0_i32_0 = arith.constant 0 : i32
    %c0_i32_1 = arith.constant 0 : i32
    return %c0_i32, %c0_i32_0 : i32, i32
  }
  func.func @transform_24(%arg0: i32, %arg1: i32) -> (i32, i32) {
    %c0_i32 = arith.constant 0 : i32
    %c0_i32_0 = arith.constant 0 : i32
    %c0_i32_1 = arith.constant 0 : i32
    return %c0_i32, %c0_i32_0 : i32, i32
  }
  func.func @transform_25(%arg0: i32, %arg1: i32) -> (i32, i32, i32) {
    %c0_i32 = arith.constant 0 : i32
    %c0_i32_0 = arith.constant 0 : i32
    return %arg0, %arg1, %c0_i32 : i32, i32, i32
  }
  func.func @transform_26(%arg0: i32, %arg1: i32) -> (i32, i32, i32, i32) {
    %c0_i32 = arith.constant 0 : i32
    %c0_i32_0 = arith.constant 0 : i32
    %c0_i32_1 = arith.constant 0 : i32
    return %arg0, %c0_i32, %arg1, %c0_i32_0 : i32, i32, i32, i32
  }
}

</mosaic_0001>

<llo_original>
// kernel: tpu_custom_call.1
$region0: #{tpu_custom_call.1}
  #allocation0 [shape = 'u32[]', space=smem, size = 0x4, offset = 0x4, fixed_abs, tag = 'smem constant byte address 0x4 - core index']
  #allocation1 [shape = 'u32[144,128]{1,0:T(1,128)}', space=vmem, size = 0x12000, scoped, tag = 'internal scratch']
  %s0 = inlined_call_operand.vmem [shape: f32[2,8,32], index: 0, kind: input, shape index: {}]
  %s1 = inlined_call_operand.vmem [shape: f32[2,4,8,8], index: 1, kind: input, shape index: {}]
  %s2 = inlined_call_operand.vmem [shape: f32[2,4,8,8], index: 2, kind: input, shape index: {}]
  %s3 = inlined_call_operand.vmem [shape: f32[2,4,16,8], index: 3, kind: input, shape index: {}]
  %s4 = inlined_call_operand.vmem [shape: f32[2,4,16,8], index: 4, kind: input, shape index: {}]
  %s5 = inlined_call_operand.vmem [shape: f32[2,1,8], index: 5, kind: input, shape index: {}]
  %s6 = inlined_call_operand.vmem [shape: f32[2,1,16], index: 6, kind: input, shape index: {}]
  %s7 = inlined_call_operand.vmem [shape: f32[32,32], index: 7, kind: input, shape index: {}]
  %s8 = inlined_call_operand.vmem [shape: f32[1,32], index: 8, kind: input, shape index: {}]
  %s9 = inlined_call_operand.vmem [shape: f32[4,8,32], index: 9, kind: input, shape index: {}]
  %s10 = inlined_call_operand.vmem [shape: f32[1,32], index: 10, kind: input, shape index: {}]
  %s11 = inlined_call_operand.vmem [shape: f32[1,32], index: 11, kind: input, shape index: {}]
  %s12 = inlined_call_operand.vmem [shape: f32[1,32], index: 12, kind: input, shape index: {}]
  %s13 = inlined_call_operand.vmem [shape: f32[32,32], index: 13, kind: input, shape index: {}]
  %s14 = inlined_call_operand.vmem [shape: f32[1,32], index: 14, kind: input, shape index: {}]
  %s15 = inlined_call_operand.vmem [shape: f32[4,8,32], index: 15, kind: input, shape index: {}]
  %s16 = inlined_call_operand.vmem [shape: f32[1,32], index: 16, kind: input, shape index: {}]
  %s17 = inlined_call_operand.vmem [shape: f32[1,32], index: 17, kind: input, shape index: {}]
  %s18 = inlined_call_operand.vmem [shape: f32[1,32], index: 18, kind: input, shape index: {}]
  %s19 = inlined_call_operand.vmem [shape: f32[32,64], index: 19, kind: input, shape index: {}]
  %s20 = inlined_call_operand.vmem [shape: f32[1,64], index: 20, kind: input, shape index: {}]
  %s21 = inlined_call_operand.vmem [shape: f32[64,32], index: 21, kind: input, shape index: {}]
  %s22 = inlined_call_operand.vmem [shape: f32[1,32], index: 22, kind: input, shape index: {}]
  %s23 = inlined_call_operand.vmem [shape: f32[1,32], index: 23, kind: input, shape index: {}]
  %s24 = inlined_call_operand.vmem [shape: f32[1,32], index: 24, kind: input, shape index: {}]
  %s25 = inlined_call_operand.hbm [shape: f32[2,8,32], index: 25, kind: output, shape index: {0}]
  %s26 = inlined_call_operand.hbm [shape: f32[2,4,8,16], index: 26, kind: output, shape index: {1}]
  %27 = xla_tuple %s25, %s26
  %s28 = sld [smem:[#allocation0]]
  $region141: #{tpu_custom_call.1} parent=0
    _
  %s30 = ssub.s32 1, %s28
  %s31 = scalar_select 0, %s30, %s28
  $region1: #{tpu_custom_call.1} parent=0
    #allocation2 [shape = 'u8[8192]{0}', space=vmem, size = 0x2000, scoped, tag = 'output window, operand 0']
    #allocation3 [shape = 's32[2]{0}', space=sflag, size = 0x8, scoped, tag = 'scoped memory for tpu_custom_call.1']
    #allocation4 [shape = 'u8[32768]{0}', space=vmem, size = 0x8000, scoped, tag = 'output window, operand 1']
    #allocation5 [shape = 's32[2]{0}', space=sflag, size = 0x8, scoped, tag = 'scoped memory for tpu_custom_call.1']
    %32 = vsyncpa [#allocation3], 0
    %s33 = scalar_lea.sflag [#allocation3], 1
    %34 = vsyncpa %s33, 0
    %35 = vsyncpa [#allocation5], 0
    %s36 = scalar_lea.sflag [#allocation5], 1
    %37 = vsyncpa %s36, 0
    loop: start=0, step=1, limit=4
    $region2: #{tpu_custom_call.1} parent=1 // loop_pre_header
      _
    $region3: #{tpu_custom_call.1} parent=1 // loop_header
      %s39 = sphi 0, %s43
      %p40 = scmp.ge.s32.totalorder %s39, 4
      %s46 = sphi 0, %s58
      %s47 = sphi 0, %s54
      %s48 = sphi 0, %s46
      %s49 = sphi 0, %s47
      %s50 = sphi 0, %s48
      %s51 = sphi 0, %s49
      %s63 = sphi 0, %s65
      %s66 = sphi 0, %s63
      %s67 = sphi 0, %s66
      %s83 = sphi 0, %s67
      %s89 = sphi 0, %s91
      %s92 = sphi 0, %s89
      %s93 = sphi 0, %s92
      %s109 = sphi 0, %s93
      %s115 = sphi 0, %s117
      %s118 = sphi 0, %s115
      %s119 = sphi 0, %s118
      %s135 = sphi 0, %s119
      %s141 = sphi 0, %s143
      %s144 = sphi 0, %s141
      %s145 = sphi 0, %s144
      %s161 = sphi 0, %s145
      %s167 = sphi 0, %s169
      %s170 = sphi 0, %s167
      %s171 = sphi 0, %s170
      %s187 = sphi 0, %s171
      %s193 = sphi 0, %s195
      %s196 = sphi 0, %s193
      %s197 = sphi 0, %s196
      %s213 = sphi 0, %s197
      %s219 = sphi 0, %s221
      %s222 = sphi 0, %s219
      %s223 = sphi 0, %s222
      %s239 = sphi 0, %s223
      %s243 = sphi 0, %s243
      %s245 = sphi 0, %s243
      %s246 = sphi 0, %s245
      %s260 = sphi 0, %s246
      %s264 = sphi 0, %s264
      %s266 = sphi 0, %s264
      %s267 = sphi 0, %s266
      %s281 = sphi 0, %s267
      %s285 = sphi 0, %s285
      %s287 = sphi 0, %s285
      %s288 = sphi 0, %s287
      %s302 = sphi 0, %s288
      %s306 = sphi 0, %s306
      %s308 = sphi 0, %s306
      %s309 = sphi 0, %s308
      %s323 = sphi 0, %s309
      %s327 = sphi 0, %s327
      %s329 = sphi 0, %s327
      %s330 = sphi 0, %s329
      %s344 = sphi 0, %s330
      %s348 = sphi 0, %s348
      %s350 = sphi 0, %s348
      %s351 = sphi 0, %s350
      %s365 = sphi 0, %s351
      %s369 = sphi 0, %s369
      %s371 = sphi 0, %s369
      %s372 = sphi 0, %s371
      %s386 = sphi 0, %s372
      %s390 = sphi 0, %s390
      %s392 = sphi 0, %s390
      %s393 = sphi 0, %s392
      %s407 = sphi 0, %s393
      %s411 = sphi 0, %s411
      %s413 = sphi 0, %s411
      %s414 = sphi 0, %s413
      %s428 = sphi 0, %s414
      %s432 = sphi 0, %s432
      %s434 = sphi 0, %s432
      %s435 = sphi 0, %s434
      %s449 = sphi 0, %s435
      %s453 = sphi 0, %s453
      %s455 = sphi 0, %s453
      %s456 = sphi 0, %s455
      %s470 = sphi 0, %s456
      %s474 = sphi 0, %s474
      %s476 = sphi 0, %s474
      %s477 = sphi 0, %s476
      %s491 = sphi 0, %s477
      %s495 = sphi 0, %s495
      %s497 = sphi 0, %s495
      %s498 = sphi 0, %s497
      %s512 = sphi 0, %s498
      %s516 = sphi 0, %s516
      %s518 = sphi 0, %s516
      %s519 = sphi 0, %s518
      %s533 = sphi 0, %s519
      %s537 = sphi 0, %s537
      %s539 = sphi 0, %s537
      %s540 = sphi 0, %s539
      %s554 = sphi 0, %s540
      %s558 = sphi 0, %s558
      %s560 = sphi 0, %s558
      %s561 = sphi 0, %s560
      %s575 = sphi 0, %s561
      %s579 = sphi 0, %s579
      %s581 = sphi 0, %s579
      %s582 = sphi 0, %s581
      %s596 = sphi 0, %s582
      %s600 = sphi 0, %s600
      %s602 = sphi 0, %s600
      %s603 = sphi 0, %s602
      %s617 = sphi 0, %s603
      %s625 = sphi 0, %s627
      %s628 = sphi 0, %s625
      %s629 = sphi 0, %s628
      %s645 = sphi 0, %s629
      %s653 = sphi 0, %s655
      %s656 = sphi 0, %s653
      %s657 = sphi 0, %s656
      %s673 = sphi 0, %s657
    $region4: #{tpu_custom_call.1} parent=1 // loop_header_branch
      %42 = sbr.rel (%p40) target = $region8
    $region5: #{tpu_custom_call.1} parent=1 // loop_body
      %s44 = ssub.s32 %s39, 1
      %s45 = ssub.s32 %s39, 2
      %s52 = sadd.s32 1, %s47
      %p53 = scmp.ge.s32.totalorder %s52, 1
      %s54 = scalar_select %p53, 0, %s52
      %s55 = sadd.s32 1, %s46
      %s56 = scalar_select %p53, %s55, %s46
      %p57 = scmp.ge.s32.totalorder %s56, 2
      %s58 = scalar_select %p57, 0, %s56
      %s59 = ssub.s32 %s46, %s58
      %s60 = ssub.s32 %s47, %s54
      %s61 = sor.u32 %s59, %s60
      %p62 = scmp.eq.s32.totalorder %s61, 0
      %s64 = sadd.s32 %s63, 1
      %s65 = scalar_select %p62, %s63, %s64
      %p68 = pneg %p62
      %p69 = scmp.eq.s32.totalorder %s39, 1
      %p70 = por %p68, %p69
      %p71 = scmp.ne.s32.totalorder %s63, %s66
      %p72 = scmp.eq.s32.totalorder %s39, 0
      %p73 = por %p71, %p72
      %p74 = scmp.ne.s32.totalorder %s63, %s66
      %p75 = scmp.eq.s32.totalorder %s44, 1
      %p76 = por %p74, %p75
      %p77 = scmp.ne.s32.totalorder %s66, %s67
      %p78 = scmp.eq.s32.totalorder %s44, 0
      %p79 = por %p77, %p78
      %p80 = scmp.ne.s32.totalorder %s66, %s67
      %p81 = scmp.eq.s32.totalorder %s45, 1
      %p82 = por %p80, %p81
      %p84 = scmp.ne.s32.totalorder %s67, %s83
      %p85 = scmp.eq.s32.totalorder %s45, 0
      %p86 = por %p84, %p85
      %s87 = ssub.s32 %s46, %s58
      %p88 = scmp.eq.s32.totalorder %s87, 0
      %s90 = sadd.s32 %s89, 1
      %s91 = scalar_select %p88, %s89, %s90
      %p94 = pneg %p88
      %p95 = scmp.eq.s32.totalorder %s39, 1
      %p96 = por %p94, %p95
      %p97 = scmp.ne.s32.totalorder %s89, %s92
      %p98 = scmp.eq.s32.totalorder %s39, 0
      %p99 = por %p97, %p98
      %p100 = scmp.ne.s32.totalorder %s89, %s92
      %p101 = scmp.eq.s32.totalorder %s44, 1
      %p102 = por %p100, %p101
      %p103 = scmp.ne.s32.totalorder %s92, %s93
      %p104 = scmp.eq.s32.totalorder %s44, 0
      %p105 = por %p103, %p104
      %p106 = scmp.ne.s32.totalorder %s92, %s93
      %p107 = scmp.eq.s32.totalorder %s45, 1
      %p108 = por %p106, %p107
      %p110 = scmp.ne.s32.totalorder %s93, %s109
      %p111 = scmp.eq.s32.totalorder %s45, 0
      %p112 = por %p110, %p111
      %s113 = ssub.s32 %s46, %s58
      %p114 = scmp.eq.s32.totalorder %s113, 0
      %s116 = sadd.s32 %s115, 1
      %s117 = scalar_select %p114, %s115, %s116
      %p120 = pneg %p114
      %p121 = scmp.eq.s32.totalorder %s39, 1
      %p122 = por %p120, %p121
      %p123 = scmp.ne.s32.totalorder %s115, %s118
      %p124 = scmp.eq.s32.totalorder %s39, 0
      %p125 = por %p123, %p124
      %p126 = scmp.ne.s32.totalorder %s115, %s118
      %p127 = scmp.eq.s32.totalorder %s44, 1
      %p128 = por %p126, %p127
      %p129 = scmp.ne.s32.totalorder %s118, %s119
      %p130 = scmp.eq.s32.totalorder %s44, 0
      %p131 = por %p129, %p130
      %p132 = scmp.ne.s32.totalorder %s118, %s119
      %p133 = scmp.eq.s32.totalorder %s45, 1
      %p134 = por %p132, %p133
      %p136 = scmp.ne.s32.totalorder %s119, %s135
      %p137 = scmp.eq.s32.totalorder %s45, 0
      %p138 = por %p136, %p137
      %s139 = ssub.s32 %s46, %s58
      %p140 = scmp.eq.s32.totalorder %s139, 0
      %s142 = sadd.s32 %s141, 1
      %s143 = scalar_select %p140, %s141, %s142
      %p146 = pneg %p140
      %p147 = scmp.eq.s32.totalorder %s39, 1
      %p148 = por %p146, %p147
      %p149 = scmp.ne.s32.totalorder %s141, %s144
      %p150 = scmp.eq.s32.totalorder %s39, 0
      %p151 = por %p149, %p150
      %p152 = scmp.ne.s32.totalorder %s141, %s144
      %p153 = scmp.eq.s32.totalorder %s44, 1
      %p154 = por %p152, %p153
      %p155 = scmp.ne.s32.totalorder %s144, %s145
      %p156 = scmp.eq.s32.totalorder %s44, 0
      %p157 = por %p155, %p156
      %p158 = scmp.ne.s32.totalorder %s144, %s145
      %p159 = scmp.eq.s32.totalorder %s45, 1
      %p160 = por %p158, %p159
      %p162 = scmp.ne.s32.totalorder %s145, %s161
      %p163 = scmp.eq.s32.totalorder %s45, 0
      %p164 = por %p162, %p163
      %s165 = ssub.s32 %s46, %s58
      %p166 = scmp.eq.s32.totalorder %s165, 0
      %s168 = sadd.s32 %s167, 1
      %s169 = scalar_select %p166, %s167, %s168
      %p172 = pneg %p166
      %p173 = scmp.eq.s32.totalorder %s39, 1
      %p174 = por %p172, %p173
      %p175 = scmp.ne.s32.totalorder %s167, %s170
      %p176 = scmp.eq.s32.totalorder %s39, 0
      %p177 = por %p175, %p176
      %p178 = scmp.ne.s32.totalorder %s167, %s170
      %p179 = scmp.eq.s32.totalorder %s44, 1
      %p180 = por %p178, %p179
      %p181 = scmp.ne.s32.totalorder %s170, %s171
      %p182 = scmp.eq.s32.totalorder %s44, 0
      %p183 = por %p181, %p182
      %p184 = scmp.ne.s32.totalorder %s170, %s171
      %p185 = scmp.eq.s32.totalorder %s45, 1
      %p186 = por %p184, %p185
      %p188 = scmp.ne.s32.totalorder %s171, %s187
      %p189 = scmp.eq.s32.totalorder %s45, 0
      %p190 = por %p188, %p189
      %s191 = ssub.s32 %s46, %s58
      %p192 = scmp.eq.s32.totalorder %s191, 0
      %s194 = sadd.s32 %s193, 1
      %s195 = scalar_select %p192, %s193, %s194
      %p198 = pneg %p192
      %p199 = scmp.eq.s32.totalorder %s39, 1
      %p200 = por %p198, %p199
      %p201 = scmp.ne.s32.totalorder %s193, %s196
      %p202 = scmp.eq.s32.totalorder %s39, 0
      %p203 = por %p201, %p202
      %p204 = scmp.ne.s32.totalorder %s193, %s196
      %p205 = scmp.eq.s32.totalorder %s44, 1
      %p206 = por %p204, %p205
      %p207 = scmp.ne.s32.totalorder %s196, %s197
      %p208 = scmp.eq.s32.totalorder %s44, 0
      %p209 = por %p207, %p208
      %p210 = scmp.ne.s32.totalorder %s196, %s197
      %p211 = scmp.eq.s32.totalorder %s45, 1
      %p212 = por %p210, %p211
      %p214 = scmp.ne.s32.totalorder %s197, %s213
      %p215 = scmp.eq.s32.totalorder %s45, 0
      %p216 = por %p214, %p215
      %s217 = ssub.s32 %s46, %s58
      %p218 = scmp.eq.s32.totalorder %s217, 0
      %s220 = sadd.s32 %s219, 1
      %s221 = scalar_select %p218, %s219, %s220
      %p224 = pneg %p218
      %p225 = scmp.eq.s32.totalorder %s39, 1
      %p226 = por %p224, %p225
      %p227 = scmp.ne.s32.totalorder %s219, %s222
      %p228 = scmp.eq.s32.totalorder %s39, 0
      %p229 = por %p227, %p228
      %p230 = scmp.ne.s32.totalorder %s219, %s222
      %p231 = scmp.eq.s32.totalorder %s44, 1
      %p232 = por %p230, %p231
      %p233 = scmp.ne.s32.totalorder %s222, %s223
      %p234 = scmp.eq.s32.totalorder %s44, 0
      %p235 = por %p233, %p234
      %p236 = scmp.ne.s32.totalorder %s222, %s223
      %p237 = scmp.eq.s32.totalorder %s45, 1
      %p238 = por %p236, %p237
      %p240 = scmp.ne.s32.totalorder %s223, %s239
      %p241 = scmp.eq.s32.totalorder %s45, 0
      %p242 = por %p240, %p241
      %s244 = sadd.s32 %s243, 1
      %p247 = scmp.eq.s32.totalorder %s39, 1
      %p248 = scmp.ne.s32.totalorder %s243, %s245
      %p249 = scmp.eq.s32.totalorder %s39, 0
      %p250 = por %p248, %p249
      %p251 = scmp.ne.s32.totalorder %s243, %s245
      %p252 = scmp.eq.s32.totalorder %s44, 1
      %p253 = por %p251, %p252
      %p254 = scmp.ne.s32.totalorder %s245, %s246
      %p255 = scmp.eq.s32.totalorder %s44, 0
      %p256 = por %p254, %p255
      %p257 = scmp.ne.s32.totalorder %s245, %s246
      %p258 = scmp.eq.s32.totalorder %s45, 1
      %p259 = por %p257, %p258
      %p261 = scmp.ne.s32.totalorder %s246, %s260
      %p262 = scmp.eq.s32.totalorder %s45, 0
      %p263 = por %p261, %p262
      %s265 = sadd.s32 %s264, 1
      %p268 = scmp.eq.s32.totalorder %s39, 1
      %p269 = scmp.ne.s32.totalorder %s264, %s266
      %p270 = scmp.eq.s32.totalorder %s39, 0
      %p271 = por %p269, %p270
      %p272 = scmp.ne.s32.totalorder %s264, %s266
      %p273 = scmp.eq.s32.totalorder %s44, 1
      %p274 = por %p272, %p273
      %p275 = scmp.ne.s32.totalorder %s266, %s267
      %p276 = scmp.eq.s32.totalorder %s44, 0
      %p277 = por %p275, %p276
      %p278 = scmp.ne.s32.totalorder %s266, %s267
      %p279 = scmp.eq.s32.totalorder %s45, 1
      %p280 = por %p278, %p279
      %p282 = scmp.ne.s32.totalorder %s267, %s281
      %p283 = scmp.eq.s32.totalorder %s45, 0
      %p284 = por %p282, %p283
      %s286 = sadd.s32 %s285, 1
      %p289 = scmp.eq.s32.totalorder %s39, 1
      %p290 = scmp.ne.s32.totalorder %s285, %s287
      %p291 = scmp.eq.s32.totalorder %s39, 0
      %p292 = por %p290, %p291
      %p293 = scmp.ne.s32.totalorder %s285, %s287
      %p294 = scmp.eq.s32.totalorder %s44, 1
      %p295 = por %p293, %p294
      %p296 = scmp.ne.s32.totalorder %s287, %s288
      %p297 = scmp.eq.s32.totalorder %s44, 0
      %p298 = por %p296, %p297
      %p299 = scmp.ne.s32.totalorder %s287, %s288
      %p300 = scmp.eq.s32.totalorder %s45, 1
      %p301 = por %p299, %p300
      %p303 = scmp.ne.s32.totalorder %s288, %s302
      %p304 = scmp.eq.s32.totalorder %s45, 0
      %p305 = por %p303, %p304
      %s307 = sadd.s32 %s306, 1
      %p310 = scmp.eq.s32.totalorder %s39, 1
      %p311 = scmp.ne.s32.totalorder %s306, %s308
      %p312 = scmp.eq.s32.totalorder %s39, 0
      %p313 = por %p311, %p312
      %p314 = scmp.ne.s32.totalorder %s306, %s308
      %p315 = scmp.eq.s32.totalorder %s44, 1
      %p316 = por %p314, %p315
      %p317 = scmp.ne.s32.totalorder %s308, %s309
      %p318 = scmp.eq.s32.totalorder %s44, 0
      %p319 = por %p317, %p318
      %p320 = scmp.ne.s32.totalorder %s308, %s309
      %p321 = scmp.eq.s32.totalorder %s45, 1
      %p322 = por %p320, %p321
      %p324 = scmp.ne.s32.totalorder %s309, %s323
      %p325 = scmp.eq.s32.totalorder %s45, 0
      %p326 = por %p324, %p325
      %s328 = sadd.s32 %s327, 1
      %p331 = scmp.eq.s32.totalorder %s39, 1
      %p332 = scmp.ne.s32.totalorder %s327, %s329
      %p333 = scmp.eq.s32.totalorder %s39, 0
      %p334 = por %p332, %p333
      %p335 = scmp.ne.s32.totalorder %s327, %s329
      %p336 = scmp.eq.s32.totalorder %s44, 1
      %p337 = por %p335, %p336
      %p338 = scmp.ne.s32.totalorder %s329, %s330
      %p339 = scmp.eq.s32.totalorder %s44, 0
      %p340 = por %p338, %p339
      %p341 = scmp.ne.s32.totalorder %s329, %s330
      %p342 = scmp.eq.s32.totalorder %s45, 1
      %p343 = por %p341, %p342
      %p345 = scmp.ne.s32.totalorder %s330, %s344
      %p346 = scmp.eq.s32.totalorder %s45, 0
      %p347 = por %p345, %p346
      %s349 = sadd.s32 %s348, 1
      %p352 = scmp.eq.s32.totalorder %s39, 1
      %p353 = scmp.ne.s32.totalorder %s348, %s350
      %p354 = scmp.eq.s32.totalorder %s39, 0
      %p355 = por %p353, %p354
      %p356 = scmp.ne.s32.totalorder %s348, %s350
      %p357 = scmp.eq.s32.totalorder %s44, 1
      %p358 = por %p356, %p357
      %p359 = scmp.ne.s32.totalorder %s350, %s351
      %p360 = scmp.eq.s32.totalorder %s44, 0
      %p361 = por %p359, %p360
      %p362 = scmp.ne.s32.totalorder %s350, %s351
      %p363 = scmp.eq.s32.totalorder %s45, 1
      %p364 = por %p362, %p363
      %p366 = scmp.ne.s32.totalorder %s351, %s365
      %p367 = scmp.eq.s32.totalorder %s45, 0
      %p368 = por %p366, %p367
      %s370 = sadd.s32 %s369, 1
      %p373 = scmp.eq.s32.totalorder %s39, 1
      %p374 = scmp.ne.s32.totalorder %s369, %s371
      %p375 = scmp.eq.s32.totalorder %s39, 0
      %p376 = por %p374, %p375
      %p377 = scmp.ne.s32.totalorder %s369, %s371
      %p378 = scmp.eq.s32.totalorder %s44, 1
      %p379 = por %p377, %p378
      %p380 = scmp.ne.s32.totalorder %s371, %s372
      %p381 = scmp.eq.s32.totalorder %s44, 0
      %p382 = por %p380, %p381
      %p383 = scmp.ne.s32.totalorder %s371, %s372
      %p384 = scmp.eq.s32.totalorder %s45, 1
      %p385 = por %p383, %p384
      %p387 = scmp.ne.s32.totalorder %s372, %s386
      %p388 = scmp.eq.s32.totalorder %s45, 0
      %p389 = por %p387, %p388
      %s391 = sadd.s32 %s390, 1
      %p394 = scmp.eq.s32.totalorder %s39, 1
      %p395 = scmp.ne.s32.totalorder %s390, %s392
      %p396 = scmp.eq.s32.totalorder %s39, 0
      %p397 = por %p395, %p396
      %p398 = scmp.ne.s32.totalorder %s390, %s392
      %p399 = scmp.eq.s32.totalorder %s44, 1
      %p400 = por %p398, %p399
      %p401 = scmp.ne.s32.totalorder %s392, %s393
      %p402 = scmp.eq.s32.totalorder %s44, 0
      %p403 = por %p401, %p402
      %p404 = scmp.ne.s32.totalorder %s392, %s393
      %p405 = scmp.eq.s32.totalorder %s45, 1
      %p406 = por %p404, %p405
      %p408 = scmp.ne.s32.totalorder %s393, %s407
      %p409 = scmp.eq.s32.totalorder %s45, 0
      %p410 = por %p408, %p409
      %s412 = sadd.s32 %s411, 1
      %p415 = scmp.eq.s32.totalorder %s39, 1
      %p416 = scmp.ne.s32.totalorder %s411, %s413
      %p417 = scmp.eq.s32.totalorder %s39, 0
      %p418 = por %p416, %p417
      %p419 = scmp.ne.s32.totalorder %s411, %s413
      %p420 = scmp.eq.s32.totalorder %s44, 1
      %p421 = por %p419, %p420
      %p422 = scmp.ne.s32.totalorder %s413, %s414
      %p423 = scmp.eq.s32.totalorder %s44, 0
      %p424 = por %p422, %p423
      %p425 = scmp.ne.s32.totalorder %s413, %s414
      %p426 = scmp.eq.s32.totalorder %s45, 1
      %p427 = por %p425, %p426
      %p429 = scmp.ne.s32.totalorder %s414, %s428
      %p430 = scmp.eq.s32.totalorder %s45, 0
      %p431 = por %p429, %p430
      %s433 = sadd.s32 %s432, 1
      %p436 = scmp.eq.s32.totalorder %s39, 1
      %p437 = scmp.ne.s32.totalorder %s432, %s434
      %p438 = scmp.eq.s32.totalorder %s39, 0
      %p439 = por %p437, %p438
      %p440 = scmp.ne.s32.totalorder %s432, %s434
      %p441 = scmp.eq.s32.totalorder %s44, 1
      %p442 = por %p440, %p441
      %p443 = scmp.ne.s32.totalorder %s434, %s435
      %p444 = scmp.eq.s32.totalorder %s44, 0
      %p445 = por %p443, %p444
      %p446 = scmp.ne.s32.totalorder %s434, %s435
      %p447 = scmp.eq.s32.totalorder %s45, 1
      %p448 = por %p446, %p447
      %p450 = scmp.ne.s32.totalorder %s435, %s449
      %p451 = scmp.eq.s32.totalorder %s45, 0
      %p452 = por %p450, %p451
      %s454 = sadd.s32 %s453, 1
      %p457 = scmp.eq.s32.totalorder %s39, 1
      %p458 = scmp.ne.s32.totalorder %s453, %s455
      %p459 = scmp.eq.s32.totalorder %s39, 0
      %p460 = por %p458, %p459
      %p461 = scmp.ne.s32.totalorder %s453, %s455
      %p462 = scmp.eq.s32.totalorder %s44, 1
      %p463 = por %p461, %p462
      %p464 = scmp.ne.s32.totalorder %s455, %s456
      %p465 = scmp.eq.s32.totalorder %s44, 0
      %p466 = por %p464, %p465
      %p467 = scmp.ne.s32.totalorder %s455, %s456
      %p468 = scmp.eq.s32.totalorder %s45, 1
      %p469 = por %p467, %p468
      %p471 = scmp.ne.s32.totalorder %s456, %s470
      %p472 = scmp.eq.s32.totalorder %s45, 0
      %p473 = por %p471, %p472
      %s475 = sadd.s32 %s474, 1
      %p478 = scmp.eq.s32.totalorder %s39, 1
      %p479 = scmp.ne.s32.totalorder %s474, %s476
      %p480 = scmp.eq.s32.totalorder %s39, 0
      %p481 = por %p479, %p480
      %p482 = scmp.ne.s32.totalorder %s474, %s476
      %p483 = scmp.eq.s32.totalorder %s44, 1
      %p484 = por %p482, %p483
      %p485 = scmp.ne.s32.totalorder %s476, %s477
      %p486 = scmp.eq.s32.totalorder %s44, 0
      %p487 = por %p485, %p486
      %p488 = scmp.ne.s32.totalorder %s476, %s477
      %p489 = scmp.eq.s32.totalorder %s45, 1
      %p490 = por %p488, %p489
      %p492 = scmp.ne.s32.totalorder %s477, %s491
      %p493 = scmp.eq.s32.totalorder %s45, 0
      %p494 = por %p492, %p493
      %s496 = sadd.s32 %s495, 1
      %p499 = scmp.eq.s32.totalorder %s39, 1
      %p500 = scmp.ne.s32.totalorder %s495, %s497
      %p501 = scmp.eq.s32.totalorder %s39, 0
      %p502 = por %p500, %p501
      %p503 = scmp.ne.s32.totalorder %s495, %s497
      %p504 = scmp.eq.s32.totalorder %s44, 1
      %p505 = por %p503, %p504
      %p506 = scmp.ne.s32.totalorder %s497, %s498
      %p507 = scmp.eq.s32.totalorder %s44, 0
      %p508 = por %p506, %p507
      %p509 = scmp.ne.s32.totalorder %s497, %s498
      %p510 = scmp.eq.s32.totalorder %s45, 1
      %p511 = por %p509, %p510
      %p513 = scmp.ne.s32.totalorder %s498, %s512
      %p514 = scmp.eq.s32.totalorder %s45, 0
      %p515 = por %p513, %p514
      %s517 = sadd.s32 %s516, 1
      %p520 = scmp.eq.s32.totalorder %s39, 1
      %p521 = scmp.ne.s32.totalorder %s516, %s518
      %p522 = scmp.eq.s32.totalorder %s39, 0
      %p523 = por %p521, %p522
      %p524 = scmp.ne.s32.totalorder %s516, %s518
      %p525 = scmp.eq.s32.totalorder %s44, 1
      %p526 = por %p524, %p525
      %p527 = scmp.ne.s32.totalorder %s518, %s519
      %p528 = scmp.eq.s32.totalorder %s44, 0
      %p529 = por %p527, %p528
      %p530 = scmp.ne.s32.totalorder %s518, %s519
      %p531 = scmp.eq.s32.totalorder %s45, 1
      %p532 = por %p530, %p531
      %p534 = scmp.ne.s32.totalorder %s519, %s533
      %p535 = scmp.eq.s32.totalorder %s45, 0
      %p536 = por %p534, %p535
      %s538 = sadd.s32 %s537, 1
      %p541 = scmp.eq.s32.totalorder %s39, 1
      %p542 = scmp.ne.s32.totalorder %s537, %s539
      %p543 = scmp.eq.s32.totalorder %s39, 0
      %p544 = por %p542, %p543
      %p545 = scmp.ne.s32.totalorder %s537, %s539
      %p546 = scmp.eq.s32.totalorder %s44, 1
      %p547 = por %p545, %p546
      %p548 = scmp.ne.s32.totalorder %s539, %s540
      %p549 = scmp.eq.s32.totalorder %s44, 0
      %p550 = por %p548, %p549
      %p551 = scmp.ne.s32.totalorder %s539, %s540
      %p552 = scmp.eq.s32.totalorder %s45, 1
      %p553 = por %p551, %p552
      %p555 = scmp.ne.s32.totalorder %s540, %s554
      %p556 = scmp.eq.s32.totalorder %s45, 0
      %p557 = por %p555, %p556
      %s559 = sadd.s32 %s558, 1
      %p562 = scmp.eq.s32.totalorder %s39, 1
      %p563 = scmp.ne.s32.totalorder %s558, %s560
      %p564 = scmp.eq.s32.totalorder %s39, 0
      %p565 = por %p563, %p564
      %p566 = scmp.ne.s32.totalorder %s558, %s560
      %p567 = scmp.eq.s32.totalorder %s44, 1
      %p568 = por %p566, %p567
      %p569 = scmp.ne.s32.totalorder %s560, %s561
      %p570 = scmp.eq.s32.totalorder %s44, 0
      %p571 = por %p569, %p570
      %p572 = scmp.ne.s32.totalorder %s560, %s561
      %p573 = scmp.eq.s32.totalorder %s45, 1
      %p574 = por %p572, %p573
      %p576 = scmp.ne.s32.totalorder %s561, %s575
      %p577 = scmp.eq.s32.totalorder %s45, 0
      %p578 = por %p576, %p577
      %s580 = sadd.s32 %s579, 1
      %p583 = scmp.eq.s32.totalorder %s39, 1
      %p584 = scmp.ne.s32.totalorder %s579, %s581
      %p585 = scmp.eq.s32.totalorder %s39, 0
      %p586 = por %p584, %p585
      %p587 = scmp.ne.s32.totalorder %s579, %s581
      %p588 = scmp.eq.s32.totalorder %s44, 1
      %p589 = por %p587, %p588
      %p590 = scmp.ne.s32.totalorder %s581, %s582
      %p591 = scmp.eq.s32.totalorder %s44, 0
      %p592 = por %p590, %p591
      %p593 = scmp.ne.s32.totalorder %s581, %s582
      %p594 = scmp.eq.s32.totalorder %s45, 1
      %p595 = por %p593, %p594
      %p597 = scmp.ne.s32.totalorder %s582, %s596
      %p598 = scmp.eq.s32.totalorder %s45, 0
      %p599 = por %p597, %p598
      %s601 = sadd.s32 %s600, 1
      %p604 = scmp.eq.s32.totalorder %s39, 1
      %p605 = scmp.ne.s32.totalorder %s600, %s602
      %p606 = scmp.eq.s32.totalorder %s39, 0
      %p607 = por %p605, %p606
      %p608 = scmp.ne.s32.totalorder %s600, %s602
      %p609 = scmp.eq.s32.totalorder %s44, 1
      %p610 = por %p608, %p609
      %p611 = scmp.ne.s32.totalorder %s602, %s603
      %p612 = scmp.eq.s32.totalorder %s44, 0
      %p613 = por %p611, %p612
      %p614 = scmp.ne.s32.totalorder %s602, %s603
      %p615 = scmp.eq.s32.totalorder %s45, 1
      %p616 = por %p614, %p615
      %p618 = scmp.ne.s32.totalorder %s603, %s617
      %p619 = scmp.eq.s32.totalorder %s45, 0
      %p620 = por %p618, %p619
      %s621 = ssub.s32 %s46, %s58
      %s622 = ssub.s32 %s47, %s54
      %s623 = sor.u32 %s621, %s622
      %p624 = scmp.eq.s32.totalorder %s623, 0
      %s626 = sadd.s32 %s625, 1
      %s627 = scalar_select %p624, %s625, %s626
      %p630 = pneg %p624
      %p631 = scmp.eq.s32.totalorder %s39, 1
      %p632 = por %p630, %p631
      %p633 = scmp.ne.s32.totalorder %s625, %s628
      %p634 = scmp.eq.s32.totalorder %s39, 0
      %p635 = por %p633, %p634
      %p636 = scmp.ne.s32.totalorder %s625, %s628
      %p637 = scmp.eq.s32.totalorder %s44, 1
      %p638 = por %p636, %p637
      %p639 = scmp.ne.s32.totalorder %s628, %s629
      %p640 = scmp.eq.s32.totalorder %s44, 0
      %p641 = por %p639, %p640
      %p642 = scmp.ne.s32.totalorder %s628, %s629
      %p643 = scmp.eq.s32.totalorder %s45, 1
      %p644 = por %p642, %p643
      %p646 = scmp.ne.s32.totalorder %s629, %s645
      %p647 = scmp.eq.s32.totalorder %s45, 0
      %p648 = por %p646, %p647
      %s649 = ssub.s32 %s46, %s58
      %s650 = ssub.s32 %s47, %s54
      %s651 = sor.u32 %s649, %s650
      %p652 = scmp.eq.s32.totalorder %s651, 0
      %s654 = sadd.s32 %s653, 1
      %s655 = scalar_select %p652, %s653, %s654
      %p658 = pneg %p652
      %p659 = scmp.eq.s32.totalorder %s39, 1
      %p660 = por %p658, %p659
      %p661 = scmp.ne.s32.totalorder %s653, %s656
      %p662 = scmp.eq.s32.totalorder %s39, 0
      %p663 = por %p661, %p662
      %p664 = scmp.ne.s32.totalorder %s653, %s656
      %p665 = scmp.eq.s32.totalorder %s44, 1
      %p666 = por %p664, %p665
      %p667 = scmp.ne.s32.totalorder %s656, %s657
      %p668 = scmp.eq.s32.totalorder %s44, 0
      %p669 = por %p667, %p668
      %p670 = scmp.ne.s32.totalorder %s656, %s657
      %p671 = scmp.eq.s32.totalorder %s45, 1
      %p672 = por %p670, %p671
      %p674 = scmp.ne.s32.totalorder %s657, %s673
      %p675 = scmp.eq.s32.totalorder %s45, 0
      %p676 = por %p674, %p675
      %p677 = scmp.le.s32.totalorder 1, %s39
      %p678 = scmp.lt.s32.totalorder %s39, 3
      %p679 = pnand %p677, %p678
      %p680 = pneg %p679
      // Predicated region
      $region9: #{tpu_custom_call.1} parent=5 // pred_check
        _
      $region10: #{tpu_custom_call.1} parent=5 // pred_check_branch
        %682 = sbr.rel (%p679) target = $region12
      $region11: #{tpu_custom_call.1} parent=5 // pred_region
        %s683 = ssub.s32 %s39, 1
        // Predicated region
        $region13: #{tpu_custom_call.1} parent=11 // pred_check
          %p684 = pneg %p256
        $region14: #{tpu_custom_call.1} parent=11 // pred_check_branch
          %686 = sbr.rel (%p684) target = $region16
        $region15: #{tpu_custom_call.1} parent=11 // pred_region
          _
        $region16: #{tpu_custom_call.1} parent=11 // pred_fallthru
          _
        // Predicated region
        $region17: #{tpu_custom_call.1} parent=11 // pred_check
          %p687 = pneg %p277
        $region18: #{tpu_custom_call.1} parent=11 // pred_check_branch
          %689 = sbr.rel (%p687) target = $region20
        $region19: #{tpu_custom_call.1} parent=11 // pred_region
          _
        $region20: #{tpu_custom_call.1} parent=11 // pred_fallthru
          _
        // Predicated region
        $region21: #{tpu_custom_call.1} parent=11 // pred_check
          %p690 = pneg %p298
        $region22: #{tpu_custom_call.1} parent=11 // pred_check_branch
          %692 = sbr.rel (%p690) target = $region24
        $region23: #{tpu_custom_call.1} parent=11 // pred_region
          _
        $region24: #{tpu_custom_call.1} parent=11 // pred_fallthru
          _
        // Predicated region
        $region25: #{tpu_custom_call.1} parent=11 // pred_check
          %p693 = pneg %p319
        $region26: #{tpu_custom_call.1} parent=11 // pred_check_branch
          %695 = sbr.rel (%p693) target = $region28
        $region27: #{tpu_custom_call.1} parent=11 // pred_region
          _
        $region28: #{tpu_custom_call.1} parent=11 // pred_fallthru
          _
        // Predicated region
        $region29: #{tpu_custom_call.1} parent=11 // pred_check
          %p696 = pneg %p340
        $region30: #{tpu_custom_call.1} parent=11 // pred_check_branch
          %698 = sbr.rel (%p696) target = $region32
        $region31: #{tpu_custom_call.1} parent=11 // pred_region
          _
        $region32: #{tpu_custom_call.1} parent=11 // pred_fallthru
          _
        // Predicated region
        $region33: #{tpu_custom_call.1} parent=11 // pred_check
          %p699 = pneg %p361
        $region34: #{tpu_custom_call.1} parent=11 // pred_check_branch
          %701 = sbr.rel (%p699) target = $region36
        $region35: #{tpu_custom_call.1} parent=11 // pred_region
          _
        $region36: #{tpu_custom_call.1} parent=11 // pred_fallthru
          _
        // Predicated region
        $region37: #{tpu_custom_call.1} parent=11 // pred_check
          %p702 = pneg %p382
        $region38: #{tpu_custom_call.1} parent=11 // pred_check_branch
          %704 = sbr.rel (%p702) target = $region40
        $region39: #{tpu_custom_call.1} parent=11 // pred_region
          _
        $region40: #{tpu_custom_call.1} parent=11 // pred_fallthru
          _
        // Predicated region
        $region41: #{tpu_custom_call.1} parent=11 // pred_check
          %p705 = pneg %p403
        $region42: #{tpu_custom_call.1} parent=11 // pred_check_branch
          %707 = sbr.rel (%p705) target = $region44
        $region43: #{tpu_custom_call.1} parent=11 // pred_region
          _
        $region44: #{tpu_custom_call.1} parent=11 // pred_fallthru
          _
        // Predicated region
        $region45: #{tpu_custom_call.1} parent=11 // pred_check
          %p708 = pneg %p424
        $region46: #{tpu_custom_call.1} parent=11 // pred_check_branch
          %710 = sbr.rel (%p708) target = $region48
        $region47: #{tpu_custom_call.1} parent=11 // pred_region
          _
        $region48: #{tpu_custom_call.1} parent=11 // pred_fallthru
          _
        // Predicated region
        $region49: #{tpu_custom_call.1} parent=11 // pred_check
          %p711 = pneg %p445
        $region50: #{tpu_custom_call.1} parent=11 // pred_check_branch
          %713 = sbr.rel (%p711) target = $region52
        $region51: #{tpu_custom_call.1} parent=11 // pred_region
          _
        $region52: #{tpu_custom_call.1} parent=11 // pred_fallthru
          _
        // Predicated region
        $region53: #{tpu_custom_call.1} parent=11 // pred_check
          %p714 = pneg %p466
        $region54: #{tpu_custom_call.1} parent=11 // pred_check_branch
          %716 = sbr.rel (%p714) target = $region56
        $region55: #{tpu_custom_call.1} parent=11 // pred_region
          _
        $region56: #{tpu_custom_call.1} parent=11 // pred_fallthru
          _
        // Predicated region
        $region57: #{tpu_custom_call.1} parent=11 // pred_check
          %p717 = pneg %p487
        $region58: #{tpu_custom_call.1} parent=11 // pred_check_branch
          %719 = sbr.rel (%p717) target = $region60
        $region59: #{tpu_custom_call.1} parent=11 // pred_region
          _
        $region60: #{tpu_custom_call.1} parent=11 // pred_fallthru
          _
        // Predicated region
        $region61: #{tpu_custom_call.1} parent=11 // pred_check
          %p720 = pneg %p508
        $region62: #{tpu_custom_call.1} parent=11 // pred_check_branch
          %722 = sbr.rel (%p720) target = $region64
        $region63: #{tpu_custom_call.1} parent=11 // pred_region
          _
        $region64: #{tpu_custom_call.1} parent=11 // pred_fallthru
          _
        // Predicated region
        $region65: #{tpu_custom_call.1} parent=11 // pred_check
          %p723 = pneg %p529
        $region66: #{tpu_custom_call.1} parent=11 // pred_check_branch
          %725 = sbr.rel (%p723) target = $region68
        $region67: #{tpu_custom_call.1} parent=11 // pred_region
          _
        $region68: #{tpu_custom_call.1} parent=11 // pred_fallthru
          _
        // Predicated region
        $region69: #{tpu_custom_call.1} parent=11 // pred_check
          %p726 = pneg %p550
        $region70: #{tpu_custom_call.1} parent=11 // pred_check_branch
          %728 = sbr.rel (%p726) target = $region72
        $region71: #{tpu_custom_call.1} parent=11 // pred_region
          _
        $region72: #{tpu_custom_call.1} parent=11 // pred_fallthru
          _
        // Predicated region
        $region73: #{tpu_custom_call.1} parent=11 // pred_check
          %p729 = pneg %p571
        $region74: #{tpu_custom_call.1} parent=11 // pred_check_branch
          %731 = sbr.rel (%p729) target = $region76
        $region75: #{tpu_custom_call.1} parent=11 // pred_region
          _
        $region76: #{tpu_custom_call.1} parent=11 // pred_fallthru
          _
        // Predicated region
        $region77: #{tpu_custom_call.1} parent=11 // pred_check
          %p732 = pneg %p592
        $region78: #{tpu_custom_call.1} parent=11 // pred_check_branch
          %734 = sbr.rel (%p732) target = $region80
        $region79: #{tpu_custom_call.1} parent=11 // pred_region
          _
        $region80: #{tpu_custom_call.1} parent=11 // pred_fallthru
          _
        // Predicated region
        $region81: #{tpu_custom_call.1} parent=11 // pred_check
          %p735 = pneg %p613
        $region82: #{tpu_custom_call.1} parent=11 // pred_check_branch
          %737 = sbr.rel (%p735) target = $region84
        $region83: #{tpu_custom_call.1} parent=11 // pred_region
          _
        $region84: #{tpu_custom_call.1} parent=11 // pred_fallthru
          _
      $region12: #{tpu_custom_call.1} parent=5 // pred_fallthru
        _
      %p738 = scmp.lt.s32.totalorder %s39, 2
      // Predicated region
      $region85: #{tpu_custom_call.1} parent=5 // pred_check
        %p739 = pneg %p738
      $region86: #{tpu_custom_call.1} parent=5 // pred_check_branch
        %741 = sbr.rel (%p739) target = $region88
      $region87: #{tpu_custom_call.1} parent=5 // pred_region
        // Predicated region
        $region89: #{tpu_custom_call.1} parent=87 // pred_check
          %p742 = pneg %p73
        $region90: #{tpu_custom_call.1} parent=87 // pred_check_branch
          %744 = sbr.rel (%p742) target = $region92
        $region91: #{tpu_custom_call.1} parent=87 // pred_region
          %p745 = scmp.lt.s32.totalorder %s46, 1
          %s746 = scalar_select %p745, %s46, 1
          %p747 = scmp.lt.s32.totalorder %s47, 0
          %s748 = scalar_select %p747, %s47, 0
          %s749 = sadd.s32 %s748, %s746
          %s750 = smul.addr %s749, 8
          %s751 = scalar_lea.vmem %s0, %s750
        $region92: #{tpu_custom_call.1} parent=87 // pred_fallthru
          _
        // Predicated region
        $region93: #{tpu_custom_call.1} parent=87 // pred_check
          %p752 = pneg %p99
        $region94: #{tpu_custom_call.1} parent=87 // pred_check_branch
          %754 = sbr.rel (%p752) target = $region96
        $region95: #{tpu_custom_call.1} parent=87 // pred_region
          %p755 = scmp.lt.s32.totalorder %s46, 1
          %s756 = scalar_select %p755, %s46, 1
          %s757 = smul.addr %s756, 4
          %s758 = smul.addr %s757, 8
          %s759 = scalar_lea.vmem %s1, %s758
        $region96: #{tpu_custom_call.1} parent=87 // pred_fallthru
          _
        // Predicated region
        $region97: #{tpu_custom_call.1} parent=87 // pred_check
          %p760 = pneg %p125
        $region98: #{tpu_custom_call.1} parent=87 // pred_check_branch
          %762 = sbr.rel (%p760) target = $region100
        $region99: #{tpu_custom_call.1} parent=87 // pred_region
          %p763 = scmp.lt.s32.totalorder %s46, 1
          %s764 = scalar_select %p763, %s46, 1
          %s765 = smul.addr %s764, 4
          %s766 = smul.addr %s765, 8
          %s767 = scalar_lea.vmem %s2, %s766
        $region100: #{tpu_custom_call.1} parent=87 // pred_fallthru
          _
        // Predicated region
        $region101: #{tpu_custom_call.1} parent=87 // pred_check
          %p768 = pneg %p151
        $region102: #{tpu_custom_call.1} parent=87 // pred_check_branch
          %770 = sbr.rel (%p768) target = $region104
        $region103: #{tpu_custom_call.1} parent=87 // pred_region
          %p771 = scmp.lt.s32.totalorder %s46, 1
          %s772 = scalar_select %p771, %s46, 1
          %s773 = smul.addr %s772, 8
          %s774 = smul.addr %s773, 8
          %s775 = scalar_lea.vmem %s3, %s774
        $region104: #{tpu_custom_call.1} parent=87 // pred_fallthru
          _
        // Predicated region
        $region105: #{tpu_custom_call.1} parent=87 // pred_check
          %p776 = pneg %p177
        $region106: #{tpu_custom_call.1} parent=87 // pred_check_branch
          %778 = sbr.rel (%p776) target = $region108
        $region107: #{tpu_custom_call.1} parent=87 // pred_region
          %p779 = scmp.lt.s32.totalorder %s46, 1
          %s780 = scalar_select %p779, %s46, 1
          %s781 = smul.addr %s780, 8
          %s782 = smul.addr %s781, 8
          %s783 = scalar_lea.vmem %s4, %s782
        $region108: #{tpu_custom_call.1} parent=87 // pred_fallthru
          _
        // Predicated region
        $region109: #{tpu_custom_call.1} parent=87 // pred_check
          %p784 = pneg %p203
        $region110: #{tpu_custom_call.1} parent=87 // pred_check_branch
          %786 = sbr.rel (%p784) target = $region112
        $region111: #{tpu_custom_call.1} parent=87 // pred_region
          %p787 = scmp.lt.s32.totalorder %s46, 1
          %s788 = scalar_select %p787, %s46, 1
          %s789 = scalar_lea.vmem %s5, %s788
        $region112: #{tpu_custom_call.1} parent=87 // pred_fallthru
          _
        // Predicated region
        $region113: #{tpu_custom_call.1} parent=87 // pred_check
          %p790 = pneg %p229
        $region114: #{tpu_custom_call.1} parent=87 // pred_check_branch
          %792 = sbr.rel (%p790) target = $region116
        $region115: #{tpu_custom_call.1} parent=87 // pred_region
          %p793 = scmp.lt.s32.totalorder %s46, 1
          %s794 = scalar_select %p793, %s46, 1
          %s795 = scalar_lea.vmem %s6, %s794
        $region116: #{tpu_custom_call.1} parent=87 // pred_fallthru
          _
      $region88: #{tpu_custom_call.1} parent=5 // pred_fallthru
        _
      %p796 = scmp.le.s32.totalorder 1, %s39
      %p797 = scmp.lt.s32.totalorder %s39, 3
      %p798 = pnand %p796, %p797
      %p799 = pneg %p798
      // Predicated region
      $region117: #{tpu_custom_call.1} parent=5 // pred_check
        _
      $region118: #{tpu_custom_call.1} parent=5 // pred_check_branch
        %801 = sbr.rel (%p798) target = $region120
      $region119: #{tpu_custom_call.1} parent=5 // pred_region
        %s802 = ssub.s32 %s39, 1
        %p803 = scmp.lt.s32.totalorder %s48, 1
        %s804 = scalar_select %p803, %s48, 1
        %p805 = scmp.lt.s32.totalorder %s49, 0
        %s806 = scalar_select %p805, %s49, 0
        %s807 = sadd.s32 %s806, %s804
        %s808 = smul.addr %s807, 8
        %s809 = scalar_lea.vmem %s0, %s808
        %p810 = pneg %p79
        %p811 = pneg %p76
        %p812 = scmp.lt.s32.totalorder %s48, 1
        %s813 = scalar_select %p812, %s48, 1
        %s814 = smul.addr %s813, 4
        %s815 = smul.addr %s814, 8
        %s816 = scalar_lea.vmem %s1, %s815
        %p817 = pneg %p105
        %p818 = pneg %p102
        %p819 = scmp.lt.s32.totalorder %s48, 1
        %s820 = scalar_select %p819, %s48, 1
        %s821 = smul.addr %s820, 4
        %s822 = smul.addr %s821, 8
        %s823 = scalar_lea.vmem %s2, %s822
        %p824 = pneg %p131
        %p825 = pneg %p128
        %p826 = scmp.lt.s32.totalorder %s48, 1
        %s827 = scalar_select %p826, %s48, 1
        %s828 = smul.addr %s827, 8
        %s829 = smul.addr %s828, 8
        %s830 = scalar_lea.vmem %s3, %s829
        %p831 = pneg %p157
        %p832 = pneg %p154
        %p833 = scmp.lt.s32.totalorder %s48, 1
        %s834 = scalar_select %p833, %s48, 1
        %s835 = smul.addr %s834, 8
        %s836 = smul.addr %s835, 8
        %s837 = scalar_lea.vmem %s4, %s836
        %p838 = pneg %p183
        %p839 = pneg %p180
        %p840 = scmp.lt.s32.totalorder %s48, 1
        %s841 = scalar_select %p840, %s48, 1
        %s842 = scalar_lea.vmem %s5, %s841
        %p843 = pneg %p209
        %p844 = pneg %p206
        %p845 = scmp.lt.s32.totalorder %s48, 1
        %s846 = scalar_select %p845, %s48, 1
        %s847 = scalar_lea.vmem %s6, %s846
        %p848 = pneg %p235
        %p849 = pneg %p232
        %p850 = pneg %p256
        %p851 = pneg %p253
        %p852 = pneg %p277
        %p853 = pneg %p274
        %p854 = pneg %p298
        %p855 = pneg %p295
        %p856 = pneg %p319
        %p857 = pneg %p316
        %p858 = pneg %p340
        %p859 = pneg %p337
        %p860 = pneg %p361
        %p861 = pneg %p358
        %p862 = pneg %p382
        %p863 = pneg %p379
        %p864 = pneg %p403
        %p865 = pneg %p400
        %p866 = pneg %p424
        %p867 = pneg %p421
        %p868 = pneg %p445
        %p869 = pneg %p442
        %p870 = pneg %p466
        %p871 = pneg %p463
        %p872 = pneg %p487
        %p873 = pneg %p484
        %p874 = pneg %p508
        %p875 = pneg %p505
        %p876 = pneg %p529
        %p877 = pneg %p526
        %p878 = pneg %p550
        %p879 = pneg %p547
        %p880 = pneg %p571
        %p881 = pneg %p568
        %p882 = pneg %p592
        %p883 = pneg %p589
        %p884 = pneg %p613
        %p885 = pneg %p610
        %p886 = pneg %p641
        %p887 = pneg %p638
        %s888 = sand.u32 %s628, 1
        %s889 = scalar_lea.sflag [#allocation3], %s888
        %s890 = sand.u32 %s628, 1
        %s891 = smul.addr %s890, 8
        %s892 = scalar_lea.vmem [#allocation2], %s891
        %p893 = pneg %p669
        %p894 = pneg %p666
        %s895 = sand.u32 %s656, 1
        %s896 = scalar_lea.sflag [#allocation5], %s895
        %s897 = sand.u32 %s656, 1
        %s898 = smul.addr %s897, 32
        %s899 = scalar_lea.vmem [#allocation4], %s898
        %p900 = scmp.lt.s32.totalorder %s48, 1
        %s901 = scalar_select %p900, %s48, 1
        %p902 = scmp.lt.s32.totalorder %s49, 0
        %s903 = scalar_select %p902, %s49, 0
        %s904 = sadd.s32 %s903, %s901
        %s905 = smul.addr %s904, 8
        %s906 = scalar_lea.vmem %s0, %s905
        %p907 = scmp.lt.s32.totalorder %s48, 1
        %s908 = scalar_select %p907, %s48, 1
        %s909 = smul.addr %s908, 4
        %s910 = smul.addr %s909, 8
        %s911 = scalar_lea.vmem %s1, %s910
        %p912 = scmp.lt.s32.totalorder %s48, 1
        %s913 = scalar_select %p912, %s48, 1
        %s914 = smul.addr %s913, 4
        %s915 = smul.addr %s914, 8
        %s916 = scalar_lea.vmem %s2, %s915
        %p917 = scmp.lt.s32.totalorder %s48, 1
        %s918 = scalar_select %p917, %s48, 1
        %s919 = smul.addr %s918, 8
        %s920 = smul.addr %s919, 8
        %s921 = scalar_lea.vmem %s3, %s920
        %p922 = scmp.lt.s32.totalorder %s48, 1
        %s923 = scalar_select %p922, %s48, 1
        %s924 = smul.addr %s923, 8
        %s925 = smul.addr %s924, 8
        %s926 = scalar_lea.vmem %s4, %s925
        %p927 = scmp.lt.s32.totalorder %s48, 1
        %s928 = scalar_select %p927, %s48, 1
        %s929 = scalar_lea.vmem %s5, %s928
        %p930 = scmp.lt.s32.totalorder %s48, 1
        %s931 = scalar_select %p930, %s48, 1
        %s932 = scalar_lea.vmem %s6, %s931
        %v933 = vld [vmem:[%s906] sm:$0xff]
        %v934 = vld [vmem:[%s929] sm:$0x1]
        %v935 = vld [vmem:[%s932] sm:$0x1]
        %v936 = vld [vmem:[%s911] sm:$0xff]
        %v937 = vld [vmem:[%s911 + $0x8] sm:$0xff]
        %v938 = vld [vmem:[%s911 + $0x10] sm:$0xff]
        %v939 = vld [vmem:[%s911 + $0x18] sm:$0xff]
        %v940 = vld [vmem:[%s916] sm:$0xff]
        %v941 = vld [vmem:[%s916 + $0x8] sm:$0xff]
        %v942 = vld [vmem:[%s916 + $0x10] sm:$0xff]
        %v943 = vld [vmem:[%s916 + $0x18] sm:$0xff]
        %v944 = vld [vmem:[%s7] sm:$0xff]
        %v945 = vld [vmem:[%s7 + $0x8] sm:$0xff]
        %v946 = vld [vmem:[%s7 + $0x10] sm:$0xff]
        %v947 = vld [vmem:[%s7 + $0x18] sm:$0xff]
        %v948 = vld [vmem:[%s8] sm:$0x1]
        %v949 = vld [vmem:[%s9] sm:$0xff]
        %v950 = vld [vmem:[%s9 + $0x8] sm:$0xff]
        %v951 = vld [vmem:[%s9 + $0x10] sm:$0xff]
        %v952 = vld [vmem:[%s9 + $0x18] sm:$0xff]
        %v953 = vld [vmem:[%s10] sm:$0x1]
        %v955 = vlaneseq
        %v956 = vshrl.u32 %v955, 7
        %v957 = vsub.s32 0, %v956
        %v958 = vrot.slane %v948, %v957
        %vm960 = vcmask 261120
        %v962 = vsel %vm960, %v933, 0
        %964 = vmatprep.subr.mxu0 0.0
        %965 = vmatpush1.msra.mxu0 %v944
        %966 = vmatprep.subr.mxu0 0.0
        %967 = vmatpush1.msra.mxu0 %v945
        %968 = vmatprep.subr.mxu0 0.0
        %969 = vmatpush1.msra.mxu0 %v946
        %970 = vmatprep.subr.mxu0 0.0
        %971 = vmatpush1.msra.mxu0 %v947
        %972 = vmatprep.subr.mxu0 0.0
        %973 = vmatpush1.msra.mxu0 0.0
        %974 = vmatprep.subr.mxu0 0.0
        %975 = vmatpush1.msra.mxu0 0.0
        %976 = vmatprep.subr.mxu0 0.0
        %977 = vmatpush1.msra.mxu0 0.0
        %978 = vmatprep.subr.mxu0 0.0
        %979 = vmatpush1.msra.mxu0 0.0
        %980 = vmatprep.subr.mxu0 0.0
        %981 = vmatpush1.msra.mxu0 0.0
        %982 = vmatprep.subr.mxu0 0.0
        %983 = vmatpush1.msra.mxu0 0.0
        %984 = vmatprep.subr.mxu0 0.0
        %985 = vmatpush1.msra.mxu0 0.0
        %986 = vmatprep.subr.mxu0 0.0
        %987 = vmatpush1.msra.mxu0 0.0
        %988 = vmatprep.subr.mxu0 0.0
        %989 = vmatpush1.msra.mxu0 0.0
        %990 = vmatprep.subr.mxu0 0.0
        %991 = vmatpush1.msra.mxu0 0.0
        %992 = vmatprep.subr.mxu0 0.0
        %993 = vmatpush1.msra.mxu0 0.0
        %994 = vmatprep.subr.mxu0 0.0
        %995 = vmatpush1.msra.mxu0 0.0
        %996 = vmatprep.subr.mxu0 0.0
        %997 = vmatpush1.msra.mxu0 0.0
        %998 = vmatprep.subr.mxu0 0.0
        %999 = vmatpush1.msra.mxu0 0.0
        %1000 = vmatprep.subr.mxu0 0.0
        %1001 = vmatpush1.msra.mxu0 0.0
        %1002 = vmatprep.subr.mxu0 0.0
        %1003 = vmatpush1.msra.mxu0 0.0
        %1004 = vmatprep.subr.mxu0 0.0
        %1005 = vmatpush1.msra.mxu0 0.0
        %1006 = vmatprep.subr.mxu0 0.0
        %1007 = vmatpush1.msra.mxu0 0.0
        %1008 = vmatprep.subr.mxu0 0.0
        %1009 = vmatpush1.msra.mxu0 0.0
        %1010 = vmatprep.subr.mxu0 0.0
        %1011 = vmatpush1.msra.mxu0 0.0
        %1012 = vmatprep.subr.mxu0 0.0
        %1013 = vmatpush1.msra.mxu0 0.0
        %1014 = vmatprep.subr.mxu0 0.0
        %1015 = vmatpush1.msra.mxu0 0.0
        %1016 = vmatprep.subr.mxu0 0.0
        %1017 = vmatpush1.msra.mxu0 0.0
        %1018 = vmatprep.subr.mxu0 0.0
        %1019 = vmatpush1.msra.mxu0 0.0
        %1020 = vmatprep.subr.mxu0 0.0
        %1021 = vmatpush1.msra.mxu0 0.0
        %1022 = vmatprep.subr.mxu0 0.0
        %1023 = vmatpush1.msra.mxu0 0.0
        %1024 = vmatprep.subr.mxu0 0.0
        %1025 = vmatpush1.msra.mxu0 0.0
        %1026 = vmatprep.subr.mxu0 0.0
        %1027 = vmatpush1.msra.mxu0 0.0
        %1028 = vmatprep.mubr.f32.mxu0 0.0
        %1029 = vmatmul.mubr.f32.gmra.mrb[0].mxu0 %v962
        %v1030 = vpop.f32.mrb[0].mxu0
        %v1031 = vadd.f32 %v958, %v1030
        %v1032 = vpop.f32.mrb[0].mxu0
        %1033 = vdwg.mxu0
        %v1034 = vmul.f32 %v1031, 0.35355338
        %1036 = vrot.lane.b32.xlu0 %v1034, 120
        %v1037 = vpop.permute.xlu0 %1036
        %1038 = vrot.lane.b32.xlu0 %v1034, 112
        %v1039 = vpop.permute.xlu0 %1038
        %1040 = vrot.lane.b32.xlu0 %v1034, 104
        %v1041 = vpop.permute.xlu0 %1040
        %v1043 = vlaneseq
        %v1044 = vshrl.u32 %v1043, 7
        %v1045 = vsub.s32 0, %v1044
        %v1046 = vrot.slane %v934, %v1045
        %vm1048 = vcmask 64512
        %v1049 = vsel %vm1048, %v1034, 0
        %v1052 = vsel %vm1048, %v936, 0
        %1054 = vmatprep.subr.mxu0 0.0
        %1055 = vmatpush1.xpose.msra.mxu0 %v1052
        %1056 = vmatprep.subr.mxu0 0.0
        %1057 = vmatpush1.xpose.msra.mxu0 0.0
        %1058 = vmatprep.subr.mxu0 0.0
        %1059 = vmatpush1.xpose.msra.mxu0 0.0
        %1060 = vmatprep.subr.mxu0 0.0
        %1061 = vmatpush1.xpose.msra.mxu0 0.0
        %1062 = vmatprep.subr.mxu0 0.0
        %1063 = vmatpush1.xpose.msra.mxu0 0.0
        %1064 = vmatprep.subr.mxu0 0.0
        %1065 = vmatpush1.xpose.msra.mxu0 0.0
        %1066 = vmatprep.subr.mxu0 0.0
        %1067 = vmatpush1.xpose.msra.mxu0 0.0
        %1068 = vmatprep.subr.mxu0 0.0
        %1069 = vmatpush1.xpose.msra.mxu0 0.0
        %1070 = vmatprep.subr.mxu0 0.0
        %1071 = vmatpush1.xpose.msra.mxu0 0.0
        %1072 = vmatprep.subr.mxu0 0.0
        %1073 = vmatpush1.xpose.msra.mxu0 0.0
        %1074 = vmatprep.subr.mxu0 0.0
        %1075 = vmatpush1.xpose.msra.mxu0 0.0
        %1076 = vmatprep.subr.mxu0 0.0
        %1077 = vmatpush1.xpose.msra.mxu0 0.0
        %1078 = vmatprep.subr.mxu0 0.0
        %1079 = vmatpush1.xpose.msra.mxu0 0.0
        %1080 = vmatprep.subr.mxu0 0.0
        %1081 = vmatpush1.xpose.msra.mxu0 0.0
        %1082 = vmatprep.subr.mxu0 0.0
        %1083 = vmatpush1.xpose.msra.mxu0 0.0
        %1084 = vmatprep.subr.mxu0 0.0
        %1085 = vmatpush1.xpose.msra.mxu0 0.0
        %1086 = vmatprep.subr.mxu0 0.0
        %1087 = vmatpush1.xpose.msra.mxu0 0.0
        %1088 = vmatprep.subr.mxu0 0.0
        %1089 = vmatpush1.xpose.msra.mxu0 0.0
        %1090 = vmatprep.subr.mxu0 0.0
        %1091 = vmatpush1.xpose.msra.mxu0 0.0
        %1092 = vmatprep.subr.mxu0 0.0
        %1093 = vmatpush1.xpose.msra.mxu0 0.0
        %1094 = vmatprep.subr.mxu0 0.0
        %1095 = vmatpush1.xpose.msra.mxu0 0.0
        %1096 = vmatprep.subr.mxu0 0.0
        %1097 = vmatpush1.xpose.msra.mxu0 0.0
        %1098 = vmatprep.subr.mxu0 0.0
        %1099 = vmatpush1.xpose.msra.mxu0 0.0
        %1100 = vmatprep.subr.mxu0 0.0
        %1101 = vmatpush1.xpose.msra.mxu0 0.0
        %1102 = vmatprep.subr.mxu0 0.0
        %1103 = vmatpush1.xpose.msra.mxu0 0.0
        %1104 = vmatprep.subr.mxu0 0.0
        %1105 = vmatpush1.xpose.msra.mxu0 0.0
        %1106 = vmatprep.subr.mxu0 0.0
        %1107 = vmatpush1.xpose.msra.mxu0 0.0
        %1108 = vmatprep.subr.mxu0 0.0
        %1109 = vmatpush1.xpose.msra.mxu0 0.0
        %1110 = vmatprep.subr.mxu0 0.0
        %1111 = vmatpush1.xpose.msra.mxu0 0.0
        %1112 = vmatprep.subr.mxu0 0.0
        %1113 = vmatpush1.xpose.msra.mxu0 0.0
        %1114 = vmatprep.subr.mxu0 0.0
        %1115 = vmatpush1.xpose.msra.mxu0 0.0
        %1116 = vmatprep.subr.mxu0 0.0
        %1117 = vmatpush1.xpose.msra.mxu0 0.0
        %1118 = vmatprep.mubr.f32.mxu0 0.0
        %1119 = vmatmul.mubr.f32.gmra.mrb[0].mxu0 %v1049
        %v1120 = vpop.f32.mrb[0].mxu0
        %v1121 = vadd.f32 %v1046, %v1120
        %v1122 = vpop.f32.mrb[0].mxu0
        %1123 = vdwg.mxu0
        %v1124 = vsel %vm1048, %v1037, 0
        %v1127 = vsel %vm1048, %v937, 0
        %1129 = vmatprep.subr.mxu0 0.0
        %1130 = vmatpush1.xpose.msra.mxu0 %v1127
        %1131 = vmatprep.subr.mxu0 0.0
        %1132 = vmatpush1.xpose.msra.mxu0 0.0
        %1133 = vmatprep.subr.mxu0 0.0
        %1134 = vmatpush1.xpose.msra.mxu0 0.0
        %1135 = vmatprep.subr.mxu0 0.0
        %1136 = vmatpush1.xpose.msra.mxu0 0.0
        %1137 = vmatprep.subr.mxu0 0.0
        %1138 = vmatpush1.xpose.msra.mxu0 0.0
        %1139 = vmatprep.subr.mxu0 0.0
        %1140 = vmatpush1.xpose.msra.mxu0 0.0
        %1141 = vmatprep.subr.mxu0 0.0
        %1142 = vmatpush1.xpose.msra.mxu0 0.0
        %1143 = vmatprep.subr.mxu0 0.0
        %1144 = vmatpush1.xpose.msra.mxu0 0.0
        %1145 = vmatprep.subr.mxu0 0.0
        %1146 = vmatpush1.xpose.msra.mxu0 0.0
        %1147 = vmatprep.subr.mxu0 0.0
        %1148 = vmatpush1.xpose.msra.mxu0 0.0
        %1149 = vmatprep.subr.mxu0 0.0
        %1150 = vmatpush1.xpose.msra.mxu0 0.0
        %1151 = vmatprep.subr.mxu0 0.0
        %1152 = vmatpush1.xpose.msra.mxu0 0.0
        %1153 = vmatprep.subr.mxu0 0.0
        %1154 = vmatpush1.xpose.msra.mxu0 0.0
        %1155 = vmatprep.subr.mxu0 0.0
        %1156 = vmatpush1.xpose.msra.mxu0 0.0
        %1157 = vmatprep.subr.mxu0 0.0
        %1158 = vmatpush1.xpose.msra.mxu0 0.0
        %1159 = vmatprep.subr.mxu0 0.0
        %1160 = vmatpush1.xpose.msra.mxu0 0.0
        %1161 = vmatprep.subr.mxu0 0.0
        %1162 = vmatpush1.xpose.msra.mxu0 0.0
        %1163 = vmatprep.subr.mxu0 0.0
        %1164 = vmatpush1.xpose.msra.mxu0 0.0
        %1165 = vmatprep.subr.mxu0 0.0
        %1166 = vmatpush1.xpose.msra.mxu0 0.0
        %1167 = vmatprep.subr.mxu0 0.0
        %1168 = vmatpush1.xpose.msra.mxu0 0.0
        %1169 = vmatprep.subr.mxu0 0.0
        %1170 = vmatpush1.xpose.msra.mxu0 0.0
        %1171 = vmatprep.subr.mxu0 0.0
        %1172 = vmatpush1.xpose.msra.mxu0 0.0
        %1173 = vmatprep.subr.mxu0 0.0
        %1174 = vmatpush1.xpose.msra.mxu0 0.0
        %1175 = vmatprep.subr.mxu0 0.0
        %1176 = vmatpush1.xpose.msra.mxu0 0.0
        %1177 = vmatprep.subr.mxu0 0.0
        %1178 = vmatpush1.xpose.msra.mxu0 0.0
        %1179 = vmatprep.subr.mxu0 0.0
        %1180 = vmatpush1.xpose.msra.mxu0 0.0
        %1181 = vmatprep.subr.mxu0 0.0
        %1182 = vmatpush1.xpose.msra.mxu0 0.0
        %1183 = vmatprep.subr.mxu0 0.0
        %1184 = vmatpush1.xpose.msra.mxu0 0.0
        %1185 = vmatprep.subr.mxu0 0.0
        %1186 = vmatpush1.xpose.msra.mxu0 0.0
        %1187 = vmatprep.subr.mxu0 0.0
        %1188 = vmatpush1.xpose.msra.mxu0 0.0
        %1189 = vmatprep.subr.mxu0 0.0
        %1190 = vmatpush1.xpose.msra.mxu0 0.0
        %1191 = vmatprep.subr.mxu0 0.0
        %1192 = vmatpush1.xpose.msra.mxu0 0.0
        %1193 = vmatprep.mubr.f32.mxu0 0.0
        %1194 = vmatmul.mubr.f32.gmra.mrb[0].mxu0 %v1124
        %v1195 = vpop.f32.mrb[0].mxu0
        %v1196 = vadd.f32 %v1046, %v1195
        %v1197 = vpop.f32.mrb[0].mxu0
        %1198 = vdwg.mxu0
        %v1199 = vsel %vm1048, %v1039, 0
        %v1202 = vsel %vm1048, %v938, 0
        %1204 = vmatprep.subr.mxu0 0.0
        %1205 = vmatpush1.xpose.msra.mxu0 %v1202
        %1206 = vmatprep.subr.mxu0 0.0
        %1207 = vmatpush1.xpose.msra.mxu0 0.0
        %1208 = vmatprep.subr.mxu0 0.0
        %1209 = vmatpush1.xpose.msra.mxu0 0.0
        %1210 = vmatprep.subr.mxu0 0.0
        %1211 = vmatpush1.xpose.msra.mxu0 0.0
        %1212 = vmatprep.subr.mxu0 0.0
        %1213 = vmatpush1.xpose.msra.mxu0 0.0
        %1214 = vmatprep.subr.mxu0 0.0
        %1215 = vmatpush1.xpose.msra.mxu0 0.0
        %1216 = vmatprep.subr.mxu0 0.0
        %1217 = vmatpush1.xpose.msra.mxu0 0.0
        %1218 = vmatprep.subr.mxu0 0.0
        %1219 = vmatpush1.xpose.msra.mxu0 0.0
        %1220 = vmatprep.subr.mxu0 0.0
        %1221 = vmatpush1.xpose.msra.mxu0 0.0
        %1222 = vmatprep.subr.mxu0 0.0
        %1223 = vmatpush1.xpose.msra.mxu0 0.0
        %1224 = vmatprep.subr.mxu0 0.0
        %1225 = vmatpush1.xpose.msra.mxu0 0.0
        %1226 = vmatprep.subr.mxu0 0.0
        %1227 = vmatpush1.xpose.msra.mxu0 0.0
        %1228 = vmatprep.subr.mxu0 0.0
        %1229 = vmatpush1.xpose.msra.mxu0 0.0
        %1230 = vmatprep.subr.mxu0 0.0
        %1231 = vmatpush1.xpose.msra.mxu0 0.0
        %1232 = vmatprep.subr.mxu0 0.0
        %1233 = vmatpush1.xpose.msra.mxu0 0.0
        %1234 = vmatprep.subr.mxu0 0.0
        %1235 = vmatpush1.xpose.msra.mxu0 0.0
        %1236 = vmatprep.subr.mxu0 0.0
        %1237 = vmatpush1.xpose.msra.mxu0 0.0
        %1238 = vmatprep.subr.mxu0 0.0
        %1239 = vmatpush1.xpose.msra.mxu0 0.0
        %1240 = vmatprep.subr.mxu0 0.0
        %1241 = vmatpush1.xpose.msra.mxu0 0.0
        %1242 = vmatprep.subr.mxu0 0.0
        %1243 = vmatpush1.xpose.msra.mxu0 0.0
        %1244 = vmatprep.subr.mxu0 0.0
        %1245 = vmatpush1.xpose.msra.mxu0 0.0
        %1246 = vmatprep.subr.mxu0 0.0
        %1247 = vmatpush1.xpose.msra.mxu0 0.0
        %1248 = vmatprep.subr.mxu0 0.0
        %1249 = vmatpush1.xpose.msra.mxu0 0.0
        %1250 = vmatprep.subr.mxu0 0.0
        %1251 = vmatpush1.xpose.msra.mxu0 0.0
        %1252 = vmatprep.subr.mxu0 0.0
        %1253 = vmatpush1.xpose.msra.mxu0 0.0
        %1254 = vmatprep.subr.mxu0 0.0
        %1255 = vmatpush1.xpose.msra.mxu0 0.0
        %1256 = vmatprep.subr.mxu0 0.0
        %1257 = vmatpush1.xpose.msra.mxu0 0.0
        %1258 = vmatprep.subr.mxu0 0.0
        %1259 = vmatpush1.xpose.msra.mxu0 0.0
        %1260 = vmatprep.subr.mxu0 0.0
        %1261 = vmatpush1.xpose.msra.mxu0 0.0
        %1262 = vmatprep.subr.mxu0 0.0
        %1263 = vmatpush1.xpose.msra.mxu0 0.0
        %1264 = vmatprep.subr.mxu0 0.0
        %1265 = vmatpush1.xpose.msra.mxu0 0.0
        %1266 = vmatprep.subr.mxu0 0.0
        %1267 = vmatpush1.xpose.msra.mxu0 0.0
        %1268 = vmatprep.mubr.f32.mxu0 0.0
        %1269 = vmatmul.mubr.f32.gmra.mrb[0].mxu0 %v1199
        %v1270 = vpop.f32.mrb[0].mxu0
        %v1271 = vadd.f32 %v1046, %v1270
        %v1272 = vpop.f32.mrb[0].mxu0
        %1273 = vdwg.mxu0
        %v1274 = vsel %vm1048, %v1041, 0
        %v1277 = vsel %vm1048, %v939, 0
        %1279 = vmatprep.subr.mxu0 0.0
        %1280 = vmatpush1.xpose.msra.mxu0 %v1277
        %1281 = vmatprep.subr.mxu0 0.0
        %1282 = vmatpush1.xpose.msra.mxu0 0.0
        %1283 = vmatprep.subr.mxu0 0.0
        %1284 = vmatpush1.xpose.msra.mxu0 0.0
        %1285 = vmatprep.subr.mxu0 0.0
        %1286 = vmatpush1.xpose.msra.mxu0 0.0
        %1287 = vmatprep.subr.mxu0 0.0
        %1288 = vmatpush1.xpose.msra.mxu0 0.0
        %1289 = vmatprep.subr.mxu0 0.0
        %1290 = vmatpush1.xpose.msra.mxu0 0.0
        %1291 = vmatprep.subr.mxu0 0.0
        %1292 = vmatpush1.xpose.msra.mxu0 0.0
        %1293 = vmatprep.subr.mxu0 0.0
        %1294 = vmatpush1.xpose.msra.mxu0 0.0
        %1295 = vmatprep.subr.mxu0 0.0
        %1296 = vmatpush1.xpose.msra.mxu0 0.0
        %1297 = vmatprep.subr.mxu0 0.0
        %1298 = vmatpush1.xpose.msra.mxu0 0.0
        %1299 = vmatprep.subr.mxu0 0.0
        %1300 = vmatpush1.xpose.msra.mxu0 0.0
        %1301 = vmatprep.subr.mxu0 0.0
        %1302 = vmatpush1.xpose.msra.mxu0 0.0
        %1303 = vmatprep.subr.mxu0 0.0
        %1304 = vmatpush1.xpose.msra.mxu0 0.0
        %1305 = vmatprep.subr.mxu0 0.0
        %1306 = vmatpush1.xpose.msra.mxu0 0.0
        %1307 = vmatprep.subr.mxu0 0.0
        %1308 = vmatpush1.xpose.msra.mxu0 0.0
        %1309 = vmatprep.subr.mxu0 0.0
        %1310 = vmatpush1.xpose.msra.mxu0 0.0
        %1311 = vmatprep.subr.mxu0 0.0
        %1312 = vmatpush1.xpose.msra.mxu0 0.0
        %1313 = vmatprep.subr.mxu0 0.0
        %1314 = vmatpush1.xpose.msra.mxu0 0.0
        %1315 = vmatprep.subr.mxu0 0.0
        %1316 = vmatpush1.xpose.msra.mxu0 0.0
        %1317 = vmatprep.subr.mxu0 0.0
        %1318 = vmatpush1.xpose.msra.mxu0 0.0
        %1319 = vmatprep.subr.mxu0 0.0
        %1320 = vmatpush1.xpose.msra.mxu0 0.0
        %1321 = vmatprep.subr.mxu0 0.0
        %1322 = vmatpush1.xpose.msra.mxu0 0.0
        %1323 = vmatprep.subr.mxu0 0.0
        %1324 = vmatpush1.xpose.msra.mxu0 0.0
        %1325 = vmatprep.subr.mxu0 0.0
        %1326 = vmatpush1.xpose.msra.mxu0 0.0
        %1327 = vmatprep.subr.mxu0 0.0
        %1328 = vmatpush1.xpose.msra.mxu0 0.0
        %1329 = vmatprep.subr.mxu0 0.0
        %1330 = vmatpush1.xpose.msra.mxu0 0.0
        %1331 = vmatprep.subr.mxu0 0.0
        %1332 = vmatpush1.xpose.msra.mxu0 0.0
        %1333 = vmatprep.subr.mxu0 0.0
        %1334 = vmatpush1.xpose.msra.mxu0 0.0
        %1335 = vmatprep.subr.mxu0 0.0
        %1336 = vmatpush1.xpose.msra.mxu0 0.0
        %1337 = vmatprep.subr.mxu0 0.0
        %1338 = vmatpush1.xpose.msra.mxu0 0.0
        %1339 = vmatprep.subr.mxu0 0.0
        %1340 = vmatpush1.xpose.msra.mxu0 0.0
        %1341 = vmatprep.subr.mxu0 0.0
        %1342 = vmatpush1.xpose.msra.mxu0 0.0
        %1343 = vmatprep.mubr.f32.mxu0 0.0
        %1344 = vmatmul.mubr.f32.gmra.mrb[0].mxu0 %v1274
        %v1345 = vpop.f32.mrb[0].mxu0
        %v1346 = vadd.f32 %v1046, %v1345
        %v1347 = vpop.f32.mrb[0].mxu0
        %1348 = vdwg.mxu0
        %v1349 = vsel %vm1048, %v1121, -inf
        %1350 = vmax.xlane.f32.xlu0 %v1349
        %v1351 = vpop.xlane.xlu0 %1350
        %v1352 = vsel %vm1048, %v1196, -inf
        %1353 = vmax.xlane.f32.xlu0 %v1352
        %v1354 = vpop.xlane.xlu0 %1353
        %v1355 = vsel %vm1048, %v1271, -inf
        %1356 = vmax.xlane.f32.xlu0 %v1355
        %v1357 = vpop.xlane.xlu0 %1356
        %v1358 = vsel %vm1048, %v1346, -inf
        %1359 = vmax.xlane.f32.xlu0 %v1358
        %v1360 = vpop.xlane.xlu0 %1359
        %v1361 = vsub.f32 %v1121, %v1351
        %v1362 = vsub.f32 %v1196, %v1354
        %v1363 = vsub.f32 %v1271, %v1357
        %v1364 = vsub.f32 %v1346, %v1360
        %v1365 = vmul.f32 %v1361, 1.442695
        %v1366 = vpow.pop %v1365
        %v1367 = vmul.f32 %v1362, 1.442695
        %v1368 = vpow.pop %v1367
        %v1369 = vmul.f32 %v1363, 1.442695
        %v1370 = vpow.pop %v1369
        %v1371 = vmul.f32 %v1364, 1.442695
        %v1372 = vpow.pop %v1371
        %v1373 = vsel %vm1048, %v1366, 0.0
        %1374 = vadd.xlane.f32.xlu0 %v1373
        %v1375 = vpop.xlane.xlu0 %1374
        %v1376 = vsel %vm1048, %v1368, 0.0
        %1377 = vadd.xlane.f32.xlu0 %v1376
        %v1378 = vpop.xlane.xlu0 %1377
        %v1379 = vsel %vm1048, %v1370, 0.0
        %1380 = vadd.xlane.f32.xlu0 %v1379
        %v1381 = vpop.xlane.xlu0 %1380
        %v1382 = vsel %vm1048, %v1372, 0.0
        %1383 = vadd.xlane.f32.xlu0 %v1382
        %v1384 = vpop.xlane.xlu0 %1383
        %v1385 = vrcp.pop %v1375
        %v1386 = vrcp.pop %v1378
        %v1387 = vrcp.pop %v1381
        %v1388 = vrcp.pop %v1384
        %v1389 = vmul.f32 %v1375, %v1385
        %v1390 = vmul.f32 %v1378, %v1386
        %v1391 = vmul.f32 %v1381, %v1387
        %v1392 = vmul.f32 %v1384, %v1388
        %v1393 = vsub.f32 2.0, %v1389
        %v1394 = vsub.f32 2.0, %v1390
        %v1395 = vsub.f32 2.0, %v1391
        %v1396 = vsub.f32 2.0, %v1392
        %v1397 = vmul.f32 %v1385, %v1393
        %v1398 = vmul.f32 %v1386, %v1394
        %v1399 = vmul.f32 %v1387, %v1395
        %v1400 = vmul.f32 %v1388, %v1396
        %v1401 = vmul.f32 %v1366, %v1397
        %v1402 = vmul.f32 %v1368, %v1398
        %v1403 = vmul.f32 %v1370, %v1399
        %v1404 = vmul.f32 %v1372, %v1400
        %v1406 = vsel %vm1048, %v1401, 0
        %1408 = vmatprep.subr.mxu0 0.0
        %1409 = vmatpush1.msra.mxu0 %v940
        %1410 = vmatprep.subr.mxu0 0.0
        %1411 = vmatpush1.msra.mxu0 0.0
        %1412 = vmatprep.subr.mxu0 0.0
        %1413 = vmatpush1.msra.mxu0 0.0
        %1414 = vmatprep.subr.mxu0 0.0
        %1415 = vmatpush1.msra.mxu0 0.0
        %1416 = vmatprep.subr.mxu0 0.0
        %1417 = vmatpush1.msra.mxu0 0.0
        %1418 = vmatprep.subr.mxu0 0.0
        %1419 = vmatpush1.msra.mxu0 0.0
        %1420 = vmatprep.subr.mxu0 0.0
        %1421 = vmatpush1.msra.mxu0 0.0
        %1422 = vmatprep.subr.mxu0 0.0
        %1423 = vmatpush1.msra.mxu0 0.0
        %1424 = vmatprep.subr.mxu0 0.0
        %1425 = vmatpush1.msra.mxu0 0.0
        %1426 = vmatprep.subr.mxu0 0.0
        %1427 = vmatpush1.msra.mxu0 0.0
        %1428 = vmatprep.subr.mxu0 0.0
        %1429 = vmatpush1.msra.mxu0 0.0
        %1430 = vmatprep.subr.mxu0 0.0
        %1431 = vmatpush1.msra.mxu0 0.0
        %1432 = vmatprep.subr.mxu0 0.0
        %1433 = vmatpush1.msra.mxu0 0.0
        %1434 = vmatprep.subr.mxu0 0.0
        %1435 = vmatpush1.msra.mxu0 0.0
        %1436 = vmatprep.subr.mxu0 0.0
        %1437 = vmatpush1.msra.mxu0 0.0
        %1438 = vmatprep.subr.mxu0 0.0
        %1439 = vmatpush1.msra.mxu0 0.0
        %1440 = vmatprep.subr.mxu0 0.0
        %1441 = vmatpush1.msra.mxu0 0.0
        %1442 = vmatprep.subr.mxu0 0.0
        %1443 = vmatpush1.msra.mxu0 0.0
        %1444 = vmatprep.subr.mxu0 0.0
        %1445 = vmatpush1.msra.mxu0 0.0
        %1446 = vmatprep.subr.mxu0 0.0
        %1447 = vmatpush1.msra.mxu0 0.0
        %1448 = vmatprep.subr.mxu0 0.0
        %1449 = vmatpush1.msra.mxu0 0.0
        %1450 = vmatprep.subr.mxu0 0.0
        %1451 = vmatpush1.msra.mxu0 0.0
        %1452 = vmatprep.subr.mxu0 0.0
        %1453 = vmatpush1.msra.mxu0 0.0
        %1454 = vmatprep.subr.mxu0 0.0
        %1455 = vmatpush1.msra.mxu0 0.0
        %1456 = vmatprep.subr.mxu0 0.0
        %1457 = vmatpush1.msra.mxu0 0.0
        %1458 = vmatprep.subr.mxu0 0.0
        %1459 = vmatpush1.msra.mxu0 0.0
        %1460 = vmatprep.subr.mxu0 0.0
        %1461 = vmatpush1.msra.mxu0 0.0
        %1462 = vmatprep.subr.mxu0 0.0
        %1463 = vmatpush1.msra.mxu0 0.0
        %1464 = vmatprep.subr.mxu0 0.0
        %1465 = vmatpush1.msra.mxu0 0.0
        %1466 = vmatprep.subr.mxu0 0.0
        %1467 = vmatpush1.msra.mxu0 0.0
        %1468 = vmatprep.subr.mxu0 0.0
        %1469 = vmatpush1.msra.mxu0 0.0
        %1470 = vmatprep.subr.mxu0 0.0
        %1471 = vmatpush1.msra.mxu0 0.0
        %1472 = vmatprep.mubr.f32.mxu0 0.0
        %1473 = vmatmul.mubr.f32.gmra.mrb[0].mxu0 %v1406
        %v1474 = vpop.f32.mrb[0].mxu0
        %v1475 = vadd.f32 0.0, %v1474
        %v1476 = vpop.f32.mrb[0].mxu0
        %1477 = vdwg.mxu0
        %v1479 = vsel %vm1048, %v1402, 0
        %1481 = vmatprep.subr.mxu0 0.0
        %1482 = vmatpush1.msra.mxu0 %v941
        %1483 = vmatprep.subr.mxu0 0.0
        %1484 = vmatpush1.msra.mxu0 0.0
        %1485 = vmatprep.subr.mxu0 0.0
        %1486 = vmatpush1.msra.mxu0 0.0
        %1487 = vmatprep.subr.mxu0 0.0
        %1488 = vmatpush1.msra.mxu0 0.0
        %1489 = vmatprep.subr.mxu0 0.0
        %1490 = vmatpush1.msra.mxu0 0.0
        %1491 = vmatprep.subr.mxu0 0.0
        %1492 = vmatpush1.msra.mxu0 0.0
        %1493 = vmatprep.subr.mxu0 0.0
        %1494 = vmatpush1.msra.mxu0 0.0
        %1495 = vmatprep.subr.mxu0 0.0
        %1496 = vmatpush1.msra.mxu0 0.0
        %1497 = vmatprep.subr.mxu0 0.0
        %1498 = vmatpush1.msra.mxu0 0.0
        %1499 = vmatprep.subr.mxu0 0.0
        %1500 = vmatpush1.msra.mxu0 0.0
        %1501 = vmatprep.subr.mxu0 0.0
        %1502 = vmatpush1.msra.mxu0 0.0
        %1503 = vmatprep.subr.mxu0 0.0
        %1504 = vmatpush1.msra.mxu0 0.0
        %1505 = vmatprep.subr.mxu0 0.0
        %1506 = vmatpush1.msra.mxu0 0.0
        %1507 = vmatprep.subr.mxu0 0.0
        %1508 = vmatpush1.msra.mxu0 0.0
        %1509 = vmatprep.subr.mxu0 0.0
        %1510 = vmatpush1.msra.mxu0 0.0
        %1511 = vmatprep.subr.mxu0 0.0
        %1512 = vmatpush1.msra.mxu0 0.0
        %1513 = vmatprep.subr.mxu0 0.0
        %1514 = vmatpush1.msra.mxu0 0.0
        %1515 = vmatprep.subr.mxu0 0.0
        %1516 = vmatpush1.msra.mxu0 0.0
        %1517 = vmatprep.subr.mxu0 0.0
        %1518 = vmatpush1.msra.mxu0 0.0
        %1519 = vmatprep.subr.mxu0 0.0
        %1520 = vmatpush1.msra.mxu0 0.0
        %1521 = vmatprep.subr.mxu0 0.0
        %1522 = vmatpush1.msra.mxu0 0.0
        %1523 = vmatprep.subr.mxu0 0.0
        %1524 = vmatpush1.msra.mxu0 0.0
        %1525 = vmatprep.subr.mxu0 0.0
        %1526 = vmatpush1.msra.mxu0 0.0
        %1527 = vmatprep.subr.mxu0 0.0
        %1528 = vmatpush1.msra.mxu0 0.0
        %1529 = vmatprep.subr.mxu0 0.0
        %1530 = vmatpush1.msra.mxu0 0.0
        %1531 = vmatprep.subr.mxu0 0.0
        %1532 = vmatpush1.msra.mxu0 0.0
        %1533 = vmatprep.subr.mxu0 0.0
        %1534 = vmatpush1.msra.mxu0 0.0
        %1535 = vmatprep.subr.mxu0 0.0
        %1536 = vmatpush1.msra.mxu0 0.0
        %1537 = vmatprep.subr.mxu0 0.0
        %1538 = vmatpush1.msra.mxu0 0.0
        %1539 = vmatprep.subr.mxu0 0.0
        %1540 = vmatpush1.msra.mxu0 0.0
        %1541 = vmatprep.subr.mxu0 0.0
        %1542 = vmatpush1.msra.mxu0 0.0
        %1543 = vmatprep.subr.mxu0 0.0
        %1544 = vmatpush1.msra.mxu0 0.0
        %1545 = vmatprep.mubr.f32.mxu0 0.0
        %1546 = vmatmul.mubr.f32.gmra.mrb[0].mxu0 %v1479
        %v1547 = vpop.f32.mrb[0].mxu0
        %v1548 = vadd.f32 0.0, %v1547
        %v1549 = vpop.f32.mrb[0].mxu0
        %1550 = vdwg.mxu0
        %v1552 = vsel %vm1048, %v1403, 0
        %1554 = vmatprep.subr.mxu0 0.0
        %1555 = vmatpush1.msra.mxu0 %v942
        %1556 = vmatprep.subr.mxu0 0.0
        %1557 = vmatpush1.msra.mxu0 0.0
        %1558 = vmatprep.subr.mxu0 0.0
        %1559 = vmatpush1.msra.mxu0 0.0
        %1560 = vmatprep.subr.mxu0 0.0
        %1561 = vmatpush1.msra.mxu0 0.0
        %1562 = vmatprep.subr.mxu0 0.0
        %1563 = vmatpush1.msra.mxu0 0.0
        %1564 = vmatprep.subr.mxu0 0.0
        %1565 = vmatpush1.msra.mxu0 0.0
        %1566 = vmatprep.subr.mxu0 0.0
        %1567 = vmatpush1.msra.mxu0 0.0
        %1568 = vmatprep.subr.mxu0 0.0
        %1569 = vmatpush1.msra.mxu0 0.0
        %1570 = vmatprep.subr.mxu0 0.0
        %1571 = vmatpush1.msra.mxu0 0.0
        %1572 = vmatprep.subr.mxu0 0.0
        %1573 = vmatpush1.msra.mxu0 0.0
        %1574 = vmatprep.subr.mxu0 0.0
        %1575 = vmatpush1.msra.mxu0 0.0
        %1576 = vmatprep.subr.mxu0 0.0
        %1577 = vmatpush1.msra.mxu0 0.0
        %1578 = vmatprep.subr.mxu0 0.0
        %1579 = vmatpush1.msra.mxu0 0.0
        %1580 = vmatprep.subr.mxu0 0.0
        %1581 = vmatpush1.msra.mxu0 0.0
        %1582 = vmatprep.subr.mxu0 0.0
        %1583 = vmatpush1.msra.mxu0 0.0
        %1584 = vmatprep.subr.mxu0 0.0
        %1585 = vmatpush1.msra.mxu0 0.0
        %1586 = vmatprep.subr.mxu0 0.0
        %1587 = vmatpush1.msra.mxu0 0.0
        %1588 = vmatprep.subr.mxu0 0.0
        %1589 = vmatpush1.msra.mxu0 0.0
        %1590 = vmatprep.subr.mxu0 0.0
        %1591 = vmatpush1.msra.mxu0 0.0
        %1592 = vmatprep.subr.mxu0 0.0
        %1593 = vmatpush1.msra.mxu0 0.0
        %1594 = vmatprep.subr.mxu0 0.0
        %1595 = vmatpush1.msra.mxu0 0.0
        %1596 = vmatprep.subr.mxu0 0.0
        %1597 = vmatpush1.msra.mxu0 0.0
        %1598 = vmatprep.subr.mxu0 0.0
        %1599 = vmatpush1.msra.mxu0 0.0
        %1600 = vmatprep.subr.mxu0 0.0
        %1601 = vmatpush1.msra.mxu0 0.0
        %1602 = vmatprep.subr.mxu0 0.0
        %1603 = vmatpush1.msra.mxu0 0.0
        %1604 = vmatprep.subr.mxu0 0.0
        %1605 = vmatpush1.msra.mxu0 0.0
        %1606 = vmatprep.subr.mxu0 0.0
        %1607 = vmatpush1.msra.mxu0 0.0
        %1608 = vmatprep.subr.mxu0 0.0
        %1609 = vmatpush1.msra.mxu0 0.0
        %1610 = vmatprep.subr.mxu0 0.0
        %1611 = vmatpush1.msra.mxu0 0.0
        %1612 = vmatprep.subr.mxu0 0.0
        %1613 = vmatpush1.msra.mxu0 0.0
        %1614 = vmatprep.subr.mxu0 0.0
        %1615 = vmatpush1.msra.mxu0 0.0
        %1616 = vmatprep.subr.mxu0 0.0
        %1617 = vmatpush1.msra.mxu0 0.0
        %1618 = vmatprep.mubr.f32.mxu0 0.0
        %1619 = vmatmul.mubr.f32.gmra.mrb[0].mxu0 %v1552
        %v1620 = vpop.f32.mrb[0].mxu0
        %v1621 = vadd.f32 0.0, %v1620
        %v1622 = vpop.f32.mrb[0].mxu0
        %1623 = vdwg.mxu0
        %v1625 = vsel %vm1048, %v1404, 0
        %1627 = vmatprep.subr.mxu0 0.0
        %1628 = vmatpush1.msra.mxu0 %v943
        %1629 = vmatprep.subr.mxu0 0.0
        %1630 = vmatpush1.msra.mxu0 0.0
        %1631 = vmatprep.subr.mxu0 0.0
        %1632 = vmatpush1.msra.mxu0 0.0
        %1633 = vmatprep.subr.mxu0 0.0
        %1634 = vmatpush1.msra.mxu0 0.0
        %1635 = vmatprep.subr.mxu0 0.0
        %1636 = vmatpush1.msra.mxu0 0.0
        %1637 = vmatprep.subr.mxu0 0.0
        %1638 = vmatpush1.msra.mxu0 0.0
        %1639 = vmatprep.subr.mxu0 0.0
        %1640 = vmatpush1.msra.mxu0 0.0
        %1641 = vmatprep.subr.mxu0 0.0
        %1642 = vmatpush1.msra.mxu0 0.0
        %1643 = vmatprep.subr.mxu0 0.0
        %1644 = vmatpush1.msra.mxu0 0.0
        %1645 = vmatprep.subr.mxu0 0.0
        %1646 = vmatpush1.msra.mxu0 0.0
        %1647 = vmatprep.subr.mxu0 0.0
        %1648 = vmatpush1.msra.mxu0 0.0
        %1649 = vmatprep.subr.mxu0 0.0
        %1650 = vmatpush1.msra.mxu0 0.0
        %1651 = vmatprep.subr.mxu0 0.0
        %1652 = vmatpush1.msra.mxu0 0.0
        %1653 = vmatprep.subr.mxu0 0.0
        %1654 = vmatpush1.msra.mxu0 0.0
        %1655 = vmatprep.subr.mxu0 0.0
        %1656 = vmatpush1.msra.mxu0 0.0
        %1657 = vmatprep.subr.mxu0 0.0
        %1658 = vmatpush1.msra.mxu0 0.0
        %1659 = vmatprep.subr.mxu0 0.0
        %1660 = vmatpush1.msra.mxu0 0.0
        %1661 = vmatprep.subr.mxu0 0.0
        %1662 = vmatpush1.msra.mxu0 0.0
        %1663 = vmatprep.subr.mxu0 0.0
        %1664 = vmatpush1.msra.mxu0 0.0
        %1665 = vmatprep.subr.mxu0 0.0
        %1666 = vmatpush1.msra.mxu0 0.0
        %1667 = vmatprep.subr.mxu0 0.0
        %1668 = vmatpush1.msra.mxu0 0.0
        %1669 = vmatprep.subr.mxu0 0.0
        %1670 = vmatpush1.msra.mxu0 0.0
        %1671 = vmatprep.subr.mxu0 0.0
        %1672 = vmatpush1.msra.mxu0 0.0
        %1673 = vmatprep.subr.mxu0 0.0
        %1674 = vmatpush1.msra.mxu0 0.0
        %1675 = vmatprep.subr.mxu0 0.0
        %1676 = vmatpush1.msra.mxu0 0.0
        %1677 = vmatprep.subr.mxu0 0.0
        %1678 = vmatpush1.msra.mxu0 0.0
        %1679 = vmatprep.subr.mxu0 0.0
        %1680 = vmatpush1.msra.mxu0 0.0
        %1681 = vmatprep.subr.mxu0 0.0
        %1682 = vmatpush1.msra.mxu0 0.0
        %1683 = vmatprep.subr.mxu0 0.0
        %1684 = vmatpush1.msra.mxu0 0.0
        %1685 = vmatprep.subr.mxu0 0.0
        %1686 = vmatpush1.msra.mxu0 0.0
        %1687 = vmatprep.subr.mxu0 0.0
        %1688 = vmatpush1.msra.mxu0 0.0
        %1689 = vmatprep.subr.mxu0 0.0
        %1690 = vmatpush1.msra.mxu0 0.0
        %1691 = vmatprep.mubr.f32.mxu0 0.0
        %1692 = vmatmul.mubr.f32.gmra.mrb[0].mxu0 %v1625
        %v1693 = vpop.f32.mrb[0].mxu0
        %v1694 = vadd.f32 0.0, %v1693
        %v1695 = vpop.f32.mrb[0].mxu0
        %1696 = vdwg.mxu0
        %v1698 = vsel %vm1048, %v1548, 0
        %1700 = vmatprep.subr.mxu0 0.0
        %1701 = vmatpush1.msra.mxu0 %v950
        %1702 = vmatprep.subr.mxu0 0.0
        %1703 = vmatpush1.msra.mxu0 0.0
        %1704 = vmatprep.subr.mxu0 0.0
        %1705 = vmatpush1.msra.mxu0 0.0
        %1706 = vmatprep.subr.mxu0 0.0
        %1707 = vmatpush1.msra.mxu0 0.0
        %1708 = vmatprep.subr.mxu0 0.0
        %1709 = vmatpush1.msra.mxu0 0.0
        %1710 = vmatprep.subr.mxu0 0.0
        %1711 = vmatpush1.msra.mxu0 0.0
        %1712 = vmatprep.subr.mxu0 0.0
        %1713 = vmatpush1.msra.mxu0 0.0
        %1714 = vmatprep.subr.mxu0 0.0
        %1715 = vmatpush1.msra.mxu0 0.0
        %1716 = vmatprep.subr.mxu0 0.0
        %1717 = vmatpush1.msra.mxu0 0.0
        %1718 = vmatprep.subr.mxu0 0.0
        %1719 = vmatpush1.msra.mxu0 0.0
        %1720 = vmatprep.subr.mxu0 0.0
        %1721 = vmatpush1.msra.mxu0 0.0
        %1722 = vmatprep.subr.mxu0 0.0
        %1723 = vmatpush1.msra.mxu0 0.0
        %1724 = vmatprep.subr.mxu0 0.0
        %1725 = vmatpush1.msra.mxu0 0.0
        %1726 = vmatprep.subr.mxu0 0.0
        %1727 = vmatpush1.msra.mxu0 0.0
        %1728 = vmatprep.subr.mxu0 0.0
        %1729 = vmatpush1.msra.mxu0 0.0
        %1730 = vmatprep.subr.mxu0 0.0
        %1731 = vmatpush1.msra.mxu0 0.0
        %1732 = vmatprep.subr.mxu0 0.0
        %1733 = vmatpush1.msra.mxu0 0.0
        %1734 = vmatprep.subr.mxu0 0.0
        %1735 = vmatpush1.msra.mxu0 0.0
        %1736 = vmatprep.subr.mxu0 0.0
        %1737 = vmatpush1.msra.mxu0 0.0
        %1738 = vmatprep.subr.mxu0 0.0
        %1739 = vmatpush1.msra.mxu0 0.0
        %1740 = vmatprep.subr.mxu0 0.0
        %1741 = vmatpush1.msra.mxu0 0.0
        %1742 = vmatprep.subr.mxu0 0.0
        %1743 = vmatpush1.msra.mxu0 0.0
        %1744 = vmatprep.subr.mxu0 0.0
        %1745 = vmatpush1.msra.mxu0 0.0
        %1746 = vmatprep.subr.mxu0 0.0
        %1747 = vmatpush1.msra.mxu0 0.0
        %1748 = vmatprep.subr.mxu0 0.0
        %1749 = vmatpush1.msra.mxu0 0.0
        %1750 = vmatprep.subr.mxu0 0.0
        %1751 = vmatpush1.msra.mxu0 0.0
        %1752 = vmatprep.subr.mxu0 0.0
        %1753 = vmatpush1.msra.mxu0 0.0
        %1754 = vmatprep.subr.mxu0 0.0
        %1755 = vmatpush1.msra.mxu0 0.0
        %1756 = vmatprep.subr.mxu0 0.0
        %1757 = vmatpush1.msra.mxu0 0.0
        %1758 = vmatprep.subr.mxu0 0.0
        %1759 = vmatpush1.msra.mxu0 0.0
        %1760 = vmatprep.subr.mxu0 0.0
        %1761 = vmatpush1.msra.mxu0 0.0
        %1762 = vmatprep.subr.mxu0 0.0
        %1763 = vmatpush1.msra.mxu0 0.0
        %1764 = vmatprep.mubr.f32.mxu0 0.0
        %1765 = vmatmul.mubr.f32.gmra.mrb[0].mxu0 %v1698
        %v1766 = vpop.f32.mrb[0].mxu0
        %v1767 = vadd.f32 0.0, %v1766
        %v1768 = vpop.f32.mrb[0].mxu0
        %1769 = vdwg.mxu0
        %v1771 = vsel %vm1048, %v1475, 0
        %1773 = vmatprep.subr.mxu0 0.0
        %1774 = vmatpush1.msra.mxu0 %v949
        %1775 = vmatprep.subr.mxu0 0.0
        %1776 = vmatpush1.msra.mxu0 0.0
        %1777 = vmatprep.subr.mxu0 0.0
        %1778 = vmatpush1.msra.mxu0 0.0
        %1779 = vmatprep.subr.mxu0 0.0
        %1780 = vmatpush1.msra.mxu0 0.0
        %1781 = vmatprep.subr.mxu0 0.0
        %1782 = vmatpush1.msra.mxu0 0.0
        %1783 = vmatprep.subr.mxu0 0.0
        %1784 = vmatpush1.msra.mxu0 0.0
        %1785 = vmatprep.subr.mxu0 0.0
        %1786 = vmatpush1.msra.mxu0 0.0
        %1787 = vmatprep.subr.mxu0 0.0
        %1788 = vmatpush1.msra.mxu0 0.0
        %1789 = vmatprep.subr.mxu0 0.0
        %1790 = vmatpush1.msra.mxu0 0.0
        %1791 = vmatprep.subr.mxu0 0.0
        %1792 = vmatpush1.msra.mxu0 0.0
        %1793 = vmatprep.subr.mxu0 0.0
        %1794 = vmatpush1.msra.mxu0 0.0
        %1795 = vmatprep.subr.mxu0 0.0
        %1796 = vmatpush1.msra.mxu0 0.0
        %1797 = vmatprep.subr.mxu0 0.0
        %1798 = vmatpush1.msra.mxu0 0.0
        %1799 = vmatprep.subr.mxu0 0.0
        %1800 = vmatpush1.msra.mxu0 0.0
        %1801 = vmatprep.subr.mxu0 0.0
        %1802 = vmatpush1.msra.mxu0 0.0
        %1803 = vmatprep.subr.mxu0 0.0
        %1804 = vmatpush1.msra.mxu0 0.0
        %1805 = vmatprep.subr.mxu0 0.0
        %1806 = vmatpush1.msra.mxu0 0.0
        %1807 = vmatprep.subr.mxu0 0.0
        %1808 = vmatpush1.msra.mxu0 0.0
        %1809 = vmatprep.subr.mxu0 0.0
        %1810 = vmatpush1.msra.mxu0 0.0
        %1811 = vmatprep.subr.mxu0 0.0
        %1812 = vmatpush1.msra.mxu0 0.0
        %1813 = vmatprep.subr.mxu0 0.0
        %1814 = vmatpush1.msra.mxu0 0.0
        %1815 = vmatprep.subr.mxu0 0.0
        %1816 = vmatpush1.msra.mxu0 0.0
        %1817 = vmatprep.subr.mxu0 0.0
        %1818 = vmatpush1.msra.mxu0 0.0
        %1819 = vmatprep.subr.mxu0 0.0
        %1820 = vmatpush1.msra.mxu0 0.0
        %1821 = vmatprep.subr.mxu0 0.0
        %1822 = vmatpush1.msra.mxu0 0.0
        %1823 = vmatprep.subr.mxu0 0.0
        %1824 = vmatpush1.msra.mxu0 0.0
        %1825 = vmatprep.subr.mxu0 0.0
        %1826 = vmatpush1.msra.mxu0 0.0
        %1827 = vmatprep.subr.mxu0 0.0
        %1828 = vmatpush1.msra.mxu0 0.0
        %1829 = vmatprep.subr.mxu0 0.0
        %1830 = vmatpush1.msra.mxu0 0.0
        %1831 = vmatprep.subr.mxu0 0.0
        %1832 = vmatpush1.msra.mxu0 0.0
        %1833 = vmatprep.subr.mxu0 0.0
        %1834 = vmatpush1.msra.mxu0 0.0
        %1835 = vmatprep.subr.mxu0 0.0
        %1836 = vmatpush1.msra.mxu0 0.0
        %1837 = vmatprep.mubr.f32.mxu0 0.0
        %1838 = vmatmul.mubr.f32.gmra.mrb[0].mxu0 %v1771
        %v1839 = vpop.f32.mrb[0].mxu0
        %v1840 = vadd.f32 %v1767, %v1839
        %v1841 = vpop.f32.mrb[0].mxu0
        %1842 = vdwg.mxu0
        %v1844 = vsel %vm1048, %v1621, 0
        %1846 = vmatprep.subr.mxu0 0.0
        %1847 = vmatpush1.msra.mxu0 %v951
        %1848 = vmatprep.subr.mxu0 0.0
        %1849 = vmatpush1.msra.mxu0 0.0
        %1850 = vmatprep.subr.mxu0 0.0
        %1851 = vmatpush1.msra.mxu0 0.0
        %1852 = vmatprep.subr.mxu0 0.0
        %1853 = vmatpush1.msra.mxu0 0.0
        %1854 = vmatprep.subr.mxu0 0.0
        %1855 = vmatpush1.msra.mxu0 0.0
        %1856 = vmatprep.subr.mxu0 0.0
        %1857 = vmatpush1.msra.mxu0 0.0
        %1858 = vmatprep.subr.mxu0 0.0
        %1859 = vmatpush1.msra.mxu0 0.0
        %1860 = vmatprep.subr.mxu0 0.0
        %1861 = vmatpush1.msra.mxu0 0.0
        %1862 = vmatprep.subr.mxu0 0.0
        %1863 = vmatpush1.msra.mxu0 0.0
        %1864 = vmatprep.subr.mxu0 0.0
        %1865 = vmatpush1.msra.mxu0 0.0
        %1866 = vmatprep.subr.mxu0 0.0
        %1867 = vmatpush1.msra.mxu0 0.0
        %1868 = vmatprep.subr.mxu0 0.0
        %1869 = vmatpush1.msra.mxu0 0.0
        %1870 = vmatprep.subr.mxu0 0.0
        %1871 = vmatpush1.msra.mxu0 0.0
        %1872 = vmatprep.subr.mxu0 0.0
        %1873 = vmatpush1.msra.mxu0 0.0
        %1874 = vmatprep.subr.mxu0 0.0
        %1875 = vmatpush1.msra.mxu0 0.0
        %1876 = vmatprep.subr.mxu0 0.0
        %1877 = vmatpush1.msra.mxu0 0.0
        %1878 = vmatprep.subr.mxu0 0.0
        %1879 = vmatpush1.msra.mxu0 0.0
        %1880 = vmatprep.subr.mxu0 0.0
        %1881 = vmatpush1.msra.mxu0 0.0
        %1882 = vmatprep.subr.mxu0 0.0
        %1883 = vmatpush1.msra.mxu0 0.0
        %1884 = vmatprep.subr.mxu0 0.0
        %1885 = vmatpush1.msra.mxu0 0.0
        %1886 = vmatprep.subr.mxu0 0.0
        %1887 = vmatpush1.msra.mxu0 0.0
        %1888 = vmatprep.subr.mxu0 0.0
        %1889 = vmatpush1.msra.mxu0 0.0
        %1890 = vmatprep.subr.mxu0 0.0
        %1891 = vmatpush1.msra.mxu0 0.0
        %1892 = vmatprep.subr.mxu0 0.0
        %1893 = vmatpush1.msra.mxu0 0.0
        %1894 = vmatprep.subr.mxu0 0.0
        %1895 = vmatpush1.msra.mxu0 0.0
        %1896 = vmatprep.subr.mxu0 0.0
        %1897 = vmatpush1.msra.mxu0 0.0
        %1898 = vmatprep.subr.mxu0 0.0
        %1899 = vmatpush1.msra.mxu0 0.0
        %1900 = vmatprep.subr.mxu0 0.0
        %1901 = vmatpush1.msra.mxu0 0.0
        %1902 = vmatprep.subr.mxu0 0.0
        %1903 = vmatpush1.msra.mxu0 0.0
        %1904 = vmatprep.subr.mxu0 0.0
        %1905 = vmatpush1.msra.mxu0 0.0
        %1906 = vmatprep.subr.mxu0 0.0
        %1907 = vmatpush1.msra.mxu0 0.0
        %1908 = vmatprep.subr.mxu0 0.0
        %1909 = vmatpush1.msra.mxu0 0.0
        %1910 = vmatprep.mubr.f32.mxu0 0.0
        %1911 = vmatmul.mubr.f32.gmra.mrb[0].mxu0 %v1844
        %v1912 = vpop.f32.mrb[0].mxu0
        %v1913 = vadd.f32 0.0, %v1912
        %v1914 = vpop.f32.mrb[0].mxu0
        %1915 = vdwg.mxu0
        %v1916 = vadd.f32 %v1840, %v1913
        %v1918 = vsel %vm1048, %v1694, 0
        %1920 = vmatprep.subr.mxu0 0.0
        %1921 = vmatpush1.msra.mxu0 %v952
        %1922 = vmatprep.subr.mxu0 0.0
        %1923 = vmatpush1.msra.mxu0 0.0
        %1924 = vmatprep.subr.mxu0 0.0
        %1925 = vmatpush1.msra.mxu0 0.0
        %1926 = vmatprep.subr.mxu0 0.0
        %1927 = vmatpush1.msra.mxu0 0.0
        %1928 = vmatprep.subr.mxu0 0.0
        %1929 = vmatpush1.msra.mxu0 0.0
        %1930 = vmatprep.subr.mxu0 0.0
        %1931 = vmatpush1.msra.mxu0 0.0
        %1932 = vmatprep.subr.mxu0 0.0
        %1933 = vmatpush1.msra.mxu0 0.0
        %1934 = vmatprep.subr.mxu0 0.0
        %1935 = vmatpush1.msra.mxu0 0.0
        %1936 = vmatprep.subr.mxu0 0.0
        %1937 = vmatpush1.msra.mxu0 0.0
        %1938 = vmatprep.subr.mxu0 0.0
        %1939 = vmatpush1.msra.mxu0 0.0
        %1940 = vmatprep.subr.mxu0 0.0
        %1941 = vmatpush1.msra.mxu0 0.0
        %1942 = vmatprep.subr.mxu0 0.0
        %1943 = vmatpush1.msra.mxu0 0.0
        %1944 = vmatprep.subr.mxu0 0.0
        %1945 = vmatpush1.msra.mxu0 0.0
        %1946 = vmatprep.subr.mxu0 0.0
        %1947 = vmatpush1.msra.mxu0 0.0
        %1948 = vmatprep.subr.mxu0 0.0
        %1949 = vmatpush1.msra.mxu0 0.0
        %1950 = vmatprep.subr.mxu0 0.0
        %1951 = vmatpush1.msra.mxu0 0.0
        %1952 = vmatprep.subr.mxu0 0.0
        %1953 = vmatpush1.msra.mxu0 0.0
        %1954 = vmatprep.subr.mxu0 0.0
        %1955 = vmatpush1.msra.mxu0 0.0
        %1956 = vmatprep.subr.mxu0 0.0
        %1957 = vmatpush1.msra.mxu0 0.0
        %1958 = vmatprep.subr.mxu0 0.0
        %1959 = vmatpush1.msra.mxu0 0.0
        %1960 = vmatprep.subr.mxu0 0.0
        %1961 = vmatpush1.msra.mxu0 0.0
        %1962 = vmatprep.subr.mxu0 0.0
        %1963 = vmatpush1.msra.mxu0 0.0
        %1964 = vmatprep.subr.mxu0 0.0
        %1965 = vmatpush1.msra.mxu0 0.0
        %1966 = vmatprep.subr.mxu0 0.0
        %1967 = vmatpush1.msra.mxu0 0.0
        %1968 = vmatprep.subr.mxu0 0.0
        %1969 = vmatpush1.msra.mxu0 0.0
        %1970 = vmatprep.subr.mxu0 0.0
        %1971 = vmatpush1.msra.mxu0 0.0
        %1972 = vmatprep.subr.mxu0 0.0
        %1973 = vmatpush1.msra.mxu0 0.0
        %1974 = vmatprep.subr.mxu0 0.0
        %1975 = vmatpush1.msra.mxu0 0.0
        %1976 = vmatprep.subr.mxu0 0.0
        %1977 = vmatpush1.msra.mxu0 0.0
        %1978 = vmatprep.subr.mxu0 0.0
        %1979 = vmatpush1.msra.mxu0 0.0
        %1980 = vmatprep.subr.mxu0 0.0
        %1981 = vmatpush1.msra.mxu0 0.0
        %1982 = vmatprep.subr.mxu0 0.0
        %1983 = vmatpush1.msra.mxu0 0.0
        %1984 = vmatprep.mubr.f32.mxu0 0.0
        %1985 = vmatmul.mubr.f32.gmra.mrb[0].mxu0 %v1918
        %v1986 = vpop.f32.mrb[0].mxu0
        %v1987 = vadd.f32 0.0, %v1986
        %v1988 = vpop.f32.mrb[0].mxu0
        %1989 = vdwg.mxu0
        %v1990 = vadd.f32 %v1916, %v1987
        %v1992 = vlaneseq
        %v1993 = vshrl.u32 %v1992, 7
        %v1994 = vsub.s32 0, %v1993
        %v1995 = vrot.slane %v953, %v1994
        %v1997 = vadd.f32 %v1990, %v1995
        %v1998 = vadd.f32 %v1997, %v933
        %v1999 = vld [vmem:[%s11] sm:$0x1]
        %v2000 = vld [vmem:[%s12] sm:$0x1]
        %v2001 = vsel %vm960, %v1998, 0.0
        %2002 = vadd.xlane.f32.xlu0 %v2001
        %v2003 = vpop.xlane.xlu0 %2002
        %v2004 = vrcp.pop 32.0
        %v2005 = vmul.f32 %v2003, %v2004
        %v2006 = vsub.f32 %v1998, %v2005
        %v2007 = vmul.f32 %v2006, %v2006
        %v2008 = vsel %vm960, %v2007, 0.0
        %2009 = vadd.xlane.f32.xlu0 %v2008
        %v2010 = vpop.xlane.xlu0 %2009
        %v2011 = vmul.f32 %v2010, %v2004
        %v2012 = vadd.f32 %v2011, 1e-05
        %v2013 = vrsqrt.pop %v2012
        %v2014 = vmul.f32 %v2006, %v2013
        %v2016 = vlaneseq
        %v2017 = vshrl.u32 %v2016, 7
        %v2018 = vsub.s32 0, %v2017
        %v2019 = vrot.slane %v1999, %v2018
        %v2021 = vmul.f32 %v2014, %v2019
        %v2023 = vlaneseq
        %v2024 = vshrl.u32 %v2023, 7
        %v2025 = vsub.s32 0, %v2024
        %v2026 = vrot.slane %v2000, %v2025
        %v2028 = vadd.f32 %v2021, %v2026
        %v2029 = vld [vmem:[%s921] sm:$0xff]
        %v2030 = vld [vmem:[%s921 + $0x8] sm:$0xff]
        %v2031 = vld [vmem:[%s921 + $0x10] sm:$0xff]
        %v2032 = vld [vmem:[%s921 + $0x18] sm:$0xff]
        %v2033 = vld [vmem:[%s921 + $0x20] sm:$0xff]
        %v2034 = vld [vmem:[%s921 + $0x28] sm:$0xff]
        %v2035 = vld [vmem:[%s921 + $0x30] sm:$0xff]
        %v2036 = vld [vmem:[%s921 + $0x38] sm:$0xff]
        %v2037 = vld [vmem:[%s926] sm:$0xff]
        %v2038 = vld [vmem:[%s926 + $0x8] sm:$0xff]
        %v2039 = vld [vmem:[%s926 + $0x10] sm:$0xff]
        %v2040 = vld [vmem:[%s926 + $0x18] sm:$0xff]
        %v2041 = vld [vmem:[%s926 + $0x20] sm:$0xff]
        %v2042 = vld [vmem:[%s926 + $0x28] sm:$0xff]
        %v2043 = vld [vmem:[%s926 + $0x30] sm:$0xff]
        %v2044 = vld [vmem:[%s926 + $0x38] sm:$0xff]
        %v2045 = vld [vmem:[%s13] sm:$0xff]
        %v2046 = vld [vmem:[%s13 + $0x8] sm:$0xff]
        %v2047 = vld [vmem:[%s13 + $0x10] sm:$0xff]
        %v2048 = vld [vmem:[%s13 + $0x18] sm:$0xff]
        %v2049 = vld [vmem:[%s14] sm:$0x1]
        %v2050 = vld [vmem:[%s15] sm:$0xff]
        %v2051 = vld [vmem:[%s15 + $0x8] sm:$0xff]
        %v2052 = vld [vmem:[%s15 + $0x10] sm:$0xff]
        %v2053 = vld [vmem:[%s15 + $0x18] sm:$0xff]
        %v2054 = vld [vmem:[%s16] sm:$0x1]
        %v2056 = vlaneseq
        %v2057 = vshrl.u32 %v2056, 7
        %v2058 = vsub.s32 0, %v2057
        %v2059 = vrot.slane %v2049, %v2058
        %v2062 = vsel %vm960, %v2028, 0
        %2064 = vmatprep.subr.mxu0 0.0
        %2065 = vmatpush1.msra.mxu0 %v2045
        %2066 = vmatprep.subr.mxu0 0.0
        %2067 = vmatpush1.msra.mxu0 %v2046
        %2068 = vmatprep.subr.mxu0 0.0
        %2069 = vmatpush1.msra.mxu0 %v2047
        %2070 = vmatprep.subr.mxu0 0.0
        %2071 = vmatpush1.msra.mxu0 %v2048
        %2072 = vmatprep.subr.mxu0 0.0
        %2073 = vmatpush1.msra.mxu0 0.0
        %2074 = vmatprep.subr.mxu0 0.0
        %2075 = vmatpush1.msra.mxu0 0.0
        %2076 = vmatprep.subr.mxu0 0.0
        %2077 = vmatpush1.msra.mxu0 0.0
        %2078 = vmatprep.subr.mxu0 0.0
        %2079 = vmatpush1.msra.mxu0 0.0
        %2080 = vmatprep.subr.mxu0 0.0
        %2081 = vmatpush1.msra.mxu0 0.0
        %2082 = vmatprep.subr.mxu0 0.0
        %2083 = vmatpush1.msra.mxu0 0.0
        %2084 = vmatprep.subr.mxu0 0.0
        %2085 = vmatpush1.msra.mxu0 0.0
        %2086 = vmatprep.subr.mxu0 0.0
        %2087 = vmatpush1.msra.mxu0 0.0
        %2088 = vmatprep.subr.mxu0 0.0
        %2089 = vmatpush1.msra.mxu0 0.0
        %2090 = vmatprep.subr.mxu0 0.0
        %2091 = vmatpush1.msra.mxu0 0.0
        %2092 = vmatprep.subr.mxu0 0.0
        %2093 = vmatpush1.msra.mxu0 0.0
        %2094 = vmatprep.subr.mxu0 0.0
        %2095 = vmatpush1.msra.mxu0 0.0
        %2096 = vmatprep.subr.mxu0 0.0
        %2097 = vmatpush1.msra.mxu0 0.0
        %2098 = vmatprep.subr.mxu0 0.0
        %2099 = vmatpush1.msra.mxu0 0.0
        %2100 = vmatprep.subr.mxu0 0.0
        %2101 = vmatpush1.msra.mxu0 0.0
        %2102 = vmatprep.subr.mxu0 0.0
        %2103 = vmatpush1.msra.mxu0 0.0
        %2104 = vmatprep.subr.mxu0 0.0
        %2105 = vmatpush1.msra.mxu0 0.0
        %2106 = vmatprep.subr.mxu0 0.0
        %2107 = vmatpush1.msra.mxu0 0.0
        %2108 = vmatprep.subr.mxu0 0.0
        %2109 = vmatpush1.msra.mxu0 0.0
        %2110 = vmatprep.subr.mxu0 0.0
        %2111 = vmatpush1.msra.mxu0 0.0
        %2112 = vmatprep.subr.mxu0 0.0
        %2113 = vmatpush1.msra.mxu0 0.0
        %2114 = vmatprep.subr.mxu0 0.0
        %2115 = vmatpush1.msra.mxu0 0.0
        %2116 = vmatprep.subr.mxu0 0.0
        %2117 = vmatpush1.msra.mxu0 0.0
        %2118 = vmatprep.subr.mxu0 0.0
        %2119 = vmatpush1.msra.mxu0 0.0
        %2120 = vmatprep.subr.mxu0 0.0
        %2121 = vmatpush1.msra.mxu0 0.0
        %2122 = vmatprep.subr.mxu0 0.0
        %2123 = vmatpush1.msra.mxu0 0.0
        %2124 = vmatprep.subr.mxu0 0.0
        %2125 = vmatpush1.msra.mxu0 0.0
        %2126 = vmatprep.subr.mxu0 0.0
        %2127 = vmatpush1.msra.mxu0 0.0
        %2128 = vmatprep.mubr.f32.mxu0 0.0
        %2129 = vmatmul.mubr.f32.gmra.mrb[0].mxu0 %v2062
        %v2130 = vpop.f32.mrb[0].mxu0
        %v2131 = vadd.f32 %v2059, %v2130
        %v2132 = vpop.f32.mrb[0].mxu0
        %2133 = vdwg.mxu0
        %v2134 = vmul.f32 %v2131, 0.35355338
        %2136 = vrot.lane.b32.xlu0 %v2134, 120
        %v2137 = vpop.permute.xlu0 %2136
        %2138 = vrot.lane.b32.xlu0 %v2134, 112
        %v2139 = vpop.permute.xlu0 %2138
        %2140 = vrot.lane.b32.xlu0 %v2134, 104
        %v2141 = vpop.permute.xlu0 %2140
        %v2143 = vlaneseq
        %v2144 = vshrl.u32 %v2143, 7
        %v2145 = vsub.s32 0, %v2144
        %v2146 = vrot.slane %v935, %v2145
        %v2148 = vsel %vm1048, %v2134, 0
        %v2151 = vsel %vm1048, %v2029, 0
        %v2154 = vsel %vm1048, %v2030, 0
        %2156 = vmatprep.subr.mxu0 0.0
        %2157 = vmatpush1.xpose.msra.mxu0 %v2151
        %2158 = vmatprep.subr.mxu0 0.0
        %2159 = vmatpush1.xpose.msra.mxu0 %v2154
        %2160 = vmatprep.subr.mxu0 0.0
        %2161 = vmatpush1.xpose.msra.mxu0 0.0
        %2162 = vmatprep.subr.mxu0 0.0
        %2163 = vmatpush1.xpose.msra.mxu0 0.0
        %2164 = vmatprep.subr.mxu0 0.0
        %2165 = vmatpush1.xpose.msra.mxu0 0.0
        %2166 = vmatprep.subr.mxu0 0.0
        %2167 = vmatpush1.xpose.msra.mxu0 0.0
        %2168 = vmatprep.subr.mxu0 0.0
        %2169 = vmatpush1.xpose.msra.mxu0 0.0
        %2170 = vmatprep.subr.mxu0 0.0
        %2171 = vmatpush1.xpose.msra.mxu0 0.0
        %2172 = vmatprep.subr.mxu0 0.0
        %2173 = vmatpush1.xpose.msra.mxu0 0.0
        %2174 = vmatprep.subr.mxu0 0.0
        %2175 = vmatpush1.xpose.msra.mxu0 0.0
        %2176 = vmatprep.subr.mxu0 0.0
        %2177 = vmatpush1.xpose.msra.mxu0 0.0
        %2178 = vmatprep.subr.mxu0 0.0
        %2179 = vmatpush1.xpose.msra.mxu0 0.0
        %2180 = vmatprep.subr.mxu0 0.0
        %2181 = vmatpush1.xpose.msra.mxu0 0.0
        %2182 = vmatprep.subr.mxu0 0.0
        %2183 = vmatpush1.xpose.msra.mxu0 0.0
        %2184 = vmatprep.subr.mxu0 0.0
        %2185 = vmatpush1.xpose.msra.mxu0 0.0
        %2186 = vmatprep.subr.mxu0 0.0
        %2187 = vmatpush1.xpose.msra.mxu0 0.0
        %2188 = vmatprep.subr.mxu0 0.0
        %2189 = vmatpush1.xpose.msra.mxu0 0.0
        %2190 = vmatprep.subr.mxu0 0.0
        %2191 = vmatpush1.xpose.msra.mxu0 0.0
        %2192 = vmatprep.subr.mxu0 0.0
        %2193 = vmatpush1.xpose.msra.mxu0 0.0
        %2194 = vmatprep.subr.mxu0 0.0
        %2195 = vmatpush1.xpose.msra.mxu0 0.0
        %2196 = vmatprep.subr.mxu0 0.0
        %2197 = vmatpush1.xpose.msra.mxu0 0.0
        %2198 = vmatprep.subr.mxu0 0.0
        %2199 = vmatpush1.xpose.msra.mxu0 0.0
        %2200 = vmatprep.subr.mxu0 0.0
        %2201 = vmatpush1.xpose.msra.mxu0 0.0
        %2202 = vmatprep.subr.mxu0 0.0
        %2203 = vmatpush1.xpose.msra.mxu0 0.0
        %2204 = vmatprep.subr.mxu0 0.0
        %2205 = vmatpush1.xpose.msra.mxu0 0.0
        %2206 = vmatprep.subr.mxu0 0.0
        %2207 = vmatpush1.xpose.msra.mxu0 0.0
        %2208 = vmatprep.subr.mxu0 0.0
        %2209 = vmatpush1.xpose.msra.mxu0 0.0
        %2210 = vmatprep.subr.mxu0 0.0
        %2211 = vmatpush1.xpose.msra.mxu0 0.0
        %2212 = vmatprep.subr.mxu0 0.0
        %2213 = vmatpush1.xpose.msra.mxu0 0.0
        %2214 = vmatprep.subr.mxu0 0.0
        %2215 = vmatpush1.xpose.msra.mxu0 0.0
        %2216 = vmatprep.subr.mxu0 0.0
        %2217 = vmatpush1.xpose.msra.mxu0 0.0
        %2218 = vmatprep.subr.mxu0 0.0
        %2219 = vmatpush1.xpose.msra.mxu0 0.0
        %2220 = vmatprep.mubr.f32.mxu0 0.0
        %2221 = vmatmul.mubr.f32.gmra.mrb[0].mxu0 %v2148
        %v2222 = vpop.f32.mrb[0].mxu0
        %v2223 = vadd.f32 %v2146, %v2222
        %v2224 = vpop.f32.mrb[0].mxu0
        %2225 = vdwg.mxu0
        %v2226 = vsel %vm1048, %v2137, 0
        %v2229 = vsel %vm1048, %v2031, 0
        %v2232 = vsel %vm1048, %v2032, 0
        %2234 = vmatprep.subr.mxu0 0.0
        %2235 = vmatpush1.xpose.msra.mxu0 %v2229
        %2236 = vmatprep.subr.mxu0 0.0
        %2237 = vmatpush1.xpose.msra.mxu0 %v2232
        %2238 = vmatprep.subr.mxu0 0.0
        %2239 = vmatpush1.xpose.msra.mxu0 0.0
        %2240 = vmatprep.subr.mxu0 0.0
        %2241 = vmatpush1.xpose.msra.mxu0 0.0
        %2242 = vmatprep.subr.mxu0 0.0
        %2243 = vmatpush1.xpose.msra.mxu0 0.0
        %2244 = vmatprep.subr.mxu0 0.0
        %2245 = vmatpush1.xpose.msra.mxu0 0.0
        %2246 = vmatprep.subr.mxu0 0.0
        %2247 = vmatpush1.xpose.msra.mxu0 0.0
        %2248 = vmatprep.subr.mxu0 0.0
        %2249 = vmatpush1.xpose.msra.mxu0 0.0
        %2250 = vmatprep.subr.mxu0 0.0
        %2251 = vmatpush1.xpose.msra.mxu0 0.0
        %2252 = vmatprep.subr.mxu0 0.0
        %2253 = vmatpush1.xpose.msra.mxu0 0.0
        %2254 = vmatprep.subr.mxu0 0.0
        %2255 = vmatpush1.xpose.msra.mxu0 0.0
        %2256 = vmatprep.subr.mxu0 0.0
        %2257 = vmatpush1.xpose.msra.mxu0 0.0
        %2258 = vmatprep.subr.mxu0 0.0
        %2259 = vmatpush1.xpose.msra.mxu0 0.0
        %2260 = vmatprep.subr.mxu0 0.0
        %2261 = vmatpush1.xpose.msra.mxu0 0.0
        %2262 = vmatprep.subr.mxu0 0.0
        %2263 = vmatpush1.xpose.msra.mxu0 0.0
        %2264 = vmatprep.subr.mxu0 0.0
        %2265 = vmatpush1.xpose.msra.mxu0 0.0
        %2266 = vmatprep.subr.mxu0 0.0
        %2267 = vmatpush1.xpose.msra.mxu0 0.0
        %2268 = vmatprep.subr.mxu0 0.0
        %2269 = vmatpush1.xpose.msra.mxu0 0.0
        %2270 = vmatprep.subr.mxu0 0.0
        %2271 = vmatpush1.xpose.msra.mxu0 0.0
        %2272 = vmatprep.subr.mxu0 0.0
        %2273 = vmatpush1.xpose.msra.mxu0 0.0
        %2274 = vmatprep.subr.mxu0 0.0
        %2275 = vmatpush1.xpose.msra.mxu0 0.0
        %2276 = vmatprep.subr.mxu0 0.0
        %2277 = vmatpush1.xpose.msra.mxu0 0.0
        %2278 = vmatprep.subr.mxu0 0.0
        %2279 = vmatpush1.xpose.msra.mxu0 0.0
        %2280 = vmatprep.subr.mxu0 0.0
        %2281 = vmatpush1.xpose.msra.mxu0 0.0
        %2282 = vmatprep.subr.mxu0 0.0
        %2283 = vmatpush1.xpose.msra.mxu0 0.0
        %2284 = vmatprep.subr.mxu0 0.0
        %2285 = vmatpush1.xpose.msra.mxu0 0.0
        %2286 = vmatprep.subr.mxu0 0.0
        %2287 = vmatpush1.xpose.msra.mxu0 0.0
        %2288 = vmatprep.subr.mxu0 0.0
        %2289 = vmatpush1.xpose.msra.mxu0 0.0
        %2290 = vmatprep.subr.mxu0 0.0
        %2291 = vmatpush1.xpose.msra.mxu0 0.0
        %2292 = vmatprep.subr.mxu0 0.0
        %2293 = vmatpush1.xpose.msra.mxu0 0.0
        %2294 = vmatprep.subr.mxu0 0.0
        %2295 = vmatpush1.xpose.msra.mxu0 0.0
        %2296 = vmatprep.subr.mxu0 0.0
        %2297 = vmatpush1.xpose.msra.mxu0 0.0
        %2298 = vmatprep.mubr.f32.mxu0 0.0
        %2299 = vmatmul.mubr.f32.gmra.mrb[0].mxu0 %v2226
        %v2300 = vpop.f32.mrb[0].mxu0
        %v2301 = vadd.f32 %v2146, %v2300
        %v2302 = vpop.f32.mrb[0].mxu0
        %2303 = vdwg.mxu0
        %v2304 = vsel %vm1048, %v2139, 0
        %v2307 = vsel %vm1048, %v2033, 0
        %v2310 = vsel %vm1048, %v2034, 0
        %2312 = vmatprep.subr.mxu0 0.0
        %2313 = vmatpush1.xpose.msra.mxu0 %v2307
        %2314 = vmatprep.subr.mxu0 0.0
        %2315 = vmatpush1.xpose.msra.mxu0 %v2310
        %2316 = vmatprep.subr.mxu0 0.0
        %2317 = vmatpush1.xpose.msra.mxu0 0.0
        %2318 = vmatprep.subr.mxu0 0.0
        %2319 = vmatpush1.xpose.msra.mxu0 0.0
        %2320 = vmatprep.subr.mxu0 0.0
        %2321 = vmatpush1.xpose.msra.mxu0 0.0
        %2322 = vmatprep.subr.mxu0 0.0
        %2323 = vmatpush1.xpose.msra.mxu0 0.0
        %2324 = vmatprep.subr.mxu0 0.0
        %2325 = vmatpush1.xpose.msra.mxu0 0.0
        %2326 = vmatprep.subr.mxu0 0.0
        %2327 = vmatpush1.xpose.msra.mxu0 0.0
        %2328 = vmatprep.subr.mxu0 0.0
        %2329 = vmatpush1.xpose.msra.mxu0 0.0
        %2330 = vmatprep.subr.mxu0 0.0
        %2331 = vmatpush1.xpose.msra.mxu0 0.0
        %2332 = vmatprep.subr.mxu0 0.0
        %2333 = vmatpush1.xpose.msra.mxu0 0.0
        %2334 = vmatprep.subr.mxu0 0.0
        %2335 = vmatpush1.xpose.msra.mxu0 0.0
        %2336 = vmatprep.subr.mxu0 0.0
        %2337 = vmatpush1.xpose.msra.mxu0 0.0
        %2338 = vmatprep.subr.mxu0 0.0
        %2339 = vmatpush1.xpose.msra.mxu0 0.0
        %2340 = vmatprep.subr.mxu0 0.0
        %2341 = vmatpush1.xpose.msra.mxu0 0.0
        %2342 = vmatprep.subr.mxu0 0.0
        %2343 = vmatpush1.xpose.msra.mxu0 0.0
        %2344 = vmatprep.subr.mxu0 0.0
        %2345 = vmatpush1.xpose.msra.mxu0 0.0
        %2346 = vmatprep.subr.mxu0 0.0
        %2347 = vmatpush1.xpose.msra.mxu0 0.0
        %2348 = vmatprep.subr.mxu0 0.0
        %2349 = vmatpush1.xpose.msra.mxu0 0.0
        %2350 = vmatprep.subr.mxu0 0.0
        %2351 = vmatpush1.xpose.msra.mxu0 0.0
        %2352 = vmatprep.subr.mxu0 0.0
        %2353 = vmatpush1.xpose.msra.mxu0 0.0
        %2354 = vmatprep.subr.mxu0 0.0
        %2355 = vmatpush1.xpose.msra.mxu0 0.0
        %2356 = vmatprep.subr.mxu0 0.0
        %2357 = vmatpush1.xpose.msra.mxu0 0.0
        %2358 = vmatprep.subr.mxu0 0.0
        %2359 = vmatpush1.xpose.msra.mxu0 0.0
        %2360 = vmatprep.subr.mxu0 0.0
        %2361 = vmatpush1.xpose.msra.mxu0 0.0
        %2362 = vmatprep.subr.mxu0 0.0
        %2363 = vmatpush1.xpose.msra.mxu0 0.0
        %2364 = vmatprep.subr.mxu0 0.0
        %2365 = vmatpush1.xpose.msra.mxu0 0.0
        %2366 = vmatprep.subr.mxu0 0.0
        %2367 = vmatpush1.xpose.msra.mxu0 0.0
        %2368 = vmatprep.subr.mxu0 0.0
        %2369 = vmatpush1.xpose.msra.mxu0 0.0
        %2370 = vmatprep.subr.mxu0 0.0
        %2371 = vmatpush1.xpose.msra.mxu0 0.0
        %2372 = vmatprep.subr.mxu0 0.0
        %2373 = vmatpush1.xpose.msra.mxu0 0.0
        %2374 = vmatprep.subr.mxu0 0.0
        %2375 = vmatpush1.xpose.msra.mxu0 0.0
        %2376 = vmatprep.mubr.f32.mxu0 0.0
        %2377 = vmatmul.mubr.f32.gmra.mrb[0].mxu0 %v2304
        %v2378 = vpop.f32.mrb[0].mxu0
        %v2379 = vadd.f32 %v2146, %v2378
        %v2380 = vpop.f32.mrb[0].mxu0
        %2381 = vdwg.mxu0
        %v2382 = vsel %vm1048, %v2141, 0
        %v2385 = vsel %vm1048, %v2035, 0
        %v2388 = vsel %vm1048, %v2036, 0
        %2390 = vmatprep.subr.mxu0 0.0
        %2391 = vmatpush1.xpose.msra.mxu0 %v2385
        %2392 = vmatprep.subr.mxu0 0.0
        %2393 = vmatpush1.xpose.msra.mxu0 %v2388
        %2394 = vmatprep.subr.mxu0 0.0
        %2395 = vmatpush1.xpose.msra.mxu0 0.0
        %2396 = vmatprep.subr.mxu0 0.0
        %2397 = vmatpush1.xpose.msra.mxu0 0.0
        %2398 = vmatprep.subr.mxu0 0.0
        %2399 = vmatpush1.xpose.msra.mxu0 0.0
        %2400 = vmatprep.subr.mxu0 0.0
        %2401 = vmatpush1.xpose.msra.mxu0 0.0
        %2402 = vmatprep.subr.mxu0 0.0
        %2403 = vmatpush1.xpose.msra.mxu0 0.0
        %2404 = vmatprep.subr.mxu0 0.0
        %2405 = vmatpush1.xpose.msra.mxu0 0.0
        %2406 = vmatprep.subr.mxu0 0.0
        %2407 = vmatpush1.xpose.msra.mxu0 0.0
        %2408 = vmatprep.subr.mxu0 0.0
        %2409 = vmatpush1.xpose.msra.mxu0 0.0
        %2410 = vmatprep.subr.mxu0 0.0
        %2411 = vmatpush1.xpose.msra.mxu0 0.0
        %2412 = vmatprep.subr.mxu0 0.0
        %2413 = vmatpush1.xpose.msra.mxu0 0.0
        %2414 = vmatprep.subr.mxu0 0.0
        %2415 = vmatpush1.xpose.msra.mxu0 0.0
        %2416 = vmatprep.subr.mxu0 0.0
        %2417 = vmatpush1.xpose.msra.mxu0 0.0
        %2418 = vmatprep.subr.mxu0 0.0
        %2419 = vmatpush1.xpose.msra.mxu0 0.0
        %2420 = vmatprep.subr.mxu0 0.0
        %2421 = vmatpush1.xpose.msra.mxu0 0.0
        %2422 = vmatprep.subr.mxu0 0.0
        %2423 = vmatpush1.xpose.msra.mxu0 0.0
        %2424 = vmatprep.subr.mxu0 0.0
        %2425 = vmatpush1.xpose.msra.mxu0 0.0
        %2426 = vmatprep.subr.mxu0 0.0
        %2427 = vmatpush1.xpose.msra.mxu0 0.0
        %2428 = vmatprep.subr.mxu0 0.0
        %2429 = vmatpush1.xpose.msra.mxu0 0.0
        %2430 = vmatprep.subr.mxu0 0.0
        %2431 = vmatpush1.xpose.msra.mxu0 0.0
        %2432 = vmatprep.subr.mxu0 0.0
        %2433 = vmatpush1.xpose.msra.mxu0 0.0
        %2434 = vmatprep.subr.mxu0 0.0
        %2435 = vmatpush1.xpose.msra.mxu0 0.0
        %2436 = vmatprep.subr.mxu0 0.0
        %2437 = vmatpush1.xpose.msra.mxu0 0.0
        %2438 = vmatprep.subr.mxu0 0.0
        %2439 = vmatpush1.xpose.msra.mxu0 0.0
        %2440 = vmatprep.subr.mxu0 0.0
        %2441 = vmatpush1.xpose.msra.mxu0 0.0
        %2442 = vmatprep.subr.mxu0 0.0
        %2443 = vmatpush1.xpose.msra.mxu0 0.0
        %2444 = vmatprep.subr.mxu0 0.0
        %2445 = vmatpush1.xpose.msra.mxu0 0.0
        %2446 = vmatprep.subr.mxu0 0.0
        %2447 = vmatpush1.xpose.msra.mxu0 0.0
        %2448 = vmatprep.subr.mxu0 0.0
        %2449 = vmatpush1.xpose.msra.mxu0 0.0
        %2450 = vmatprep.subr.mxu0 0.0
        %2451 = vmatpush1.xpose.msra.mxu0 0.0
        %2452 = vmatprep.subr.mxu0 0.0
        %2453 = vmatpush1.xpose.msra.mxu0 0.0
        %2454 = vmatprep.mubr.f32.mxu0 0.0
        %2455 = vmatmul.mubr.f32.gmra.mrb[0].mxu0 %v2382
        %v2456 = vpop.f32.mrb[0].mxu0
        %v2457 = vadd.f32 %v2146, %v2456
        %v2458 = vpop.f32.mrb[0].mxu0
        %2459 = vdwg.mxu0
        %vm2460 = vcmask 130048
        %v2461 = vsel %vm2460, %v2223, -inf
        %2462 = vmax.xlane.f32.xlu0 %v2461
        %v2463 = vpop.xlane.xlu0 %2462
        %v2464 = vsel %vm2460, %v2301, -inf
        %2465 = vmax.xlane.f32.xlu0 %v2464
        %v2466 = vpop.xlane.xlu0 %2465
        %v2467 = vsel %vm2460, %v2379, -inf
        %2468 = vmax.xlane.f32.xlu0 %v2467
        %v2469 = vpop.xlane.xlu0 %2468
        %v2470 = vsel %vm2460, %v2457, -inf
        %2471 = vmax.xlane.f32.xlu0 %v2470
        %v2472 = vpop.xlane.xlu0 %2471
        %v2473 = vsub.f32 %v2223, %v2463
        %v2474 = vsub.f32 %v2301, %v2466
        %v2475 = vsub.f32 %v2379, %v2469
        %v2476 = vsub.f32 %v2457, %v2472
        %v2477 = vmul.f32 %v2473, 1.442695
        %v2478 = vpow.pop %v2477
        %v2479 = vmul.f32 %v2474, 1.442695
        %v2480 = vpow.pop %v2479
        %v2481 = vmul.f32 %v2475, 1.442695
        %v2482 = vpow.pop %v2481
        %v2483 = vmul.f32 %v2476, 1.442695
        %v2484 = vpow.pop %v2483
        %v2485 = vsel %vm2460, %v2478, 0.0
        %2486 = vadd.xlane.f32.xlu0 %v2485
        %v2487 = vpop.xlane.xlu0 %2486
        %v2488 = vsel %vm2460, %v2480, 0.0
        %2489 = vadd.xlane.f32.xlu0 %v2488
        %v2490 = vpop.xlane.xlu0 %2489
        %v2491 = vsel %vm2460, %v2482, 0.0
        %2492 = vadd.xlane.f32.xlu0 %v2491
        %v2493 = vpop.xlane.xlu0 %2492
        %v2494 = vsel %vm2460, %v2484, 0.0
        %2495 = vadd.xlane.f32.xlu0 %v2494
        %v2496 = vpop.xlane.xlu0 %2495
        %v2497 = vrcp.pop %v2487
        %v2498 = vrcp.pop %v2490
        %v2499 = vrcp.pop %v2493
        %v2500 = vrcp.pop %v2496
        %v2501 = vmul.f32 %v2487, %v2497
        %v2502 = vmul.f32 %v2490, %v2498
        %v2503 = vmul.f32 %v2493, %v2499
        %v2504 = vmul.f32 %v2496, %v2500
        %v2505 = vsub.f32 2.0, %v2501
        %v2506 = vsub.f32 2.0, %v2502
        %v2507 = vsub.f32 2.0, %v2503
        %v2508 = vsub.f32 2.0, %v2504
        %v2509 = vmul.f32 %v2497, %v2505
        %v2510 = vmul.f32 %v2498, %v2506
        %v2511 = vmul.f32 %v2499, %v2507
        %v2512 = vmul.f32 %v2500, %v2508
        %v2513 = vmul.f32 %v2478, %v2509
        %v2514 = vmul.f32 %v2480, %v2510
        %v2515 = vmul.f32 %v2482, %v2511
        %v2516 = vmul.f32 %v2484, %v2512
        %v2518 = vsel %vm2460, %v2513, 0
        %2520 = vmatprep.subr.mxu0 0.0
        %2521 = vmatpush1.msra.mxu0 %v2037
        %2522 = vmatprep.subr.mxu0 0.0
        %2523 = vmatpush1.msra.mxu0 %v2038
        %2524 = vmatprep.subr.mxu0 0.0
        %2525 = vmatpush1.msra.mxu0 0.0
        %2526 = vmatprep.subr.mxu0 0.0
        %2527 = vmatpush1.msra.mxu0 0.0
        %2528 = vmatprep.subr.mxu0 0.0
        %2529 = vmatpush1.msra.mxu0 0.0
        %2530 = vmatprep.subr.mxu0 0.0
        %2531 = vmatpush1.msra.mxu0 0.0
        %2532 = vmatprep.subr.mxu0 0.0
        %2533 = vmatpush1.msra.mxu0 0.0
        %2534 = vmatprep.subr.mxu0 0.0
        %2535 = vmatpush1.msra.mxu0 0.0
        %2536 = vmatprep.subr.mxu0 0.0
        %2537 = vmatpush1.msra.mxu0 0.0
        %2538 = vmatprep.subr.mxu0 0.0
        %2539 = vmatpush1.msra.mxu0 0.0
        %2540 = vmatprep.subr.mxu0 0.0
        %2541 = vmatpush1.msra.mxu0 0.0
        %2542 = vmatprep.subr.mxu0 0.0
        %2543 = vmatpush1.msra.mxu0 0.0
        %2544 = vmatprep.subr.mxu0 0.0
        %2545 = vmatpush1.msra.mxu0 0.0
        %2546 = vmatprep.subr.mxu0 0.0
        %2547 = vmatpush1.msra.mxu0 0.0
        %2548 = vmatprep.subr.mxu0 0.0
        %2549 = vmatpush1.msra.mxu0 0.0
        %2550 = vmatprep.subr.mxu0 0.0
        %2551 = vmatpush1.msra.mxu0 0.0
        %2552 = vmatprep.subr.mxu0 0.0
        %2553 = vmatpush1.msra.mxu0 0.0
        %2554 = vmatprep.subr.mxu0 0.0
        %2555 = vmatpush1.msra.mxu0 0.0
        %2556 = vmatprep.subr.mxu0 0.0
        %2557 = vmatpush1.msra.mxu0 0.0
        %2558 = vmatprep.subr.mxu0 0.0
        %2559 = vmatpush1.msra.mxu0 0.0
        %2560 = vmatprep.subr.mxu0 0.0
        %2561 = vmatpush1.msra.mxu0 0.0
        %2562 = vmatprep.subr.mxu0 0.0
        %2563 = vmatpush1.msra.mxu0 0.0
        %2564 = vmatprep.subr.mxu0 0.0
        %2565 = vmatpush1.msra.mxu0 0.0
        %2566 = vmatprep.subr.mxu0 0.0
        %2567 = vmatpush1.msra.mxu0 0.0
        %2568 = vmatprep.subr.mxu0 0.0
        %2569 = vmatpush1.msra.mxu0 0.0
        %2570 = vmatprep.subr.mxu0 0.0
        %2571 = vmatpush1.msra.mxu0 0.0
        %2572 = vmatprep.subr.mxu0 0.0
        %2573 = vmatpush1.msra.mxu0 0.0
        %2574 = vmatprep.subr.mxu0 0.0
        %2575 = vmatpush1.msra.mxu0 0.0
        %2576 = vmatprep.subr.mxu0 0.0
        %2577 = vmatpush1.msra.mxu0 0.0
        %2578 = vmatprep.subr.mxu0 0.0
        %2579 = vmatpush1.msra.mxu0 0.0
        %2580 = vmatprep.subr.mxu0 0.0
        %2581 = vmatpush1.msra.mxu0 0.0
        %2582 = vmatprep.subr.mxu0 0.0
        %2583 = vmatpush1.msra.mxu0 0.0
        %2584 = vmatprep.mubr.f32.mxu0 0.0
        %2585 = vmatmul.mubr.f32.gmra.mrb[0].mxu0 %v2518
        %v2586 = vpop.f32.mrb[0].mxu0
        %v2587 = vadd.f32 0.0, %v2586
        %v2588 = vpop.f32.mrb[0].mxu0
        %2589 = vdwg.mxu0
        %v2591 = vsel %vm2460, %v2514, 0
        %2593 = vmatprep.subr.mxu0 0.0
        %2594 = vmatpush1.msra.mxu0 %v2039
        %2595 = vmatprep.subr.mxu0 0.0
        %2596 = vmatpush1.msra.mxu0 %v2040
        %2597 = vmatprep.subr.mxu0 0.0
        %2598 = vmatpush1.msra.mxu0 0.0
        %2599 = vmatprep.subr.mxu0 0.0
        %2600 = vmatpush1.msra.mxu0 0.0
        %2601 = vmatprep.subr.mxu0 0.0
        %2602 = vmatpush1.msra.mxu0 0.0
        %2603 = vmatprep.subr.mxu0 0.0
        %2604 = vmatpush1.msra.mxu0 0.0
        %2605 = vmatprep.subr.mxu0 0.0
        %2606 = vmatpush1.msra.mxu0 0.0
        %2607 = vmatprep.subr.mxu0 0.0
        %2608 = vmatpush1.msra.mxu0 0.0
        %2609 = vmatprep.subr.mxu0 0.0
        %2610 = vmatpush1.msra.mxu0 0.0
        %2611 = vmatprep.subr.mxu0 0.0
        %2612 = vmatpush1.msra.mxu0 0.0
        %2613 = vmatprep.subr.mxu0 0.0
        %2614 = vmatpush1.msra.mxu0 0.0
        %2615 = vmatprep.subr.mxu0 0.0
        %2616 = vmatpush1.msra.mxu0 0.0
        %2617 = vmatprep.subr.mxu0 0.0
        %2618 = vmatpush1.msra.mxu0 0.0
        %2619 = vmatprep.subr.mxu0 0.0
        %2620 = vmatpush1.msra.mxu0 0.0
        %2621 = vmatprep.subr.mxu0 0.0
        %2622 = vmatpush1.msra.mxu0 0.0
        %2623 = vmatprep.subr.mxu0 0.0
        %2624 = vmatpush1.msra.mxu0 0.0
        %2625 = vmatprep.subr.mxu0 0.0
        %2626 = vmatpush1.msra.mxu0 0.0
        %2627 = vmatprep.subr.mxu0 0.0
        %2628 = vmatpush1.msra.mxu0 0.0
        %2629 = vmatprep.subr.mxu0 0.0
        %2630 = vmatpush1.msra.mxu0 0.0
        %2631 = vmatprep.subr.mxu0 0.0
        %2632 = vmatpush1.msra.mxu0 0.0
        %2633 = vmatprep.subr.mxu0 0.0
        %2634 = vmatpush1.msra.mxu0 0.0
        %2635 = vmatprep.subr.mxu0 0.0
        %2636 = vmatpush1.msra.mxu0 0.0
        %2637 = vmatprep.subr.mxu0 0.0
        %2638 = vmatpush1.msra.mxu0 0.0
        %2639 = vmatprep.subr.mxu0 0.0
        %2640 = vmatpush1.msra.mxu0 0.0
        %2641 = vmatprep.subr.mxu0 0.0
        %2642 = vmatpush1.msra.mxu0 0.0
        %2643 = vmatprep.subr.mxu0 0.0
        %2644 = vmatpush1.msra.mxu0 0.0
        %2645 = vmatprep.subr.mxu0 0.0
        %2646 = vmatpush1.msra.mxu0 0.0
        %2647 = vmatprep.subr.mxu0 0.0
        %2648 = vmatpush1.msra.mxu0 0.0
        %2649 = vmatprep.subr.mxu0 0.0
        %2650 = vmatpush1.msra.mxu0 0.0
        %2651 = vmatprep.subr.mxu0 0.0
        %2652 = vmatpush1.msra.mxu0 0.0
        %2653 = vmatprep.subr.mxu0 0.0
        %2654 = vmatpush1.msra.mxu0 0.0
        %2655 = vmatprep.subr.mxu0 0.0
        %2656 = vmatpush1.msra.mxu0 0.0
        %2657 = vmatprep.mubr.f32.mxu0 0.0
        %2658 = vmatmul.mubr.f32.gmra.mrb[0].mxu0 %v2591
        %v2659 = vpop.f32.mrb[0].mxu0
        %v2660 = vadd.f32 0.0, %v2659
        %v2661 = vpop.f32.mrb[0].mxu0
        %2662 = vdwg.mxu0
        %v2664 = vsel %vm2460, %v2515, 0
        %2666 = vmatprep.subr.mxu0 0.0
        %2667 = vmatpush1.msra.mxu0 %v2041
        %2668 = vmatprep.subr.mxu0 0.0
        %2669 = vmatpush1.msra.mxu0 %v2042
        %2670 = vmatprep.subr.mxu0 0.0
        %2671 = vmatpush1.msra.mxu0 0.0
        %2672 = vmatprep.subr.mxu0 0.0
        %2673 = vmatpush1.msra.mxu0 0.0
        %2674 = vmatprep.subr.mxu0 0.0
        %2675 = vmatpush1.msra.mxu0 0.0
        %2676 = vmatprep.subr.mxu0 0.0
        %2677 = vmatpush1.msra.mxu0 0.0
        %2678 = vmatprep.subr.mxu0 0.0
        %2679 = vmatpush1.msra.mxu0 0.0
        %2680 = vmatprep.subr.mxu0 0.0
        %2681 = vmatpush1.msra.mxu0 0.0
        %2682 = vmatprep.subr.mxu0 0.0
        %2683 = vmatpush1.msra.mxu0 0.0
        %2684 = vmatprep.subr.mxu0 0.0
        %2685 = vmatpush1.msra.mxu0 0.0
        %2686 = vmatprep.subr.mxu0 0.0
        %2687 = vmatpush1.msra.mxu0 0.0
        %2688 = vmatprep.subr.mxu0 0.0
        %2689 = vmatpush1.msra.mxu0 0.0
        %2690 = vmatprep.subr.mxu0 0.0
        %2691 = vmatpush1.msra.mxu0 0.0
        %2692 = vmatprep.subr.mxu0 0.0
        %2693 = vmatpush1.msra.mxu0 0.0
        %2694 = vmatprep.subr.mxu0 0.0
        %2695 = vmatpush1.msra.mxu0 0.0
        %2696 = vmatprep.subr.mxu0 0.0
        %2697 = vmatpush1.msra.mxu0 0.0
        %2698 = vmatprep.subr.mxu0 0.0
        %2699 = vmatpush1.msra.mxu0 0.0
        %2700 = vmatprep.subr.mxu0 0.0
        %2701 = vmatpush1.msra.mxu0 0.0
        %2702 = vmatprep.subr.mxu0 0.0
        %2703 = vmatpush1.msra.mxu0 0.0
        %2704 = vmatprep.subr.mxu0 0.0
        %2705 = vmatpush1.msra.mxu0 0.0
        %2706 = vmatprep.subr.mxu0 0.0
        %2707 = vmatpush1.msra.mxu0 0.0
        %2708 = vmatprep.subr.mxu0 0.0
        %2709 = vmatpush1.msra.mxu0 0.0
        %2710 = vmatprep.subr.mxu0 0.0
        %2711 = vmatpush1.msra.mxu0 0.0
        %2712 = vmatprep.subr.mxu0 0.0
        %2713 = vmatpush1.msra.mxu0 0.0
        %2714 = vmatprep.subr.mxu0 0.0
        %2715 = vmatpush1.msra.mxu0 0.0
        %2716 = vmatprep.subr.mxu0 0.0
        %2717 = vmatpush1.msra.mxu0 0.0
        %2718 = vmatprep.subr.mxu0 0.0
        %2719 = vmatpush1.msra.mxu0 0.0
        %2720 = vmatprep.subr.mxu0 0.0
        %2721 = vmatpush1.msra.mxu0 0.0
        %2722 = vmatprep.subr.mxu0 0.0
        %2723 = vmatpush1.msra.mxu0 0.0
        %2724 = vmatprep.subr.mxu0 0.0
        %2725 = vmatpush1.msra.mxu0 0.0
        %2726 = vmatprep.subr.mxu0 0.0
        %2727 = vmatpush1.msra.mxu0 0.0
        %2728 = vmatprep.subr.mxu0 0.0
        %2729 = vmatpush1.msra.mxu0 0.0
        %2730 = vmatprep.mubr.f32.mxu0 0.0
        %2731 = vmatmul.mubr.f32.gmra.mrb[0].mxu0 %v2664
        %v2732 = vpop.f32.mrb[0].mxu0
        %v2733 = vadd.f32 0.0, %v2732
        %v2734 = vpop.f32.mrb[0].mxu0
        %2735 = vdwg.mxu0
        %v2737 = vsel %vm2460, %v2516, 0
        %2739 = vmatprep.subr.mxu0 0.0
        %2740 = vmatpush1.msra.mxu0 %v2043
        %2741 = vmatprep.subr.mxu0 0.0
        %2742 = vmatpush1.msra.mxu0 %v2044
        %2743 = vmatprep.subr.mxu0 0.0
        %2744 = vmatpush1.msra.mxu0 0.0
        %2745 = vmatprep.subr.mxu0 0.0
        %2746 = vmatpush1.msra.mxu0 0.0
        %2747 = vmatprep.subr.mxu0 0.0
        %2748 = vmatpush1.msra.mxu0 0.0
        %2749 = vmatprep.subr.mxu0 0.0
        %2750 = vmatpush1.msra.mxu0 0.0
        %2751 = vmatprep.subr.mxu0 0.0
        %2752 = vmatpush1.msra.mxu0 0.0
        %2753 = vmatprep.subr.mxu0 0.0
        %2754 = vmatpush1.msra.mxu0 0.0
        %2755 = vmatprep.subr.mxu0 0.0
        %2756 = vmatpush1.msra.mxu0 0.0
        %2757 = vmatprep.subr.mxu0 0.0
        %2758 = vmatpush1.msra.mxu0 0.0
        %2759 = vmatprep.subr.mxu0 0.0
        %2760 = vmatpush1.msra.mxu0 0.0
        %2761 = vmatprep.subr.mxu0 0.0
        %2762 = vmatpush1.msra.mxu0 0.0
        %2763 = vmatprep.subr.mxu0 0.0
        %2764 = vmatpush1.msra.mxu0 0.0
        %2765 = vmatprep.subr.mxu0 0.0
        %2766 = vmatpush1.msra.mxu0 0.0
        %2767 = vmatprep.subr.mxu0 0.0
        %2768 = vmatpush1.msra.mxu0 0.0
        %2769 = vmatprep.subr.mxu0 0.0
        %2770 = vmatpush1.msra.mxu0 0.0
        %2771 = vmatprep.subr.mxu0 0.0
        %2772 = vmatpush1.msra.mxu0 0.0
        %2773 = vmatprep.subr.mxu0 0.0
        %2774 = vmatpush1.msra.mxu0 0.0
        %2775 = vmatprep.subr.mxu0 0.0
        %2776 = vmatpush1.msra.mxu0 0.0
        %2777 = vmatprep.subr.mxu0 0.0
        %2778 = vmatpush1.msra.mxu0 0.0
        %2779 = vmatprep.subr.mxu0 0.0
        %2780 = vmatpush1.msra.mxu0 0.0
        %2781 = vmatprep.subr.mxu0 0.0
        %2782 = vmatpush1.msra.mxu0 0.0
        %2783 = vmatprep.subr.mxu0 0.0
        %2784 = vmatpush1.msra.mxu0 0.0
        %2785 = vmatprep.subr.mxu0 0.0
        %2786 = vmatpush1.msra.mxu0 0.0
        %2787 = vmatprep.subr.mxu0 0.0
        %2788 = vmatpush1.msra.mxu0 0.0
        %2789 = vmatprep.subr.mxu0 0.0
        %2790 = vmatpush1.msra.mxu0 0.0
        %2791 = vmatprep.subr.mxu0 0.0
        %2792 = vmatpush1.msra.mxu0 0.0
        %2793 = vmatprep.subr.mxu0 0.0
        %2794 = vmatpush1.msra.mxu0 0.0
        %2795 = vmatprep.subr.mxu0 0.0
        %2796 = vmatpush1.msra.mxu0 0.0
        %2797 = vmatprep.subr.mxu0 0.0
        %2798 = vmatpush1.msra.mxu0 0.0
        %2799 = vmatprep.subr.mxu0 0.0
        %2800 = vmatpush1.msra.mxu0 0.0
        %2801 = vmatprep.subr.mxu0 0.0
        %2802 = vmatpush1.msra.mxu0 0.0
        %2803 = vmatprep.mubr.f32.mxu0 0.0
        %2804 = vmatmul.mubr.f32.gmra.mrb[0].mxu0 %v2737
        %v2805 = vpop.f32.mrb[0].mxu0
        %v2806 = vadd.f32 0.0, %v2805
        %v2807 = vpop.f32.mrb[0].mxu0
        %2808 = vdwg.mxu0
        %v2810 = vsel %vm1048, %v2660, 0
        %2812 = vmatprep.subr.mxu0 0.0
        %2813 = vmatpush1.msra.mxu0 %v2051
        %2814 = vmatprep.subr.mxu0 0.0
        %2815 = vmatpush1.msra.mxu0 0.0
        %2816 = vmatprep.subr.mxu0 0.0
        %2817 = vmatpush1.msra.mxu0 0.0
        %2818 = vmatprep.subr.mxu0 0.0
        %2819 = vmatpush1.msra.mxu0 0.0
        %2820 = vmatprep.subr.mxu0 0.0
        %2821 = vmatpush1.msra.mxu0 0.0
        %2822 = vmatprep.subr.mxu0 0.0
        %2823 = vmatpush1.msra.mxu0 0.0
        %2824 = vmatprep.subr.mxu0 0.0
        %2825 = vmatpush1.msra.mxu0 0.0
        %2826 = vmatprep.subr.mxu0 0.0
        %2827 = vmatpush1.msra.mxu0 0.0
        %2828 = vmatprep.subr.mxu0 0.0
        %2829 = vmatpush1.msra.mxu0 0.0
        %2830 = vmatprep.subr.mxu0 0.0
        %2831 = vmatpush1.msra.mxu0 0.0
        %2832 = vmatprep.subr.mxu0 0.0
        %2833 = vmatpush1.msra.mxu0 0.0
        %2834 = vmatprep.subr.mxu0 0.0
        %2835 = vmatpush1.msra.mxu0 0.0
        %2836 = vmatprep.subr.mxu0 0.0
        %2837 = vmatpush1.msra.mxu0 0.0
        %2838 = vmatprep.subr.mxu0 0.0
        %2839 = vmatpush1.msra.mxu0 0.0
        %2840 = vmatprep.subr.mxu0 0.0
        %2841 = vmatpush1.msra.mxu0 0.0
        %2842 = vmatprep.subr.mxu0 0.0
        %2843 = vmatpush1.msra.mxu0 0.0
        %2844 = vmatprep.subr.mxu0 0.0
        %2845 = vmatpush1.msra.mxu0 0.0
        %2846 = vmatprep.subr.mxu0 0.0
        %2847 = vmatpush1.msra.mxu0 0.0
        %2848 = vmatprep.subr.mxu0 0.0
        %2849 = vmatpush1.msra.mxu0 0.0
        %2850 = vmatprep.subr.mxu0 0.0
        %2851 = vmatpush1.msra.mxu0 0.0
        %2852 = vmatprep.subr.mxu0 0.0
        %2853 = vmatpush1.msra.mxu0 0.0
        %2854 = vmatprep.subr.mxu0 0.0
        %2855 = vmatpush1.msra.mxu0 0.0
        %2856 = vmatprep.subr.mxu0 0.0
        %2857 = vmatpush1.msra.mxu0 0.0
        %2858 = vmatprep.subr.mxu0 0.0
        %2859 = vmatpush1.msra.mxu0 0.0
        %2860 = vmatprep.subr.mxu0 0.0
        %2861 = vmatpush1.msra.mxu0 0.0
        %2862 = vmatprep.subr.mxu0 0.0
        %2863 = vmatpush1.msra.mxu0 0.0
        %2864 = vmatprep.subr.mxu0 0.0
        %2865 = vmatpush1.msra.mxu0 0.0
        %2866 = vmatprep.subr.mxu0 0.0
        %2867 = vmatpush1.msra.mxu0 0.0
        %2868 = vmatprep.subr.mxu0 0.0
        %2869 = vmatpush1.msra.mxu0 0.0
        %2870 = vmatprep.subr.mxu0 0.0
        %2871 = vmatpush1.msra.mxu0 0.0
        %2872 = vmatprep.subr.mxu0 0.0
        %2873 = vmatpush1.msra.mxu0 0.0
        %2874 = vmatprep.subr.mxu0 0.0
        %2875 = vmatpush1.msra.mxu0 0.0
        %2876 = vmatprep.mubr.f32.mxu0 0.0
        %2877 = vmatmul.mubr.f32.gmra.mrb[0].mxu0 %v2810
        %v2878 = vpop.f32.mrb[0].mxu0
        %v2879 = vadd.f32 0.0, %v2878
        %v2880 = vpop.f32.mrb[0].mxu0
        %2881 = vdwg.mxu0
        %v2883 = vsel %vm1048, %v2587, 0
        %2885 = vmatprep.subr.mxu0 0.0
        %2886 = vmatpush1.msra.mxu0 %v2050
        %2887 = vmatprep.subr.mxu0 0.0
        %2888 = vmatpush1.msra.mxu0 0.0
        %2889 = vmatprep.subr.mxu0 0.0
        %2890 = vmatpush1.msra.mxu0 0.0
        %2891 = vmatprep.subr.mxu0 0.0
        %2892 = vmatpush1.msra.mxu0 0.0
        %2893 = vmatprep.subr.mxu0 0.0
        %2894 = vmatpush1.msra.mxu0 0.0
        %2895 = vmatprep.subr.mxu0 0.0
        %2896 = vmatpush1.msra.mxu0 0.0
        %2897 = vmatprep.subr.mxu0 0.0
        %2898 = vmatpush1.msra.mxu0 0.0
        %2899 = vmatprep.subr.mxu0 0.0
        %2900 = vmatpush1.msra.mxu0 0.0
        %2901 = vmatprep.subr.mxu0 0.0
        %2902 = vmatpush1.msra.mxu0 0.0
        %2903 = vmatprep.subr.mxu0 0.0
        %2904 = vmatpush1.msra.mxu0 0.0
        %2905 = vmatprep.subr.mxu0 0.0
        %2906 = vmatpush1.msra.mxu0 0.0
        %2907 = vmatprep.subr.mxu0 0.0
        %2908 = vmatpush1.msra.mxu0 0.0
        %2909 = vmatprep.subr.mxu0 0.0
        %2910 = vmatpush1.msra.mxu0 0.0
        %2911 = vmatprep.subr.mxu0 0.0
        %2912 = vmatpush1.msra.mxu0 0.0
        %2913 = vmatprep.subr.mxu0 0.0
        %2914 = vmatpush1.msra.mxu0 0.0
        %2915 = vmatprep.subr.mxu0 0.0
        %2916 = vmatpush1.msra.mxu0 0.0
        %2917 = vmatprep.subr.mxu0 0.0
        %2918 = vmatpush1.msra.mxu0 0.0
        %2919 = vmatprep.subr.mxu0 0.0
        %2920 = vmatpush1.msra.mxu0 0.0
        %2921 = vmatprep.subr.mxu0 0.0
        %2922 = vmatpush1.msra.mxu0 0.0
        %2923 = vmatprep.subr.mxu0 0.0
        %2924 = vmatpush1.msra.mxu0 0.0
        %2925 = vmatprep.subr.mxu0 0.0
        %2926 = vmatpush1.msra.mxu0 0.0
        %2927 = vmatprep.subr.mxu0 0.0
        %2928 = vmatpush1.msra.mxu0 0.0
        %2929 = vmatprep.subr.mxu0 0.0
        %2930 = vmatpush1.msra.mxu0 0.0
        %2931 = vmatprep.subr.mxu0 0.0
        %2932 = vmatpush1.msra.mxu0 0.0
        %2933 = vmatprep.subr.mxu0 0.0
        %2934 = vmatpush1.msra.mxu0 0.0
        %2935 = vmatprep.subr.mxu0 0.0
        %2936 = vmatpush1.msra.mxu0 0.0
        %2937 = vmatprep.subr.mxu0 0.0
        %2938 = vmatpush1.msra.mxu0 0.0
        %2939 = vmatprep.subr.mxu0 0.0
        %2940 = vmatpush1.msra.mxu0 0.0
        %2941 = vmatprep.subr.mxu0 0.0
        %2942 = vmatpush1.msra.mxu0 0.0
        %2943 = vmatprep.subr.mxu0 0.0
        %2944 = vmatpush1.msra.mxu0 0.0
        %2945 = vmatprep.subr.mxu0 0.0
        %2946 = vmatpush1.msra.mxu0 0.0
        %2947 = vmatprep.subr.mxu0 0.0
        %2948 = vmatpush1.msra.mxu0 0.0
        %2949 = vmatprep.mubr.f32.mxu0 0.0
        %2950 = vmatmul.mubr.f32.gmra.mrb[0].mxu0 %v2883
        %v2951 = vpop.f32.mrb[0].mxu0
        %v2952 = vadd.f32 %v2879, %v2951
        %v2953 = vpop.f32.mrb[0].mxu0
        %2954 = vdwg.mxu0
        %v2956 = vsel %vm1048, %v2733, 0
        %2958 = vmatprep.subr.mxu0 0.0
        %2959 = vmatpush1.msra.mxu0 %v2052
        %2960 = vmatprep.subr.mxu0 0.0
        %2961 = vmatpush1.msra.mxu0 0.0
        %2962 = vmatprep.subr.mxu0 0.0
        %2963 = vmatpush1.msra.mxu0 0.0
        %2964 = vmatprep.subr.mxu0 0.0
        %2965 = vmatpush1.msra.mxu0 0.0
        %2966 = vmatprep.subr.mxu0 0.0
        %2967 = vmatpush1.msra.mxu0 0.0
        %2968 = vmatprep.subr.mxu0 0.0
        %2969 = vmatpush1.msra.mxu0 0.0
        %2970 = vmatprep.subr.mxu0 0.0
        %2971 = vmatpush1.msra.mxu0 0.0
        %2972 = vmatprep.subr.mxu0 0.0
        %2973 = vmatpush1.msra.mxu0 0.0
        %2974 = vmatprep.subr.mxu0 0.0
        %2975 = vmatpush1.msra.mxu0 0.0
        %2976 = vmatprep.subr.mxu0 0.0
        %2977 = vmatpush1.msra.mxu0 0.0
        %2978 = vmatprep.subr.mxu0 0.0
        %2979 = vmatpush1.msra.mxu0 0.0
        %2980 = vmatprep.subr.mxu0 0.0
        %2981 = vmatpush1.msra.mxu0 0.0
        %2982 = vmatprep.subr.mxu0 0.0
        %2983 = vmatpush1.msra.mxu0 0.0
        %2984 = vmatprep.subr.mxu0 0.0
        %2985 = vmatpush1.msra.mxu0 0.0
        %2986 = vmatprep.subr.mxu0 0.0
        %2987 = vmatpush1.msra.mxu0 0.0
        %2988 = vmatprep.subr.mxu0 0.0
        %2989 = vmatpush1.msra.mxu0 0.0
        %2990 = vmatprep.subr.mxu0 0.0
        %2991 = vmatpush1.msra.mxu0 0.0
        %2992 = vmatprep.subr.mxu0 0.0
        %2993 = vmatpush1.msra.mxu0 0.0
        %2994 = vmatprep.subr.mxu0 0.0
        %2995 = vmatpush1.msra.mxu0 0.0
        %2996 = vmatprep.subr.mxu0 0.0
        %2997 = vmatpush1.msra.mxu0 0.0
        %2998 = vmatprep.subr.mxu0 0.0
        %2999 = vmatpush1.msra.mxu0 0.0
        %3000 = vmatprep.subr.mxu0 0.0
        %3001 = vmatpush1.msra.mxu0 0.0
        %3002 = vmatprep.subr.mxu0 0.0
        %3003 = vmatpush1.msra.mxu0 0.0
        %3004 = vmatprep.subr.mxu0 0.0
        %3005 = vmatpush1.msra.mxu0 0.0
        %3006 = vmatprep.subr.mxu0 0.0
        %3007 = vmatpush1.msra.mxu0 0.0
        %3008 = vmatprep.subr.mxu0 0.0
        %3009 = vmatpush1.msra.mxu0 0.0
        %3010 = vmatprep.subr.mxu0 0.0
        %3011 = vmatpush1.msra.mxu0 0.0
        %3012 = vmatprep.subr.mxu0 0.0
        %3013 = vmatpush1.msra.mxu0 0.0
        %3014 = vmatprep.subr.mxu0 0.0
        %3015 = vmatpush1.msra.mxu0 0.0
        %3016 = vmatprep.subr.mxu0 0.0
        %3017 = vmatpush1.msra.mxu0 0.0
        %3018 = vmatprep.subr.mxu0 0.0
        %3019 = vmatpush1.msra.mxu0 0.0
        %3020 = vmatprep.subr.mxu0 0.0
        %3021 = vmatpush1.msra.mxu0 0.0
        %3022 = vmatprep.mubr.f32.mxu0 0.0
        %3023 = vmatmul.mubr.f32.gmra.mrb[0].mxu0 %v2956
        %v3024 = vpop.f32.mrb[0].mxu0
        %v3025 = vadd.f32 0.0, %v3024
        %v3026 = vpop.f32.mrb[0].mxu0
        %3027 = vdwg.mxu0
        %v3028 = vadd.f32 %v2952, %v3025
        %v3030 = vsel %vm1048, %v2806, 0
        %3032 = vmatprep.subr.mxu0 0.0
        %3033 = vmatpush1.msra.mxu0 %v2053
        %3034 = vmatprep.subr.mxu0 0.0
        %3035 = vmatpush1.msra.mxu0 0.0
        %3036 = vmatprep.subr.mxu0 0.0
        %3037 = vmatpush1.msra.mxu0 0.0
        %3038 = vmatprep.subr.mxu0 0.0
        %3039 = vmatpush1.msra.mxu0 0.0
        %3040 = vmatprep.subr.mxu0 0.0
        %3041 = vmatpush1.msra.mxu0 0.0
        %3042 = vmatprep.subr.mxu0 0.0
        %3043 = vmatpush1.msra.mxu0 0.0
        %3044 = vmatprep.subr.mxu0 0.0
        %3045 = vmatpush1.msra.mxu0 0.0
        %3046 = vmatprep.subr.mxu0 0.0
        %3047 = vmatpush1.msra.mxu0 0.0
        %3048 = vmatprep.subr.mxu0 0.0
        %3049 = vmatpush1.msra.mxu0 0.0
        %3050 = vmatprep.subr.mxu0 0.0
        %3051 = vmatpush1.msra.mxu0 0.0
        %3052 = vmatprep.subr.mxu0 0.0
        %3053 = vmatpush1.msra.mxu0 0.0
        %3054 = vmatprep.subr.mxu0 0.0
        %3055 = vmatpush1.msra.mxu0 0.0
        %3056 = vmatprep.subr.mxu0 0.0
        %3057 = vmatpush1.msra.mxu0 0.0
        %3058 = vmatprep.subr.mxu0 0.0
        %3059 = vmatpush1.msra.mxu0 0.0
        %3060 = vmatprep.subr.mxu0 0.0
        %3061 = vmatpush1.msra.mxu0 0.0
        %3062 = vmatprep.subr.mxu0 0.0
        %3063 = vmatpush1.msra.mxu0 0.0
        %3064 = vmatprep.subr.mxu0 0.0
        %3065 = vmatpush1.msra.mxu0 0.0
        %3066 = vmatprep.subr.mxu0 0.0
        %3067 = vmatpush1.msra.mxu0 0.0
        %3068 = vmatprep.subr.mxu0 0.0
        %3069 = vmatpush1.msra.mxu0 0.0
        %3070 = vmatprep.subr.mxu0 0.0
        %3071 = vmatpush1.msra.mxu0 0.0
        %3072 = vmatprep.subr.mxu0 0.0
        %3073 = vmatpush1.msra.mxu0 0.0
        %3074 = vmatprep.subr.mxu0 0.0
        %3075 = vmatpush1.msra.mxu0 0.0
        %3076 = vmatprep.subr.mxu0 0.0
        %3077 = vmatpush1.msra.mxu0 0.0
        %3078 = vmatprep.subr.mxu0 0.0
        %3079 = vmatpush1.msra.mxu0 0.0
        %3080 = vmatprep.subr.mxu0 0.0
        %3081 = vmatpush1.msra.mxu0 0.0
        %3082 = vmatprep.subr.mxu0 0.0
        %3083 = vmatpush1.msra.mxu0 0.0
        %3084 = vmatprep.subr.mxu0 0.0
        %3085 = vmatpush1.msra.mxu0 0.0
        %3086 = vmatprep.subr.mxu0 0.0
        %3087 = vmatpush1.msra.mxu0 0.0
        %3088 = vmatprep.subr.mxu0 0.0
        %3089 = vmatpush1.msra.mxu0 0.0
        %3090 = vmatprep.subr.mxu0 0.0
        %3091 = vmatpush1.msra.mxu0 0.0
        %3092 = vmatprep.subr.mxu0 0.0
        %3093 = vmatpush1.msra.mxu0 0.0
        %3094 = vmatprep.subr.mxu0 0.0
        %3095 = vmatpush1.msra.mxu0 0.0
        %3096 = vmatprep.mubr.f32.mxu0 0.0
        %3097 = vmatmul.mubr.f32.gmra.mrb[0].mxu0 %v3030
        %v3098 = vpop.f32.mrb[0].mxu0
        %v3099 = vadd.f32 0.0, %v3098
        %v3100 = vpop.f32.mrb[0].mxu0
        %3101 = vdwg.mxu0
        %v3102 = vadd.f32 %v3028, %v3099
        %v3104 = vlaneseq
        %v3105 = vshrl.u32 %v3104, 7
        %v3106 = vsub.s32 0, %v3105
        %v3107 = vrot.slane %v2054, %v3106
        %v3109 = vadd.f32 %v3102, %v3107
        %v3110 = vadd.f32 %v3109, %v2028
        %v3111 = vld [vmem:[%s17] sm:$0x1]
        %v3112 = vld [vmem:[%s18] sm:$0x1]
        %v3113 = vsel %vm960, %v3110, 0.0
        %3114 = vadd.xlane.f32.xlu0 %v3113
        %v3115 = vpop.xlane.xlu0 %3114
        %v3116 = vmul.f32 %v3115, %v2004
        %v3117 = vsub.f32 %v3110, %v3116
        %v3118 = vmul.f32 %v3117, %v3117
        %v3119 = vsel %vm960, %v3118, 0.0
        %3120 = vadd.xlane.f32.xlu0 %v3119
        %v3121 = vpop.xlane.xlu0 %3120
        %v3122 = vmul.f32 %v3121, %v2004
        %v3123 = vadd.f32 %v3122, 1e-05
        %v3124 = vrsqrt.pop %v3123
        %v3125 = vmul.f32 %v3117, %v3124
        %v3127 = vlaneseq
        %v3128 = vshrl.u32 %v3127, 7
        %v3129 = vsub.s32 0, %v3128
        %v3130 = vrot.slane %v3111, %v3129
        %v3132 = vmul.f32 %v3125, %v3130
        %v3134 = vlaneseq
        %v3135 = vshrl.u32 %v3134, 7
        %v3136 = vsub.s32 0, %v3135
        %v3137 = vrot.slane %v3112, %v3136
        %v3139 = vadd.f32 %v3132, %v3137
        %v3140 = vld [vmem:[%s19] sm:$0xff]
        %v3141 = vld [vmem:[%s19 + $0x8] sm:$0xff]
        %v3142 = vld [vmem:[%s19 + $0x10] sm:$0xff]
        %v3143 = vld [vmem:[%s19 + $0x18] sm:$0xff]
        %v3144 = vld [vmem:[%s20] sm:$0x1]
        %v3146 = vlaneseq
        %v3147 = vshrl.u32 %v3146, 7
        %v3148 = vsub.s32 0, %v3147
        %v3149 = vrot.slane %v3144, %v3148
        %v3152 = vsel %vm960, %v3139, 0
        %3154 = vmatprep.subr.mxu0 0.0
        %3155 = vmatpush1.msra.mxu0 %v3140
        %3156 = vmatprep.subr.mxu0 0.0
        %3157 = vmatpush1.msra.mxu0 %v3141
        %3158 = vmatprep.subr.mxu0 0.0
        %3159 = vmatpush1.msra.mxu0 %v3142
        %3160 = vmatprep.subr.mxu0 0.0
        %3161 = vmatpush1.msra.mxu0 %v3143
        %3162 = vmatprep.subr.mxu0 0.0
        %3163 = vmatpush1.msra.mxu0 0.0
        %3164 = vmatprep.subr.mxu0 0.0
        %3165 = vmatpush1.msra.mxu0 0.0
        %3166 = vmatprep.subr.mxu0 0.0
        %3167 = vmatpush1.msra.mxu0 0.0
        %3168 = vmatprep.subr.mxu0 0.0
        %3169 = vmatpush1.msra.mxu0 0.0
        %3170 = vmatprep.subr.mxu0 0.0
        %3171 = vmatpush1.msra.mxu0 0.0
        %3172 = vmatprep.subr.mxu0 0.0
        %3173 = vmatpush1.msra.mxu0 0.0
        %3174 = vmatprep.subr.mxu0 0.0
        %3175 = vmatpush1.msra.mxu0 0.0
        %3176 = vmatprep.subr.mxu0 0.0
        %3177 = vmatpush1.msra.mxu0 0.0
        %3178 = vmatprep.subr.mxu0 0.0
        %3179 = vmatpush1.msra.mxu0 0.0
        %3180 = vmatprep.subr.mxu0 0.0
        %3181 = vmatpush1.msra.mxu0 0.0
        %3182 = vmatprep.subr.mxu0 0.0
        %3183 = vmatpush1.msra.mxu0 0.0
        %3184 = vmatprep.subr.mxu0 0.0
        %3185 = vmatpush1.msra.mxu0 0.0
        %3186 = vmatprep.subr.mxu0 0.0
        %3187 = vmatpush1.msra.mxu0 0.0
        %3188 = vmatprep.subr.mxu0 0.0
        %3189 = vmatpush1.msra.mxu0 0.0
        %3190 = vmatprep.subr.mxu0 0.0
        %3191 = vmatpush1.msra.mxu0 0.0
        %3192 = vmatprep.subr.mxu0 0.0
        %3193 = vmatpush1.msra.mxu0 0.0
        %3194 = vmatprep.subr.mxu0 0.0
        %3195 = vmatpush1.msra.mxu0 0.0
        %3196 = vmatprep.subr.mxu0 0.0
        %3197 = vmatpush1.msra.mxu0 0.0
        %3198 = vmatprep.subr.mxu0 0.0
        %3199 = vmatpush1.msra.mxu0 0.0
        %3200 = vmatprep.subr.mxu0 0.0
        %3201 = vmatpush1.msra.mxu0 0.0
        %3202 = vmatprep.subr.mxu0 0.0
        %3203 = vmatpush1.msra.mxu0 0.0
        %3204 = vmatprep.subr.mxu0 0.0
        %3205 = vmatpush1.msra.mxu0 0.0
        %3206 = vmatprep.subr.mxu0 0.0
        %3207 = vmatpush1.msra.mxu0 0.0
        %3208 = vmatprep.subr.mxu0 0.0
        %3209 = vmatpush1.msra.mxu0 0.0
        %3210 = vmatprep.subr.mxu0 0.0
        %3211 = vmatpush1.msra.mxu0 0.0
        %3212 = vmatprep.subr.mxu0 0.0
        %3213 = vmatpush1.msra.mxu0 0.0
        %3214 = vmatprep.subr.mxu0 0.0
        %3215 = vmatpush1.msra.mxu0 0.0
        %3216 = vmatprep.subr.mxu0 0.0
        %3217 = vmatpush1.msra.mxu0 0.0
        %3218 = vmatprep.mubr.f32.mxu0 0.0
        %3219 = vmatmul.mubr.f32.gmra.mrb[0].mxu0 %v3152
        %v3220 = vpop.f32.mrb[0].mxu0
        %v3221 = vadd.f32 %v3149, %v3220
        %v3222 = vpop.f32.mrb[0].mxu0
        %3223 = vdwg.mxu0
        %v3224 = vmax.f32 %v3221, 0.0
        %v3225 = vld [vmem:[%s21] sm:$0xff]
        %v3226 = vld [vmem:[%s21 + $0x8] sm:$0xff]
        %v3227 = vld [vmem:[%s21 + $0x10] sm:$0xff]
        %v3228 = vld [vmem:[%s21 + $0x18] sm:$0xff]
        %v3229 = vld [vmem:[%s21 + $0x20] sm:$0xff]
        %v3230 = vld [vmem:[%s21 + $0x28] sm:$0xff]
        %v3231 = vld [vmem:[%s21 + $0x30] sm:$0xff]
        %v3232 = vld [vmem:[%s21 + $0x38] sm:$0xff]
        %v3233 = vld [vmem:[%s22] sm:$0x1]
        %v3235 = vlaneseq
        %v3236 = vshrl.u32 %v3235, 7
        %v3237 = vsub.s32 0, %v3236
        %v3238 = vrot.slane %v3233, %v3237
        %vm3240 = vcmask 523264
        %v3242 = vsel %vm3240, %v3224, 0
        %3244 = vmatprep.subr.mxu0 0.0
        %3245 = vmatpush1.msra.mxu0 %v3225
        %3246 = vmatprep.subr.mxu0 0.0
        %3247 = vmatpush1.msra.mxu0 %v3226
        %3248 = vmatprep.subr.mxu0 0.0
        %3249 = vmatpush1.msra.mxu0 %v3227
        %3250 = vmatprep.subr.mxu0 0.0
        %3251 = vmatpush1.msra.mxu0 %v3228
        %3252 = vmatprep.subr.mxu0 0.0
        %3253 = vmatpush1.msra.mxu0 %v3229
        %3254 = vmatprep.subr.mxu0 0.0
        %3255 = vmatpush1.msra.mxu0 %v3230
        %3256 = vmatprep.subr.mxu0 0.0
        %3257 = vmatpush1.msra.mxu0 %v3231
        %3258 = vmatprep.subr.mxu0 0.0
        %3259 = vmatpush1.msra.mxu0 %v3232
        %3260 = vmatprep.subr.mxu0 0.0
        %3261 = vmatpush1.msra.mxu0 0.0
        %3262 = vmatprep.subr.mxu0 0.0
        %3263 = vmatpush1.msra.mxu0 0.0
        %3264 = vmatprep.subr.mxu0 0.0
        %3265 = vmatpush1.msra.mxu0 0.0
        %3266 = vmatprep.subr.mxu0 0.0
        %3267 = vmatpush1.msra.mxu0 0.0
        %3268 = vmatprep.subr.mxu0 0.0
        %3269 = vmatpush1.msra.mxu0 0.0
        %3270 = vmatprep.subr.mxu0 0.0
        %3271 = vmatpush1.msra.mxu0 0.0
        %3272 = vmatprep.subr.mxu0 0.0
        %3273 = vmatpush1.msra.mxu0 0.0
        %3274 = vmatprep.subr.mxu0 0.0
        %3275 = vmatpush1.msra.mxu0 0.0
        %3276 = vmatprep.subr.mxu0 0.0
        %3277 = vmatpush1.msra.mxu0 0.0
        %3278 = vmatprep.subr.mxu0 0.0
        %3279 = vmatpush1.msra.mxu0 0.0
        %3280 = vmatprep.subr.mxu0 0.0
        %3281 = vmatpush1.msra.mxu0 0.0
        %3282 = vmatprep.subr.mxu0 0.0
        %3283 = vmatpush1.msra.mxu0 0.0
        %3284 = vmatprep.subr.mxu0 0.0
        %3285 = vmatpush1.msra.mxu0 0.0
        %3286 = vmatprep.subr.mxu0 0.0
        %3287 = vmatpush1.msra.mxu0 0.0
        %3288 = vmatprep.subr.mxu0 0.0
        %3289 = vmatpush1.msra.mxu0 0.0
        %3290 = vmatprep.subr.mxu0 0.0
        %3291 = vmatpush1.msra.mxu0 0.0
        %3292 = vmatprep.subr.mxu0 0.0
        %3293 = vmatpush1.msra.mxu0 0.0
        %3294 = vmatprep.subr.mxu0 0.0
        %3295 = vmatpush1.msra.mxu0 0.0
        %3296 = vmatprep.subr.mxu0 0.0
        %3297 = vmatpush1.msra.mxu0 0.0
        %3298 = vmatprep.subr.mxu0 0.0
        %3299 = vmatpush1.msra.mxu0 0.0
        %3300 = vmatprep.subr.mxu0 0.0
        %3301 = vmatpush1.msra.mxu0 0.0
        %3302 = vmatprep.subr.mxu0 0.0
        %3303 = vmatpush1.msra.mxu0 0.0
        %3304 = vmatprep.subr.mxu0 0.0
        %3305 = vmatpush1.msra.mxu0 0.0
        %3306 = vmatprep.subr.mxu0 0.0
        %3307 = vmatpush1.msra.mxu0 0.0
        %3308 = vmatprep.mubr.f32.mxu0 0.0
        %3309 = vmatmul.mubr.f32.gmra.mrb[0].mxu0 %v3242
        %v3310 = vpop.f32.mrb[0].mxu0
        %v3311 = vadd.f32 %v3238, %v3310
        %v3312 = vpop.f32.mrb[0].mxu0
        %3313 = vdwg.mxu0
        %v3314 = vadd.f32 %v3311, %v3139
        %v3315 = vld [vmem:[%s23] sm:$0x1]
        %v3316 = vld [vmem:[%s24] sm:$0x1]
        %v3317 = vsel %vm960, %v3314, 0.0
        %3318 = vadd.xlane.f32.xlu0 %v3317
        %v3319 = vpop.xlane.xlu0 %3318
        %v3320 = vmul.f32 %v3319, %v2004
        %v3321 = vsub.f32 %v3314, %v3320
        %v3322 = vmul.f32 %v3321, %v3321
        %v3323 = vsel %vm960, %v3322, 0.0
        %3324 = vadd.xlane.f32.xlu0 %v3323
        %v3325 = vpop.xlane.xlu0 %3324
        %v3326 = vmul.f32 %v3325, %v2004
        %v3327 = vadd.f32 %v3326, 1e-05
        %v3328 = vrsqrt.pop %v3327
        %v3329 = vmul.f32 %v3321, %v3328
        %v3331 = vlaneseq
        %v3332 = vshrl.u32 %v3331, 7
        %v3333 = vsub.s32 0, %v3332
        %v3334 = vrot.slane %v3315, %v3333
        %v3336 = vmul.f32 %v3329, %v3334
        %v3338 = vlaneseq
        %v3339 = vshrl.u32 %v3338, 7
        %v3340 = vsub.s32 0, %v3339
        %v3341 = vrot.slane %v3316, %v3340
        %v3343 = vadd.f32 %v3336, %v3341
        %3344 = vst.msk [vmem:[%s892] sm:$0xff] %vm960, %v3343
        %3345 = vst.msk [vmem:[%s899] sm:$0xff] %vm2460, %v2513
        %3346 = vst.msk [vmem:[%s899 + $0x8] sm:$0xff] %vm2460, %v2514
        %3347 = vst.msk [vmem:[%s899 + $0x10] sm:$0xff] %vm2460, %v2515
        %3348 = vst.msk [vmem:[%s899 + $0x18] sm:$0xff] %vm2460, %v2516
        %s3349 = sand.u32 %s628, 1
        %s3350 = scalar_lea.sflag [#allocation3], %s3349
        %s3351 = sand.u32 %s628, 1
        %s3352 = smul.addr %s3351, 8
        %s3353 = scalar_lea.vmem [#allocation2], %s3352
        %s3354 = sand.u32 %s656, 1
        %s3355 = scalar_lea.sflag [#allocation5], %s3354
        %s3356 = sand.u32 %s656, 1
        %s3357 = smul.addr %s3356, 32
        %s3358 = scalar_lea.vmem [#allocation4], %s3357
        // Predicated region
        $region121: #{tpu_custom_call.1} parent=119 // pred_check
          %p3359 = pneg %p638
        $region122: #{tpu_custom_call.1} parent=119 // pred_check_branch
          %3361 = sbr.rel (%p3359) target = $region124
        $region123: #{tpu_custom_call.1} parent=119 // pred_region
          %s3363 = ssub.s32 128, 128
          %3364 = vsyncadd %s3350, %s3363
          %s3365 = sadd.s32 %s49, %s48
          %s3366 = smul.addr %s3365, 128
          %s3367 = scalar_lea.hbm %s25, %s3366
          %s3369 = sshll.u32 %s3353, 4
          %s3370 = int_to_ptr.vmem [resolvable:$true] %s3369
          %3372 = dma.vmem_to_hbm [thread:$0]  %s3370, 128, %s3367, %s3350
        $region124: #{tpu_custom_call.1} parent=119 // pred_fallthru
          _
        // Predicated region
        $region125: #{tpu_custom_call.1} parent=119 // pred_check
          %p3373 = pneg %p666
        $region126: #{tpu_custom_call.1} parent=119 // pred_check_branch
          %3375 = sbr.rel (%p3373) target = $region128
        $region127: #{tpu_custom_call.1} parent=119 // pred_region
          %s3377 = ssub.s32 512, 512
          %3378 = vsyncadd %s3355, %s3377
          %s3379 = smul.addr %s48, 4
          %s3380 = sadd.s32 %s49, %s3379
          %s3381 = smul.addr %s3380, 128
          %s3382 = scalar_lea.hbm %s26, %s3381
          %s3383 = sshll.u32 %s3358, 4
          %s3384 = int_to_ptr.vmem [resolvable:$true] %s3383
          %3389 = dma.vmem_to_hbm [thread:$0]  %s3384, 512, %s3382, %s3355, 128, 128, 8
        $region128: #{tpu_custom_call.1} parent=119 // pred_fallthru
          _
      $region120: #{tpu_custom_call.1} parent=5 // pred_fallthru
        _
      %p3390 = scmp.le.s32.totalorder 2, %s39
      // Predicated region
      $region129: #{tpu_custom_call.1} parent=5 // pred_check
        %p3391 = pneg %p3390
      $region130: #{tpu_custom_call.1} parent=5 // pred_check_branch
        %3393 = sbr.rel (%p3391) target = $region132
      $region131: #{tpu_custom_call.1} parent=5 // pred_region
        %s3394 = ssub.s32 %s39, 2
        // Predicated region
        $region133: #{tpu_custom_call.1} parent=131 // pred_check
          %p3395 = pneg %p644
        $region134: #{tpu_custom_call.1} parent=131 // pred_check_branch
          %3397 = sbr.rel (%p3395) target = $region136
        $region135: #{tpu_custom_call.1} parent=131 // pred_region
          %s3398 = sand.u32 %s629, 1
          %s3399 = scalar_lea.sflag [#allocation3], %s3398
          %s3400 = sand.u32 %s629, 1
          %s3401 = smul.addr %s3400, 8
          %s3402 = scalar_lea.vmem [#allocation2], %s3401
          %3403 = dma.done %s3399, 128
        $region136: #{tpu_custom_call.1} parent=131 // pred_fallthru
          _
        // Predicated region
        $region137: #{tpu_custom_call.1} parent=131 // pred_check
          %p3404 = pneg %p672
        $region138: #{tpu_custom_call.1} parent=131 // pred_check_branch
          %3406 = sbr.rel (%p3404) target = $region140
        $region139: #{tpu_custom_call.1} parent=131 // pred_region
          %s3407 = sand.u32 %s657, 1
          %s3408 = scalar_lea.sflag [#allocation5], %s3407
          %s3409 = sand.u32 %s657, 1
          %s3410 = smul.addr %s3409, 32
          %s3411 = scalar_lea.vmem [#allocation4], %s3410
          %3412 = dma.done %s3408, 512
        $region140: #{tpu_custom_call.1} parent=131 // pred_fallthru
          _
      $region132: #{tpu_custom_call.1} parent=5 // pred_fallthru
        _
    $region6: #{tpu_custom_call.1} parent=1 // loop_footer
      %s43 = sadd.s32 1, %s39
    $region7: #{tpu_custom_call.1} parent=1 // loop_footer_branch
      %38 = sbr.rel target = $region3
    $region8: #{tpu_custom_call.1} parent=1 // loop_exit
      _
    %3413 = vsyncpa [#allocation3], 1
    %s3414 = scalar_lea.sflag [#allocation3], 1
    %3415 = vsyncpa %s3414, 1
    %3416 = vsyncpa [#allocation5], 1
    %s3417 = scalar_lea.sflag [#allocation5], 1
    %3418 = vsyncpa %s3417, 1

// kernel: tpu_custom_call.1
$region0: #{tpu_custom_call.1}
  #allocation0 [shape = 'u32[]', space=smem, size = 0x4, offset = 0x4, fixed_abs, tag = 'smem constant byte address 0x4 - core index']
  #allocation1 [shape = 'u32[144,128]{1,0:T(1,128)}', space=vmem, size = 0x12000, scoped, tag = 'internal scratch']
  %s0 = inlined_call_operand.vmem [shape: f32[2,8,32], index: 0, kind: input, shape index: {}]
  %s1 = inlined_call_operand.vmem [shape: f32[2,4,8,8], index: 1, kind: input, shape index: {}]
  %s2 = inlined_call_operand.vmem [shape: f32[2,4,8,8], index: 2, kind: input, shape index: {}]
  %s3 = inlined_call_operand.vmem [shape: f32[2,4,16,8], index: 3, kind: input, shape index: {}]
  %s4 = inlined_call_operand.vmem [shape: f32[2,4,16,8], index: 4, kind: input, shape index: {}]
  %s5 = inlined_call_operand.vmem [shape: f32[2,1,8], index: 5, kind: input, shape index: {}]
  %s6 = inlined_call_operand.vmem [shape: f32[2,1,16], index: 6, kind: input, shape index: {}]
  %s7 = inlined_call_operand.vmem [shape: f32[32,32], index: 7, kind: input, shape index: {}]
  %s8 = inlined_call_operand.vmem [shape: f32[1,32], index: 8, kind: input, shape index: {}]
  %s9 = inlined_call_operand.vmem [shape: f32[4,8,32], index: 9, kind: input, shape index: {}]
  %s10 = inlined_call_operand.vmem [shape: f32[1,32], index: 10, kind: input, shape index: {}]
  %s11 = inlined_call_operand.vmem [shape: f32[1,32], index: 11, kind: input, shape index: {}]
  %s12 = inlined_call_operand.vmem [shape: f32[1,32], index: 12, kind: input, shape index: {}]
  %s13 = inlined_call_operand.vmem [shape: f32[32,32], index: 13, kind: input, shape index: {}]
  %s14 = inlined_call_operand.vmem [shape: f32[1,32], index: 14, kind: input, shape index: {}]
  %s15 = inlined_call_operand.vmem [shape: f32[4,8,32], index: 15, kind: input, shape index: {}]
  %s16 = inlined_call_operand.vmem [shape: f32[1,32], index: 16, kind: input, shape index: {}]
  %s17 = inlined_call_operand.vmem [shape: f32[1,32], index: 17, kind: input, shape index: {}]
  %s18 = inlined_call_operand.vmem [shape: f32[1,32], index: 18, kind: input, shape index: {}]
  %s19 = inlined_call_operand.vmem [shape: f32[32,64], index: 19, kind: input, shape index: {}]
  %s20 = inlined_call_operand.vmem [shape: f32[1,64], index: 20, kind: input, shape index: {}]
  %s21 = inlined_call_operand.vmem [shape: f32[64,32], index: 21, kind: input, shape index: {}]
  %s22 = inlined_call_operand.vmem [shape: f32[1,32], index: 22, kind: input, shape index: {}]
  %s23 = inlined_call_operand.vmem [shape: f32[1,32], index: 23, kind: input, shape index: {}]
  %s24 = inlined_call_operand.vmem [shape: f32[1,32], index: 24, kind: input, shape index: {}]
  %s25 = inlined_call_operand.hbm [shape: f32[2,8,32], index: 25, kind: output, shape index: {0}]
  %s26 = inlined_call_operand.hbm [shape: f32[2,4,8,16], index: 26, kind: output, shape index: {1}]
  %27 = xla_tuple %s25, %s26
  %s28 = sld [smem:[#allocation0]]
  $region141: #{tpu_custom_call.1} parent=0
    _
  %s30 = ssub.s32 1, %s28
  %s31 = scalar_select 0, %s30, %s28
  $region1: #{tpu_custom_call.1} parent=0
    #allocation2 [shape = 'u8[8192]{0}', space=vmem, size = 0x2000, scoped, tag = 'output window, operand 0']
    #allocation3 [shape = 's32[2]{0}', space=sflag, size = 0x8, scoped, tag = 'scoped memory for tpu_custom_call.1']
    #allocation4 [shape = 'u8[32768]{0}', space=vmem, size = 0x8000, scoped, tag = 'output window, operand 1']
    #allocation5 [shape = 's32[2]{0}', space=sflag, size = 0x8, scoped, tag = 'scoped memory for tpu_custom_call.1']
    %32 = vsyncpa [#allocation3], 0
    %s33 = scalar_lea.sflag [#allocation3], 1
    %34 = vsyncpa %s33, 0
    %35 = vsyncpa [#allocation5], 0
    %s36 = scalar_lea.sflag [#allocation5], 1
    %37 = vsyncpa %s36, 0
    loop: start=0, step=1, limit=4
    $region2: #{tpu_custom_call.1} parent=1 // loop_pre_header
      _
    $region3: #{tpu_custom_call.1} parent=1 // loop_header
      %s39 = sphi 0, %s43
      %p40 = scmp.ge.s32.totalorder %s39, 4
      %s46 = sphi 0, %s58
      %s47 = sphi 0, %s54
      %s48 = sphi 0, %s46
      %s49 = sphi 0, %s47
      %s50 = sphi 0, %s48
      %s51 = sphi 0, %s49
      %s63 = sphi 0, %s65
      %s66 = sphi 0, %s63
      %s67 = sphi 0, %s66
      %s83 = sphi 0, %s67
      %s89 = sphi 0, %s91
      %s92 = sphi 0, %s89
      %s93 = sphi 0, %s92
      %s109 = sphi 0, %s93
      %s115 = sphi 0, %s117
      %s118 = sphi 0, %s115
      %s119 = sphi 0, %s118
      %s135 = sphi 0, %s119
      %s141 = sphi 0, %s143
      %s144 = sphi 0, %s141
      %s145 = sphi 0, %s144
      %s161 = sphi 0, %s145
      %s167 = sphi 0, %s169
      %s170 = sphi 0, %s167
      %s171 = sphi 0, %s170
      %s187 = sphi 0, %s171
      %s193 = sphi 0, %s195
      %s196 = sphi 0, %s193
      %s197 = sphi 0, %s196
      %s213 = sphi 0, %s197
      %s219 = sphi 0, %s221
      %s222 = sphi 0, %s219
      %s223 = sphi 0, %s222
      %s239 = sphi 0, %s223
      %s243 = sphi 0, %s243
      %s245 = sphi 0, %s243
      %s246 = sphi 0, %s245
      %s260 = sphi 0, %s246
      %s264 = sphi 0, %s264
      %s266 = sphi 0, %s264
      %s267 = sphi 0, %s266
      %s281 = sphi 0, %s267
      %s285 = sphi 0, %s285
      %s287 = sphi 0, %s285
      %s288 = sphi 0, %s287
      %s302 = sphi 0, %s288
      %s306 = sphi 0, %s306
      %s308 = sphi 0, %s306
      %s309 = sphi 0, %s308
      %s323 = sphi 0, %s309
      %s327 = sphi 0, %s327
      %s329 = sphi 0, %s327
      %s330 = sphi 0, %s329
      %s344 = sphi 0, %s330
      %s348 = sphi 0, %s348
      %s350 = sphi 0, %s348
      %s351 = sphi 0, %s350
      %s365 = sphi 0, %s351
      %s369 = sphi 0, %s369
      %s371 = sphi 0, %s369
      %s372 = sphi 0, %s371
      %s386 = sphi 0, %s372
      %s390 = sphi 0, %s390
      %s392 = sphi 0, %s390
      %s393 = sphi 0, %s392
      %s407 = sphi 0, %s393
      %s411 = sphi 0, %s411
      %s413 = sphi 0, %s411
      %s414 = sphi 0, %s413
      %s428 = sphi 0, %s414
      %s432 = sphi 0, %s432
      %s434 = sphi 0, %s432
      %s435 = sphi 0, %s434
      %s449 = sphi 0, %s435
      %s453 = sphi 0, %s453
      %s455 = sphi 0, %s453
      %s456 = sphi 0, %s455
      %s470 = sphi 0, %s456
      %s474 = sphi 0, %s474
      %s476 = sphi 0, %s474
      %s477 = sphi 0, %s476
      %s491 = sphi 0, %s477
      %s495 = sphi 0, %s495
      %s497 = sphi 0, %s495
      %s498 = sphi 0, %s497
      %s512 = sphi 0, %s498
      %s516 = sphi 0, %s516
      %s518 = sphi 0, %s516
      %s519 = sphi 0, %s518
      %s533 = sphi 0, %s519
      %s537 = sphi 0, %s537
      %s539 = sphi 0, %s537
      %s540 = sphi 0, %s539
      %s554 = sphi 0, %s540
      %s558 = sphi 0, %s558
      %s560 = sphi 0, %s558
      %s561 = sphi 0, %s560
      %s575 = sphi 0, %s561
      %s579 = sphi 0, %s579
      %s581 = sphi 0, %s579
      %s582 = sphi 0, %s581
      %s596 = sphi 0, %s582
      %s600 = sphi 0, %s600
      %s602 = sphi 0, %s600
      %s603 = sphi 0, %s602
      %s617 = sphi 0, %s603
      %s625 = sphi 0, %s627
      %s628 = sphi 0, %s625
      %s629 = sphi 0, %s628
      %s645 = sphi 0, %s629
      %s653 = sphi 0, %s655
      %s656 = sphi 0, %s653
      %s657 = sphi 0, %s656
      %s673 = sphi 0, %s657
    $region4: #{tpu_custom_call.1} parent=1 // loop_header_branch
      %42 = sbr.rel (%p40) target = $region8
    $region5: #{tpu_custom_call.1} parent=1 // loop_body
      %s44 = ssub.s32 %s39, 1
      %s45 = ssub.s32 %s39, 2
      %s52 = sadd.s32 1, %s47
      %p53 = scmp.ge.s32.totalorder %s52, 1
      %s54 = scalar_select %p53, 0, %s52
      %s55 = sadd.s32 1, %s46
      %s56 = scalar_select %p53, %s55, %s46
      %p57 = scmp.ge.s32.totalorder %s56, 2
      %s58 = scalar_select %p57, 0, %s56
      %s59 = ssub.s32 %s46, %s58
      %s60 = ssub.s32 %s47, %s54
      %s61 = sor.u32 %s59, %s60
      %p62 = scmp.eq.s32.totalorder %s61, 0
      %s64 = sadd.s32 %s63, 1
      %s65 = scalar_select %p62, %s63, %s64
      %p68 = pneg %p62
      %p69 = scmp.eq.s32.totalorder %s39, 1
      %p70 = por %p68, %p69
      %p71 = scmp.ne.s32.totalorder %s63, %s66
      %p72 = scmp.eq.s32.totalorder %s39, 0
      %p73 = por %p71, %p72
      %p74 = scmp.ne.s32.totalorder %s63, %s66
      %p75 = scmp.eq.s32.totalorder %s44, 1
      %p76 = por %p74, %p75
      %p77 = scmp.ne.s32.totalorder %s66, %s67
      %p78 = scmp.eq.s32.totalorder %s44, 0
      %p79 = por %p77, %p78
      %p80 = scmp.ne.s32.totalorder %s66, %s67
      %p81 = scmp.eq.s32.totalorder %s45, 1
      %p82 = por %p80, %p81
      %p84 = scmp.ne.s32.totalorder %s67, %s83
      %p85 = scmp.eq.s32.totalorder %s45, 0
      %p86 = por %p84, %p85
      %s87 = ssub.s32 %s46, %s58
      %p88 = scmp.eq.s32.totalorder %s87, 0
      %s90 = sadd.s32 %s89, 1
      %s91 = scalar_select %p88, %s89, %s90
      %p94 = pneg %p88
      %p95 = scmp.eq.s32.totalorder %s39, 1
      %p96 = por %p94, %p95
      %p97 = scmp.ne.s32.totalorder %s89, %s92
      %p98 = scmp.eq.s32.totalorder %s39, 0
      %p99 = por %p97, %p98
      %p100 = scmp.ne.s32.totalorder %s89, %s92
      %p101 = scmp.eq.s32.totalorder %s44, 1
      %p102 = por %p100, %p101
      %p103 = scmp.ne.s32.totalorder %s92, %s93
      %p104 = scmp.eq.s32.totalorder %s44, 0
      %p105 = por %p103, %p104
      %p106 = scmp.ne.s32.totalorder %s92, %s93
      %p107 = scmp.eq.s32.totalorder %s45, 1
      %p108 = por %p106, %p107
      %p110 = scmp.ne.s32.totalorder %s93, %s109
      %p111 = scmp.eq.s32.totalorder %s45, 0
      %p112 = por %p110, %p111
      %s113 = ssub.s32 %s46, %s58
      %p114 = scmp.eq.s32.totalorder %s113, 0
      %s116 = sadd.s32 %s115, 1
      %s117 = scalar_select %p114, %s115, %s116
      %p120 = pneg %p114
      %p121 = scmp.eq.s32.totalorder %s39, 1
      %p122 = por %p120, %p121
      %p123 = scmp.ne.s32.totalorder %s115, %s118
      %p124 = scmp.eq.s32.totalorder %s39, 0
      %p125 = por %p123, %p124
      %p126 = scmp.ne.s32.totalorder %s115, %s118
      %p127 = scmp.eq.s32.totalorder %s44, 1
      %p128 = por %p126, %p127
      %p129 = scmp.ne.s32.totalorder %s118, %s119
      %p130 = scmp.eq.s32.totalorder %s44, 0
      %p131 = por %p129, %p130
      %p132 = scmp.ne.s32.totalorder %s118, %s119
      %p133 = scmp.eq.s32.totalorder %s45, 1
      %p134 = por %p132, %p133
      %p136 = scmp.ne.s32.totalorder %s119, %s135
      %p137 = scmp.eq.s32.totalorder %s45, 0
      %p138 = por %p136, %p137
      %s139 = ssub.s32 %s46, %s58
      %p140 = scmp.eq.s32.totalorder %s139, 0
      %s142 = sadd.s32 %s141, 1
      %s143 = scalar_select %p140, %s141, %s142
      %p146 = pneg %p140
      %p147 = scmp.eq.s32.totalorder %s39, 1
      %p148 = por %p146, %p147
      %p149 = scmp.ne.s32.totalorder %s141, %s144
      %p150 = scmp.eq.s32.totalorder %s39, 0
      %p151 = por %p149, %p150
      %p152 = scmp.ne.s32.totalorder %s141, %s144
      %p153 = scmp.eq.s32.totalorder %s44, 1
      %p154 = por %p152, %p153
      %p155 = scmp.ne.s32.totalorder %s144, %s145
      %p156 = scmp.eq.s32.totalorder %s44, 0
      %p157 = por %p155, %p156
      %p158 = scmp.ne.s32.totalorder %s144, %s145
      %p159 = scmp.eq.s32.totalorder %s45, 1
      %p160 = por %p158, %p159
      %p162 = scmp.ne.s32.totalorder %s145, %s161
      %p163 = scmp.eq.s32.totalorder %s45, 0
      %p164 = por %p162, %p163
      %s165 = ssub.s32 %s46, %s58
      %p166 = scmp.eq.s32.totalorder %s165, 0
      %s168 = sadd.s32 %s167, 1
      %s169 = scalar_select %p166, %s167, %s168
      %p172 = pneg %p166
      %p173 = scmp.eq.s32.totalorder %s39, 1
      %p174 = por %p172, %p173
      %p175 = scmp.ne.s32.totalorder %s167, %s170
      %p176 = scmp.eq.s32.totalorder %s39, 0
      %p177 = por %p175, %p176
      %p178 = scmp.ne.s32.totalorder %s167, %s170
      %p179 = scmp.eq.s32.totalorder %s44, 1
      %p180 = por %p178, %p179
      %p181 = scmp.ne.s32.totalorder %s170, %s171
      %p182 = scmp.eq.s32.totalorder %s44, 0
      %p183 = por %p181, %p182
      %p184 = scmp.ne.s32.totalorder %s170, %s171
      %p185 = scmp.eq.s32.totalorder %s45, 1
      %p186 = por %p184, %p185
      %p188 = scmp.ne.s32.totalorder %s171, %s187
      %p189 = scmp.eq.s32.totalorder %s45, 0
      %p190 = por %p188, %p189
      %s191 = ssub.s32 %s46, %s58
      %p192 = scmp.eq.s32.totalorder %s191, 0
      %s194 = sadd.s32 %s193, 1
      %s195 = scalar_select %p192, %s193, %s194
      %p198 = pneg %p192
      %p199 = scmp.eq.s32.totalorder %s39, 1
      %p200 = por %p198, %p199
      %p201 = scmp.ne.s32.totalorder %s193, %s196
      %p202 = scmp.eq.s32.totalorder %s39, 0
      %p203 = por %p201, %p202
      %p204 = scmp.ne.s32.totalorder %s193, %s196
      %p205 = scmp.eq.s32.totalorder %s44, 1
      %p206 = por %p204, %p205
      %p207 = scmp.ne.s32.totalorder %s196, %s197
      %p208 = scmp.eq.s32.totalorder %s44, 0
      %p209 = por %p207, %p208
      %p210 = scmp.ne.s32.totalorder %s196, %s197
      %p211 = scmp.eq.s32.totalorder %s45, 1
      %p212 = por %p210, %p211
      %p214 = scmp.ne.s32.totalorder %s197, %s213
      %p215 = scmp.eq.s32.totalorder %s45, 0
      %p216 = por %p214, %p215
      %s217 = ssub.s32 %s46, %s58
      %p218 = scmp.eq.s32.totalorder %s217, 0
      %s220 = sadd.s32 %s219, 1
      %s221 = scalar_select %p218, %s219, %s220
      %p224 = pneg %p218
      %p225 = scmp.eq.s32.totalorder %s39, 1
      %p226 = por %p224, %p225
      %p227 = scmp.ne.s32.totalorder %s219, %s222
      %p228 = scmp.eq.s32.totalorder %s39, 0
      %p229 = por %p227, %p228
      %p230 = scmp.ne.s32.totalorder %s219, %s222
      %p231 = scmp.eq.s32.totalorder %s44, 1
      %p232 = por %p230, %p231
      %p233 = scmp.ne.s32.totalorder %s222, %s223
      %p234 = scmp.eq.s32.totalorder %s44, 0
      %p235 = por %p233, %p234
      %p236 = scmp.ne.s32.totalorder %s222, %s223
      %p237 = scmp.eq.s32.totalorder %s45, 1
      %p238 = por %p236, %p237
      %p240 = scmp.ne.s32.totalorder %s223, %s239
      %p241 = scmp.eq.s32.totalorder %s45, 0
      %p242 = por %p240, %p241
      %s244 = sadd.s32 %s243, 1
      %p247 = scmp.eq.s32.totalorder %s39, 1
      %p248 = scmp.ne.s32.totalorder %s243, %s245
      %p249 = scmp.eq.s32.totalorder %s39, 0
      %p250 = por %p248, %p249
      %p251 = scmp.ne.s32.totalorder %s243, %s245
      %p252 = scmp.eq.s32.totalorder %s44, 1
      %p253 = por %p251, %p252
      %p254 = scmp.ne.s32.totalorder %s245, %s246
      %p255 = scmp.eq.s32.totalorder %s44, 0
      %p256 = por %p254, %p255
      %p257 = scmp.ne.s32.totalorder %s245, %s246
      %p258 = scmp.eq.s32.totalorder %s45, 1
      %p259 = por %p257, %p258
      %p261 = scmp.ne.s32.totalorder %s246, %s260
      %p262 = scmp.eq.s32.totalorder %s45, 0
      %p263 = por %p261, %p262
      %s265 = sadd.s32 %s264, 1
      %p268 = scmp.eq.s32.totalorder %s39, 1
      %p269 = scmp.ne.s32.totalorder %s264, %s266
      %p270 = scmp.eq.s32.totalorder %s39, 0
      %p271 = por %p269, %p270
      %p272 = scmp.ne.s32.totalorder %s264, %s266
      %p273 = scmp.eq.s32.totalorder %s44, 1
      %p274 = por %p272, %p273
      %p275 = scmp.ne.s32.totalorder %s266, %s267
      %p276 = scmp.eq.s32.totalorder %s44, 0
      %p277 = por %p275, %p276
      %p278 = scmp.ne.s32.totalorder %s266, %s267
      %p279 = scmp.eq.s32.totalorder %s45, 1
      %p280 = por %p278, %p279
      %p282 = scmp.ne.s32.totalorder %s267, %s281
      %p283 = scmp.eq.s32.totalorder %s45, 0
      %p284 = por %p282, %p283
      %s286 = sadd.s32 %s285, 1
      %p289 = scmp.eq.s32.totalorder %s39, 1
      %p290 = scmp.ne.s32.totalorder %s285, %s287
      %p291 = scmp.eq.s32.totalorder %s39, 0
      %p292 = por %p290, %p291
      %p293 = scmp.ne.s32.totalorder %s285, %s287
      %p294 = scmp.eq.s32.totalorder %s44, 1
      %p295 = por %p293, %p294
      %p296 = scmp.ne.s32.totalorder %s287, %s288
      %p297 = scmp.eq.s32.totalorder %s44, 0
      %p298 = por %p296, %p297
      %p299 = scmp.ne.s32.totalorder %s287, %s288
      %p300 = scmp.eq.s32.totalorder %s45, 1
      %p301 = por %p299, %p300
      %p303 = scmp.ne.s32.totalorder %s288, %s302
      %p304 = scmp.eq.s32.totalorder %s45, 0
      %p305 = por %p303, %p304
      %s307 = sadd.s32 %s306, 1
      %p310 = scmp.eq.s32.totalorder %s39, 1
      %p311 = scmp.ne.s32.totalorder %s306, %s308
      %p312 = scmp.eq.s32.totalorder %s39, 0
      %p313 = por %p311, %p312
      %p314 = scmp.ne.s32.totalorder %s306, %s308
      %p315 = scmp.eq.s32.totalorder %s44, 1
      %p316 = por %p314, %p315
      %p317 = scmp.ne.s32.totalorder %s308, %s309
      %p318 = scmp.eq.s32.totalorder %s44, 0
      %p319 = por %p317, %p318
      %p320 = scmp.ne.s32.totalorder %s308, %s309
      %p321 = scmp.eq.s32.totalorder %s45, 1
      %p322 = por %p320, %p321
      %p324 = scmp.ne.s32.totalorder %s309, %s323
      %p325 = scmp.eq.s32.totalorder %s45, 0
      %p326 = por %p324, %p325
      %s328 = sadd.s32 %s327, 1
      %p331 = scmp.eq.s32.totalorder %s39, 1
      %p332 = scmp.ne.s32.totalorder %s327, %s329
      %p333 = scmp.eq.s32.totalorder %s39, 0
      %p334 = por %p332, %p333
      %p335 = scmp.ne.s32.totalorder %s327, %s329
      %p336 = scmp.eq.s32.totalorder %s44, 1
      %p337 = por %p335, %p336
      %p338 = scmp.ne.s32.totalorder %s329, %s330
      %p339 = scmp.eq.s32.totalorder %s44, 0
      %p340 = por %p338, %p339
      %p341 = scmp.ne.s32.totalorder %s329, %s330
      %p342 = scmp.eq.s32.totalorder %s45, 1
      %p343 = por %p341, %p342
      %p345 = scmp.ne.s32.totalorder %s330, %s344
      %p346 = scmp.eq.s32.totalorder %s45, 0
      %p347 = por %p345, %p346
      %s349 = sadd.s32 %s348, 1
      %p352 = scmp.eq.s32.totalorder %s39, 1
      %p353 = scmp.ne.s32.totalorder %s348, %s350
      %p354 = scmp.eq.s32.totalorder %s39, 0
      %p355 = por %p353, %p354
      %p356 = scmp.ne.s32.totalorder %s348, %s350
      %p357 = scmp.eq.s32.totalorder %s44, 1
      %p358 = por %p356, %p357
      %p359 = scmp.ne.s32.totalorder %s350, %s351
      %p360 = scmp.eq.s32.totalorder %s44, 0
      %p361 = por %p359, %p360
      %p362 = scmp.ne.s32.totalorder %s350, %s351
      %p363 = scmp.eq.s32.totalorder %s45, 1
      %p364 = por %p362, %p363
      %p366 = scmp.ne.s32.totalorder %s351, %s365
      %p367 = scmp.eq.s32.totalorder %s45, 0
      %p368 = por %p366, %p367
      %s370 = sadd.s32 %s369, 1
      %p373 = scmp.eq.s32.totalorder %s39, 1
      %p374 = scmp.ne.s32.totalorder %s369, %s371
      %p375 = scmp.eq.s32.totalorder %s39, 0
      %p376 = por %p374, %p375
      %p377 = scmp.ne.s32.totalorder %s369, %s371
      %p378 = scmp.eq.s32.totalorder %s44, 1
      %p379 = por %p377, %p378
      %p380 = scmp.ne.s32.totalorder %s371, %s372
      %p381 = scmp.eq.s32.totalorder %s44, 0
      %p382 = por %p380, %p381
      %p383 = scmp.ne.s32.totalorder %s371, %s372
      %p384 = scmp.eq.s32.totalorder %s45, 1
      %p385 = por %p383, %p384
      %p387 = scmp.ne.s32.totalorder %s372, %s386
      %p388 = scmp.eq.s32.totalorder %s45, 0
      %p389 = por %p387, %p388
      %s391 = sadd.s32 %s390, 1
      %p394 = scmp.eq.s32.totalorder %s39, 1
      %p395 = scmp.ne.s32.totalorder %s390, %s392
      %p396 = scmp.eq.s32.totalorder %s39, 0
      %p397 = por %p395, %p396
      %p398 = scmp.ne.s32.totalorder %s390, %s392
      %p399 = scmp.eq.s32.totalorder %s44, 1
      %p400 = por %p398, %p399
      %p401 = scmp.ne.s32.totalorder %s392, %s393
      %p402 = scmp.eq.s32.totalorder %s44, 0
      %p403 = por %p401, %p402
      %p404 = scmp.ne.s32.totalorder %s392, %s393
      %p405 = scmp.eq.s32.totalorder %s45, 1
      %p406 = por %p404, %p405
      %p408 = scmp.ne.s32.totalorder %s393, %s407
      %p409 = scmp.eq.s32.totalorder %s45, 0
      %p410 = por %p408, %p409
      %s412 = sadd.s32 %s411, 1
      %p415 = scmp.eq.s32.totalorder %s39, 1
      %p416 = scmp.ne.s32.totalorder %s411, %s413
      %p417 = scmp.eq.s32.totalorder %s39, 0
      %p418 = por %p416, %p417
      %p419 = scmp.ne.s32.totalorder %s411, %s413
      %p420 = scmp.eq.s32.totalorder %s44, 1
      %p421 = por %p419, %p420
      %p422 = scmp.ne.s32.totalorder %s413, %s414
      %p423 = scmp.eq.s32.totalorder %s44, 0
      %p424 = por %p422, %p423
      %p425 = scmp.ne.s32.totalorder %s413, %s414
      %p426 = scmp.eq.s32.totalorder %s45, 1
      %p427 = por %p425, %p426
      %p429 = scmp.ne.s32.totalorder %s414, %s428
      %p430 = scmp.eq.s32.totalorder %s45, 0
      %p431 = por %p429, %p430
      %s433 = sadd.s32 %s432, 1
      %p436 = scmp.eq.s32.totalorder %s39, 1
      %p437 = scmp.ne.s32.totalorder %s432, %s434
      %p438 = scmp.eq.s32.totalorder %s39, 0
      %p439 = por %p437, %p438
      %p440 = scmp.ne.s32.totalorder %s432, %s434
      %p441 = scmp.eq.s32.totalorder %s44, 1
      %p442 = por %p440, %p441
      %p443 = scmp.ne.s32.totalorder %s434, %s435
      %p444 = scmp.eq.s32.totalorder %s44, 0
      %p445 = por %p443, %p444
      %p446 = scmp.ne.s32.totalorder %s434, %s435
      %p447 = scmp.eq.s32.totalorder %s45, 1
      %p448 = por %p446, %p447
      %p450 = scmp.ne.s32.totalorder %s435, %s449
      %p451 = scmp.eq.s32.totalorder %s45, 0
      %p452 = por %p450, %p451
      %s454 = sadd.s32 %s453, 1
      %p457 = scmp.eq.s32.totalorder %s39, 1
      %p458 = scmp.ne.s32.totalorder %s453, %s455
      %p459 = scmp.eq.s32.totalorder %s39, 0
      %p460 = por %p458, %p459
      %p461 = scmp.ne.s32.totalorder %s453, %s455
      %p462 = scmp.eq.s32.totalorder %s44, 1
      %p463 = por %p461, %p462
      %p464 = scmp.ne.s32.totalorder %s455, %s456
      %p465 = scmp.eq.s32.totalorder %s44, 0
      %p466 = por %p464, %p465
      %p467 = scmp.ne.s32.totalorder %s455, %s456
      %p468 = scmp.eq.s32.totalorder %s45, 1
      %p469 = por %p467, %p468
      %p471 = scmp.ne.s32.totalorder %s456, %s470
      %p472 = scmp.eq.s32.totalorder %s45, 0
      %p473 = por %p471, %p472
      %s475 = sadd.s32 %s474, 1
      %p478 = scmp.eq.s32.totalorder %s39, 1
      %p479 = scmp.ne.s32.totalorder %s474, %s476
      %p480 = scmp.eq.s32.totalorder %s39, 0
      %p481 = por %p479, %p480
      %p482 = scmp.ne.s32.totalorder %s474, %s476
      %p483 = scmp.eq.s32.totalorder %s44, 1
      %p484 = por %p482, %p483
      %p485 = scmp.ne.s32.totalorder %s476, %s477
      %p486 = scmp.eq.s32.totalorder %s44, 0
      %p487 = por %p485, %p486
      %p488 = scmp.ne.s32.totalorder %s476, %s477
      %p489 = scmp.eq.s32.totalorder %s45, 1
      %p490 = por %p488, %p489
      %p492 = scmp.ne.s32.totalorder %s477, %s491
      %p493 = scmp.eq.s32.totalorder %s45, 0
      %p494 = por %p492, %p493
      %s496 = sadd.s32 %s495, 1
      %p499 = scmp.eq.s32.totalorder %s39, 1
      %p500 = scmp.ne.s32.totalorder %s495, %s497
      %p501 = scmp.eq.s32.totalorder %s39, 0
      %p502 = por %p500, %p501
      %p503 = scmp.ne.s32.totalorder %s495, %s497
      %p504 = scmp.eq.s32.totalorder %s44, 1
      %p505 = por %p503, %p504
      %p506 = scmp.ne.s32.totalorder %s497, %s498
      %p507 = scmp.eq.s32.totalorder %s44, 0
      %p508 = por %p506, %p507
      %p509 = scmp.ne.s32.totalorder %s497, %s498
      %p510 = scmp.eq.s32.totalorder %s45, 1
      %p511 = por %p509, %p510
      %p513 = scmp.ne.s32.totalorder %s498, %s512
      %p514 = scmp.eq.s32.totalorder %s45, 0
      %p515 = por %p513, %p514
      %s517 = sadd.s32 %s516, 1
      %p520 = scmp.eq.s32.totalorder %s39, 1
      %p521 = scmp.ne.s32.totalorder %s516, %s518
      %p522 = scmp.eq.s32.totalorder %s39, 0
      %p523 = por %p521, %p522
      %p524 = scmp.ne.s32.totalorder %s516, %s518
      %p525 = scmp.eq.s32.totalorder %s44, 1
      %p526 = por %p524, %p525
      %p527 = scmp.ne.s32.totalorder %s518, %s519
      %p528 = scmp.eq.s32.totalorder %s44, 0
      %p529 = por %p527, %p528
      %p530 = scmp.ne.s32.totalorder %s518, %s519
      %p531 = scmp.eq.s32.totalorder %s45, 1
      %p532 = por %p530, %p531
      %p534 = scmp.ne.s32.totalorder %s519, %s533
      %p535 = scmp.eq.s32.totalorder %s45, 0
      %p536 = por %p534, %p535
      %s538 = sadd.s32 %s537, 1
      %p541 = scmp.eq.s32.totalorder %s39, 1
      %p542 = scmp.ne.s32.totalorder %s537, %s539
      %p543 = scmp.eq.s32.totalorder %s39, 0
      %p544 = por %p542, %p543
      %p545 = scmp.ne.s32.totalorder %s537, %s539
      %p546 = scmp.eq.s32.totalorder %s44, 1
      %p547 = por %p545, %p546
      %p548 = scmp.ne.s32.totalorder %s539, %s540
      %p549 = scmp.eq.s32.totalorder %s44, 0
      %p550 = por %p548, %p549
      %p551 = scmp.ne.s32.totalorder %s539, %s540
      %p552 = scmp.eq.s32.totalorder %s45, 1
      %p553 = por %p551, %p552
      %p555 = scmp.ne.s32.totalorder %s540, %s554
      %p556 = scmp.eq.s32.totalorder %s45, 0
      %p557 = por %p555, %p556
      %s559 = sadd.s32 %s558, 1
      %p562 = scmp.eq.s32.totalorder %s39, 1
      %p563 = scmp.ne.s32.totalorder %s558, %s560
      %p564 = scmp.eq.s32.totalorder %s39, 0
      %p565 = por %p563, %p564
      %p566 = scmp.ne.s32.totalorder %s558, %s560
      %p567 = scmp.eq.s32.totalorder %s44, 1
      %p568 = por %p566, %p567
      %p569 = scmp.ne.s32.totalorder %s560, %s561
      %p570 = scmp.eq.s32.totalorder %s44, 0
      %p571 = por %p569, %p570
      %p572 = scmp.ne.s32.totalorder %s560, %s561
      %p573 = scmp.eq.s32.totalorder %s45, 1
      %p574 = por %p572, %p573
      %p576 = scmp.ne.s32.totalorder %s561, %s575
      %p577 = scmp.eq.s32.totalorder %s45, 0
      %p578 = por %p576, %p577
      %s580 = sadd.s32 %s579, 1
      %p583 = scmp.eq.s32.totalorder %s39, 1
      %p584 = scmp.ne.s32.totalorder %s579, %s581
      %p585 = scmp.eq.s32.totalorder %s39, 0
      %p586 = por %p584, %p585
      %p587 = scmp.ne.s32.totalorder %s579, %s581
      %p588 = scmp.eq.s32.totalorder %s44, 1
      %p589 = por %p587, %p588
      %p590 = scmp.ne.s32.totalorder %s581, %s582
      %p591 = scmp.eq.s32.totalorder %s44, 0
      %p592 = por %p590, %p591
      %p593 = scmp.ne.s32.totalorder %s581, %s582
      %p594 = scmp.eq.s32.totalorder %s45, 1
      %p595 = por %p593, %p594
      %p597 = scmp.ne.s32.totalorder %s582, %s596
      %p598 = scmp.eq.s32.totalorder %s45, 0
      %p599 = por %p597, %p598
      %s601 = sadd.s32 %s600, 1
      %p604 = scmp.eq.s32.totalorder %s39, 1
      %p605 = scmp.ne.s32.totalorder %s600, %s602
      %p606 = scmp.eq.s32.totalorder %s39, 0
      %p607 = por %p605, %p606
      %p608 = scmp.ne.s32.totalorder %s600, %s602
      %p609 = scmp.eq.s32.totalorder %s44, 1
      %p610 = por %p608, %p609
      %p611 = scmp.ne.s32.totalorder %s602, %s603
      %p612 = scmp.eq.s32.totalorder %s44, 0
      %p613 = por %p611, %p612
      %p614 = scmp.ne.s32.totalorder %s602, %s603
      %p615 = scmp.eq.s32.totalorder %s45, 1
      %p616 = por %p614, %p615
      %p618 = scmp.ne.s32.totalorder %s603, %s617
      %p619 = scmp.eq.s32.totalorder %s45, 0
      %p620 = por %p618, %p619
      %s621 = ssub.s32 %s46, %s58
      %s622 = ssub.s32 %s47, %s54
      %s623 = sor.u32 %s621, %s622
      %p624 = scmp.eq.s32.totalorder %s623, 0
      %s626 = sadd.s32 %s625, 1
      %s627 = scalar_select %p624, %s625, %s626
      %p630 = pneg %p624
      %p631 = scmp.eq.s32.totalorder %s39, 1
      %p632 = por %p630, %p631
      %p633 = scmp.ne.s32.totalorder %s625, %s628
      %p634 = scmp.eq.s32.totalorder %s39, 0
      %p635 = por %p633, %p634
      %p636 = scmp.ne.s32.totalorder %s625, %s628
      %p637 = scmp.eq.s32.totalorder %s44, 1
      %p638 = por %p636, %p637
      %p639 = scmp.ne.s32.totalorder %s628, %s629
      %p640 = scmp.eq.s32.totalorder %s44, 0
      %p641 = por %p639, %p640
      %p642 = scmp.ne.s32.totalorder %s628, %s629
      %p643 = scmp.eq.s32.totalorder %s45, 1
      %p644 = por %p642, %p643
      %p646 = scmp.ne.s32.totalorder %s629, %s645
      %p647 = scmp.eq.s32.totalorder %s45, 0
      %p648 = por %p646, %p647
      %s649 = ssub.s32 %s46, %s58
      %s650 = ssub.s32 %s47, %s54
      %s651 = sor.u32 %s649, %s650
      %p652 = scmp.eq.s32.totalorder %s651, 0
      %s654 = sadd.s32 %s653, 1
      %s655 = scalar_select %p652, %s653, %s654
      %p658 = pneg %p652
      %p659 = scmp.eq.s32.totalorder %s39, 1
      %p660 = por %p658, %p659
      %p661 = scmp.ne.s32.totalorder %s653, %s656
      %p662 = scmp.eq.s32.totalorder %s39, 0
      %p663 = por %p661, %p662
      %p664 = scmp.ne.s32.totalorder %s653, %s656
      %p665 = scmp.eq.s32.totalorder %s44, 1
      %p666 = por %p664, %p665
      %p667 = scmp.ne.s32.totalorder %s656, %s657
      %p668 = scmp.eq.s32.totalorder %s44, 0
      %p669 = por %p667, %p668
      %p670 = scmp.ne.s32.totalorder %s656, %s657
      %p671 = scmp.eq.s32.totalorder %s45, 1
      %p672 = por %p670, %p671
      %p674 = scmp.ne.s32.totalorder %s657, %s673
      %p675 = scmp.eq.s32.totalorder %s45, 0
      %p676 = por %p674, %p675
      %p677 = scmp.le.s32.totalorder 1, %s39
      %p678 = scmp.lt.s32.totalorder %s39, 3
      %p679 = pnand %p677, %p678
      %p680 = pneg %p679
      // Predicated region
      $region9: #{tpu_custom_call.1} parent=5 // pred_check
        _
      $region10: #{tpu_custom_call.1} parent=5 // pred_check_branch
        %682 = sbr.rel (%p679) target = $region12
      $region11: #{tpu_custom_call.1} parent=5 // pred_region
        %s683 = ssub.s32 %s39, 1
        // Predicated region
        $region13: #{tpu_custom_call.1} parent=11 // pred_check
          %p684 = pneg %p256
        $region14: #{tpu_custom_call.1} parent=11 // pred_check_branch
          %686 = sbr.rel (%p684) target = $region16
        $region15: #{tpu_custom_call.1} parent=11 // pred_region
          _
        $region16: #{tpu_custom_call.1} parent=11 // pred_fallthru
          _
        // Predicated region
        $region17: #{tpu_custom_call.1} parent=11 // pred_check
          %p687 = pneg %p277
        $region18: #{tpu_custom_call.1} parent=11 // pred_check_branch
          %689 = sbr.rel (%p687) target = $region20
        $region19: #{tpu_custom_call.1} parent=11 // pred_region
          _
        $region20: #{tpu_custom_call.1} parent=11 // pred_fallthru
          _
        // Predicated region
        $region21: #{tpu_custom_call.1} parent=11 // pred_check
          %p690 = pneg %p298
        $region22: #{tpu_custom_call.1} parent=11 // pred_check_branch
          %692 = sbr.rel (%p690) target = $region24
        $region23: #{tpu_custom_call.1} parent=11 // pred_region
          _
        $region24: #{tpu_custom_call.1} parent=11 // pred_fallthru
          _
        // Predicated region
        $region25: #{tpu_custom_call.1} parent=11 // pred_check
          %p693 = pneg %p319
        $region26: #{tpu_custom_call.1} parent=11 // pred_check_branch
          %695 = sbr.rel (%p693) target = $region28
        $region27: #{tpu_custom_call.1} parent=11 // pred_region
          _
        $region28: #{tpu_custom_call.1} parent=11 // pred_fallthru
          _
        // Predicated region
        $region29: #{tpu_custom_call.1} parent=11 // pred_check
          %p696 = pneg %p340
        $region30: #{tpu_custom_call.1} parent=11 // pred_check_branch
          %698 = sbr.rel (%p696) target = $region32
        $region31: #{tpu_custom_call.1} parent=11 // pred_region
          _
        $region32: #{tpu_custom_call.1} parent=11 // pred_fallthru
          _
        // Predicated region
        $region33: #{tpu_custom_call.1} parent=11 // pred_check
          %p699 = pneg %p361
        $region34: #{tpu_custom_call.1} parent=11 // pred_check_branch
          %701 = sbr.rel (%p699) target = $region36
        $region35: #{tpu_custom_call.1} parent=11 // pred_region
          _
        $region36: #{tpu_custom_call.1} parent=11 // pred_fallthru
          _
        // Predicated region
        $region37: #{tpu_custom_call.1} parent=11 // pred_check
          %p702 = pneg %p382
        $region38: #{tpu_custom_call.1} parent=11 // pred_check_branch
          %704 = sbr.rel (%p702) target = $region40
        $region39: #{tpu_custom_call.1} parent=11 // pred_region
          _
        $region40: #{tpu_custom_call.1} parent=11 // pred_fallthru
          _
        // Predicated region
        $region41: #{tpu_custom_call.1} parent=11 // pred_check
          %p705 = pneg %p403
        $region42: #{tpu_custom_call.1} parent=11 // pred_check_branch
          %707 = sbr.rel (%p705) target = $region44
        $region43: #{tpu_custom_call.1} parent=11 // pred_region
          _
        $region44: #{tpu_custom_call.1} parent=11 // pred_fallthru
          _
        // Predicated region
        $region45: #{tpu_custom_call.1} parent=11 // pred_check
          %p708 = pneg %p424
        $region46: #{tpu_custom_call.1} parent=11 // pred_check_branch
          %710 = sbr.rel (%p708) target = $region48
        $region47: #{tpu_custom_call.1} parent=11 // pred_region
          _
        $region48: #{tpu_custom_call.1} parent=11 // pred_fallthru
          _
        // Predicated region
        $region49: #{tpu_custom_call.1} parent=11 // pred_check
          %p711 = pneg %p445
        $region50: #{tpu_custom_call.1} parent=11 // pred_check_branch
          %713 = sbr.rel (%p711) target = $region52
        $region51: #{tpu_custom_call.1} parent=11 // pred_region
          _
        $region52: #{tpu_custom_call.1} parent=11 // pred_fallthru
          _
        // Predicated region
        $region53: #{tpu_custom_call.1} parent=11 // pred_check
          %p714 = pneg %p466
        $region54: #{tpu_custom_call.1} parent=11 // pred_check_branch
          %716 = sbr.rel (%p714) target = $region56
        $region55: #{tpu_custom_call.1} parent=11 // pred_region
          _
        $region56: #{tpu_custom_call.1} parent=11 // pred_fallthru
          _
        // Predicated region
        $region57: #{tpu_custom_call.1} parent=11 // pred_check
          %p717 = pneg %p487
        $region58: #{tpu_custom_call.1} parent=11 // pred_check_branch
          %719 = sbr.rel (%p717) target = $region60
        $region59: #{tpu_custom_call.1} parent=11 // pred_region
          _
        $region60: #{tpu_custom_call.1} parent=11 // pred_fallthru
          _
        // Predicated region
        $region61: #{tpu_custom_call.1} parent=11 // pred_check
          %p720 = pneg %p508
        $region62: #{tpu_custom_call.1} parent=11 // pred_check_branch
          %722 = sbr.rel (%p720) target = $region64
        $region63: #{tpu_custom_call.1} parent=11 // pred_region
          _
        $region64: #{tpu_custom_call.1} parent=11 // pred_fallthru
          _
        // Predicated region
        $region65: #{tpu_custom_call.1} parent=11 // pred_check
          %p723 = pneg %p529
        $region66: #{tpu_custom_call.1} parent=11 // pred_check_branch
          %725 = sbr.rel (%p723) target = $region68
        $region67: #{tpu_custom_call.1} parent=11 // pred_region
          _
        $region68: #{tpu_custom_call.1} parent=11 // pred_fallthru
          _
        // Predicated region
        $region69: #{tpu_custom_call.1} parent=11 // pred_check
          %p726 = pneg %p550
        $region70: #{tpu_custom_call.1} parent=11 // pred_check_branch
          %728 = sbr.rel (%p726) target = $region72
        $region71: #{tpu_custom_call.1} parent=11 // pred_region
          _
        $region72: #{tpu_custom_call.1} parent=11 // pred_fallthru
          _
        // Predicated region
        $region73: #{tpu_custom_call.1} parent=11 // pred_check
          %p729 = pneg %p571
        $region74: #{tpu_custom_call.1} parent=11 // pred_check_branch
          %731 = sbr.rel (%p729) target = $region76
        $region75: #{tpu_custom_call.1} parent=11 // pred_region
          _
        $region76: #{tpu_custom_call.1} parent=11 // pred_fallthru
          _
        // Predicated region
        $region77: #{tpu_custom_call.1} parent=11 // pred_check
          %p732 = pneg %p592
        $region78: #{tpu_custom_call.1} parent=11 // pred_check_branch
          %734 = sbr.rel (%p732) target = $region80
        $region79: #{tpu_custom_call.1} parent=11 // pred_region
          _
        $region80: #{tpu_custom_call.1} parent=11 // pred_fallthru
          _
        // Predicated region
        $region81: #{tpu_custom_call.1} parent=11 // pred_check
          %p735 = pneg %p613
        $region82: #{tpu_custom_call.1} parent=11 // pred_check_branch
          %737 = sbr.rel (%p735) target = $region84
        $region83: #{tpu_custom_call.1} parent=11 // pred_region
          _
        $region84: #{tpu_custom_call.1} parent=11 // pred_fallthru
          _
      $region12: #{tpu_custom_call.1} parent=5 // pred_fallthru
        _
      %p738 = scmp.lt.s32.totalorder %s39, 2
      // Predicated region
      $region85: #{tpu_custom_call.1} parent=5 // pred_check
        %p739 = pneg %p738
      $region86: #{tpu_custom_call.1} parent=5 // pred_check_branch
        %741 = sbr.rel (%p739) target = $region88
      $region87: #{tpu_custom_call.1} parent=5 // pred_region
        // Predicated region
        $region89: #{tpu_custom_call.1} parent=87 // pred_check
          %p742 = pneg %p73
        $region90: #{tpu_custom_call.1} parent=87 // pred_check_branch
          %744 = sbr.rel (%p742) target = $region92
        $region91: #{tpu_custom_call.1} parent=87 // pred_region
          %p745 = scmp.lt.s32.totalorder %s46, 1
          %s746 = scalar_select %p745, %s46, 1
          %p747 = scmp.lt.s32.totalorder %s47, 0
          %s748 = scalar_select %p747, %s47, 0
          %s749 = sadd.s32 %s748, %s746
          %s750 = smul.addr %s749, 8
          %s751 = scalar_lea.vmem %s0, %s750
        $region92: #{tpu_custom_call.1} parent=87 // pred_fallthru
          _
        // Predicated region
        $region93: #{tpu_custom_call.1} parent=87 // pred_check
          %p752 = pneg %p99
        $region94: #{tpu_custom_call.1} parent=87 // pred_check_branch
          %754 = sbr.rel (%p752) target = $region96
        $region95: #{tpu_custom_call.1} parent=87 // pred_region
          %p755 = scmp.lt.s32.totalorder %s46, 1
          %s756 = scalar_select %p755, %s46, 1
          %s757 = smul.addr %s756, 4
          %s758 = smul.addr %s757, 8
          %s759 = scalar_lea.vmem %s1, %s758
        $region96: #{tpu_custom_call.1} parent=87 // pred_fallthru
          _
        // Predicated region
        $region97: #{tpu_custom_call.1} parent=87 // pred_check
          %p760 = pneg %p125
        $region98: #{tpu_custom_call.1} parent=87 // pred_check_branch
          %762 = sbr.rel (%p760) target = $region100
        $region99: #{tpu_custom_call.1} parent=87 // pred_region
          %p763 = scmp.lt.s32.totalorder %s46, 1
          %s764 = scalar_select %p763, %s46, 1
          %s765 = smul.addr %s764, 4
          %s766 = smul.addr %s765, 8
          %s767 = scalar_lea.vmem %s2, %s766
        $region100: #{tpu_custom_call.1} parent=87 // pred_fallthru
          _
        // Predicated region
        $region101: #{tpu_custom_call.1} parent=87 // pred_check
          %p768 = pneg %p151
        $region102: #{tpu_custom_call.1} parent=87 // pred_check_branch
          %770 = sbr.rel (%p768) target = $region104
        $region103: #{tpu_custom_call.1} parent=87 // pred_region
          %p771 = scmp.lt.s32.totalorder %s46, 1
          %s772 = scalar_select %p771, %s46, 1
          %s773 = smul.addr %s772, 8
          %s774 = smul.addr %s773, 8
          %s775 = scalar_lea.vmem %s3, %s774
        $region104: #{tpu_custom_call.1} parent=87 // pred_fallthru
          _
        // Predicated region
        $region105: #{tpu_custom_call.1} parent=87 // pred_check
          %p776 = pneg %p177
        $region106: #{tpu_custom_call.1} parent=87 // pred_check_branch
          %778 = sbr.rel (%p776) target = $region108
        $region107: #{tpu_custom_call.1} parent=87 // pred_region
          %p779 = scmp.lt.s32.totalorder %s46, 1
          %s780 = scalar_select %p779, %s46, 1
          %s781 = smul.addr %s780, 8
          %s782 = smul.addr %s781, 8
          %s783 = scalar_lea.vmem %s4, %s782
        $region108: #{tpu_custom_call.1} parent=87 // pred_fallthru
          _
        // Predicated region
        $region109: #{tpu_custom_call.1} parent=87 // pred_check
          %p784 = pneg %p203
        $region110: #{tpu_custom_call.1} parent=87 // pred_check_branch
          %786 = sbr.rel (%p784) target = $region112
        $region111: #{tpu_custom_call.1} parent=87 // pred_region
          %p787 = scmp.lt.s32.totalorder %s46, 1
          %s788 = scalar_select %p787, %s46, 1
          %s789 = scalar_lea.vmem %s5, %s788
        $region112: #{tpu_custom_call.1} parent=87 // pred_fallthru
          _
        // Predicated region
        $region113: #{tpu_custom_call.1} parent=87 // pred_check
          %p790 = pneg %p229
        $region114: #{tpu_custom_call.1} parent=87 // pred_check_branch
          %792 = sbr.rel (%p790) target = $region116
        $region115: #{tpu_custom_call.1} parent=87 // pred_region
          %p793 = scmp.lt.s32.totalorder %s46, 1
          %s794 = scalar_select %p793, %s46, 1
          %s795 = scalar_lea.vmem %s6, %s794
        $region116: #{tpu_custom_call.1} parent=87 // pred_fallthru
          _
      $region88: #{tpu_custom_call.1} parent=5 // pred_fallthru
        _
      %p796 = scmp.le.s32.totalorder 1, %s39
      %p797 = scmp.lt.s32.totalorder %s39, 3
      %p798 = pnand %p796, %p797
      %p799 = pneg %p798
      // Predicated region
      $region117: #{tpu_custom_call.1} parent=5 // pred_check
        _
      $region118: #{tpu_custom_call.1} parent=5 // pred_check_branch
        %801 = sbr.rel (%p798) target = $region120
      $region119: #{tpu_custom_call.1} parent=5 // pred_region
        %s802 = ssub.s32 %s39, 1
        %p803 = scmp.lt.s32.totalorder %s48, 1
        %s804 = scalar_select %p803, %s48, 1
        %p805 = scmp.lt.s32.totalorder %s49, 0
        %s806 = scalar_select %p805, %s49, 0
        %s807 = sadd.s32 %s806, %s804
        %s808 = smul.addr %s807, 8
        %s809 = scalar_lea.vmem %s0, %s808
        %p810 = pneg %p79
        %p811 = pneg %p76
        %p812 = scmp.lt.s32.totalorder %s48, 1
        %s813 = scalar_select %p812, %s48, 1
        %s814 = smul.addr %s813, 4
        %s815 = smul.addr %s814, 8
        %s816 = scalar_lea.vmem %s1, %s815
        %p817 = pneg %p105
        %p818 = pneg %p102
        %p819 = scmp.lt.s32.totalorder %s48, 1
        %s820 = scalar_select %p819, %s48, 1
        %s821 = smul.addr %s820, 4
        %s822 = smul.addr %s821, 8
        %s823 = scalar_lea.vmem %s2, %s822
        %p824 = pneg %p131
        %p825 = pneg %p128
        %p826 = scmp.lt.s32.totalorder %s48, 1
        %s827 = scalar_select %p826, %s48, 1
        %s828 = smul.addr %s827, 8
        %s829 = smul.addr %s828, 8
        %s830 = scalar_lea.vmem %s3, %s829
        %p831 = pneg %p157
        %p832 = pneg %p154
        %p833 = scmp.lt.s32.totalorder %s48, 1
        %s834 = scalar_select %p833, %s48, 1
        %s835 = smul.addr %s834, 8
        %s836 = smul.addr %s835, 8
        %s837 = scalar_lea.vmem %s4, %s836
        %p838 = pneg %p183
        %p839 = pneg %p180
        %p840 = scmp.lt.s32.totalorder %s48, 1
        %s841 = scalar_select %p840, %s48, 1
        %s842 = scalar_lea.vmem %s5, %s841
        %p843 = pneg %p209
        %p844 = pneg %p206
        %p845 = scmp.lt.s32.totalorder %s48, 1
        %s846 = scalar_select %p845, %s48, 1
        %s847 = scalar_lea.vmem %s6, %s846
        %p848 = pneg %p235
        %p849 = pneg %p232
        %p850 = pneg %p256
        %p851 = pneg %p253
        %p852 = pneg %p277
        %p853 = pneg %p274
        %p854 = pneg %p298
        %p855 = pneg %p295
        %p856 = pneg %p319
        %p857 = pneg %p316
        %p858 = pneg %p340
        %p859 = pneg %p337
        %p860 = pneg %p361
        %p861 = pneg %p358
        %p862 = pneg %p382
        %p863 = pneg %p379
        %p864 = pneg %p403
        %p865 = pneg %p400
        %p866 = pneg %p424
        %p867 = pneg %p421
        %p868 = pneg %p445
        %p869 = pneg %p442
        %p870 = pneg %p466
        %p871 = pneg %p463
        %p872 = pneg %p487
        %p873 = pneg %p484
        %p874 = pneg %p508
        %p875 = pneg %p505
        %p876 = pneg %p529
        %p877 = pneg %p526
        %p878 = pneg %p550
        %p879 = pneg %p547
        %p880 = pneg %p571
        %p881 = pneg %p568
        %p882 = pneg %p592
        %p883 = pneg %p589
        %p884 = pneg %p613
        %p885 = pneg %p610
        %p886 = pneg %p641
        %p887 = pneg %p638
        %s888 = sand.u32 %s628, 1
        %s889 = scalar_lea.sflag [#allocation3], %s888
        %s890 = sand.u32 %s628, 1
        %s891 = smul.addr %s890, 8
        %s892 = scalar_lea.vmem [#allocation2], %s891
        %p893 = pneg %p669
        %p894 = pneg %p666
        %s895 = sand.u32 %s656, 1
        %s896 = scalar_lea.sflag [#allocation5], %s895
        %s897 = sand.u32 %s656, 1
        %s898 = smul.addr %s897, 32
        %s899 = scalar_lea.vmem [#allocation4], %s898
        %p900 = scmp.lt.s32.totalorder %s48, 1
        %s901 = scalar_select %p900, %s48, 1
        %p902 = scmp.lt.s32.totalorder %s49, 0
        %s903 = scalar_select %p902, %s49, 0
        %s904 = sadd.s32 %s903, %s901
        %s905 = smul.addr %s904, 8
        %s906 = scalar_lea.vmem %s0, %s905
        %p907 = scmp.lt.s32.totalorder %s48, 1
        %s908 = scalar_select %p907, %s48, 1
        %s909 = smul.addr %s908, 4
        %s910 = smul.addr %s909, 8
        %s911 = scalar_lea.vmem %s1, %s910
        %p912 = scmp.lt.s32.totalorder %s48, 1
        %s913 = scalar_select %p912, %s48, 1
        %s914 = smul.addr %s913, 4
        %s915 = smul.addr %s914, 8
        %s916 = scalar_lea.vmem %s2, %s915
        %p917 = scmp.lt.s32.totalorder %s48, 1
        %s918 = scalar_select %p917, %s48, 1
        %s919 = smul.addr %s918, 8
        %s920 = smul.addr %s919, 8
        %s921 = scalar_lea.vmem %s3, %s920
        %p922 = scmp.lt.s32.totalorder %s48, 1
        %s923 = scalar_select %p922, %s48, 1
        %s924 = smul.addr %s923, 8
        %s925 = smul.addr %s924, 8
        %s926 = scalar_lea.vmem %s4, %s925
        %p927 = scmp.lt.s32.totalorder %s48, 1
        %s928 = scalar_select %p927, %s48, 1
        %s929 = scalar_lea.vmem %s5, %s928
        %p930 = scmp.lt.s32.totalorder %s48, 1
        %s931 = scalar_select %p930, %s48, 1
        %s932 = scalar_lea.vmem %s6, %s931
        %v933 = vld [vmem:[%s906] sm:$0xff]
        %v934 = vld [vmem:[%s929] sm:$0x1]
        %v935 = vld [vmem:[%s932] sm:$0x1]
        %v936 = vld [vmem:[%s911] sm:$0xff]
        %v937 = vld [vmem:[%s911 + $0x8] sm:$0xff]
        %v938 = vld [vmem:[%s911 + $0x10] sm:$0xff]
        %v939 = vld [vmem:[%s911 + $0x18] sm:$0xff]
        %v940 = vld [vmem:[%s916] sm:$0xff]
        %v941 = vld [vmem:[%s916 + $0x8] sm:$0xff]
        %v942 = vld [vmem:[%s916 + $0x10] sm:$0xff]
        %v943 = vld [vmem:[%s916 + $0x18] sm:$0xff]
        %v944 = vld [vmem:[%s7] sm:$0xff]
        %v945 = vld [vmem:[%s7 + $0x8] sm:$0xff]
        %v946 = vld [vmem:[%s7 + $0x10] sm:$0xff]
        %v947 = vld [vmem:[%s7 + $0x18] sm:$0xff]
        %v948 = vld [vmem:[%s8] sm:$0x1]
        %v949 = vld [vmem:[%s9] sm:$0xff]
        %v950 = vld [vmem:[%s9 + $0x8] sm:$0xff]
        %v951 = vld [vmem:[%s9 + $0x10] sm:$0xff]
        %v952 = vld [vmem:[%s9 + $0x18] sm:$0xff]
        %v953 = vld [vmem:[%s10] sm:$0x1]
        %v955 = vlaneseq
        %v956 = vshrl.u32 %v955, 7
        %v957 = vsub.s32 0, %v956
        %v958 = vrot.slane %v948, %v957
        %vm960 = vcmask 261120
        %v962 = vsel %vm960, %v933, 0
        %964 = vmatprep.subr.mxu0 0.0
        %965 = vmatpush1.msra.mxu0 %v944
        %966 = vmatprep.subr.mxu0 0.0
        %967 = vmatpush1.msra.mxu0 %v945
        %968 = vmatprep.subr.mxu0 0.0
        %969 = vmatpush1.msra.mxu0 %v946
        %970 = vmatprep.subr.mxu0 0.0
        %971 = vmatpush1.msra.mxu0 %v947
        %972 = vmatprep.subr.mxu0 0.0
        %973 = vmatpush1.msra.mxu0 0.0
        %974 = vmatprep.subr.mxu0 0.0
        %975 = vmatpush1.msra.mxu0 0.0
        %976 = vmatprep.subr.mxu0 0.0
        %977 = vmatpush1.msra.mxu0 0.0
        %978 = vmatprep.subr.mxu0 0.0
        %979 = vmatpush1.msra.mxu0 0.0
        %980 = vmatprep.subr.mxu0 0.0
        %981 = vmatpush1.msra.mxu0 0.0
        %982 = vmatprep.subr.mxu0 0.0
        %983 = vmatpush1.msra.mxu0 0.0
        %984 = vmatprep.subr.mxu0 0.0
        %985 = vmatpush1.msra.mxu0 0.0
        %986 = vmatprep.subr.mxu0 0.0
        %987 = vmatpush1.msra.mxu0 0.0
        %988 = vmatprep.subr.mxu0 0.0
        %989 = vmatpush1.msra.mxu0 0.0
        %990 = vmatprep.subr.mxu0 0.0
        %991 = vmatpush1.msra.mxu0 0.0
        %992 = vmatprep.subr.mxu0 0.0
        %993 = vmatpush1.msra.mxu0 0.0
        %994 = vmatprep.subr.mxu0 0.0
        %995 = vmatpush1.msra.mxu0 0.0
        %996 = vmatprep.subr.mxu0 0.0
        %997 = vmatpush1.msra.mxu0 0.0
        %998 = vmatprep.subr.mxu0 0.0
        %999 = vmatpush1.msra.mxu0 0.0
        %1000 = vmatprep.subr.mxu0 0.0
        %1001 = vmatpush1.msra.mxu0 0.0
        %1002 = vmatprep.subr.mxu0 0.0
        %1003 = vmatpush1.msra.mxu0 0.0
        %1004 = vmatprep.subr.mxu0 0.0
        %1005 = vmatpush1.msra.mxu0 0.0
        %1006 = vmatprep.subr.mxu0 0.0
        %1007 = vmatpush1.msra.mxu0 0.0
        %1008 = vmatprep.subr.mxu0 0.0
        %1009 = vmatpush1.msra.mxu0 0.0
        %1010 = vmatprep.subr.mxu0 0.0
        %1011 = vmatpush1.msra.mxu0 0.0
        %1012 = vmatprep.subr.mxu0 0.0
        %1013 = vmatpush1.msra.mxu0 0.0
        %1014 = vmatprep.subr.mxu0 0.0
        %1015 = vmatpush1.msra.mxu0 0.0
        %1016 = vmatprep.subr.mxu0 0.0
        %1017 = vmatpush1.msra.mxu0 0.0
        %1018 = vmatprep.subr.mxu0 0.0
        %1019 = vmatpush1.msra.mxu0 0.0
        %1020 = vmatprep.subr.mxu0 0.0
        %1021 = vmatpush1.msra.mxu0 0.0
        %1022 = vmatprep.subr.mxu0 0.0
        %1023 = vmatpush1.msra.mxu0 0.0
        %1024 = vmatprep.subr.mxu0 0.0
        %1025 = vmatpush1.msra.mxu0 0.0
        %1026 = vmatprep.subr.mxu0 0.0
        %1027 = vmatpush1.msra.mxu0 0.0
        %1028 = vmatprep.mubr.f32.mxu0 0.0
        %1029 = vmatmul.mubr.f32.gmra.mrb[0].mxu0 %v962
        %v1030 = vpop.f32.mrb[0].mxu0
        %v1031 = vadd.f32 %v958, %v1030
        %v1032 = vpop.f32.mrb[0].mxu0
        %1033 = vdwg.mxu0
        %v1034 = vmul.f32 %v1031, 0.35355338
        %1036 = vrot.lane.b32.xlu0 %v1034, 120
        %v1037 = vpop.permute.xlu0 %1036
        %1038 = vrot.lane.b32.xlu0 %v1034, 112
        %v1039 = vpop.permute.xlu0 %1038
        %1040 = vrot.lane.b32.xlu0 %v1034, 104
        %v1041 = vpop.permute.xlu0 %1040
        %v1043 = vlaneseq
        %v1044 = vshrl.u32 %v1043, 7
        %v1045 = vsub.s32 0, %v1044
        %v1046 = vrot.slane %v934, %v1045
        %vm1048 = vcmask 64512
        %v1049 = vsel %vm1048, %v1034, 0
        %v1052 = vsel %vm1048, %v936, 0
        %1054 = vmatprep.subr.mxu0 0.0
        %1055 = vmatpush1.xpose.msra.mxu0 %v1052
        %1056 = vmatprep.subr.mxu0 0.0
        %1057 = vmatpush1.xpose.msra.mxu0 0.0
        %1058 = vmatprep.subr.mxu0 0.0
        %1059 = vmatpush1.xpose.msra.mxu0 0.0
        %1060 = vmatprep.subr.mxu0 0.0
        %1061 = vmatpush1.xpose.msra.mxu0 0.0
        %1062 = vmatprep.subr.mxu0 0.0
        %1063 = vmatpush1.xpose.msra.mxu0 0.0
        %1064 = vmatprep.subr.mxu0 0.0
        %1065 = vmatpush1.xpose.msra.mxu0 0.0
        %1066 = vmatprep.subr.mxu0 0.0
        %1067 = vmatpush1.xpose.msra.mxu0 0.0
        %1068 = vmatprep.subr.mxu0 0.0
        %1069 = vmatpush1.xpose.msra.mxu0 0.0
        %1070 = vmatprep.subr.mxu0 0.0
        %1071 = vmatpush1.xpose.msra.mxu0 0.0
        %1072 = vmatprep.subr.mxu0 0.0
        %1073 = vmatpush1.xpose.msra.mxu0 0.0
        %1074 = vmatprep.subr.mxu0 0.0
        %1075 = vmatpush1.xpose.msra.mxu0 0.0
        %1076 = vmatprep.subr.mxu0 0.0
        %1077 = vmatpush1.xpose.msra.mxu0 0.0
        %1078 = vmatprep.subr.mxu0 0.0
        %1079 = vmatpush1.xpose.msra.mxu0 0.0
        %1080 = vmatprep.subr.mxu0 0.0
        %1081 = vmatpush1.xpose.msra.mxu0 0.0
        %1082 = vmatprep.subr.mxu0 0.0
        %1083 = vmatpush1.xpose.msra.mxu0 0.0
        %1084 = vmatprep.subr.mxu0 0.0
        %1085 = vmatpush1.xpose.msra.mxu0 0.0
        %1086 = vmatprep.subr.mxu0 0.0
        %1087 = vmatpush1.xpose.msra.mxu0 0.0
        %1088 = vmatprep.subr.mxu0 0.0
        %1089 = vmatpush1.xpose.msra.mxu0 0.0
        %1090 = vmatprep.subr.mxu0 0.0
        %1091 = vmatpush1.xpose.msra.mxu0 0.0
        %1092 = vmatprep.subr.mxu0 0.0
        %1093 = vmatpush1.xpose.msra.mxu0 0.0
        %1094 = vmatprep.subr.mxu0 0.0
        %1095 = vmatpush1.xpose.msra.mxu0 0.0
        %1096 = vmatprep.subr.mxu0 0.0
        %1097 = vmatpush1.xpose.msra.mxu0 0.0
        %1098 = vmatprep.subr.mxu0 0.0
        %1099 = vmatpush1.xpose.msra.mxu0 0.0
        %1100 = vmatprep.subr.mxu0 0.0
        %1101 = vmatpush1.xpose.msra.mxu0 0.0
        %1102 = vmatprep.subr.mxu0 0.0
        %1103 = vmatpush1.xpose.msra.mxu0 0.0
        %1104 = vmatprep.subr.mxu0 0.0
        %1105 = vmatpush1.xpose.msra.mxu0 0.0
        %1106 = vmatprep.subr.mxu0 0.0
        %1107 = vmatpush1.xpose.msra.mxu0 0.0
        %1108 = vmatprep.subr.mxu0 0.0
        %1109 = vmatpush1.xpose.msra.mxu0 0.0
        %1110 = vmatprep.subr.mxu0 0.0
        %1111 = vmatpush1.xpose.msra.mxu0 0.0
        %1112 = vmatprep.subr.mxu0 0.0
        %1113 = vmatpush1.xpose.msra.mxu0 0.0
        %1114 = vmatprep.subr.mxu0 0.0
        %1115 = vmatpush1.xpose.msra.mxu0 0.0
        %1116 = vmatprep.subr.mxu0 0.0
        %1117 = vmatpush1.xpose.msra.mxu0 0.0
        %1118 = vmatprep.mubr.f32.mxu0 0.0
        %1119 = vmatmul.mubr.f32.gmra.mrb[0].mxu0 %v1049
        %v1120 = vpop.f32.mrb[0].mxu0
        %v1121 = vadd.f32 %v1046, %v1120
        %v1122 = vpop.f32.mrb[0].mxu0
        %1123 = vdwg.mxu0
        %v1124 = vsel %vm1048, %v1037, 0
        %v1127 = vsel %vm1048, %v937, 0
        %1129 = vmatprep.subr.mxu0 0.0
        %1130 = vmatpush1.xpose.msra.mxu0 %v1127
        %1131 = vmatprep.subr.mxu0 0.0
        %1132 = vmatpush1.xpose.msra.mxu0 0.0
        %1133 = vmatprep.subr.mxu0 0.0
        %1134 = vmatpush1.xpose.msra.mxu0 0.0
        %1135 = vmatprep.subr.mxu0 0.0
        %1136 = vmatpush1.xpose.msra.mxu0 0.0
        %1137 = vmatprep.subr.mxu0 0.0
        %1138 = vmatpush1.xpose.msra.mxu0 0.0
        %1139 = vmatprep.subr.mxu0 0.0
        %1140 = vmatpush1.xpose.msra.mxu0 0.0
        %1141 = vmatprep.subr.mxu0 0.0
        %1142 = vmatpush1.xpose.msra.mxu0 0.0
        %1143 = vmatprep.subr.mxu0 0.0
        %1144 = vmatpush1.xpose.msra.mxu0 0.0
        %1145 = vmatprep.subr.mxu0 0.0
        %1146 = vmatpush1.xpose.msra.mxu0 0.0
        %1147 = vmatprep.subr.mxu0 0.0
        %1148 = vmatpush1.xpose.msra.mxu0 0.0
        %1149 = vmatprep.subr.mxu0 0.0
        %1150 = vmatpush1.xpose.msra.mxu0 0.0
        %1151 = vmatprep.subr.mxu0 0.0
        %1152 = vmatpush1.xpose.msra.mxu0 0.0
        %1153 = vmatprep.subr.mxu0 0.0
        %1154 = vmatpush1.xpose.msra.mxu0 0.0
        %1155 = vmatprep.subr.mxu0 0.0
        %1156 = vmatpush1.xpose.msra.mxu0 0.0
        %1157 = vmatprep.subr.mxu0 0.0
        %1158 = vmatpush1.xpose.msra.mxu0 0.0
        %1159 = vmatprep.subr.mxu0 0.0
        %1160 = vmatpush1.xpose.msra.mxu0 0.0
        %1161 = vmatprep.subr.mxu0 0.0
        %1162 = vmatpush1.xpose.msra.mxu0 0.0
        %1163 = vmatprep.subr.mxu0 0.0
        %1164 = vmatpush1.xpose.msra.mxu0 0.0
        %1165 = vmatprep.subr.mxu0 0.0
        %1166 = vmatpush1.xpose.msra.mxu0 0.0
        %1167 = vmatprep.subr.mxu0 0.0
        %1168 = vmatpush1.xpose.msra.mxu0 0.0
        %1169 = vmatprep.subr.mxu0 0.0
        %1170 = vmatpush1.xpose.msra.mxu0 0.0
        %1171 = vmatprep.subr.mxu0 0.0
        %1172 = vmatpush1.xpose.msra.mxu0 0.0
        %1173 = vmatprep.subr.mxu0 0.0
        %1174 = vmatpush1.xpose.msra.mxu0 0.0
        %1175 = vmatprep.subr.mxu0 0.0
        %1176 = vmatpush1.xpose.msra.mxu0 0.0
        %1177 = vmatprep.subr.mxu0 0.0
        %1178 = vmatpush1.xpose.msra.mxu0 0.0
        %1179 = vmatprep.subr.mxu0 0.0
        %1180 = vmatpush1.xpose.msra.mxu0 0.0
        %1181 = vmatprep.subr.mxu0 0.0
        %1182 = vmatpush1.xpose.msra.mxu0 0.0
        %1183 = vmatprep.subr.mxu0 0.0
        %1184 = vmatpush1.xpose.msra.mxu0 0.0
        %1185 = vmatprep.subr.mxu0 0.0
        %1186 = vmatpush1.xpose.msra.mxu0 0.0
        %1187 = vmatprep.subr.mxu0 0.0
        %1188 = vmatpush1.xpose.msra.mxu0 0.0
        %1189 = vmatprep.subr.mxu0 0.0
        %1190 = vmatpush1.xpose.msra.mxu0 0.0
        %1191 = vmatprep.subr.mxu0 0.0
        %1192 = vmatpush1.xpose.msra.mxu0 0.0
        %1193 = vmatprep.mubr.f32.mxu0 0.0
        %1194 = vmatmul.mubr.f32.gmra.mrb[0].mxu0 %v1124
        %v1195 = vpop.f32.mrb[0].mxu0
        %v1196 = vadd.f32 %v1046, %v1195
        %v1197 = vpop.f32.mrb[0].mxu0
        %1198 = vdwg.mxu0
        %v1199 = vsel %vm1048, %v1039, 0
        %v1202 = vsel %vm1048, %v938, 0
        %1204 = vmatprep.subr.mxu0 0.0
        %1205 = vmatpush1.xpose.msra.mxu0 %v1202
        %1206 = vmatprep.subr.mxu0 0.0
        %1207 = vmatpush1.xpose.msra.mxu0 0.0
        %1208 = vmatprep.subr.mxu0 0.0
        %1209 = vmatpush1.xpose.msra.mxu0 0.0
        %1210 = vmatprep.subr.mxu0 0.0
        %1211 = vmatpush1.xpose.msra.mxu0 0.0
        %1212 = vmatprep.subr.mxu0 0.0
        %1213 = vmatpush1.xpose.msra.mxu0 0.0
        %1214 = vmatprep.subr.mxu0 0.0
        %1215 = vmatpush1.xpose.msra.mxu0 0.0
        %1216 = vmatprep.subr.mxu0 0.0
        %1217 = vmatpush1.xpose.msra.mxu0 0.0
        %1218 = vmatprep.subr.mxu0 0.0
        %1219 = vmatpush1.xpose.msra.mxu0 0.0
        %1220 = vmatprep.subr.mxu0 0.0
        %1221 = vmatpush1.xpose.msra.mxu0 0.0
        %1222 = vmatprep.subr.mxu0 0.0
        %1223 = vmatpush1.xpose.msra.mxu0 0.0
        %1224 = vmatprep.subr.mxu0 0.0
        %1225 = vmatpush1.xpose.msra.mxu0 0.0
        %1226 = vmatprep.subr.mxu0 0.0
        %1227 = vmatpush1.xpose.msra.mxu0 0.0
        %1228 = vmatprep.subr.mxu0 0.0
        %1229 = vmatpush1.xpose.msra.mxu0 0.0
        %1230 = vmatprep.subr.mxu0 0.0
        %1231 = vmatpush1.xpose.msra.mxu0 0.0
        %1232 = vmatprep.subr.mxu0 0.0
        %1233 = vmatpush1.xpose.msra.mxu0 0.0
        %1234 = vmatprep.subr.mxu0 0.0
        %1235 = vmatpush1.xpose.msra.mxu0 0.0
        %1236 = vmatprep.subr.mxu0 0.0
        %1237 = vmatpush1.xpose.msra.mxu0 0.0
        %1238 = vmatprep.subr.mxu0 0.0
        %1239 = vmatpush1.xpose.msra.mxu0 0.0
        %1240 = vmatprep.subr.mxu0 0.0
        %1241 = vmatpush1.xpose.msra.mxu0 0.0
        %1242 = vmatprep.subr.mxu0 0.0
        %1243 = vmatpush1.xpose.msra.mxu0 0.0
        %1244 = vmatprep.subr.mxu0 0.0
        %1245 = vmatpush1.xpose.msra.mxu0 0.0
        %1246 = vmatprep.subr.mxu0 0.0
        %1247 = vmatpush1.xpose.msra.mxu0 0.0
        %1248 = vmatprep.subr.mxu0 0.0
        %1249 = vmatpush1.xpose.msra.mxu0 0.0
        %1250 = vmatprep.subr.mxu0 0.0
        %1251 = vmatpush1.xpose.msra.mxu0 0.0
        %1252 = vmatprep.subr.mxu0 0.0
        %1253 = vmatpush1.xpose.msra.mxu0 0.0
        %1254 = vmatprep.subr.mxu0 0.0
        %1255 = vmatpush1.xpose.msra.mxu0 0.0
        %1256 = vmatprep.subr.mxu0 0.0
        %1257 = vmatpush1.xpose.msra.mxu0 0.0
        %1258 = vmatprep.subr.mxu0 0.0
        %1259 = vmatpush1.xpose.msra.mxu0 0.0
        %1260 = vmatprep.subr.mxu0 0.0
        %1261 = vmatpush1.xpose.msra.mxu0 0.0
        %1262 = vmatprep.subr.mxu0 0.0
        %1263 = vmatpush1.xpose.msra.mxu0 0.0
        %1264 = vmatprep.subr.mxu0 0.0
        %1265 = vmatpush1.xpose.msra.mxu0 0.0
        %1266 = vmatprep.subr.mxu0 0.0
        %1267 = vmatpush1.xpose.msra.mxu0 0.0
        %1268 = vmatprep.mubr.f32.mxu0 0.0
        %1269 = vmatmul.mubr.f32.gmra.mrb[0].mxu0 %v1199
        %v1270 = vpop.f32.mrb[0].mxu0
        %v1271 = vadd.f32 %v1046, %v1270
        %v1272 = vpop.f32.mrb[0].mxu0
        %1273 = vdwg.mxu0
        %v1274 = vsel %vm1048, %v1041, 0
        %v1277 = vsel %vm1048, %v939, 0
        %1279 = vmatprep.subr.mxu0 0.0
        %1280 = vmatpush1.xpose.msra.mxu0 %v1277
        %1281 = vmatprep.subr.mxu0 0.0
        %1282 = vmatpush1.xpose.msra.mxu0 0.0
        %1283 = vmatprep.subr.mxu0 0.0
        %1284 = vmatpush1.xpose.msra.mxu0 0.0
        %1285 = vmatprep.subr.mxu0 0.0
        %1286 = vmatpush1.xpose.msra.mxu0 0.0
        %1287 = vmatprep.subr.mxu0 0.0
        %1288 = vmatpush1.xpose.msra.mxu0 0.0
        %1289 = vmatprep.subr.mxu0 0.0
        %1290 = vmatpush1.xpose.msra.mxu0 0.0
        %1291 = vmatprep.subr.mxu0 0.0
        %1292 = vmatpush1.xpose.msra.mxu0 0.0
        %1293 = vmatprep.subr.mxu0 0.0
        %1294 = vmatpush1.xpose.msra.mxu0 0.0
        %1295 = vmatprep.subr.mxu0 0.0
        %1296 = vmatpush1.xpose.msra.mxu0 0.0
        %1297 = vmatprep.subr.mxu0 0.0
        %1298 = vmatpush1.xpose.msra.mxu0 0.0
        %1299 = vmatprep.subr.mxu0 0.0
        %1300 = vmatpush1.xpose.msra.mxu0 0.0
        %1301 = vmatprep.subr.mxu0 0.0
        %1302 = vmatpush1.xpose.msra.mxu0 0.0
        %1303 = vmatprep.subr.mxu0 0.0
        %1304 = vmatpush1.xpose.msra.mxu0 0.0
        %1305 = vmatprep.subr.mxu0 0.0
        %1306 = vmatpush1.xpose.msra.mxu0 0.0
        %1307 = vmatprep.subr.mxu0 0.0
        %1308 = vmatpush1.xpose.msra.mxu0 0.0
        %1309 = vmatprep.subr.mxu0 0.0
        %1310 = vmatpush1.xpose.msra.mxu0 0.0
        %1311 = vmatprep.subr.mxu0 0.0
        %1312 = vmatpush1.xpose.msra.mxu0 0.0
        %1313 = vmatprep.subr.mxu0 0.0
        %1314 = vmatpush1.xpose.msra.mxu0 0.0
        %1315 = vmatprep.subr.mxu0 0.0
        %1316 = vmatpush1.xpose.msra.mxu0 0.0
        %1317 = vmatprep.subr.mxu0 0.0
        %1318 = vmatpush1.xpose.msra.mxu0 0.0
        %1319 = vmatprep.subr.mxu0 0.0
        %1320 = vmatpush1.xpose.msra.mxu0 0.0
        %1321 = vmatprep.subr.mxu0 0.0
        %1322 = vmatpush1.xpose.msra.mxu0 0.0
        %1323 = vmatprep.subr.mxu0 0.0
        %1324 = vmatpush1.xpose.msra.mxu0 0.0
        %1325 = vmatprep.subr.mxu0 0.0
        %1326 = vmatpush1.xpose.msra.mxu0 0.0
        %1327 = vmatprep.subr.mxu0 0.0
        %1328 = vmatpush1.xpose.msra.mxu0 0.0
        %1329 = vmatprep.subr.mxu0 0.0
        %1330 = vmatpush1.xpose.msra.mxu0 0.0
        %1331 = vmatprep.subr.mxu0 0.0
        %1332 = vmatpush1.xpose.msra.mxu0 0.0
        %1333 = vmatprep.subr.mxu0 0.0
        %1334 = vmatpush1.xpose.msra.mxu0 0.0
        %1335 = vmatprep.subr.mxu0 0.0
        %1336 = vmatpush1.xpose.msra.mxu0 0.0
        %1337 = vmatprep.subr.mxu0 0.0
        %1338 = vmatpush1.xpose.msra.mxu0 0.0
        %1339 = vmatprep.subr.mxu0 0.0
        %1340 = vmatpush1.xpose.msra.mxu0 0.0
        %1341 = vmatprep.subr.mxu0 0.0
        %1342 = vmatpush1.xpose.msra.mxu0 0.0
        %1343 = vmatprep.mubr.f32.mxu0 0.0
        %1344 = vmatmul.mubr.f32.gmra.mrb[0].mxu0 %v1274
        %v1345 = vpop.f32.mrb[0].mxu0
        %v1346 = vadd.f32 %v1046, %v1345
        %v1347 = vpop.f32.mrb[0].mxu0
        %1348 = vdwg.mxu0
        %v1349 = vsel %vm1048, %v1121, -inf
        %1350 = vmax.xlane.f32.xlu0 %v1349
        %v1351 = vpop.xlane.xlu0 %1350
        %v1352 = vsel %vm1048, %v1196, -inf
        %1353 = vmax.xlane.f32.xlu0 %v1352
        %v1354 = vpop.xlane.xlu0 %1353
        %v1355 = vsel %vm1048, %v1271, -inf
        %1356 = vmax.xlane.f32.xlu0 %v1355
        %v1357 = vpop.xlane.xlu0 %1356
        %v1358 = vsel %vm1048, %v1346, -inf
        %1359 = vmax.xlane.f32.xlu0 %v1358
        %v1360 = vpop.xlane.xlu0 %1359
        %v1361 = vsub.f32 %v1121, %v1351
        %v1362 = vsub.f32 %v1196, %v1354
        %v1363 = vsub.f32 %v1271, %v1357
        %v1364 = vsub.f32 %v1346, %v1360
        %v1365 = vmul.f32 %v1361, 1.442695
        %v1366 = vpow.pop %v1365
        %v1367 = vmul.f32 %v1362, 1.442695
        %v1368 = vpow.pop %v1367
        %v1369 = vmul.f32 %v1363, 1.442695
        %v1370 = vpow.pop %v1369
        %v1371 = vmul.f32 %v1364, 1.442695
        %v1372 = vpow.pop %v1371
        %v1373 = vsel %vm1048, %v1366, 0.0
        %1374 = vadd.xlane.f32.xlu0 %v1373
        %v1375 = vpop.xlane.xlu0 %1374
        %v1376 = vsel %vm1048, %v1368, 0.0
        %1377 = vadd.xlane.f32.xlu0 %v1376
        %v1378 = vpop.xlane.xlu0 %1377
        %v1379 = vsel %vm1048, %v1370, 0.0
        %1380 = vadd.xlane.f32.xlu0 %v1379
        %v1381 = vpop.xlane.xlu0 %1380
        %v1382 = vsel %vm1048, %v1372, 0.0
        %1383 = vadd.xlane.f32.xlu0 %v1382
        %v1384 = vpop.xlane.xlu0 %1383
        %v1385 = vrcp.pop %v1375
        %v1386 = vrcp.pop %v1378
        %v1387 = vrcp.pop %v1381
        %v1388 = vrcp.pop %v1384
        %v1389 = vmul.f32 %v1375, %v1385
        %v1390 = vmul.f32 %v1378, %v1386
        %v1391 = vmul.f32 %v1381, %v1387
        %v1392 = vmul.f32 %v1384, %v1388
        %v1393 = vsub.f32 2.0, %v1389
        %v1394 = vsub.f32 2.0, %v1390
        %v1395 = vsub.f32 2.0, %v1391
        %v1396 = vsub.f32 2.0, %v1392
        %v1397 = vmul.f32 %v1385, %v1393
        %v1398 = vmul.f32 %v1386, %v1394
        %v1399 = vmul.f32 %v1387, %v1395
        %v1400 = vmul.f32 %v1388, %v1396
        %v1401 = vmul.f32 %v1366, %v1397
        %v1402 = vmul.f32 %v1368, %v1398
        %v1403 = vmul.f32 %v1370, %v1399
        %v1404 = vmul.f32 %v1372, %v1400
        %v1406 = vsel %vm1048, %v1401, 0
        %1408 = vmatprep.subr.mxu0 0.0
        %1409 = vmatpush1.msra.mxu0 %v940
        %1410 = vmatprep.subr.mxu0 0.0
        %1411 = vmatpush1.msra.mxu0 0.0
        %1412 = vmatprep.subr.mxu0 0.0
        %1413 = vmatpush1.msra.mxu0 0.0
        %1414 = vmatprep.subr.mxu0 0.0
        %1415 = vmatpush1.msra.mxu0 0.0
        %1416 = vmatprep.subr.mxu0 0.0
        %1417 = vmatpush1.msra.mxu0 0.0
        %1418 = vmatprep.subr.mxu0 0.0
        %1419 = vmatpush1.msra.mxu0 0.0
        %1420 = vmatprep.subr.mxu0 0.0
        %1421 = vmatpush1.msra.mxu0 0.0
        %1422 = vmatprep.subr.mxu0 0.0
        %1423 = vmatpush1.msra.mxu0 0.0
        %1424 = vmatprep.subr.mxu0 0.0
        %1425 = vmatpush1.msra.mxu0 0.0
        %1426 = vmatprep.subr.mxu0 0.0
        %1427 = vmatpush1.msra.mxu0 0.0
        %1428 = vmatprep.subr.mxu0 0.0
        %1429 = vmatpush1.msra.mxu0 0.0
        %1430 = vmatprep.subr.mxu0 0.0
        %1431 = vmatpush1.msra.mxu0 0.0
        %1432 = vmatprep.subr.mxu0 0.0
        %1433 = vmatpush1.msra.mxu0 0.0
        %1434 = vmatprep.subr.mxu0 0.0
        %1435 = vmatpush1.msra.mxu0 0.0
        %1436 = vmatprep.subr.mxu0 0.0
        %1437 = vmatpush1.msra.mxu0 0.0
        %1438 = vmatprep.subr.mxu0 0.0
        %1439 = vmatpush1.msra.mxu0 0.0
        %1440 = vmatprep.subr.mxu0 0.0
        %1441 = vmatpush1.msra.mxu0 0.0
        %1442 = vmatprep.subr.mxu0 0.0
        %1443 = vmatpush1.msra.mxu0 0.0
        %1444 = vmatprep.subr.mxu0 0.0
        %1445 = vmatpush1.msra.mxu0 0.0
        %1446 = vmatprep.subr.mxu0 0.0
        %1447 = vmatpush1.msra.mxu0 0.0
        %1448 = vmatprep.subr.mxu0 0.0
        %1449 = vmatpush1.msra.mxu0 0.0
        %1450 = vmatprep.subr.mxu0 0.0
        %1451 = vmatpush1.msra.mxu0 0.0
        %1452 = vmatprep.subr.mxu0 0.0
        %1453 = vmatpush1.msra.mxu0 0.0
        %1454 = vmatprep.subr.mxu0 0.0
        %1455 = vmatpush1.msra.mxu0 0.0
        %1456 = vmatprep.subr.mxu0 0.0
        %1457 = vmatpush1.msra.mxu0 0.0
        %1458 = vmatprep.subr.mxu0 0.0
        %1459 = vmatpush1.msra.mxu0 0.0
        %1460 = vmatprep.subr.mxu0 0.0
        %1461 = vmatpush1.msra.mxu0 0.0
        %1462 = vmatprep.subr.mxu0 0.0
        %1463 = vmatpush1.msra.mxu0 0.0
        %1464 = vmatprep.subr.mxu0 0.0
        %1465 = vmatpush1.msra.mxu0 0.0
        %1466 = vmatprep.subr.mxu0 0.0
        %1467 = vmatpush1.msra.mxu0 0.0
        %1468 = vmatprep.subr.mxu0 0.0
        %1469 = vmatpush1.msra.mxu0 0.0
        %1470 = vmatprep.subr.mxu0 0.0
        %1471 = vmatpush1.msra.mxu0 0.0
        %1472 = vmatprep.mubr.f32.mxu0 0.0
        %1473 = vmatmul.mubr.f32.gmra.mrb[0].mxu0 %v1406
        %v1474 = vpop.f32.mrb[0].mxu0
        %v1475 = vadd.f32 0.0, %v1474
        %v1476 = vpop.f32.mrb[0].mxu0
        %1477 = vdwg.mxu0
        %v1479 = vsel %vm1048, %v1402, 0
        %1481 = vmatprep.subr.mxu0 0.0
        %1482 = vmatpush1.msra.mxu0 %v941
        %1483 = vmatprep.subr.mxu0 0.0
        %1484 = vmatpush1.msra.mxu0 0.0
        %1485 = vmatprep.subr.mxu0 0.0
        %1486 = vmatpush1.msra.mxu0 0.0
        %1487 = vmatprep.subr.mxu0 0.0
        %1488 = vmatpush1.msra.mxu0 0.0
        %1489 = vmatprep.subr.mxu0 0.0
        %1490 = vmatpush1.msra.mxu0 0.0
        %1491 = vmatprep.subr.mxu0 0.0
        %1492 = vmatpush1.msra.mxu0 0.0
        %1493 = vmatprep.subr.mxu0 0.0
        %1494 = vmatpush1.msra.mxu0 0.0
        %1495 = vmatprep.subr.mxu0 0.0
        %1496 = vmatpush1.msra.mxu0 0.0
        %1497 = vmatprep.subr.mxu0 0.0
        %1498 = vmatpush1.msra.mxu0 0.0
        %1499 = vmatprep.subr.mxu0 0.0
        %1500 = vmatpush1.msra.mxu0 0.0
        %1501 = vmatprep.subr.mxu0 0.0
        %1502 = vmatpush1.msra.mxu0 0.0
        %1503 = vmatprep.subr.mxu0 0.0
        %1504 = vmatpush1.msra.mxu0 0.0
        %1505 = vmatprep.subr.mxu0 0.0
        %1506 = vmatpush1.msra.mxu0 0.0
        %1507 = vmatprep.subr.mxu0 0.0
        %1508 = vmatpush1.msra.mxu0 0.0
        %1509 = vmatprep.subr.mxu0 0.0
        %1510 = vmatpush1.msra.mxu0 0.0
        %1511 = vmatprep.subr.mxu0 0.0
        %1512 = vmatpush1.msra.mxu0 0.0
        %1513 = vmatprep.subr.mxu0 0.0
        %1514 = vmatpush1.msra.mxu0 0.0
        %1515 = vmatprep.subr.mxu0 0.0
        %1516 = vmatpush1.msra.mxu0 0.0
        %1517 = vmatprep.subr.mxu0 0.0
        %1518 = vmatpush1.msra.mxu0 0.0
        %1519 = vmatprep.subr.mxu0 0.0
        %1520 = vmatpush1.msra.mxu0 0.0
        %1521 = vmatprep.subr.mxu0 0.0
        %1522 = vmatpush1.msra.mxu0 0.0
        %1523 = vmatprep.subr.mxu0 0.0
        %1524 = vmatpush1.msra.mxu0 0.0
        %1525 = vmatprep.subr.mxu0 0.0
        %1526 = vmatpush1.msra.mxu0 0.0
        %1527 = vmatprep.subr.mxu0 0.0
        %1528 = vmatpush1.msra.mxu0 0.0
        %1529 = vmatprep.subr.mxu0 0.0
        %1530 = vmatpush1.msra.mxu0 0.0
        %1531 = vmatprep.subr.mxu0 0.0
        %1532 = vmatpush1.msra.mxu0 0.0
        %1533 = vmatprep.subr.mxu0 0.0
        %1534 = vmatpush1.msra.mxu0 0.0
        %1535 = vmatprep.subr.mxu0 0.0
        %1536 = vmatpush1.msra.mxu0 0.0
        %1537 = vmatprep.subr.mxu0 0.0
        %1538 = vmatpush1.msra.mxu0 0.0
        %1539 = vmatprep.subr.mxu0 0.0
        %1540 = vmatpush1.msra.mxu0 0.0
        %1541 = vmatprep.subr.mxu0 0.0
        %1542 = vmatpush1.msra.mxu0 0.0
        %1543 = vmatprep.subr.mxu0 0.0
        %1544 = vmatpush1.msra.mxu0 0.0
        %1545 = vmatprep.mubr.f32.mxu0 0.0
        %1546 = vmatmul.mubr.f32.gmra.mrb[0].mxu0 %v1479
        %v1547 = vpop.f32.mrb[0].mxu0
        %v1548 = vadd.f32 0.0, %v1547
        %v1549 = vpop.f32.mrb[0].mxu0
        %1550 = vdwg.mxu0
        %v1552 = vsel %vm1048, %v1403, 0
        %1554 = vmatprep.subr.mxu0 0.0
        %1555 = vmatpush1.msra.mxu0 %v942
        %1556 = vmatprep.subr.mxu0 0.0
        %1557 = vmatpush1.msra.mxu0 0.0
        %1558 = vmatprep.subr.mxu0 0.0
        %1559 = vmatpush1.msra.mxu0 0.0
        %1560 = vmatprep.subr.mxu0 0.0
        %1561 = vmatpush1.msra.mxu0 0.0
        %1562 = vmatprep.subr.mxu0 0.0
        %1563 = vmatpush1.msra.mxu0 0.0
        %1564 = vmatprep.subr.mxu0 0.0
        %1565 = vmatpush1.msra.mxu0 0.0
        %1566 = vmatprep.subr.mxu0 0.0
        %1567 = vmatpush1.msra.mxu0 0.0
        %1568 = vmatprep.subr.mxu0 0.0
        %1569 = vmatpush1.msra.mxu0 0.0
        %1570 = vmatprep.subr.mxu0 0.0
        %1571 = vmatpush1.msra.mxu0 0.0
        %1572 = vmatprep.subr.mxu0 0.0
        %1573 = vmatpush1.msra.mxu0 0.0
        %1574 = vmatprep.subr.mxu0 0.0
        %1575 = vmatpush1.msra.mxu0 0.0
        %1576 = vmatprep.subr.mxu0 0.0
        %1577 = vmatpush1.msra.mxu0 0.0
        %1578 = vmatprep.subr.mxu0 0.0
        %1579 = vmatpush1.msra.mxu0 0.0
        %1580 = vmatprep.subr.mxu0 0.0
        %1581 = vmatpush1.msra.mxu0 0.0
        %1582 = vmatprep.subr.mxu0 0.0
        %1583 = vmatpush1.msra.mxu0 0.0
        %1584 = vmatprep.subr.mxu0 0.0
        %1585 = vmatpush1.msra.mxu0 0.0
        %1586 = vmatprep.subr.mxu0 0.0
        %1587 = vmatpush1.msra.mxu0 0.0
        %1588 = vmatprep.subr.mxu0 0.0
        %1589 = vmatpush1.msra.mxu0 0.0
        %1590 = vmatprep.subr.mxu0 0.0
        %1591 = vmatpush1.msra.mxu0 0.0
        %1592 = vmatprep.subr.mxu0 0.0
        %1593 = vmatpush1.msra.mxu0 0.0
        %1594 = vmatprep.subr.mxu0 0.0
        %1595 = vmatpush1.msra.mxu0 0.0
        %1596 = vmatprep.subr.mxu0 0.0
        %1597 = vmatpush1.msra.mxu0 0.0
        %1598 = vmatprep.subr.mxu0 0.0
        %1599 = vmatpush1.msra.mxu0 0.0
        %1600 = vmatprep.subr.mxu0 0.0
        %1601 = vmatpush1.msra.mxu0 0.0
        %1602 = vmatprep.subr.mxu0 0.0
        %1603 = vmatpush1.msra.mxu0 0.0
        %1604 = vmatprep.subr.mxu0 0.0
        %1605 = vmatpush1.msra.mxu0 0.0
        %1606 = vmatprep.subr.mxu0 0.0
        %1607 = vmatpush1.msra.mxu0 0.0
        %1608 = vmatprep.subr.mxu0 0.0
        %1609 = vmatpush1.msra.mxu0 0.0
        %1610 = vmatprep.subr.mxu0 0.0
        %1611 = vmatpush1.msra.mxu0 0.0
        %1612 = vmatprep.subr.mxu0 0.0
        %1613 = vmatpush1.msra.mxu0 0.0
        %1614 = vmatprep.subr.mxu0 0.0
        %1615 = vmatpush1.msra.mxu0 0.0
        %1616 = vmatprep.subr.mxu0 0.0
        %1617 = vmatpush1.msra.mxu0 0.0
        %1618 = vmatprep.mubr.f32.mxu0 0.0
        %1619 = vmatmul.mubr.f32.gmra.mrb[0].mxu0 %v1552
        %v1620 = vpop.f32.mrb[0].mxu0
        %v1621 = vadd.f32 0.0, %v1620
        %v1622 = vpop.f32.mrb[0].mxu0
        %1623 = vdwg.mxu0
        %v1625 = vsel %vm1048, %v1404, 0
        %1627 = vmatprep.subr.mxu0 0.0
        %1628 = vmatpush1.msra.mxu0 %v943
        %1629 = vmatprep.subr.mxu0 0.0
        %1630 = vmatpush1.msra.mxu0 0.0
        %1631 = vmatprep.subr.mxu0 0.0
        %1632 = vmatpush1.msra.mxu0 0.0
        %1633 = vmatprep.subr.mxu0 0.0
        %1634 = vmatpush1.msra.mxu0 0.0
        %1635 = vmatprep.subr.mxu0 0.0
        %1636 = vmatpush1.msra.mxu0 0.0
        %1637 = vmatprep.subr.mxu0 0.0
        %1638 = vmatpush1.msra.mxu0 0.0
        %1639 = vmatprep.subr.mxu0 0.0
        %1640 = vmatpush1.msra.mxu0 0.0
        %1641 = vmatprep.subr.mxu0 0.0
        %1642 = vmatpush1.msra.mxu0 0.0
        %1643 = vmatprep.subr.mxu0 0.0
        %1644 = vmatpush1.msra.mxu0 0.0
        %1645 = vmatprep.subr.mxu0 0.0
        %1646 = vmatpush1.msra.mxu0 0.0
        %1647 = vmatprep.subr.mxu0 0.0
        %1648 = vmatpush1.msra.mxu0 0.0
        %1649 = vmatprep.subr.mxu0 0.0
        %1650 = vmatpush1.msra.mxu0 0.0
        %1651 = vmatprep.subr.mxu0 0.0
        %1652 = vmatpush1.msra.mxu0 0.0
        %1653 = vmatprep.subr.mxu0 0.0
        %1654 = vmatpush1.msra.mxu0 0.0
        %1655 = vmatprep.subr.mxu0 0.0
        %1656 = vmatpush1.msra.mxu0 0.0
        %1657 = vmatprep.subr.mxu0 0.0
        %1658 = vmatpush1.msra.mxu0 0.0
        %1659 = vmatprep.subr.mxu0 0.0
        %1660 = vmatpush1.msra.mxu0 0.0
        %1661 = vmatprep.subr.mxu0 0.0
        %1662 = vmatpush1.msra.mxu0 0.0
        %1663 = vmatprep.subr.mxu0 0.0
        %1664 = vmatpush1.msra.mxu0 0.0
        %1665 = vmatprep.subr.mxu0 0.0
        %1666 = vmatpush1.msra.mxu0 0.0
        %1667 = vmatprep.subr.mxu0 0.0
        %1668 = vmatpush1.msra.mxu0 0.0
        %1669 = vmatprep.subr.mxu0 0.0
        %1670 = vmatpush1.msra.mxu0 0.0
        %1671 = vmatprep.subr.mxu0 0.0
        %1672 = vmatpush1.msra.mxu0 0.0
        %1673 = vmatprep.subr.mxu0 0.0
        %1674 = vmatpush1.msra.mxu0 0.0
        %1675 = vmatprep.subr.mxu0 0.0
        %1676 = vmatpush1.msra.mxu0 0.0
        %1677 = vmatprep.subr.mxu0 0.0
        %1678 = vmatpush1.msra.mxu0 0.0
        %1679 = vmatprep.subr.mxu0 0.0
        %1680 = vmatpush1.msra.mxu0 0.0
        %1681 = vmatprep.subr.mxu0 0.0
        %1682 = vmatpush1.msra.mxu0 0.0
        %1683 = vmatprep.subr.mxu0 0.0
        %1684 = vmatpush1.msra.mxu0 0.0
        %1685 = vmatprep.subr.mxu0 0.0
        %1686 = vmatpush1.msra.mxu0 0.0
        %1687 = vmatprep.subr.mxu0 0.0
        %1688 = vmatpush1.msra.mxu0 0.0
        %1689 = vmatprep.subr.mxu0 0.0
        %1690 = vmatpush1.msra.mxu0 0.0
        %1691 = vmatprep.mubr.f32.mxu0 0.0
        %1692 = vmatmul.mubr.f32.gmra.mrb[0].mxu0 %v1625
        %v1693 = vpop.f32.mrb[0].mxu0
        %v1694 = vadd.f32 0.0, %v1693
        %v1695 = vpop.f32.mrb[0].mxu0
        %1696 = vdwg.mxu0
        %v1698 = vsel %vm1048, %v1548, 0
        %1700 = vmatprep.subr.mxu0 0.0
        %1701 = vmatpush1.msra.mxu0 %v950
        %1702 = vmatprep.subr.mxu0 0.0
        %1703 = vmatpush1.msra.mxu0 0.0
        %1704 = vmatprep.subr.mxu0 0.0
        %1705 = vmatpush1.msra.mxu0 0.0
        %1706 = vmatprep.subr.mxu0 0.0
        %1707 = vmatpush1.msra.mxu0 0.0
        %1708 = vmatprep.subr.mxu0 0.0
        %1709 = vmatpush1.msra.mxu0 0.0
        %1710 = vmatprep.subr.mxu0 0.0
        %1711 = vmatpush1.msra.mxu0 0.0
        %1712 = vmatprep.subr.mxu0 0.0
        %1713 = vmatpush1.msra.mxu0 0.0
        %1714 = vmatprep.subr.mxu0 0.0
        %1715 = vmatpush1.msra.mxu0 0.0
        %1716 = vmatprep.subr.mxu0 0.0
        %1717 = vmatpush1.msra.mxu0 0.0
        %1718 = vmatprep.subr.mxu0 0.0
        %1719 = vmatpush1.msra.mxu0 0.0
        %1720 = vmatprep.subr.mxu0 0.0
        %1721 = vmatpush1.msra.mxu0 0.0
        %1722 = vmatprep.subr.mxu0 0.0
        %1723 = vmatpush1.msra.mxu0 0.0
        %1724 = vmatprep.subr.mxu0 0.0
        %1725 = vmatpush1.msra.mxu0 0.0
        %1726 = vmatprep.subr.mxu0 0.0
        %1727 = vmatpush1.msra.mxu0 0.0
        %1728 = vmatprep.subr.mxu0 0.0
        %1729 = vmatpush1.msra.mxu0 0.0
        %1730 = vmatprep.subr.mxu0 0.0
        %1731 = vmatpush1.msra.mxu0 0.0
        %1732 = vmatprep.subr.mxu0 0.0
        %1733 = vmatpush1.msra.mxu0 0.0
        %1734 = vmatprep.subr.mxu0 0.0
        %1735 = vmatpush1.msra.mxu0 0.0
        %1736 = vmatprep.subr.mxu0 0.0
        %1737 = vmatpush1.msra.mxu0 0.0
        %1738 = vmatprep.subr.mxu0 0.0
        %1739 = vmatpush1.msra.mxu0 0.0
        %1740 = vmatprep.subr.mxu0 0.0
        %1741 = vmatpush1.msra.mxu0 0.0
        %1742 = vmatprep.subr.mxu0 0.0
        %1743 = vmatpush1.msra.mxu0 0.0
        %1744 = vmatprep.subr.mxu0 0.0
        %1745 = vmatpush1.msra.mxu0 0.0
        %1746 = vmatprep.subr.mxu0 0.0
        %1747 = vmatpush1.msra.mxu0 0.0
        %1748 = vmatprep.subr.mxu0 0.0
        %1749 = vmatpush1.msra.mxu0 0.0
        %1750 = vmatprep.subr.mxu0 0.0
        %1751 = vmatpush1.msra.mxu0 0.0
        %1752 = vmatprep.subr.mxu0 0.0
        %1753 = vmatpush1.msra.mxu0 0.0
        %1754 = vmatprep.subr.mxu0 0.0
        %1755 = vmatpush1.msra.mxu0 0.0
        %1756 = vmatprep.subr.mxu0 0.0
        %1757 = vmatpush1.msra.mxu0 0.0
        %1758 = vmatprep.subr.mxu0 0.0
        %1759 = vmatpush1.msra.mxu0 0.0
        %1760 = vmatprep.subr.mxu0 0.0
        %1761 = vmatpush1.msra.mxu0 0.0
        %1762 = vmatprep.subr.mxu0 0.0
        %1763 = vmatpush1.msra.mxu0 0.0
        %1764 = vmatprep.mubr.f32.mxu0 0.0
        %1765 = vmatmul.mubr.f32.gmra.mrb[0].mxu0 %v1698
        %v1766 = vpop.f32.mrb[0].mxu0
        %v1767 = vadd.f32 0.0, %v1766
        %v1768 = vpop.f32.mrb[0].mxu0
        %1769 = vdwg.mxu0
        %v1771 = vsel %vm1048, %v1475, 0
        %1773 = vmatprep.subr.mxu0 0.0
        %1774 = vmatpush1.msra.mxu0 %v949
        %1775 = vmatprep.subr.mxu0 0.0
        %1776 = vmatpush1.msra.mxu0 0.0
        %1777 = vmatprep.subr.mxu0 0.0
        %1778 = vmatpush1.msra.mxu0 0.0
        %1779 = vmatprep.subr.mxu0 0.0
        %1780 = vmatpush1.msra.mxu0 0.0
        %1781 = vmatprep.subr.mxu0 0.0
        %1782 = vmatpush1.msra.mxu0 0.0
        %1783 = vmatprep.subr.mxu0 0.0
        %1784 = vmatpush1.msra.mxu0 0.0
        %1785 = vmatprep.subr.mxu0 0.0
        %1786 = vmatpush1.msra.mxu0 0.0
        %1787 = vmatprep.subr.mxu0 0.0
        %1788 = vmatpush1.msra.mxu0 0.0
        %1789 = vmatprep.subr.mxu0 0.0
        %1790 = vmatpush1.msra.mxu0 0.0
        %1791 = vmatprep.subr.mxu0 0.0
        %1792 = vmatpush1.msra.mxu0 0.0
        %1793 = vmatprep.subr.mxu0 0.0
        %1794 = vmatpush1.msra.mxu0 0.0
        %1795 = vmatprep.subr.mxu0 0.0
        %1796 = vmatpush1.msra.mxu0 0.0
        %1797 = vmatprep.subr.mxu0 0.0
        %1798 = vmatpush1.msra.mxu0 0.0
        %1799 = vmatprep.subr.mxu0 0.0
        %1800 = vmatpush1.msra.mxu0 0.0
        %1801 = vmatprep.subr.mxu0 0.0
        %1802 = vmatpush1.msra.mxu0 0.0
        %1803 = vmatprep.subr.mxu0 0.0
        %1804 = vmatpush1.msra.mxu0 0.0
        %1805 = vmatprep.subr.mxu0 0.0
        %1806 = vmatpush1.msra.mxu0 0.0
        %1807 = vmatprep.subr.mxu0 0.0
        %1808 = vmatpush1.msra.mxu0 0.0
        %1809 = vmatprep.subr.mxu0 0.0
        %1810 = vmatpush1.msra.mxu0 0.0
        %1811 = vmatprep.subr.mxu0 0.0
        %1812 = vmatpush1.msra.mxu0 0.0
        %1813 = vmatprep.subr.mxu0 0.0
        %1814 = vmatpush1.msra.mxu0 0.0
        %1815 = vmatprep.subr.mxu0 0.0
        %1816 = vmatpush1.msra.mxu0 0.0
        %1817 = vmatprep.subr.mxu0 0.0
        %1818 = vmatpush1.msra.mxu0 0.0
        %1819 = vmatprep.subr.mxu0 0.0
        %1820 = vmatpush1.msra.mxu0 0.0
        %1821 = vmatprep.subr.mxu0 0.0
        %1822 = vmatpush1.msra.mxu0 0.0
        %1823 = vmatprep.subr.mxu0 0.0
        %1824 = vmatpush1.msra.mxu0 0.0
        %1825 = vmatprep.subr.mxu0 0.0
        %1826 = vmatpush1.msra.mxu0 0.0
        %1827 = vmatprep.subr.mxu0 0.0
        %1828 = vmatpush1.msra.mxu0 0.0
        %1829 = vmatprep.subr.mxu0 0.0
        %1830 = vmatpush1.msra.mxu0 0.0
        %1831 = vmatprep.subr.mxu0 0.0
        %1832 = vmatpush1.msra.mxu0 0.0
        %1833 = vmatprep.subr.mxu0 0.0
        %1834 = vmatpush1.msra.mxu0 0.0
        %1835 = vmatprep.subr.mxu0 0.0
        %1836 = vmatpush1.msra.mxu0 0.0
        %1837 = vmatprep.mubr.f32.mxu0 0.0
        %1838 = vmatmul.mubr.f32.gmra.mrb[0].mxu0 %v1771
        %v1839 = vpop.f32.mrb[0].mxu0
        %v1840 = vadd.f32 %v1767, %v1839
        %v1841 = vpop.f32.mrb[0].mxu0
        %1842 = vdwg.mxu0
        %v1844 = vsel %vm1048, %v1621, 0
        %1846 = vmatprep.subr.mxu0 0.0
        %1847 = vmatpush1.msra.mxu0 %v951
        %1848 = vmatprep.subr.mxu0 0.0
        %1849 = vmatpush1.msra.mxu0 0.0
        %1850 = vmatprep.subr.mxu0 0.0
        %1851 = vmatpush1.msra.mxu0 0.0
        %1852 = vmatprep.subr.mxu0 0.0
        %1853 = vmatpush1.msra.mxu0 0.0
        %1854 = vmatprep.subr.mxu0 0.0
        %1855 = vmatpush1.msra.mxu0 0.0
        %1856 = vmatprep.subr.mxu0 0.0
        %1857 = vmatpush1.msra.mxu0 0.0
        %1858 = vmatprep.subr.mxu0 0.0
        %1859 = vmatpush1.msra.mxu0 0.0
        %1860 = vmatprep.subr.mxu0 0.0
        %1861 = vmatpush1.msra.mxu0 0.0
        %1862 = vmatprep.subr.mxu0 0.0
        %1863 = vmatpush1.msra.mxu0 0.0
        %1864 = vmatprep.subr.mxu0 0.0
        %1865 = vmatpush1.msra.mxu0 0.0
        %1866 = vmatprep.subr.mxu0 0.0
        %1867 = vmatpush1.msra.mxu0 0.0
        %1868 = vmatprep.subr.mxu0 0.0
        %1869 = vmatpush1.msra.mxu0 0.0
        %1870 = vmatprep.subr.mxu0 0.0
        %1871 = vmatpush1.msra.mxu0 0.0
        %1872 = vmatprep.subr.mxu0 0.0
        %1873 = vmatpush1.msra.mxu0 0.0
        %1874 = vmatprep.subr.mxu0 0.0
        %1875 = vmatpush1.msra.mxu0 0.0
        %1876 = vmatprep.subr.mxu0 0.0
        %1877 = vmatpush1.msra.mxu0 0.0
        %1878 = vmatprep.subr.mxu0 0.0
        %1879 = vmatpush1.msra.mxu0 0.0
        %1880 = vmatprep.subr.mxu0 0.0
        %1881 = vmatpush1.msra.mxu0 0.0
        %1882 = vmatprep.subr.mxu0 0.0
        %1883 = vmatpush1.msra.mxu0 0.0
        %1884 = vmatprep.subr.mxu0 0.0
        %1885 = vmatpush1.msra.mxu0 0.0
        %1886 = vmatprep.subr.mxu0 0.0
        %1887 = vmatpush1.msra.mxu0 0.0
        %1888 = vmatprep.subr.mxu0 0.0
        %1889 = vmatpush1.msra.mxu0 0.0
        %1890 = vmatprep.subr.mxu0 0.0
        %1891 = vmatpush1.msra.mxu0 0.0
        %1892 = vmatprep.subr.mxu0 0.0
        %1893 = vmatpush1.msra.mxu0 0.0
        %1894 = vmatprep.subr.mxu0 0.0
        %1895 = vmatpush1.msra.mxu0 0.0
        %1896 = vmatprep.subr.mxu0 0.0
        %1897 = vmatpush1.msra.mxu0 0.0
        %1898 = vmatprep.subr.mxu0 0.0
        %1899 = vmatpush1.msra.mxu0 0.0
        %1900 = vmatprep.subr.mxu0 0.0
        %1901 = vmatpush1.msra.mxu0 0.0
        %1902 = vmatprep.subr.mxu0 0.0
        %1903 = vmatpush1.msra.mxu0 0.0
        %1904 = vmatprep.subr.mxu0 0.0
        %1905 = vmatpush1.msra.mxu0 0.0
        %1906 = vmatprep.subr.mxu0 0.0
        %1907 = vmatpush1.msra.mxu0 0.0
        %1908 = vmatprep.subr.mxu0 0.0
        %1909 = vmatpush1.msra.mxu0 0.0
        %1910 = vmatprep.mubr.f32.mxu0 0.0
        %1911 = vmatmul.mubr.f32.gmra.mrb[0].mxu0 %v1844
        %v1912 = vpop.f32.mrb[0].mxu0
        %v1913 = vadd.f32 0.0, %v1912
        %v1914 = vpop.f32.mrb[0].mxu0
        %1915 = vdwg.mxu0
        %v1916 = vadd.f32 %v1840, %v1913
        %v1918 = vsel %vm1048, %v1694, 0
        %1920 = vmatprep.subr.mxu0 0.0
        %1921 = vmatpush1.msra.mxu0 %v952
        %1922 = vmatprep.subr.mxu0 0.0
        %1923 = vmatpush1.msra.mxu0 0.0
        %1924 = vmatprep.subr.mxu0 0.0
        %1925 = vmatpush1.msra.mxu0 0.0
        %1926 = vmatprep.subr.mxu0 0.0
        %1927 = vmatpush1.msra.mxu0 0.0
        %1928 = vmatprep.subr.mxu0 0.0
        %1929 = vmatpush1.msra.mxu0 0.0
        %1930 = vmatprep.subr.mxu0 0.0
        %1931 = vmatpush1.msra.mxu0 0.0
        %1932 = vmatprep.subr.mxu0 0.0
        %1933 = vmatpush1.msra.mxu0 0.0
        %1934 = vmatprep.subr.mxu0 0.0
        %1935 = vmatpush1.msra.mxu0 0.0
        %1936 = vmatprep.subr.mxu0 0.0
        %1937 = vmatpush1.msra.mxu0 0.0
        %1938 = vmatprep.subr.mxu0 0.0
        %1939 = vmatpush1.msra.mxu0 0.0
        %1940 = vmatprep.subr.mxu0 0.0
        %1941 = vmatpush1.msra.mxu0 0.0
        %1942 = vmatprep.subr.mxu0 0.0
        %1943 = vmatpush1.msra.mxu0 0.0
        %1944 = vmatprep.subr.mxu0 0.0
        %1945 = vmatpush1.msra.mxu0 0.0
        %1946 = vmatprep.subr.mxu0 0.0
        %1947 = vmatpush1.msra.mxu0 0.0
        %1948 = vmatprep.subr.mxu0 0.0
        %1949 = vmatpush1.msra.mxu0 0.0
        %1950 = vmatprep.subr.mxu0 0.0
        %1951 = vmatpush1.msra.mxu0 0.0
        %1952 = vmatprep.subr.mxu0 0.0
        %1953 = vmatpush1.msra.mxu0 0.0
        %1954 = vmatprep.subr.mxu0 0.0
        %1955 = vmatpush1.msra.mxu0 0.0
        %1956 = vmatprep.subr.mxu0 0.0
        %1957 = vmatpush1.msra.mxu0 0.0
        %1958 = vmatprep.subr.mxu0 0.0
        %1959 = vmatpush1.msra.mxu0 0.0
        %1960 = vmatprep.subr.mxu0 0.0
        %1961 = vmatpush1.msra.mxu0 0.0
        %1962 = vmatprep.subr.mxu0 0.0
        %1963 = vmatpush1.msra.mxu0 0.0
        %1964 = vmatprep.subr.mxu0 0.0
        %1965 = vmatpush1.msra.mxu0 0.0
        %1966 = vmatprep.subr.mxu0 0.0
        %1967 = vmatpush1.msra.mxu0 0.0
        %1968 = vmatprep.subr.mxu0 0.0
        %1969 = vmatpush1.msra.mxu0 0.0
        %1970 = vmatprep.subr.mxu0 0.0
        %1971 = vmatpush1.msra.mxu0 0.0
        %1972 = vmatprep.subr.mxu0 0.0
        %1973 = vmatpush1.msra.mxu0 0.0
        %1974 = vmatprep.subr.mxu0 0.0
        %1975 = vmatpush1.msra.mxu0 0.0
        %1976 = vmatprep.subr.mxu0 0.0
        %1977 = vmatpush1.msra.mxu0 0.0
        %1978 = vmatprep.subr.mxu0 0.0
        %1979 = vmatpush1.msra.mxu0 0.0
        %1980 = vmatprep.subr.mxu0 0.0
        %1981 = vmatpush1.msra.mxu0 0.0
        %1982 = vmatprep.subr.mxu0 0.0
        %1983 = vmatpush1.msra.mxu0 0.0
        %1984 = vmatprep.mubr.f32.mxu0 0.0
        %1985 = vmatmul.mubr.f32.gmra.mrb[0].mxu0 %v1918
        %v1986 = vpop.f32.mrb[0].mxu0
        %v1987 = vadd.f32 0.0, %v1986
        %v1988 = vpop.f32.mrb[0].mxu0
        %1989 = vdwg.mxu0
        %v1990 = vadd.f32 %v1916, %v1987
        %v1992 = vlaneseq
        %v1993 = vshrl.u32 %v1992, 7
        %v1994 = vsub.s32 0, %v1993
        %v1995 = vrot.slane %v953, %v1994
        %v1997 = vadd.f32 %v1990, %v1995
        %v1998 = vadd.f32 %v1997, %v933
        %v1999 = vld [vmem:[%s11] sm:$0x1]
        %v2000 = vld [vmem:[%s12] sm:$0x1]
        %v2001 = vsel %vm960, %v1998, 0.0
        %2002 = vadd.xlane.f32.xlu0 %v2001
        %v2003 = vpop.xlane.xlu0 %2002
        %v2004 = vrcp.pop 32.0
        %v2005 = vmul.f32 %v2003, %v2004
        %v2006 = vsub.f32 %v1998, %v2005
        %v2007 = vmul.f32 %v2006, %v2006
        %v2008 = vsel %vm960, %v2007, 0.0
        %2009 = vadd.xlane.f32.xlu0 %v2008
        %v2010 = vpop.xlane.xlu0 %2009
        %v2011 = vmul.f32 %v2010, %v2004
        %v2012 = vadd.f32 %v2011, 1e-05
        %v2013 = vrsqrt.pop %v2012
        %v2014 = vmul.f32 %v2006, %v2013
        %v2016 = vlaneseq
        %v2017 = vshrl.u32 %v2016, 7
        %v2018 = vsub.s32 0, %v2017
        %v2019 = vrot.slane %v1999, %v2018
        %v2021 = vmul.f32 %v2014, %v2019
        %v2023 = vlaneseq
        %v2024 = vshrl.u32 %v2023, 7
        %v2025 = vsub.s32 0, %v2024
        %v2026 = vrot.slane %v2000, %v2025
        %v2028 = vadd.f32 %v2021, %v2026
        %v2029 = vld [vmem:[%s921] sm:$0xff]
        %v2030 = vld [vmem:[%s921 + $0x8] sm:$0xff]
        %v2031 = vld [vmem:[%s921 + $0x10] sm:$0xff]
        %v2032 = vld [vmem:[%s921 + $0x18] sm:$0xff]
        %v2033 = vld [vmem:[%s921 + $0x20] sm:$0xff]
        %v2034 = vld [vmem:[%s921 + $0x28] sm:$0xff]
        %v2035 = vld [vmem:[%s921 + $0x30] sm:$0xff]
        %v2036 = vld [vmem:[%s921 + $0x38] sm:$0xff]
        %v2037 = vld [vmem:[%s926] sm:$0xff]
        %v2038 = vld [vmem:[%s926 + $0x8] sm:$0xff]
        %v2039 = vld [vmem:[%s926 + $0x10] sm:$0xff]
        %v2040 = vld [vmem:[%s926 + $0x18] sm:$0xff]
        %v2041 = vld [vmem:[%s926 + $0x20] sm:$0xff]
        %v2042 = vld [vmem:[%s926 + $0x28] sm:$0xff]
        %v2043 = vld [vmem:[%s926 + $0x30] sm:$0xff]
        %v2044 = vld [vmem:[%s926 + $0x38] sm:$0xff]
        %v2045 = vld [vmem:[%s13] sm:$0xff]
        %v2046 = vld [vmem:[%s13 + $0x8] sm:$0xff]
        %v2047 = vld [vmem:[%s13 + $0x10] sm:$0xff]
        %v2048 = vld [vmem:[%s13 + $0x18] sm:$0xff]
        %v2049 = vld [vmem:[%s14] sm:$0x1]
        %v2050 = vld [vmem:[%s15] sm:$0xff]
        %v2051 = vld [vmem:[%s15 + $0x8] sm:$0xff]
        %v2052 = vld [vmem:[%s15 + $0x10] sm:$0xff]
        %v2053 = vld [vmem:[%s15 + $0x18] sm:$0xff]
        %v2054 = vld [vmem:[%s16] sm:$0x1]
        %v2056 = vlaneseq
        %v2057 = vshrl.u32 %v2056, 7
        %v2058 = vsub.s32 0, %v2057
        %v2059 = vrot.slane %v2049, %v2058
        %v2062 = vsel %vm960, %v2028, 0
        %2064 = vmatprep.subr.mxu0 0.0
        %2065 = vmatpush1.msra.mxu0 %v2045
        %2066 = vmatprep.subr.mxu0 0.0
        %2067 = vmatpush1.msra.mxu0 %v2046
        %2068 = vmatprep.subr.mxu0 0.0
        %2069 = vmatpush1.msra.mxu0 %v2047
        %2070 = vmatprep.subr.mxu0 0.0
        %2071 = vmatpush1.msra.mxu0 %v2048
        %2072 = vmatprep.subr.mxu0 0.0
        %2073 = vmatpush1.msra.mxu0 0.0
        %2074 = vmatprep.subr.mxu0 0.0
        %2075 = vmatpush1.msra.mxu0 0.0
        %2076 = vmatprep.subr.mxu0 0.0
        %2077 = vmatpush1.msra.mxu0 0.0
        %2078 = vmatprep.subr.mxu0 0.0
        %2079 = vmatpush1.msra.mxu0 0.0
        %2080 = vmatprep.subr.mxu0 0.0
        %2081 = vmatpush1.msra.mxu0 0.0
        %2082 = vmatprep.subr.mxu0 0.0
        %2083 = vmatpush1.msra.mxu0 0.0
        %2084 = vmatprep.subr.mxu0 0.0
        %2085 = vmatpush1.msra.mxu0 0.0
        %2086 = vmatprep.subr.mxu0 0.0
        %2087 = vmatpush1.msra.mxu0 0.0
        %2088 = vmatprep.subr.mxu0 0.0
        %2089 = vmatpush1.msra.mxu0 0.0
        %2090 = vmatprep.subr.mxu0 0.0
        %2091 = vmatpush1.msra.mxu0 0.0
        %2092 = vmatprep.subr.mxu0 0.0
        %2093 = vmatpush1.msra.mxu0 0.0
        %2094 = vmatprep.subr.mxu0 0.0
        %2095 = vmatpush1.msra.mxu0 0.0
        %2096 = vmatprep.subr.mxu0 0.0
        %2097 = vmatpush1.msra.mxu0 0.0
        %2098 = vmatprep.subr.mxu0 0.0
        %2099 = vmatpush1.msra.mxu0 0.0
        %2100 = vmatprep.subr.mxu0 0.0
        %2101 = vmatpush1.msra.mxu0 0.0
        %2102 = vmatprep.subr.mxu0 0.0
        %2103 = vmatpush1.msra.mxu0 0.0
        %2104 = vmatprep.subr.mxu0 0.0
        %2105 = vmatpush1.msra.mxu0 0.0
        %2106 = vmatprep.subr.mxu0 0.0
        %2107 = vmatpush1.msra.mxu0 0.0
        %2108 = vmatprep.subr.mxu0 0.0
        %2109 = vmatpush1.msra.mxu0 0.0
        %2110 = vmatprep.subr.mxu0 0.0
        %2111 = vmatpush1.msra.mxu0 0.0
        %2112 = vmatprep.subr.mxu0 0.0
        %2113 = vmatpush1.msra.mxu0 0.0
        %2114 = vmatprep.subr.mxu0 0.0
        %2115 = vmatpush1.msra.mxu0 0.0
        %2116 = vmatprep.subr.mxu0 0.0
        %2117 = vmatpush1.msra.mxu0 0.0
        %2118 = vmatprep.subr.mxu0 0.0
        %2119 = vmatpush1.msra.mxu0 0.0
        %2120 = vmatprep.subr.mxu0 0.0
        %2121 = vmatpush1.msra.mxu0 0.0
        %2122 = vmatprep.subr.mxu0 0.0
        %2123 = vmatpush1.msra.mxu0 0.0
        %2124 = vmatprep.subr.mxu0 0.0
        %2125 = vmatpush1.msra.mxu0 0.0
        %2126 = vmatprep.subr.mxu0 0.0
        %2127 = vmatpush1.msra.mxu0 0.0
        %2128 = vmatprep.mubr.f32.mxu0 0.0
        %2129 = vmatmul.mubr.f32.gmra.mrb[0].mxu0 %v2062
        %v2130 = vpop.f32.mrb[0].mxu0
        %v2131 = vadd.f32 %v2059, %v2130
        %v2132 = vpop.f32.mrb[0].mxu0
        %2133 = vdwg.mxu0
        %v2134 = vmul.f32 %v2131, 0.35355338
        %2136 = vrot.lane.b32.xlu0 %v2134, 120
        %v2137 = vpop.permute.xlu0 %2136
        %2138 = vrot.lane.b32.xlu0 %v2134, 112
        %v2139 = vpop.permute.xlu0 %2138
        %2140 = vrot.lane.b32.xlu0 %v2134, 104
        %v2141 = vpop.permute.xlu0 %2140
        %v2143 = vlaneseq
        %v2144 = vshrl.u32 %v2143, 7
        %v2145 = vsub.s32 0, %v2144
        %v2146 = vrot.slane %v935, %v2145
        %v2148 = vsel %vm1048, %v2134, 0
        %v2151 = vsel %vm1048, %v2029, 0
        %v2154 = vsel %vm1048, %v2030, 0
        %2156 = vmatprep.subr.mxu0 0.0
        %2157 = vmatpush1.xpose.msra.mxu0 %v2151
        %2158 = vmatprep.subr.mxu0 0.0
        %2159 = vmatpush1.xpose.msra.mxu0 %v2154
        %2160 = vmatprep.subr.mxu0 0.0
        %2161 = vmatpush1.xpose.msra.mxu0 0.0
        %2162 = vmatprep.subr.mxu0 0.0
        %2163 = vmatpush1.xpose.msra.mxu0 0.0
        %2164 = vmatprep.subr.mxu0 0.0
        %2165 = vmatpush1.xpose.msra.mxu0 0.0
        %2166 = vmatprep.subr.mxu0 0.0
        %2167 = vmatpush1.xpose.msra.mxu0 0.0
        %2168 = vmatprep.subr.mxu0 0.0
        %2169 = vmatpush1.xpose.msra.mxu0 0.0
        %2170 = vmatprep.subr.mxu0 0.0
        %2171 = vmatpush1.xpose.msra.mxu0 0.0
        %2172 = vmatprep.subr.mxu0 0.0
        %2173 = vmatpush1.xpose.msra.mxu0 0.0
        %2174 = vmatprep.subr.mxu0 0.0
        %2175 = vmatpush1.xpose.msra.mxu0 0.0
        %2176 = vmatprep.subr.mxu0 0.0
        %2177 = vmatpush1.xpose.msra.mxu0 0.0
        %2178 = vmatprep.subr.mxu0 0.0
        %2179 = vmatpush1.xpose.msra.mxu0 0.0
        %2180 = vmatprep.subr.mxu0 0.0
        %2181 = vmatpush1.xpose.msra.mxu0 0.0
        %2182 = vmatprep.subr.mxu0 0.0
        %2183 = vmatpush1.xpose.msra.mxu0 0.0
        %2184 = vmatprep.subr.mxu0 0.0
        %2185 = vmatpush1.xpose.msra.mxu0 0.0
        %2186 = vmatprep.subr.mxu0 0.0
        %2187 = vmatpush1.xpose.msra.mxu0 0.0
        %2188 = vmatprep.subr.mxu0 0.0
        %2189 = vmatpush1.xpose.msra.mxu0 0.0
        %2190 = vmatprep.subr.mxu0 0.0
        %2191 = vmatpush1.xpose.msra.mxu0 0.0
        %2192 = vmatprep.subr.mxu0 0.0
        %2193 = vmatpush1.xpose.msra.mxu0 0.0
        %2194 = vmatprep.subr.mxu0 0.0
        %2195 = vmatpush1.xpose.msra.mxu0 0.0
        %2196 = vmatprep.subr.mxu0 0.0
        %2197 = vmatpush1.xpose.msra.mxu0 0.0
        %2198 = vmatprep.subr.mxu0 0.0
        %2199 = vmatpush1.xpose.msra.mxu0 0.0
        %2200 = vmatprep.subr.mxu0 0.0
        %2201 = vmatpush1.xpose.msra.mxu0 0.0
        %2202 = vmatprep.subr.mxu0 0.0
        %2203 = vmatpush1.xpose.msra.mxu0 0.0
        %2204 = vmatprep.subr.mxu0 0.0
        %2205 = vmatpush1.xpose.msra.mxu0 0.0
        %2206 = vmatprep.subr.mxu0 0.0
        %2207 = vmatpush1.xpose.msra.mxu0 0.0
        %2208 = vmatprep.subr.mxu0 0.0
        %2209 = vmatpush1.xpose.msra.mxu0 0.0
        %2210 = vmatprep.subr.mxu0 0.0
        %2211 = vmatpush1.xpose.msra.mxu0 0.0
        %2212 = vmatprep.subr.mxu0 0.0
        %2213 = vmatpush1.xpose.msra.mxu0 0.0
        %2214 = vmatprep.subr.mxu0 0.0
        %2215 = vmatpush1.xpose.msra.mxu0 0.0
        %2216 = vmatprep.subr.mxu0 0.0
        %2217 = vmatpush1.xpose.msra.mxu0 0.0
        %2218 = vmatprep.subr.mxu0 0.0
        %2219 = vmatpush1.xpose.msra.mxu0 0.0
        %2220 = vmatprep.mubr.f32.mxu0 0.0
        %2221 = vmatmul.mubr.f32.gmra.mrb[0].mxu0 %v2148
        %v2222 = vpop.f32.mrb[0].mxu0
        %v2223 = vadd.f32 %v2146, %v2222
        %v2224 = vpop.f32.mrb[0].mxu0
        %2225 = vdwg.mxu0
        %v2226 = vsel %vm1048, %v2137, 0
        %v2229 = vsel %vm1048, %v2031, 0
        %v2232 = vsel %vm1048, %v2032, 0
        %2234 = vmatprep.subr.mxu0 0.0
        %2235 = vmatpush1.xpose.msra.mxu0 %v2229
        %2236 = vmatprep.subr.mxu0 0.0
        %2237 = vmatpush1.xpose.msra.mxu0 %v2232
        %2238 = vmatprep.subr.mxu0 0.0
        %2239 = vmatpush1.xpose.msra.mxu0 0.0
        %2240 = vmatprep.subr.mxu0 0.0
        %2241 = vmatpush1.xpose.msra.mxu0 0.0
        %2242 = vmatprep.subr.mxu0 0.0
        %2243 = vmatpush1.xpose.msra.mxu0 0.0
        %2244 = vmatprep.subr.mxu0 0.0
        %2245 = vmatpush1.xpose.msra.mxu0 0.0
        %2246 = vmatprep.subr.mxu0 0.0
        %2247 = vmatpush1.xpose.msra.mxu0 0.0
        %2248 = vmatprep.subr.mxu0 0.0
        %2249 = vmatpush1.xpose.msra.mxu0 0.0
        %2250 = vmatprep.subr.mxu0 0.0
        %2251 = vmatpush1.xpose.msra.mxu0 0.0
        %2252 = vmatprep.subr.mxu0 0.0
        %2253 = vmatpush1.xpose.msra.mxu0 0.0
        %2254 = vmatprep.subr.mxu0 0.0
        %2255 = vmatpush1.xpose.msra.mxu0 0.0
        %2256 = vmatprep.subr.mxu0 0.0
        %2257 = vmatpush1.xpose.msra.mxu0 0.0
        %2258 = vmatprep.subr.mxu0 0.0
        %2259 = vmatpush1.xpose.msra.mxu0 0.0
        %2260 = vmatprep.subr.mxu0 0.0
        %2261 = vmatpush1.xpose.msra.mxu0 0.0
        %2262 = vmatprep.subr.mxu0 0.0
        %2263 = vmatpush1.xpose.msra.mxu0 0.0
        %2264 = vmatprep.subr.mxu0 0.0
        %2265 = vmatpush1.xpose.msra.mxu0 0.0
        %2266 = vmatprep.subr.mxu0 0.0
        %2267 = vmatpush1.xpose.msra.mxu0 0.0
        %2268 = vmatprep.subr.mxu0 0.0
        %2269 = vmatpush1.xpose.msra.mxu0 0.0
        %2270 = vmatprep.subr.mxu0 0.0
        %2271 = vmatpush1.xpose.msra.mxu0 0.0
        %2272 = vmatprep.subr.mxu0 0.0
        %2273 = vmatpush1.xpose.msra.mxu0 0.0
        %2274 = vmatprep.subr.mxu0 0.0
        %2275 = vmatpush1.xpose.msra.mxu0 0.0
        %2276 = vmatprep.subr.mxu0 0.0
        %2277 = vmatpush1.xpose.msra.mxu0 0.0
        %2278 = vmatprep.subr.mxu0 0.0
        %2279 = vmatpush1.xpose.msra.mxu0 0.0
        %2280 = vmatprep.subr.mxu0 0.0
        %2281 = vmatpush1.xpose.msra.mxu0 0.0
        %2282 = vmatprep.subr.mxu0 0.0
        %2283 = vmatpush1.xpose.msra.mxu0 0.0
        %2284 = vmatprep.subr.mxu0 0.0
        %2285 = vmatpush1.xpose.msra.mxu0 0.0
        %2286 = vmatprep.subr.mxu0 0.0
        %2287 = vmatpush1.xpose.msra.mxu0 0.0
        %2288 = vmatprep.subr.mxu0 0.0
        %2289 = vmatpush1.xpose.msra.mxu0 0.0
        %2290 = vmatprep.subr.mxu0 0.0
        %2291 = vmatpush1.xpose.msra.mxu0 0.0
        %2292 = vmatprep.subr.mxu0 0.0
        %2293 = vmatpush1.xpose.msra.mxu0 0.0
        %2294 = vmatprep.subr.mxu0 0.0
        %2295 = vmatpush1.xpose.msra.mxu0 0.0
        %2296 = vmatprep.subr.mxu0 0.0
        %2297 = vmatpush1.xpose.msra.mxu0 0.0
        %2298 = vmatprep.mubr.f32.mxu0 0.0
        %2299 = vmatmul.mubr.f32.gmra.mrb[0].mxu0 %v2226
        %v2300 = vpop.f32.mrb[0].mxu0
        %v2301 = vadd.f32 %v2146, %v2300
        %v2302 = vpop.f32.mrb[0].mxu0
        %2303 = vdwg.mxu0
        %v2304 = vsel %vm1048, %v2139, 0
        %v2307 = vsel %vm1048, %v2033, 0
        %v2310 = vsel %vm1048, %v2034, 0
        %2312 = vmatprep.subr.mxu0 0.0
        %2313 = vmatpush1.xpose.msra.mxu0 %v2307
        %2314 = vmatprep.subr.mxu0 0.0
        %2315 = vmatpush1.xpose.msra.mxu0 %v2310
        %2316 = vmatprep.subr.mxu0 0.0
        %2317 = vmatpush1.xpose.msra.mxu0 0.0
        %2318 = vmatprep.subr.mxu0 0.0
        %2319 = vmatpush1.xpose.msra.mxu0 0.0
        %2320 = vmatprep.subr.mxu0 0.0
        %2321 = vmatpush1.xpose.msra.mxu0 0.0
        %2322 = vmatprep.subr.mxu0 0.0
        %2323 = vmatpush1.xpose.msra.mxu0 0.0
        %2324 = vmatprep.subr.mxu0 0.0
        %2325 = vmatpush1.xpose.msra.mxu0 0.0
        %2326 = vmatprep.subr.mxu0 0.0
        %2327 = vmatpush1.xpose.msra.mxu0 0.0
        %2328 = vmatprep.subr.mxu0 0.0
        %2329 = vmatpush1.xpose.msra.mxu0 0.0
        %2330 = vmatprep.subr.mxu0 0.0
        %2331 = vmatpush1.xpose.msra.mxu0 0.0
        %2332 = vmatprep.subr.mxu0 0.0
        %2333 = vmatpush1.xpose.msra.mxu0 0.0
        %2334 = vmatprep.subr.mxu0 0.0
        %2335 = vmatpush1.xpose.msra.mxu0 0.0
        %2336 = vmatprep.subr.mxu0 0.0
        %2337 = vmatpush1.xpose.msra.mxu0 0.0
        %2338 = vmatprep.subr.mxu0 0.0
        %2339 = vmatpush1.xpose.msra.mxu0 0.0
        %2340 = vmatprep.subr.mxu0 0.0
        %2341 = vmatpush1.xpose.msra.mxu0 0.0
        %2342 = vmatprep.subr.mxu0 0.0
        %2343 = vmatpush1.xpose.msra.mxu0 0.0
        %2344 = vmatprep.subr.mxu0 0.0
        %2345 = vmatpush1.xpose.msra.mxu0 0.0
        %2346 = vmatprep.subr.mxu0 0.0
        %2347 = vmatpush1.xpose.msra.mxu0 0.0
        %2348 = vmatprep.subr.mxu0 0.0
        %2349 = vmatpush1.xpose.msra.mxu0 0.0
        %2350 = vmatprep.subr.mxu0 0.0
        %2351 = vmatpush1.xpose.msra.mxu0 0.0
        %2352 = vmatprep.subr.mxu0 0.0
        %2353 = vmatpush1.xpose.msra.mxu0 0.0
        %2354 = vmatprep.subr.mxu0 0.0
        %2355 = vmatpush1.xpose.msra.mxu0 0.0
        %2356 = vmatprep.subr.mxu0 0.0
        %2357 = vmatpush1.xpose.msra.mxu0 0.0
        %2358 = vmatprep.subr.mxu0 0.0
        %2359 = vmatpush1.xpose.msra.mxu0 0.0
        %2360 = vmatprep.subr.mxu0 0.0
        %2361 = vmatpush1.xpose.msra.mxu0 0.0
        %2362 = vmatprep.subr.mxu0 0.0
        %2363 = vmatpush1.xpose.msra.mxu0 0.0
        %2364 = vmatprep.subr.mxu0 0.0
        %2365 = vmatpush1.xpose.msra.mxu0 0.0
        %2366 = vmatprep.subr.mxu0 0.0
        %2367 = vmatpush1.xpose.msra.mxu0 0.0
        %2368 = vmatprep.subr.mxu0 0.0
        %2369 = vmatpush1.xpose.msra.mxu0 0.0
        %2370 = vmatprep.subr.mxu0 0.0
        %2371 = vmatpush1.xpose.msra.mxu0 0.0
        %2372 = vmatprep.subr.mxu0 0.0
        %2373 = vmatpush1.xpose.msra.mxu0 0.0
        %2374 = vmatprep.subr.mxu0 0.0
        %2375 = vmatpush1.xpose.msra.mxu0 0.0
        %2376 = vmatprep.mubr.f32.mxu0 0.0
        %2377 = vmatmul.mubr.f32.gmra.mrb[0].mxu0 %v2304
        %v2378 = vpop.f32.mrb[0].mxu0
        %v2379 = vadd.f32 %v2146, %v2378
        %v2380 = vpop.f32.mrb[0].mxu0
        %2381 = vdwg.mxu0
        %v2382 = vsel %vm1048, %v2141, 0
        %v2385 = vsel %vm1048, %v2035, 0
        %v2388 = vsel %vm1048, %v2036, 0
        %2390 = vmatprep.subr.mxu0 0.0
        %2391 = vmatpush1.xpose.msra.mxu0 %v2385
        %2392 = vmatprep.subr.mxu0 0.0
        %2393 = vmatpush1.xpose.msra.mxu0 %v2388
        %2394 = vmatprep.subr.mxu0 0.0
        %2395 = vmatpush1.xpose.msra.mxu0 0.0
        %2396 = vmatprep.subr.mxu0 0.0
        %2397 = vmatpush1.xpose.msra.mxu0 0.0
        %2398 = vmatprep.subr.mxu0 0.0
        %2399 = vmatpush1.xpose.msra.mxu0 0.0
        %2400 = vmatprep.subr.mxu0 0.0
        %2401 = vmatpush1.xpose.msra.mxu0 0.0
        %2402 = vmatprep.subr.mxu0 0.0
        %2403 = vmatpush1.xpose.msra.mxu0 0.0
        %2404 = vmatprep.subr.mxu0 0.0
        %2405 = vmatpush1.xpose.msra.mxu0 0.0
        %2406 = vmatprep.subr.mxu0 0.0
        %2407 = vmatpush1.xpose.msra.mxu0 0.0
        %2408 = vmatprep.subr.mxu0 0.0
        %2409 = vmatpush1.xpose.msra.mxu0 0.0
        %2410 = vmatprep.subr.mxu0 0.0
        %2411 = vmatpush1.xpose.msra.mxu0 0.0
        %2412 = vmatprep.subr.mxu0 0.0
        %2413 = vmatpush1.xpose.msra.mxu0 0.0
        %2414 = vmatprep.subr.mxu0 0.0
        %2415 = vmatpush1.xpose.msra.mxu0 0.0
        %2416 = vmatprep.subr.mxu0 0.0
        %2417 = vmatpush1.xpose.msra.mxu0 0.0
        %2418 = vmatprep.subr.mxu0 0.0
        %2419 = vmatpush1.xpose.msra.mxu0 0.0
        %2420 = vmatprep.subr.mxu0 0.0
        %2421 = vmatpush1.xpose.msra.mxu0 0.0
        %2422 = vmatprep.subr.mxu0 0.0
        %2423 = vmatpush1.xpose.msra.mxu0 0.0
        %2424 = vmatprep.subr.mxu0 0.0
        %2425 = vmatpush1.xpose.msra.mxu0 0.0
        %2426 = vmatprep.subr.mxu0 0.0
        %2427 = vmatpush1.xpose.msra.mxu0 0.0
        %2428 = vmatprep.subr.mxu0 0.0
        %2429 = vmatpush1.xpose.msra.mxu0 0.0
        %2430 = vmatprep.subr.mxu0 0.0
        %2431 = vmatpush1.xpose.msra.mxu0 0.0
        %2432 = vmatprep.subr.mxu0 0.0
        %2433 = vmatpush1.xpose.msra.mxu0 0.0
        %2434 = vmatprep.subr.mxu0 0.0
        %2435 = vmatpush1.xpose.msra.mxu0 0.0
        %2436 = vmatprep.subr.mxu0 0.0
        %2437 = vmatpush1.xpose.msra.mxu0 0.0
        %2438 = vmatprep.subr.mxu0 0.0
        %2439 = vmatpush1.xpose.msra.mxu0 0.0
        %2440 = vmatprep.subr.mxu0 0.0
        %2441 = vmatpush1.xpose.msra.mxu0 0.0
        %2442 = vmatprep.subr.mxu0 0.0
        %2443 = vmatpush1.xpose.msra.mxu0 0.0
        %2444 = vmatprep.subr.mxu0 0.0
        %2445 = vmatpush1.xpose.msra.mxu0 0.0
        %2446 = vmatprep.subr.mxu0 0.0
        %2447 = vmatpush1.xpose.msra.mxu0 0.0
        %2448 = vmatprep.subr.mxu0 0.0
        %2449 = vmatpush1.xpose.msra.mxu0 0.0
        %2450 = vmatprep.subr.mxu0 0.0
        %2451 = vmatpush1.xpose.msra.mxu0 0.0
        %2452 = vmatprep.subr.mxu0 0.0
        %2453 = vmatpush1.xpose.msra.mxu0 0.0
        %2454 = vmatprep.mubr.f32.mxu0 0.0
        %2455 = vmatmul.mubr.f32.gmra.mrb[0].mxu0 %v2382
        %v2456 = vpop.f32.mrb[0].mxu0
        %v2457 = vadd.f32 %v2146, %v2456
        %v2458 = vpop.f32.mrb[0].mxu0
        %2459 = vdwg.mxu0
        %vm2460 = vcmask 130048
        %v2461 = vsel %vm2460, %v2223, -inf
        %2462 = vmax.xlane.f32.xlu0 %v2461
        %v2463 = vpop.xlane.xlu0 %2462
        %v2464 = vsel %vm2460, %v2301, -inf
        %2465 = vmax.xlane.f32.xlu0 %v2464
        %v2466 = vpop.xlane.xlu0 %2465
        %v2467 = vsel %vm2460, %v2379, -inf
        %2468 = vmax.xlane.f32.xlu0 %v2467
        %v2469 = vpop.xlane.xlu0 %2468
        %v2470 = vsel %vm2460, %v2457, -inf
        %2471 = vmax.xlane.f32.xlu0 %v2470
        %v2472 = vpop.xlane.xlu0 %2471
        %v2473 = vsub.f32 %v2223, %v2463
        %v2474 = vsub.f32 %v2301, %v2466
        %v2475 = vsub.f32 %v2379, %v2469
        %v2476 = vsub.f32 %v2457, %v2472
        %v2477 = vmul.f32 %v2473, 1.442695
        %v2478 = vpow.pop %v2477
        %v2479 = vmul.f32 %v2474, 1.442695
        %v2480 = vpow.pop %v2479
        %v2481 = vmul.f32 %v2475, 1.442695
        %v2482 = vpow.pop %v2481
        %v2483 = vmul.f32 %v2476, 1.442695
        %v2484 = vpow.pop %v2483
        %v2485 = vsel %vm2460, %v2478, 0.0
        %2486 = vadd.xlane.f32.xlu0 %v2485
        %v2487 = vpop.xlane.xlu0 %2486
        %v2488 = vsel %vm2460, %v2480, 0.0
        %2489 = vadd.xlane.f32.xlu0 %v2488
        %v2490 = vpop.xlane.xlu0 %2489
        %v2491 = vsel %vm2460, %v2482, 0.0
        %2492 = vadd.xlane.f32.xlu0 %v2491
        %v2493 = vpop.xlane.xlu0 %2492
        %v2494 = vsel %vm2460, %v2484, 0.0
        %2495 = vadd.xlane.f32.xlu0 %v2494
        %v2496 = vpop.xlane.xlu0 %2495
        %v2497 = vrcp.pop %v2487
        %v2498 = vrcp.pop %v2490
        %v2499 = vrcp.pop %v2493
        %v2500 = vrcp.pop %v2496
        %v2501 = vmul.f32 %v2487, %v2497
        %v2502 = vmul.f32 %v2490, %v2498
        %v2503 = vmul.f32 %v2493, %v2499
        %v2504 = vmul.f32 %v2496, %v2500
        %v2505 = vsub.f32 2.0, %v2501
        %v2506 = vsub.f32 2.0, %v2502
        %v2507 = vsub.f32 2.0, %v2503
        %v2508 = vsub.f32 2.0, %v2504
        %v2509 = vmul.f32 %v2497, %v2505
        %v2510 = vmul.f32 %v2498, %v2506
        %v2511 = vmul.f32 %v2499, %v2507
        %v2512 = vmul.f32 %v2500, %v2508
        %v2513 = vmul.f32 %v2478, %v2509
        %v2514 = vmul.f32 %v2480, %v2510
        %v2515 = vmul.f32 %v2482, %v2511
        %v2516 = vmul.f32 %v2484, %v2512
        %v2518 = vsel %vm2460, %v2513, 0
        %2520 = vmatprep.subr.mxu0 0.0
        %2521 = vmatpush1.msra.mxu0 %v2037
        %2522 = vmatprep.subr.mxu0 0.0
        %2523 = vmatpush1.msra.mxu0 %v2038
        %2524 = vmatprep.subr.mxu0 0.0
        %2525 = vmatpush1.msra.mxu0 0.0
        %2526 = vmatprep.subr.mxu0 0.0
        %2527 = vmatpush1.msra.mxu0 0.0
        %2528 = vmatprep.subr.mxu0 0.0
        %2529 = vmatpush1.msra.mxu0 0.0
        %2530 = vmatprep.subr.mxu0 0.0
        %2531 = vmatpush1.msra.mxu0 0.0
        %2532 = vmatprep.subr.mxu0 0.0
        %2533 = vmatpush1.msra.mxu0 0.0
        %2534 = vmatprep.subr.mxu0 0.0
        %2535 = vmatpush1.msra.mxu0 0.0
        %2536 = vmatprep.subr.mxu0 0.0
        %2537 = vmatpush1.msra.mxu0 0.0
        %2538 = vmatprep.subr.mxu0 0.0
        %2539 = vmatpush1.msra.mxu0 0.0
        %2540 = vmatprep.subr.mxu0 0.0
        %2541 = vmatpush1.msra.mxu0 0.0
        %2542 = vmatprep.subr.mxu0 0.0
        %2543 = vmatpush1.msra.mxu0 0.0
        %2544 = vmatprep.subr.mxu0 0.0
        %2545 = vmatpush1.msra.mxu0 0.0
        %2546 = vmatprep.subr.mxu0 0.0
        %2547 = vmatpush1.msra.mxu0 0.0
        %2548 = vmatprep.subr.mxu0 0.0
        %2549 = vmatpush1.msra.mxu0 0.0
        %2550 = vmatprep.subr.mxu0 0.0
        %2551 = vmatpush1.msra.mxu0 0.0
        %2552 = vmatprep.subr.mxu0 0.0
        %2553 = vmatpush1.msra.mxu0 0.0
        %2554 = vmatprep.subr.mxu0 0.0
        %2555 = vmatpush1.msra.mxu0 0.0
        %2556 = vmatprep.subr.mxu0 0.0
        %2557 = vmatpush1.msra.mxu0 0.0
        %2558 = vmatprep.subr.mxu0 0.0
        %2559 = vmatpush1.msra.mxu0 0.0
        %2560 = vmatprep.subr.mxu0 0.0
        %2561 = vmatpush1.msra.mxu0 0.0
        %2562 = vmatprep.subr.mxu0 0.0
        %2563 = vmatpush1.msra.mxu0 0.0
        %2564 = vmatprep.subr.mxu0 0.0
        %2565 = vmatpush1.msra.mxu0 0.0
        %2566 = vmatprep.subr.mxu0 0.0
        %2567 = vmatpush1.msra.mxu0 0.0
        %2568 = vmatprep.subr.mxu0 0.0
        %2569 = vmatpush1.msra.mxu0 0.0
        %2570 = vmatprep.subr.mxu0 0.0
        %2571 = vmatpush1.msra.mxu0 0.0
        %2572 = vmatprep.subr.mxu0 0.0
        %2573 = vmatpush1.msra.mxu0 0.0
        %2574 = vmatprep.subr.mxu0 0.0
        %2575 = vmatpush1.msra.mxu0 0.0
        %2576 = vmatprep.subr.mxu0 0.0
        %2577 = vmatpush1.msra.mxu0 0.0
        %2578 = vmatprep.subr.mxu0 0.0
        %2579 = vmatpush1.msra.mxu0 0.0
        %2580 = vmatprep.subr.mxu0 0.0
        %2581 = vmatpush1.msra.mxu0 0.0
        %2582 = vmatprep.subr.mxu0 0.0
        %2583 = vmatpush1.msra.mxu0 0.0
        %2584 = vmatprep.mubr.f32.mxu0 0.0
        %2585 = vmatmul.mubr.f32.gmra.mrb[0].mxu0 %v2518
        %v2586 = vpop.f32.mrb[0].mxu0
        %v2587 = vadd.f32 0.0, %v2586
        %v2588 = vpop.f32.mrb[0].mxu0
        %2589 = vdwg.mxu0
        %v2591 = vsel %vm2460, %v2514, 0
        %2593 = vmatprep.subr.mxu0 0.0
        %2594 = vmatpush1.msra.mxu0 %v2039
        %2595 = vmatprep.subr.mxu0 0.0
        %2596 = vmatpush1.msra.mxu0 %v2040
        %2597 = vmatprep.subr.mxu0 0.0
        %2598 = vmatpush1.msra.mxu0 0.0
        %2599 = vmatprep.subr.mxu0 0.0
        %2600 = vmatpush1.msra.mxu0 0.0
        %2601 = vmatprep.subr.mxu0 0.0
        %2602 = vmatpush1.msra.mxu0 0.0
        %2603 = vmatprep.subr.mxu0 0.0
        %2604 = vmatpush1.msra.mxu0 0.0
        %2605 = vmatprep.subr.mxu0 0.0
        %2606 = vmatpush1.msra.mxu0 0.0
        %2607 = vmatprep.subr.mxu0 0.0
        %2608 = vmatpush1.msra.mxu0 0.0
        %2609 = vmatprep.subr.mxu0 0.0
        %2610 = vmatpush1.msra.mxu0 0.0
        %2611 = vmatprep.subr.mxu0 0.0
        %2612 = vmatpush1.msra.mxu0 0.0
        %2613 = vmatprep.subr.mxu0 0.0
        %2614 = vmatpush1.msra.mxu0 0.0
        %2615 = vmatprep.subr.mxu0 0.0
        %2616 = vmatpush1.msra.mxu0 0.0
        %2617 = vmatprep.subr.mxu0 0.0
        %2618 = vmatpush1.msra.mxu0 0.0
        %2619 = vmatprep.subr.mxu0 0.0
        %2620 = vmatpush1.msra.mxu0 0.0
        %2621 = vmatprep.subr.mxu0 0.0
        %2622 = vmatpush1.msra.mxu0 0.0
        %2623 = vmatprep.subr.mxu0 0.0
        %2624 = vmatpush1.msra.mxu0 0.0
        %2625 = vmatprep.subr.mxu0 0.0
        %2626 = vmatpush1.msra.mxu0 0.0
        %2627 = vmatprep.subr.mxu0 0.0
        %2628 = vmatpush1.msra.mxu0 0.0
        %2629 = vmatprep.subr.mxu0 0.0
        %2630 = vmatpush1.msra.mxu0 0.0
        %2631 = vmatprep.subr.mxu0 0.0
        %2632 = vmatpush1.msra.mxu0 0.0
        %2633 = vmatprep.subr.mxu0 0.0
        %2634 = vmatpush1.msra.mxu0 0.0
        %2635 = vmatprep.subr.mxu0 0.0
        %2636 = vmatpush1.msra.mxu0 0.0
        %2637 = vmatprep.subr.mxu0 0.0
        %2638 = vmatpush1.msra.mxu0 0.0
        %2639 = vmatprep.subr.mxu0 0.0
        %2640 = vmatpush1.msra.mxu0 0.0
        %2641 = vmatprep.subr.mxu0 0.0
        %2642 = vmatpush1.msra.mxu0 0.0
        %2643 = vmatprep.subr.mxu0 0.0
        %2644 = vmatpush1.msra.mxu0 0.0
        %2645 = vmatprep.subr.mxu0 0.0
        %2646 = vmatpush1.msra.mxu0 0.0
        %2647 = vmatprep.subr.mxu0 0.0
        %2648 = vmatpush1.msra.mxu0 0.0
        %2649 = vmatprep.subr.mxu0 0.0
        %2650 = vmatpush1.msra.mxu0 0.0
        %2651 = vmatprep.subr.mxu0 0.0
        %2652 = vmatpush1.msra.mxu0 0.0
        %2653 = vmatprep.subr.mxu0 0.0
        %2654 = vmatpush1.msra.mxu0 0.0
        %2655 = vmatprep.subr.mxu0 0.0
        %2656 = vmatpush1.msra.mxu0 0.0
        %2657 = vmatprep.mubr.f32.mxu0 0.0
        %2658 = vmatmul.mubr.f32.gmra.mrb[0].mxu0 %v2591
        %v2659 = vpop.f32.mrb[0].mxu0
        %v2660 = vadd.f32 0.0, %v2659
        %v2661 = vpop.f32.mrb[0].mxu0
        %2662 = vdwg.mxu0
        %v2664 = vsel %vm2460, %v2515, 0
        %2666 = vmatprep.subr.mxu0 0.0
        %2667 = vmatpush1.msra.mxu0 %v2041
        %2668 = vmatprep.subr.mxu0 0.0
        %2669 = vmatpush1.msra.mxu0 %v2042
        %2670 = vmatprep.subr.mxu0 0.0
        %2671 = vmatpush1.msra.mxu0 0.0
        %2672 = vmatprep.subr.mxu0 0.0
        %2673 = vmatpush1.msra.mxu0 0.0
        %2674 = vmatprep.subr.mxu0 0.0
        %2675 = vmatpush1.msra.mxu0 0.0
        %2676 = vmatprep.subr.mxu0 0.0
        %2677 = vmatpush1.msra.mxu0 0.0
        %2678 = vmatprep.subr.mxu0 0.0
        %2679 = vmatpush1.msra.mxu0 0.0
        %2680 = vmatprep.subr.mxu0 0.0
        %2681 = vmatpush1.msra.mxu0 0.0
        %2682 = vmatprep.subr.mxu0 0.0
        %2683 = vmatpush1.msra.mxu0 0.0
        %2684 = vmatprep.subr.mxu0 0.0
        %2685 = vmatpush1.msra.mxu0 0.0
        %2686 = vmatprep.subr.mxu0 0.0
        %2687 = vmatpush1.msra.mxu0 0.0
        %2688 = vmatprep.subr.mxu0 0.0
        %2689 = vmatpush1.msra.mxu0 0.0
        %2690 = vmatprep.subr.mxu0 0.0
        %2691 = vmatpush1.msra.mxu0 0.0
        %2692 = vmatprep.subr.mxu0 0.0
        %2693 = vmatpush1.msra.mxu0 0.0
        %2694 = vmatprep.subr.mxu0 0.0
        %2695 = vmatpush1.msra.mxu0 0.0
        %2696 = vmatprep.subr.mxu0 0.0
        %2697 = vmatpush1.msra.mxu0 0.0
        %2698 = vmatprep.subr.mxu0 0.0
        %2699 = vmatpush1.msra.mxu0 0.0
        %2700 = vmatprep.subr.mxu0 0.0
        %2701 = vmatpush1.msra.mxu0 0.0
        %2702 = vmatprep.subr.mxu0 0.0
        %2703 = vmatpush1.msra.mxu0 0.0
        %2704 = vmatprep.subr.mxu0 0.0
        %2705 = vmatpush1.msra.mxu0 0.0
        %2706 = vmatprep.subr.mxu0 0.0
        %2707 = vmatpush1.msra.mxu0 0.0
        %2708 = vmatprep.subr.mxu0 0.0
        %2709 = vmatpush1.msra.mxu0 0.0
        %2710 = vmatprep.subr.mxu0 0.0
        %2711 = vmatpush1.msra.mxu0 0.0
        %2712 = vmatprep.subr.mxu0 0.0
        %2713 = vmatpush1.msra.mxu0 0.0
        %2714 = vmatprep.subr.mxu0 0.0
        %2715 = vmatpush1.msra.mxu0 0.0
        %2716 = vmatprep.subr.mxu0 0.0
        %2717 = vmatpush1.msra.mxu0 0.0
        %2718 = vmatprep.subr.mxu0 0.0
        %2719 = vmatpush1.msra.mxu0 0.0
        %2720 = vmatprep.subr.mxu0 0.0
        %2721 = vmatpush1.msra.mxu0 0.0
        %2722 = vmatprep.subr.mxu0 0.0
        %2723 = vmatpush1.msra.mxu0 0.0
        %2724 = vmatprep.subr.mxu0 0.0
        %2725 = vmatpush1.msra.mxu0 0.0
        %2726 = vmatprep.subr.mxu0 0.0
        %2727 = vmatpush1.msra.mxu0 0.0
        %2728 = vmatprep.subr.mxu0 0.0
        %2729 = vmatpush1.msra.mxu0 0.0
        %2730 = vmatprep.mubr.f32.mxu0 0.0
        %2731 = vmatmul.mubr.f32.gmra.mrb[0].mxu0 %v2664
        %v2732 = vpop.f32.mrb[0].mxu0
        %v2733 = vadd.f32 0.0, %v2732
        %v2734 = vpop.f32.mrb[0].mxu0
        %2735 = vdwg.mxu0
        %v2737 = vsel %vm2460, %v2516, 0
        %2739 = vmatprep.subr.mxu0 0.0
        %2740 = vmatpush1.msra.mxu0 %v2043
        %2741 = vmatprep.subr.mxu0 0.0
        %2742 = vmatpush1.msra.mxu0 %v2044
        %2743 = vmatprep.subr.mxu0 0.0
        %2744 = vmatpush1.msra.mxu0 0.0
        %2745 = vmatprep.subr.mxu0 0.0
        %2746 = vmatpush1.msra.mxu0 0.0
        %2747 = vmatprep.subr.mxu0 0.0
        %2748 = vmatpush1.msra.mxu0 0.0
        %2749 = vmatprep.subr.mxu0 0.0
        %2750 = vmatpush1.msra.mxu0 0.0
        %2751 = vmatprep.subr.mxu0 0.0
        %2752 = vmatpush1.msra.mxu0 0.0
        %2753 = vmatprep.subr.mxu0 0.0
        %2754 = vmatpush1.msra.mxu0 0.0
        %2755 = vmatprep.subr.mxu0 0.0
        %2756 = vmatpush1.msra.mxu0 0.0
        %2757 = vmatprep.subr.mxu0 0.0
        %2758 = vmatpush1.msra.mxu0 0.0
        %2759 = vmatprep.subr.mxu0 0.0
        %2760 = vmatpush1.msra.mxu0 0.0
        %2761 = vmatprep.subr.mxu0 0.0
        %2762 = vmatpush1.msra.mxu0 0.0
        %2763 = vmatprep.subr.mxu0 0.0
        %2764 = vmatpush1.msra.mxu0 0.0
        %2765 = vmatprep.subr.mxu0 0.0
        %2766 = vmatpush1.msra.mxu0 0.0
        %2767 = vmatprep.subr.mxu0 0.0
        %2768 = vmatpush1.msra.mxu0 0.0
        %2769 = vmatprep.subr.mxu0 0.0
        %2770 = vmatpush1.msra.mxu0 0.0
        %2771 = vmatprep.subr.mxu0 0.0
        %2772 = vmatpush1.msra.mxu0 0.0
        %2773 = vmatprep.subr.mxu0 0.0
        %2774 = vmatpush1.msra.mxu0 0.0
        %2775 = vmatprep.subr.mxu0 0.0
        %2776 = vmatpush1.msra.mxu0 0.0
        %2777 = vmatprep.subr.mxu0 0.0
        %2778 = vmatpush1.msra.mxu0 0.0
        %2779 = vmatprep.subr.mxu0 0.0
        %2780 = vmatpush1.msra.mxu0 0.0
        %2781 = vmatprep.subr.mxu0 0.0
        %2782 = vmatpush1.msra.mxu0 0.0
        %2783 = vmatprep.subr.mxu0 0.0
        %2784 = vmatpush1.msra.mxu0 0.0
        %2785 = vmatprep.subr.mxu0 0.0
        %2786 = vmatpush1.msra.mxu0 0.0
        %2787 = vmatprep.subr.mxu0 0.0
        %2788 = vmatpush1.msra.mxu0 0.0
        %2789 = vmatprep.subr.mxu0 0.0
        %2790 = vmatpush1.msra.mxu0 0.0
        %2791 = vmatprep.subr.mxu0 0.0
        %2792 = vmatpush1.msra.mxu0 0.0
        %2793 = vmatprep.subr.mxu0 0.0
        %2794 = vmatpush1.msra.mxu0 0.0
        %2795 = vmatprep.subr.mxu0 0.0
        %2796 = vmatpush1.msra.mxu0 0.0
        %2797 = vmatprep.subr.mxu0 0.0
        %2798 = vmatpush1.msra.mxu0 0.0
        %2799 = vmatprep.subr.mxu0 0.0
        %2800 = vmatpush1.msra.mxu0 0.0
        %2801 = vmatprep.subr.mxu0 0.0
        %2802 = vmatpush1.msra.mxu0 0.0
        %2803 = vmatprep.mubr.f32.mxu0 0.0
        %2804 = vmatmul.mubr.f32.gmra.mrb[0].mxu0 %v2737
        %v2805 = vpop.f32.mrb[0].mxu0
        %v2806 = vadd.f32 0.0, %v2805
        %v2807 = vpop.f32.mrb[0].mxu0
        %2808 = vdwg.mxu0
        %v2810 = vsel %vm1048, %v2660, 0
        %2812 = vmatprep.subr.mxu0 0.0
        %2813 = vmatpush1.msra.mxu0 %v2051
        %2814 = vmatprep.subr.mxu0 0.0
        %2815 = vmatpush1.msra.mxu0 0.0
        %2816 = vmatprep.subr.mxu0 0.0
        %2817 = vmatpush1.msra.mxu0 0.0
        %2818 = vmatprep.subr.mxu0 0.0
        %2819 = vmatpush1.msra.mxu0 0.0
        %2820 = vmatprep.subr.mxu0 0.0
        %2821 = vmatpush1.msra.mxu0 0.0
        %2822 = vmatprep.subr.mxu0 0.0
        %2823 = vmatpush1.msra.mxu0 0.0
        %2824 = vmatprep.subr.mxu0 0.0
        %2825 = vmatpush1.msra.mxu0 0.0
        %2826 = vmatprep.subr.mxu0 0.0
        %2827 = vmatpush1.msra.mxu0 0.0
        %2828 = vmatprep.subr.mxu0 0.0
        %2829 = vmatpush1.msra.mxu0 0.0
        %2830 = vmatprep.subr.mxu0 0.0
        %2831 = vmatpush1.msra.mxu0 0.0
        %2832 = vmatprep.subr.mxu0 0.0
        %2833 = vmatpush1.msra.mxu0 0.0
        %2834 = vmatprep.subr.mxu0 0.0
        %2835 = vmatpush1.msra.mxu0 0.0
        %2836 = vmatprep.subr.mxu0 0.0
        %2837 = vmatpush1.msra.mxu0 0.0
        %2838 = vmatprep.subr.mxu0 0.0
        %2839 = vmatpush1.msra.mxu0 0.0
        %2840 = vmatprep.subr.mxu0 0.0
        %2841 = vmatpush1.msra.mxu0 0.0
        %2842 = vmatprep.subr.mxu0 0.0
        %2843 = vmatpush1.msra.mxu0 0.0
        %2844 = vmatprep.subr.mxu0 0.0
        %2845 = vmatpush1.msra.mxu0 0.0
        %2846 = vmatprep.subr.mxu0 0.0
        %2847 = vmatpush1.msra.mxu0 0.0
        %2848 = vmatprep.subr.mxu0 0.0
        %2849 = vmatpush1.msra.mxu0 0.0
        %2850 = vmatprep.subr.mxu0 0.0
        %2851 = vmatpush1.msra.mxu0 0.0
        %2852 = vmatprep.subr.mxu0 0.0
        %2853 = vmatpush1.msra.mxu0 0.0
        %2854 = vmatprep.subr.mxu0 0.0
        %2855 = vmatpush1.msra.mxu0 0.0
        %2856 = vmatprep.subr.mxu0 0.0
        %2857 = vmatpush1.msra.mxu0 0.0
        %2858 = vmatprep.subr.mxu0 0.0
        %2859 = vmatpush1.msra.mxu0 0.0
        %2860 = vmatprep.subr.mxu0 0.0
        %2861 = vmatpush1.msra.mxu0 0.0
        %2862 = vmatprep.subr.mxu0 0.0
        %2863 = vmatpush1.msra.mxu0 0.0
        %2864 = vmatprep.subr.mxu0 0.0
        %2865 = vmatpush1.msra.mxu0 0.0
        %2866 = vmatprep.subr.mxu0 0.0
        %2867 = vmatpush1.msra.mxu0 0.0
        %2868 = vmatprep.subr.mxu0 0.0
        %2869 = vmatpush1.msra.mxu0 0.0
        %2870 = vmatprep.subr.mxu0 0.0
        %2871 = vmatpush1.msra.mxu0 0.0
        %2872 = vmatprep.subr.mxu0 0.0
        %2873 = vmatpush1.msra.mxu0 0.0
        %2874 = vmatprep.subr.mxu0 0.0
        %2875 = vmatpush1.msra.mxu0 0.0
        %2876 = vmatprep.mubr.f32.mxu0 0.0
        %2877 = vmatmul.mubr.f32.gmra.mrb[0].mxu0 %v2810
        %v2878 = vpop.f32.mrb[0].mxu0
        %v2879 = vadd.f32 0.0, %v2878
        %v2880 = vpop.f32.mrb[0].mxu0
        %2881 = vdwg.mxu0
        %v2883 = vsel %vm1048, %v2587, 0
        %2885 = vmatprep.subr.mxu0 0.0
        %2886 = vmatpush1.msra.mxu0 %v2050
        %2887 = vmatprep.subr.mxu0 0.0
        %2888 = vmatpush1.msra.mxu0 0.0
        %2889 = vmatprep.subr.mxu0 0.0
        %2890 = vmatpush1.msra.mxu0 0.0
        %2891 = vmatprep.subr.mxu0 0.0
        %2892 = vmatpush1.msra.mxu0 0.0
        %2893 = vmatprep.subr.mxu0 0.0
        %2894 = vmatpush1.msra.mxu0 0.0
        %2895 = vmatprep.subr.mxu0 0.0
        %2896 = vmatpush1.msra.mxu0 0.0
        %2897 = vmatprep.subr.mxu0 0.0
        %2898 = vmatpush1.msra.mxu0 0.0
        %2899 = vmatprep.subr.mxu0 0.0
        %2900 = vmatpush1.msra.mxu0 0.0
        %2901 = vmatprep.subr.mxu0 0.0
        %2902 = vmatpush1.msra.mxu0 0.0
        %2903 = vmatprep.subr.mxu0 0.0
        %2904 = vmatpush1.msra.mxu0 0.0
        %2905 = vmatprep.subr.mxu0 0.0
        %2906 = vmatpush1.msra.mxu0 0.0
        %2907 = vmatprep.subr.mxu0 0.0
        %2908 = vmatpush1.msra.mxu0 0.0
        %2909 = vmatprep.subr.mxu0 0.0
        %2910 = vmatpush1.msra.mxu0 0.0
        %2911 = vmatprep.subr.mxu0 0.0
        %2912 = vmatpush1.msra.mxu0 0.0
        %2913 = vmatprep.subr.mxu0 0.0
        %2914 = vmatpush1.msra.mxu0 0.0
        %2915 = vmatprep.subr.mxu0 0.0
        %2916 = vmatpush1.msra.mxu0 0.0
        %2917 = vmatprep.subr.mxu0 0.0
        %2918 = vmatpush1.msra.mxu0 0.0
        %2919 = vmatprep.subr.mxu0 0.0
        %2920 = vmatpush1.msra.mxu0 0.0
        %2921 = vmatprep.subr.mxu0 0.0
        %2922 = vmatpush1.msra.mxu0 0.0
        %2923 = vmatprep.subr.mxu0 0.0
        %2924 = vmatpush1.msra.mxu0 0.0
        %2925 = vmatprep.subr.mxu0 0.0
        %2926 = vmatpush1.msra.mxu0 0.0
        %2927 = vmatprep.subr.mxu0 0.0
        %2928 = vmatpush1.msra.mxu0 0.0
        %2929 = vmatprep.subr.mxu0 0.0
        %2930 = vmatpush1.msra.mxu0 0.0
        %2931 = vmatprep.subr.mxu0 0.0
        %2932 = vmatpush1.msra.mxu0 0.0
        %2933 = vmatprep.subr.mxu0 0.0
        %2934 = vmatpush1.msra.mxu0 0.0
        %2935 = vmatprep.subr.mxu0 0.0
        %2936 = vmatpush1.msra.mxu0 0.0
        %2937 = vmatprep.subr.mxu0 0.0
        %2938 = vmatpush1.msra.mxu0 0.0
        %2939 = vmatprep.subr.mxu0 0.0
        %2940 = vmatpush1.msra.mxu0 0.0
        %2941 = vmatprep.subr.mxu0 0.0
        %2942 = vmatpush1.msra.mxu0 0.0
        %2943 = vmatprep.subr.mxu0 0.0
        %2944 = vmatpush1.msra.mxu0 0.0
        %2945 = vmatprep.subr.mxu0 0.0
        %2946 = vmatpush1.msra.mxu0 0.0
        %2947 = vmatprep.subr.mxu0 0.0
        %2948 = vmatpush1.msra.mxu0 0.0
        %2949 = vmatprep.mubr.f32.mxu0 0.0
        %2950 = vmatmul.mubr.f32.gmra.mrb[0].mxu0 %v2883
        %v2951 = vpop.f32.mrb[0].mxu0
        %v2952 = vadd.f32 %v2879, %v2951
        %v2953 = vpop.f32.mrb[0].mxu0
        %2954 = vdwg.mxu0
        %v2956 = vsel %vm1048, %v2733, 0
        %2958 = vmatprep.subr.mxu0 0.0
        %2959 = vmatpush1.msra.mxu0 %v2052
        %2960 = vmatprep.subr.mxu0 0.0
        %2961 = vmatpush1.msra.mxu0 0.0
        %2962 = vmatprep.subr.mxu0 0.0
        %2963 = vmatpush1.msra.mxu0 0.0
        %2964 = vmatprep.subr.mxu0 0.0
        %2965 = vmatpush1.msra.mxu0 0.0
        %2966 = vmatprep.subr.mxu0 0.0
        %2967 = vmatpush1.msra.mxu0 0.0
        %2968 = vmatprep.subr.mxu0 0.0
        %2969 = vmatpush1.msra.mxu0 0.0
        %2970 = vmatprep.subr.mxu0 0.0
        %2971 = vmatpush1.msra.mxu0 0.0
        %2972 = vmatprep.subr.mxu0 0.0
        %2973 = vmatpush1.msra.mxu0 0.0
        %2974 = vmatprep.subr.mxu0 0.0
        %2975 = vmatpush1.msra.mxu0 0.0
        %2976 = vmatprep.subr.mxu0 0.0
        %2977 = vmatpush1.msra.mxu0 0.0
        %2978 = vmatprep.subr.mxu0 0.0
        %2979 = vmatpush1.msra.mxu0 0.0
        %2980 = vmatprep.subr.mxu0 0.0
        %2981 = vmatpush1.msra.mxu0 0.0
        %2982 = vmatprep.subr.mxu0 0.0
        %2983 = vmatpush1.msra.mxu0 0.0
        %2984 = vmatprep.subr.mxu0 0.0
        %2985 = vmatpush1.msra.mxu0 0.0
        %2986 = vmatprep.subr.mxu0 0.0
        %2987 = vmatpush1.msra.mxu0 0.0
        %2988 = vmatprep.subr.mxu0 0.0
        %2989 = vmatpush1.msra.mxu0 0.0
        %2990 = vmatprep.subr.mxu0 0.0
        %2991 = vmatpush1.msra.mxu0 0.0
        %2992 = vmatprep.subr.mxu0 0.0
        %2993 = vmatpush1.msra.mxu0 0.0
        %2994 = vmatprep.subr.mxu0 0.0
        %2995 = vmatpush1.msra.mxu0 0.0
        %2996 = vmatprep.subr.mxu0 0.0
        %2997 = vmatpush1.msra.mxu0 0.0
        %2998 = vmatprep.subr.mxu0 0.0
        %2999 = vmatpush1.msra.mxu0 0.0
        %3000 = vmatprep.subr.mxu0 0.0
        %3001 = vmatpush1.msra.mxu0 0.0
        %3002 = vmatprep.subr.mxu0 0.0
        %3003 = vmatpush1.msra.mxu0 0.0
        %3004 = vmatprep.subr.mxu0 0.0
        %3005 = vmatpush1.msra.mxu0 0.0
        %3006 = vmatprep.subr.mxu0 0.0
        %3007 = vmatpush1.msra.mxu0 0.0
        %3008 = vmatprep.subr.mxu0 0.0
        %3009 = vmatpush1.msra.mxu0 0.0
        %3010 = vmatprep.subr.mxu0 0.0
        %3011 = vmatpush1.msra.mxu0 0.0
        %3012 = vmatprep.subr.mxu0 0.0
        %3013 = vmatpush1.msra.mxu0 0.0
        %3014 = vmatprep.subr.mxu0 0.0
        %3015 = vmatpush1.msra.mxu0 0.0
        %3016 = vmatprep.subr.mxu0 0.0
        %3017 = vmatpush1.msra.mxu0 0.0
        %3018 = vmatprep.subr.mxu0 0.0
        %3019 = vmatpush1.msra.mxu0 0.0
        %3020 = vmatprep.subr.mxu0 0.0
        %3021 = vmatpush1.msra.mxu0 0.0
        %3022 = vmatprep.mubr.f32.mxu0 0.0
        %3023 = vmatmul.mubr.f32.gmra.mrb[0].mxu0 %v2956
        %v3024 = vpop.f32.mrb[0].mxu0
        %v3025 = vadd.f32 0.0, %v3024
        %v3026 = vpop.f32.mrb[0].mxu0
        %3027 = vdwg.mxu0
        %v3028 = vadd.f32 %v2952, %v3025
        %v3030 = vsel %vm1048, %v2806, 0
        %3032 = vmatprep.subr.mxu0 0.0
        %3033 = vmatpush1.msra.mxu0 %v2053
        %3034 = vmatprep.subr.mxu0 0.0
        %3035 = vmatpush1.msra.mxu0 0.0
        %3036 = vmatprep.subr.mxu0 0.0
        %3037 = vmatpush1.msra.mxu0 0.0
        %3038 = vmatprep.subr.mxu0 0.0
        %3039 = vmatpush1.msra.mxu0 0.0
        %3040 = vmatprep.subr.mxu0 0.0
        %3041 = vmatpush1.msra.mxu0 0.0
        %3042 = vmatprep.subr.mxu0 0.0
        %3043 = vmatpush1.msra.mxu0 0.0
        %3044 = vmatprep.subr.mxu0 0.0
        %3045 = vmatpush1.msra.mxu0 0.0
        %3046 = vmatprep.subr.mxu0 0.0
        %3047 = vmatpush1.msra.mxu0 0.0
        %3048 = vmatprep.subr.mxu0 0.0
        %3049 = vmatpush1.msra.mxu0 0.0
        %3050 = vmatprep.subr.mxu0 0.0
        %3051 = vmatpush1.msra.mxu0 0.0
        %3052 = vmatprep.subr.mxu0 0.0
        %3053 = vmatpush1.msra.mxu0 0.0
        %3054 = vmatprep.subr.mxu0 0.0
        %3055 = vmatpush1.msra.mxu0 0.0
        %3056 = vmatprep.subr.mxu0 0.0
        %3057 = vmatpush1.msra.mxu0 0.0
        %3058 = vmatprep.subr.mxu0 0.0
        %3059 = vmatpush1.msra.mxu0 0.0
        %3060 = vmatprep.subr.mxu0 0.0
        %3061 = vmatpush1.msra.mxu0 0.0
        %3062 = vmatprep.subr.mxu0 0.0
        %3063 = vmatpush1.msra.mxu0 0.0
        %3064 = vmatprep.subr.mxu0 0.0
        %3065 = vmatpush1.msra.mxu0 0.0
        %3066 = vmatprep.subr.mxu0 0.0
        %3067 = vmatpush1.msra.mxu0 0.0
        %3068 = vmatprep.subr.mxu0 0.0
        %3069 = vmatpush1.msra.mxu0 0.0
        %3070 = vmatprep.subr.mxu0 0.0
        %3071 = vmatpush1.msra.mxu0 0.0
        %3072 = vmatprep.subr.mxu0 0.0
        %3073 = vmatpush1.msra.mxu0 0.0
        %3074 = vmatprep.subr.mxu0 0.0
        %3075 = vmatpush1.msra.mxu0 0.0
        %3076 = vmatprep.subr.mxu0 0.0
        %3077 = vmatpush1.msra.mxu0 0.0
        %3078 = vmatprep.subr.mxu0 0.0
        %3079 = vmatpush1.msra.mxu0 0.0
        %3080 = vmatprep.subr.mxu0 0.0
        %3081 = vmatpush1.msra.mxu0 0.0
        %3082 = vmatprep.subr.mxu0 0.0
        %3083 = vmatpush1.msra.mxu0 0.0
        %3084 = vmatprep.subr.mxu0 0.0
        %3085 = vmatpush1.msra.mxu0 0.0
        %3086 = vmatprep.subr.mxu0 0.0
        %3087 = vmatpush1.msra.mxu0 0.0
        %3088 = vmatprep.subr.mxu0 0.0
        %3089 = vmatpush1.msra.mxu0 0.0
        %3090 = vmatprep.subr.mxu0 0.0
        %3091 = vmatpush1.msra.mxu0 0.0
        %3092 = vmatprep.subr.mxu0 0.0
        %3093 = vmatpush1.msra.mxu0 0.0
        %3094 = vmatprep.subr.mxu0 0.0
        %3095 = vmatpush1.msra.mxu0 0.0
        %3096 = vmatprep.mubr.f32.mxu0 0.0
        %3097 = vmatmul.mubr.f32.gmra.mrb[0].mxu0 %v3030
        %v3098 = vpop.f32.mrb[0].mxu0
        %v3099 = vadd.f32 0.0, %v3098
        %v3100 = vpop.f32.mrb[0].mxu0
        %3101 = vdwg.mxu0
        %v3102 = vadd.f32 %v3028, %v3099
        %v3104 = vlaneseq
        %v3105 = vshrl.u32 %v3104, 7
        %v3106 = vsub.s32 0, %v3105
        %v3107 = vrot.slane %v2054, %v3106
        %v3109 = vadd.f32 %v3102, %v3107
        %v3110 = vadd.f32 %v3109, %v2028
        %v3111 = vld [vmem:[%s17] sm:$0x1]
        %v3112 = vld [vmem:[%s18] sm:$0x1]
        %v3113 = vsel %vm960, %v3110, 0.0
        %3114 = vadd.xlane.f32.xlu0 %v3113
        %v3115 = vpop.xlane.xlu0 %3114
        %v3116 = vmul.f32 %v3115, %v2004
        %v3117 = vsub.f32 %v3110, %v3116
        %v3118 = vmul.f32 %v3117, %v3117
        %v3119 = vsel %vm960, %v3118, 0.0
        %3120 = vadd.xlane.f32.xlu0 %v3119
        %v3121 = vpop.xlane.xlu0 %3120
        %v3122 = vmul.f32 %v3121, %v2004
        %v3123 = vadd.f32 %v3122, 1e-05
        %v3124 = vrsqrt.pop %v3123
        %v3125 = vmul.f32 %v3117, %v3124
        %v3127 = vlaneseq
        %v3128 = vshrl.u32 %v3127, 7
        %v3129 = vsub.s32 0, %v3128
        %v3130 = vrot.slane %v3111, %v3129
        %v3132 = vmul.f32 %v3125, %v3130
        %v3134 = vlaneseq
        %v3135 = vshrl.u32 %v3134, 7
        %v3136 = vsub.s32 0, %v3135
        %v3137 = vrot.slane %v3112, %v3136
        %v3139 = vadd.f32 %v3132, %v3137
        %v3140 = vld [vmem:[%s19] sm:$0xff]
        %v3141 = vld [vmem:[%s19 + $0x8] sm:$0xff]
        %v3142 = vld [vmem:[%s19 + $0x10] sm:$0xff]
        %v3143 = vld [vmem:[%s19 + $0x18] sm:$0xff]
        %v3144 = vld [vmem:[%s20] sm:$0x1]
        %v3146 = vlaneseq
        %v3147 = vshrl.u32 %v3146, 7
        %v3148 = vsub.s32 0, %v3147
        %v3149 = vrot.slane %v3144, %v3148
        %v3152 = vsel %vm960, %v3139, 0
        %3154 = vmatprep.subr.mxu0 0.0
        %3155 = vmatpush1.msra.mxu0 %v3140
        %3156 = vmatprep.subr.mxu0 0.0
        %3157 = vmatpush1.msra.mxu0 %v3141
        %3158 = vmatprep.subr.mxu0 0.0
        %3159 = vmatpush1.msra.mxu0 %v3142
        %3160 = vmatprep.subr.mxu0 0.0
        %3161 = vmatpush1.msra.mxu0 %v3143
        %3162 = vmatprep.subr.mxu0 0.0
        %3163 = vmatpush1.msra.mxu0 0.0
        %3164 = vmatprep.subr.mxu0 0.0
        %3165 = vmatpush1.msra.mxu0 0.0
        %3166 = vmatprep.subr.mxu0 0.0
        %3167 = vmatpush1.msra.mxu0 0.0
        %3168 = vmatprep.subr.mxu0 0.0
        %3169 = vmatpush1.msra.mxu0 0.0
        %3170 = vmatprep.subr.mxu0 0.0
        %3171 = vmatpush1.msra.mxu0 0.0
        %3172 = vmatprep.subr.mxu0 0.0
        %3173 = vmatpush1.msra.mxu0 0.0
        %3174 = vmatprep.subr.mxu0 0.0
        %3175 = vmatpush1.msra.mxu0 0.0
        %3176 = vmatprep.subr.mxu0 0.0
        %3177 = vmatpush1.msra.mxu0 0.0
        %3178 = vmatprep.subr.mxu0 0.0
        %3179 = vmatpush1.msra.mxu0 0.0
        %3180 = vmatprep.subr.mxu0 0.0
        %3181 = vmatpush1.msra.mxu0 0.0
        %3182 = vmatprep.subr.mxu0 0.0
        %3183 = vmatpush1.msra.mxu0 0.0
        %3184 = vmatprep.subr.mxu0 0.0
        %3185 = vmatpush1.msra.mxu0 0.0
        %3186 = vmatprep.subr.mxu0 0.0
        %3187 = vmatpush1.msra.mxu0 0.0
        %3188 = vmatprep.subr.mxu0 0.0
        %3189 = vmatpush1.msra.mxu0 0.0
        %3190 = vmatprep.subr.mxu0 0.0
        %3191 = vmatpush1.msra.mxu0 0.0
        %3192 = vmatprep.subr.mxu0 0.0
        %3193 = vmatpush1.msra.mxu0 0.0
        %3194 = vmatprep.subr.mxu0 0.0
        %3195 = vmatpush1.msra.mxu0 0.0
        %3196 = vmatprep.subr.mxu0 0.0
        %3197 = vmatpush1.msra.mxu0 0.0
        %3198 = vmatprep.subr.mxu0 0.0
        %3199 = vmatpush1.msra.mxu0 0.0
        %3200 = vmatprep.subr.mxu0 0.0
        %3201 = vmatpush1.msra.mxu0 0.0
        %3202 = vmatprep.subr.mxu0 0.0
        %3203 = vmatpush1.msra.mxu0 0.0
        %3204 = vmatprep.subr.mxu0 0.0
        %3205 = vmatpush1.msra.mxu0 0.0
        %3206 = vmatprep.subr.mxu0 0.0
        %3207 = vmatpush1.msra.mxu0 0.0
        %3208 = vmatprep.subr.mxu0 0.0
        %3209 = vmatpush1.msra.mxu0 0.0
        %3210 = vmatprep.subr.mxu0 0.0
        %3211 = vmatpush1.msra.mxu0 0.0
        %3212 = vmatprep.subr.mxu0 0.0
        %3213 = vmatpush1.msra.mxu0 0.0
        %3214 = vmatprep.subr.mxu0 0.0
        %3215 = vmatpush1.msra.mxu0 0.0
        %3216 = vmatprep.subr.mxu0 0.0
        %3217 = vmatpush1.msra.mxu0 0.0
        %3218 = vmatprep.mubr.f32.mxu0 0.0
        %3219 = vmatmul.mubr.f32.gmra.mrb[0].mxu0 %v3152
        %v3220 = vpop.f32.mrb[0].mxu0
        %v3221 = vadd.f32 %v3149, %v3220
        %v3222 = vpop.f32.mrb[0].mxu0
        %3223 = vdwg.mxu0
        %v3224 = vmax.f32 %v3221, 0.0
        %v3225 = vld [vmem:[%s21] sm:$0xff]
        %v3226 = vld [vmem:[%s21 + $0x8] sm:$0xff]
        %v3227 = vld [vmem:[%s21 + $0x10] sm:$0xff]
        %v3228 = vld [vmem:[%s21 + $0x18] sm:$0xff]
        %v3229 = vld [vmem:[%s21 + $0x20] sm:$0xff]
        %v3230 = vld [vmem:[%s21 + $0x28] sm:$0xff]
        %v3231 = vld [vmem:[%s21 + $0x30] sm:$0xff]
        %v3232 = vld [vmem:[%s21 + $0x38] sm:$0xff]
        %v3233 = vld [vmem:[%s22] sm:$0x1]
        %v3235 = vlaneseq
        %v3236 = vshrl.u32 %v3235, 7
        %v3237 = vsub.s32 0, %v3236
        %v3238 = vrot.slane %v3233, %v3237
        %vm3240 = vcmask 523264
        %v3242 = vsel %vm3240, %v3224, 0
        %3244 = vmatprep.subr.mxu0 0.0
        %3245 = vmatpush1.msra.mxu0 %v3225
        %3246 = vmatprep.subr.mxu0 0.0
        %3247 = vmatpush1.msra.mxu0 %v3226
        %3248 = vmatprep.subr.mxu0 0.0
        %3249 = vmatpush1.msra.mxu0 %v3227
        %3250 = vmatprep.subr.mxu0 0.0
        %3251 = vmatpush1.msra.mxu0 %v3228
        %3252 = vmatprep.subr.mxu0 0.0
        %3253 = vmatpush1.msra.mxu0 %v3229
        %3254 = vmatprep.subr.mxu0 0.0
        %3255 = vmatpush1.msra.mxu0 %v3230
        %3256 = vmatprep.subr.mxu0 0.0
        %3257 = vmatpush1.msra.mxu0 %v3231
        %3258 = vmatprep.subr.mxu0 0.0
        %3259 = vmatpush1.msra.mxu0 %v3232
        %3260 = vmatprep.subr.mxu0 0.0
        %3261 = vmatpush1.msra.mxu0 0.0
        %3262 = vmatprep.subr.mxu0 0.0
        %3263 = vmatpush1.msra.mxu0 0.0
        %3264 = vmatprep.subr.mxu0 0.0
        %3265 = vmatpush1.msra.mxu0 0.0
        %3266 = vmatprep.subr.mxu0 0.0
        %3267 = vmatpush1.msra.mxu0 0.0
        %3268 = vmatprep.subr.mxu0 0.0
        %3269 = vmatpush1.msra.mxu0 0.0
        %3270 = vmatprep.subr.mxu0 0.0
        %3271 = vmatpush1.msra.mxu0 0.0
        %3272 = vmatprep.subr.mxu0 0.0
        %3273 = vmatpush1.msra.mxu0 0.0
        %3274 = vmatprep.subr.mxu0 0.0
        %3275 = vmatpush1.msra.mxu0 0.0
        %3276 = vmatprep.subr.mxu0 0.0
        %3277 = vmatpush1.msra.mxu0 0.0
        %3278 = vmatprep.subr.mxu0 0.0
        %3279 = vmatpush1.msra.mxu0 0.0
        %3280 = vmatprep.subr.mxu0 0.0
        %3281 = vmatpush1.msra.mxu0 0.0
        %3282 = vmatprep.subr.mxu0 0.0
        %3283 = vmatpush1.msra.mxu0 0.0
        %3284 = vmatprep.subr.mxu0 0.0
        %3285 = vmatpush1.msra.mxu0 0.0
        %3286 = vmatprep.subr.mxu0 0.0
        %3287 = vmatpush1.msra.mxu0 0.0
        %3288 = vmatprep.subr.mxu0 0.0
        %3289 = vmatpush1.msra.mxu0 0.0
        %3290 = vmatprep.subr.mxu0 0.0
        %3291 = vmatpush1.msra.mxu0 0.0
        %3292 = vmatprep.subr.mxu0 0.0
        %3293 = vmatpush1.msra.mxu0 0.0
        %3294 = vmatprep.subr.mxu0 0.0
        %3295 = vmatpush1.msra.mxu0 0.0
        %3296 = vmatprep.subr.mxu0 0.0
        %3297 = vmatpush1.msra.mxu0 0.0
        %3298 = vmatprep.subr.mxu0 0.0
        %3299 = vmatpush1.msra.mxu0 0.0
        %3300 = vmatprep.subr.mxu0 0.0
        %3301 = vmatpush1.msra.mxu0 0.0
        %3302 = vmatprep.subr.mxu0 0.0
        %3303 = vmatpush1.msra.mxu0 0.0
        %3304 = vmatprep.subr.mxu0 0.0
        %3305 = vmatpush1.msra.mxu0 0.0
        %3306 = vmatprep.subr.mxu0 0.0
        %3307 = vmatpush1.msra.mxu0 0.0
        %3308 = vmatprep.mubr.f32.mxu0 0.0
        %3309 = vmatmul.mubr.f32.gmra.mrb[0].mxu0 %v3242
        %v3310 = vpop.f32.mrb[0].mxu0
        %v3311 = vadd.f32 %v3238, %v3310
        %v3312 = vpop.f32.mrb[0].mxu0
        %3313 = vdwg.mxu0
        %v3314 = vadd.f32 %v3311, %v3139
        %v3315 = vld [vmem:[%s23] sm:$0x1]
        %v3316 = vld [vmem:[%s24] sm:$0x1]
        %v3317 = vsel %vm960, %v3314, 0.0
        %3318 = vadd.xlane.f32.xlu0 %v3317
        %v3319 = vpop.xlane.xlu0 %3318
        %v3320 = vmul.f32 %v3319, %v2004
        %v3321 = vsub.f32 %v3314, %v3320
        %v3322 = vmul.f32 %v3321, %v3321
        %v3323 = vsel %vm960, %v3322, 0.0
        %3324 = vadd.xlane.f32.xlu0 %v3323
        %v3325 = vpop.xlane.xlu0 %3324
        %v3326 = vmul.f32 %v3325, %v2004
        %v3327 = vadd.f32 %v3326, 1e-05
        %v3328 = vrsqrt.pop %v3327
        %v3329 = vmul.f32 %v3321, %v3328
        %v3331 = vlaneseq
        %v3332 = vshrl.u32 %v3331, 7
        %v3333 = vsub.s32 0, %v3332
        %v3334 = vrot.slane %v3315, %v3333
        %v3336 = vmul.f32 %v3329, %v3334
        %v3338 = vlaneseq
        %v3339 = vshrl.u32 %v3338, 7
        %v3340 = vsub.s32 0, %v3339
        %v3341 = vrot.slane %v3316, %v3340
        %v3343 = vadd.f32 %v3336, %v3341
        %3344 = vst.msk [vmem:[%s892] sm:$0xff] %vm960, %v3343
        %3345 = vst.msk [vmem:[%s899] sm:$0xff] %vm2460, %v2513
        %3346 = vst.msk [vmem:[%s899 + $0x8] sm:$0xff] %vm2460, %v2514
        %3347 = vst.msk [vmem:[%s899 + $0x10] sm:$0xff] %vm2460, %v2515
        %3348 = vst.msk [vmem:[%s899 + $0x18] sm:$0xff] %vm2460, %v2516
        %s3349 = sand.u32 %s628, 1
        %s3350 = scalar_lea.sflag [#allocation3], %s3349
        %s3351 = sand.u32 %s628, 1
        %s3352 = smul.addr %s3351, 8
        %s3353 = scalar_lea.vmem [#allocation2], %s3352
        %s3354 = sand.u32 %s656, 1
        %s3355 = scalar_lea.sflag [#allocation5], %s3354
        %s3356 = sand.u32 %s656, 1
        %s3357 = smul.addr %s3356, 32
        %s3358 = scalar_lea.vmem [#allocation4], %s3357
        // Predicated region
        $region121: #{tpu_custom_call.1} parent=119 // pred_check
          %p3359 = pneg %p638
        $region122: #{tpu_custom_call.1} parent=119 // pred_check_branch
          %3361 = sbr.rel (%p3359) target = $region124
        $region123: #{tpu_custom_call.1} parent=119 // pred_region
          %s3363 = ssub.s32 128, 128
          %3364 = vsyncadd %s3350, %s3363
          %s3365 = sadd.s32 %s49, %s48
          %s3366 = smul.addr %s3365, 128
          %s3367 = scalar_lea.hbm %s25, %s3366
          %s3369 = sshll.u32 %s3353, 4
          %s3370 = int_to_ptr.vmem [resolvable:$true] %s3369
          %3372 = dma.vmem_to_hbm [thread:$0]  %s3370, 128, %s3367, %s3350
        $region124: #{tpu_custom_call.1} parent=119 // pred_fallthru
          _
        // Predicated region
        $region125: #{tpu_custom_call.1} parent=119 // pred_check
          %p3373 = pneg %p666
        $region126: #{tpu_custom_call.1} parent=119 // pred_check_branch
          %3375 = sbr.rel (%p3373) target = $region128
        $region127: #{tpu_custom_call.1} parent=119 // pred_region
          %s3377 = ssub.s32 512, 512
          %3378 = vsyncadd %s3355, %s3377
          %s3379 = smul.addr %s48, 4
          %s3380 = sadd.s32 %s49, %s3379
          %s3381 = smul.addr %s3380, 128
          %s3382 = scalar_lea.hbm %s26, %s3381
          %s3383 = sshll.u32 %s3358, 4
          %s3384 = int_to_ptr.vmem [resolvable:$true] %s3383
          %3389 = dma.vmem_to_hbm [thread:$0]  %s3384, 512, %s3382, %s3355, 128, 128, 8
        $region128: #{tpu_custom_call.1} parent=119 // pred_fallthru
          _
      $region120: #{tpu_custom_call.1} parent=5 // pred_fallthru
        _
      %p3390 = scmp.le.s32.totalorder 2, %s39
      // Predicated region
      $region129: #{tpu_custom_call.1} parent=5 // pred_check
        %p3391 = pneg %p3390
      $region130: #{tpu_custom_call.1} parent=5 // pred_check_branch
        %3393 = sbr.rel (%p3391) target = $region132
      $region131: #{tpu_custom_call.1} parent=5 // pred_region
        %s3394 = ssub.s32 %s39, 2
        // Predicated region
        $region133: #{tpu_custom_call.1} parent=131 // pred_check
          %p3395 = pneg %p644
        $region134: #{tpu_custom_call.1} parent=131 // pred_check_branch
          %3397 = sbr.rel (%p3395) target = $region136
        $region135: #{tpu_custom_call.1} parent=131 // pred_region
          %s3398 = sand.u32 %s629, 1
          %s3399 = scalar_lea.sflag [#allocation3], %s3398
          %s3400 = sand.u32 %s629, 1
          %s3401 = smul.addr %s3400, 8
          %s3402 = scalar_lea.vmem [#allocation2], %s3401
          %3403 = dma.done %s3399, 128
        $region136: #{tpu_custom_call.1} parent=131 // pred_fallthru
          _
        // Predicated region
        $region137: #{tpu_custom_call.1} parent=131 // pred_check
          %p3404 = pneg %p672
        $region138: #{tpu_custom_call.1} parent=131 // pred_check_branch
          %3406 = sbr.rel (%p3404) target = $region140
        $region139: #{tpu_custom_call.1} parent=131 // pred_region
          %s3407 = sand.u32 %s657, 1
          %s3408 = scalar_lea.sflag [#allocation5], %s3407
          %s3409 = sand.u32 %s657, 1
          %s3410 = smul.addr %s3409, 32
          %s3411 = scalar_lea.vmem [#allocation4], %s3410
          %3412 = dma.done %s3408, 512
        $region140: #{tpu_custom_call.1} parent=131 // pred_fallthru
          _
      $region132: #{tpu_custom_call.1} parent=5 // pred_fallthru
        _
    $region6: #{tpu_custom_call.1} parent=1 // loop_footer
      %s43 = sadd.s32 1, %s39
    $region7: #{tpu_custom_call.1} parent=1 // loop_footer_branch
      %38 = sbr.rel target = $region3
    $region8: #{tpu_custom_call.1} parent=1 // loop_exit
      _
    %3413 = vsyncpa [#allocation3], 1
    %s3414 = scalar_lea.sflag [#allocation3], 1
    %3415 = vsyncpa %s3414, 1
    %3416 = vsyncpa [#allocation5], 1
    %s3417 = scalar_lea.sflag [#allocation5], 1
    %3418 = vsyncpa %s3417, 1

</llo_original>
